<compile_context>
chip_gen: v6e
topology: v6e:2x2x1
jax: 0.10.0
libtpu: 0.0.40
codegen_flags: <defaults>
</compile_context>

<pallas_src>
import functools

import jax
import jax.numpy as jnp
from jax.experimental import pallas as pl
from jax.experimental.pallas import tpu as pltpu

_MIB = 1024 * 1024


def _round_up(x, m):
    return (x + m - 1) // m * m


# --------------------------------------------------------------------------
# Generation-aware VMEM budget
# --------------------------------------------------------------------------
def _vmem_capacity_bytes():
    try:
        info = pltpu.get_tpu_info()
        cap = getattr(info, "vmem_capacity_bytes", None)
        if cap:
            return int(cap)
    except Exception:
        pass
    try:
        kind = jax.devices()[0].device_kind.lower()
        if "v7" in kind:
            return 64 * _MIB
    except Exception:
        pass
    return 128 * _MIB


_VMEM_PHYS = _vmem_capacity_bytes()
# Leave headroom for Mosaic internal scratch; never request the full physical
# capacity (v7x has only 64 MiB per TensorCore).
_VMEM_LIMIT = max(32 * _MIB, min(_VMEM_PHYS - 16 * _MIB, 100 * _MIB))
_WORKSET_BUDGET = _VMEM_LIMIT - 8 * _MIB


def _pick_col_tile(total, cap=512):
    """Largest 128-multiple column tile <= cap that divides `total`."""
    if total <= cap:
        return total
    for cand in range(cap, 127, -128):
        if total % cand == 0:
            return cand
    return 128


# --------------------------------------------------------------------------
# Pallas GEMM kernel: bf16 A/B, f32 accumulation, fused bias / act / BN stats
# --------------------------------------------------------------------------
def _gemm_kernel(*refs, act, has_bias, want_stats):
    if has_bias:
        a_ref, b_ref, bias_ref = refs[0], refs[1], refs[2]
        rest = refs[3:]
    else:
        a_ref, b_ref = refs[0], refs[1]
        bias_ref = None
        rest = refs[2:]
    if want_stats:
        o_ref, sum_ref, sq_ref, acc_ref = rest
    else:
        o_ref, acc_ref = rest
        sum_ref = sq_ref = None

    k = pl.program_id(2)

    @pl.when(k == 0)
    def _():
        acc_ref[...] = jnp.zeros_like(acc_ref)

    acc_ref[...] += jnp.dot(a_ref[...], b_ref[...],
                            preferred_element_type=jnp.float32)

    @pl.when(k == pl.num_programs(2) - 1)
    def _():
        acc = acc_ref[...]
        y = (acc + bias_ref[...]) if has_bias else acc
        if act == "relu":
            y = jnp.maximum(y, 0.0)
        elif act == "tanh":
            y = jnp.tanh(y)
        o_ref[...] = y.astype(o_ref.dtype)
        if want_stats:
            # exact f32 per-column statistics of the (pre-activation) conv
            # output for this M tile; cross-tile reduction happens outside.
            sum_ref[...] = jnp.sum(acc, axis=0).reshape(sum_ref.shape)
            sq_ref[...] = jnp.sum(acc * acc, axis=0).reshape(sq_ref.shape)


def matmul_gemm(a, b_padded, bias_padded=None, *, act="none",
                out_dtype=jnp.bfloat16, want_stats=False):
    """(M, K) @ (Kp, Np) (+bias, +act) -> (M, Np) in `out_dtype`.

    `b_padded` is a GEMM-ready weight (bf16, K padded per `_k_pad`, N padded to
    a multiple of 128).  With `want_stats`, also returns per-M-tile column sums
    and sums of squares of the f32 accumulator (for fused BatchNorm stats)."""
    assert not (want_stats and bias_padded is not None)
    M, K = a.shape
    Kp, Np = b_padded.shape
    tk = Kp if Kp <= 512 else 512
    tn = _pick_col_tile(Np, 512)
    has_bias = bias_padded is not None
    out_bytes = jnp.dtype(out_dtype).itemsize

    def vmem_est(tm_):
        v = (2 * tm_ * tk * 2           # A tiles (bf16, double buffered)
             + 2 * tk * tn * 2          # B tiles (bf16)
             + 2 * tm_ * tn * out_bytes # output tiles
             + tm_ * tn * 4)            # f32 accumulator scratch
        if has_bias:
            v += 2 * tn * 4
        if want_stats:
            v += 4 * 2 * tn * 4
        return v

    tm = min(1024, _round_up(M, 8))
    while tm > 128 and vmem_est(tm) > _WORKSET_BUDGET:
        tm = _round_up(max(tm // 2, 128), 8)
    Mp = _round_up(M, tm)

    a = a.astype(jnp.bfloat16)
    if Mp != M or Kp != K:
        a = jnp.pad(a, ((0, Mp - M), (0, Kp - K)))

    grid = (Mp // tm, Np // tn, Kp // tk)
    n_m_tiles = grid[0]

    in_specs = [
        pl.BlockSpec((tm, tk), lambda i, j, k: (i, k)),
        pl.BlockSpec((tk, tn), lambda i, j, k: (k, j)),
    ]
    args = [a, b_padded]
    if has_bias:
        in_specs.append(pl.BlockSpec((1, tn), lambda i, j, k: (0, j)))
        args.append(bias_padded)

    out_shapes = (jax.ShapeDtypeStruct((Mp, Np), out_dtype),)
    out_specs = (pl.BlockSpec((tm, tn), lambda i, j, k: (i, j)),)
    if want_stats:
        stat_shape = jax.ShapeDtypeStruct((n_m_tiles, 1, Np), jnp.float32)
        stat_spec = pl.BlockSpec((1, 1, tn), lambda i, j, k: (i, 0, j))
        out_shapes = out_shapes + (stat_shape, stat_shape)
        out_specs = out_specs + (stat_spec, stat_spec)

    kern = functools.partial(_gemm_kernel, act=act,
                             has_bias=has_bias, want_stats=want_stats)

    res = pl.pallas_call(
        kern,
        out_shape=out_shapes if len(out_shapes) > 1 else out_shapes[0],
        grid_spec=pltpu.PrefetchScalarGridSpec(
            num_scalar_prefetch=0,
            grid=grid,
            in_specs=in_specs,
            out_specs=out_specs if len(out_specs) > 1 else out_specs[0],
            scratch_shapes=[pltpu.VMEM((tm, tn), jnp.float32)],
        ),
        compiler_params=pltpu.CompilerParams(
            dimension_semantics=("parallel", "parallel", "arbitrary"),
            vmem_limit_bytes=_VMEM_LIMIT,
        ),
    )(*args)

    if want_stats:
        out, ssum, ssq = res
        return out[:M], (ssum, ssq)
    return res[:M]


# --------------------------------------------------------------------------
# Pallas BatchNorm-apply kernel: y = act(x * scale + shift), bf16 output
# --------------------------------------------------------------------------
def _bn_act_kernel(x_ref, s_ref, t_ref, o_ref, *, slope):
    y = x_ref[...].astype(jnp.float32) * s_ref[...] + t_ref[...]
    if slope is not None:                      # slope=0.0 -> fused ReLU
        y = jnp.maximum(y, slope * y)
    o_ref[...] = y.astype(o_ref.dtype)


def bn_apply(x, scale, shift, *, slope=None, out_dtype=jnp.bfloat16):
    """x: (N,H,W,C); scale/shift: (C,).  Lane-dense (N*H, W*C) tiling with the
    per-channel params tiled W times along the lane axis."""
    N, H, W, C = x.shape
    L = W * C
    scale_row = jnp.tile(scale, W).reshape(1, L).astype(jnp.float32)
    shift_row = jnp.tile(shift, W).reshape(1, L).astype(jnp.float32)
    x2d = x.reshape(N * H, L)
    R = N * H
    in_bytes = jnp.dtype(x.dtype).itemsize
    # ~6 MiB input blocks keep this mem-bound kernel at the HBM roofline while
    # the double-buffered working set stays tiny on every generation.
    tr = max(8, min(4096, ((6 * _MIB) // max(L * in_bytes, 1)) // 8 * 8))
    if R <= tr:
        tr = _round_up(R, 8)
    Rp = _round_up(R, tr)
    if Rp != R:
        x2d = jnp.pad(x2d, ((0, Rp - R), (0, 0)))
    out = pl.pallas_call(
        functools.partial(_bn_act_kernel, slope=slope),
        out_shape=jax.ShapeDtypeStruct((Rp, L), out_dtype),
        grid_spec=pltpu.PrefetchScalarGridSpec(
            num_scalar_prefetch=0,
            grid=(Rp // tr,),
            in_specs=[
                pl.BlockSpec((tr, L), lambda i: (i, 0)),
                pl.BlockSpec((1, L), lambda i: (0, 0)),
                pl.BlockSpec((1, L), lambda i: (0, 0)),
            ],
            out_specs=pl.BlockSpec((tr, L), lambda i: (i, 0)),
        ),
        compiler_params=pltpu.CompilerParams(
            dimension_semantics=("parallel",),
            vmem_limit_bytes=_VMEM_LIMIT,
        ),
    )(x2d, scale_row, shift_row)
    return out[:R].reshape(N, H, W, C)


def _bn_scale_shift(mean, var, gamma, beta, eps=1e-5):
    scale = gamma * jax.lax.rsqrt(var + eps)
    shift = beta - mean * scale
    return scale, shift


def batchnorm_from_gemm_stats(y, stats, count, gamma, beta, *, slope=None,
                              eps=1e-5):
    """BatchNorm2d using exact f32 statistics fused into the GEMM epilogue.
    Zero-padded GEMM rows/columns contribute exactly zero to the sums."""
    ssum, ssq = stats
    C = y.shape[-1]
    s = jnp.sum(ssum, axis=(0, 1))[:C]
    ss = jnp.sum(ssq, axis=(0, 1))[:C]
    inv = 1.0 / float(count)
    mean = s * inv
    var = jnp.maximum(ss * inv - mean * mean, 0.0)     # biased variance
    scale, shift = _bn_scale_shift(mean, var, gamma, beta, eps)
    return bn_apply(y, scale, shift, slope=slope)


def batchnorm2d(y, gamma, beta, *, slope=None, eps=1e-5):
    """Training-mode BatchNorm2d with batch statistics computed in f32 from the
    (bf16-stored) activation in a single fused XLA reduction pass."""
    # TODO(synk): fuse these stats into the conv-transpose GEMM epilogue too
    # (needs per-phase validity masking of the (H+1)x(W+1) sub-pixel grid).
    N, H, W, C = y.shape
    xf = y.reshape(-1, C).astype(jnp.float32)
    m1 = jnp.mean(xf, axis=0)
    m2 = jnp.mean(xf * xf, axis=0)
    var = jnp.maximum(m2 - m1 * m1, 0.0)               # biased variance
    scale, shift = _bn_scale_shift(m1, var, gamma, beta, eps)
    return bn_apply(y, scale, shift, slope=slope)


# --------------------------------------------------------------------------
# Conv2d(k=4, s=2, p=1) and ConvTranspose2d(k=4, s=2, p=1) via Pallas GEMMs
# --------------------------------------------------------------------------
def conv2d_k4s2p1(x, wmat, bias_row, oc, *, act="none",
                  out_dtype=jnp.bfloat16, want_stats=False):
    """x: (N, H, W, C); wmat: prepared (16*C pad, OC pad) bf16."""
    N, H, W, C = x.shape
    OH, OW = H // 2, W // 2
    xp = jnp.pad(x.astype(jnp.bfloat16), ((0, 0), (1, 1), (1, 1), (0, 0)))
    cols = []
    for kh in range(4):
        for kw in range(4):
            cols.append(xp[:, kh:kh + 2 * OH - 1:2, kw:kw + 2 * OW - 1:2, :])
    # TODO(synk): fold this im2col into the GEMM A-side (stride-phase planes +
    # shifted BlockSpec windows) so the 16x bf16 patch matrix is never
    # materialized in HBM -- it is the remaining dominant HBM term.
    patches = jnp.concatenate(cols, axis=-1).reshape(N * OH * OW, 16 * C)
    res = matmul_gemm(patches, wmat, bias_row, act=act,
                      out_dtype=out_dtype, want_stats=want_stats)
    if want_stats:
        out, stats = res
        return out[:, :oc].reshape(N, OH, OW, oc), stats
    return res[:, :oc].reshape(N, OH, OW, oc)


def conv_transpose2d_k4s2p1(x, wmat, bias_row, oc, *, act="none",
                            out_dtype=jnp.bfloat16):
    """Sub-pixel decomposition: one GEMM over 2x2 windows produces all 4 output
    phases (columns grouped as (phase = 2r + c, oc)); then interleave."""
    N, H, W, C = x.shape
    xp = jnp.pad(x.astype(jnp.bfloat16), ((0, 0), (1, 1), (1, 1), (0, 0)))
    cols = []
    for s in range(2):
        for t in range(2):
            cols.append(xp[:, s:s + H + 1, t:t + W + 1, :])
    patches = jnp.concatenate(cols, axis=-1).reshape(N * (H + 1) * (W + 1), 4 * C)
    g = matmul_gemm(patches, wmat, bias_row, act=act, out_dtype=out_dtype)
    g = g[:, :4 * oc].reshape(N, H + 1, W + 1, 4, oc)
    # y[n, 2a + r, 2b + c, :] = g[n, a + r, b + c, 2r + c, :]
    rows = []
    for r in range(2):
        phase_cols = [g[:, r:r + H, c:c + W, 2 * r + c, :] for c in range(2)]
        rows.append(jnp.stack(phase_cols, axis=3))        # (N, H, W, 2, oc)
    y = jnp.stack(rows, axis=2)                           # (N, H, 2, W, 2, oc)
    return y.reshape(N, 2 * H, 2 * W, oc)


# --------------------------------------------------------------------------
# Parameter construction (GEMM-ready weights prepared once, outside the forward)
# --------------------------------------------------------------------------
def _k_pad(k):
    return k if k <= 512 else _round_up(k, 512)


def _prep_gemm_weight(wmat, bias):
    K, N = wmat.shape
    Kp, Np = _k_pad(K), _round_up(N, 128)
    w = jnp.pad(wmat, ((0, Kp - K), (0, Np - N))).astype(jnp.bfloat16)
    if bias is None:
        return w, None
    b = jnp.pad(bias, (0, Np - N)).reshape(1, Np).astype(jnp.float32)
    return w, b


def prep_conv(w, bias):
    """PyTorch Conv2d weight (OC, IC, 4, 4) -> GEMM matrix ((kh,kw,ic), oc)."""
    OC, IC, KH, KW = w.shape
    wmat = jnp.transpose(w, (2, 3, 1, 0)).reshape(KH * KW * IC, OC)
    return _prep_gemm_weight(wmat, bias)


def prep_conv_transpose(w, bias):
    """PyTorch ConvTranspose2d weight (IC, OC, 4, 4) -> phase-combined GEMM
    matrix ((s,t,ic), (phase=2r+c, oc)) for the sub-pixel decomposition."""
    IC, OC, _, _ = w.shape
    blocks = []
    for s in range(2):
        for t in range(2):
            sub = jnp.stack(
                [w[:, :, 3 - r - 2 * s, 3 - c - 2 * t]
                 for r in range(2) for c in range(2)], axis=1)    # (IC, 4, OC)
            blocks.append(sub.reshape(IC, 4 * OC))
    wmat = jnp.concatenate(blocks, axis=0)                        # (4*IC, 4*OC)
    bias4 = None if bias is None else jnp.tile(bias, 4)
    return _prep_gemm_weight(wmat, bias4)


def init_unet_params(key, input_nc, output_nc, num_downs, ngf):
    assert num_downs >= 5
    keys = iter(jax.random.split(key, 8 * num_downs + 8))

    def nrm(shape):
        return jax.random.normal(next(keys), shape, jnp.float32) * 0.02

    # (outer_nc, inner_nc, innermost) from the outside in
    plan = [(ngf, ngf * 2, False), (ngf * 2, ngf * 4, False),
            (ngf * 4, ngf * 8, False)]
    plan += [(ngf * 8, ngf * 8, False)] * (num_downs - 5)
    plan += [(ngf * 8, ngf * 8, True)]

    blocks = []
    for outer_nc, inner_nc, innermost in plan:
        blk = {"innermost": innermost, "outer_nc": outer_nc, "inner_nc": inner_nc}
        dw = nrm((inner_nc, outer_nc, 4, 4))                # Conv2d weight
        if innermost:
            # innermost downconv has no norm after it -> keep its bias
            blk["down_w"], blk["down_b"] = prep_conv(dw, nrm((inner_nc,)))
        else:
            # training-mode BatchNorm cancels the conv bias exactly -> drop it
            blk["down_w"], blk["down_b"] = prep_conv(dw, None)
            blk["dn_g"] = jnp.ones((inner_nc,), jnp.float32)
            blk["dn_b"] = jnp.zeros((inner_nc,), jnp.float32)
        up_in = inner_nc if innermost else inner_nc * 2
        uw = nrm((up_in, outer_nc, 4, 4))                   # ConvTranspose2d weight
        blk["up_w"], blk["up_b"] = prep_conv_transpose(uw, None)   # BN follows
        blk["un_g"] = jnp.ones((outer_nc,), jnp.float32)
        blk["un_b"] = jnp.zeros((outer_nc,), jnp.float32)
        blocks.append(blk)

    params = {"blocks": blocks, "ngf": ngf, "output_nc": output_nc}
    # outermost down: Conv2d(input_nc, ngf, 4, 2, 1) -- no norm after, keep bias
    params["in_w"], params["in_b"] = prep_conv(nrm((ngf, input_nc, 4, 4)),
                                               nrm((ngf,)))
    # outermost up: ConvTranspose2d(ngf*2, output_nc, 4, 2, 1) -- keep bias
    params["out_w"], params["out_b"] = prep_conv_transpose(
        nrm((ngf * 2, output_nc, 4, 4)), nrm((output_nc,)))
    return params


# --------------------------------------------------------------------------
# UnetGenerator forward (default flags)
# --------------------------------------------------------------------------
def unet_forward(params, x_nchw):
    x = jnp.transpose(x_nchw, (0, 2, 3, 1))                       # NCHW -> NHWC
    blocks = params["blocks"]

    def lrelu(v):
        return jnp.maximum(v, 0.2 * v)

    def relu(v):
        return jnp.maximum(v, 0.0)

    def run(level, h):
        """Returns ReLU(up-norm output) of this block.  The block's unique
        consumer is always the parent's ConvTranspose, which is preceded by
        ReLU -- so the ReLU is fused into this block's BN-apply kernel."""
        blk = blocks[level]
        hin = lrelu(h)                                            # fused by XLA
        if blk["innermost"]:
            # bias kept (no norm follows); only consumer is ReLU -> upconv, so
            # the ReLU is fused into the GEMM epilogue.
            s_act = conv2d_k4s2p1(hin, blk["down_w"], blk["down_b"],
                                  blk["inner_nc"], act="relu")
        else:
            # BN-followed conv: bias dropped (cancelled); BN stats fused into
            # the GEMM epilogue (exact f32), applied in a single bf16 pass.
            d_raw, stats = conv2d_k4s2p1(hin, blk["down_w"], None,
                                         blk["inner_nc"], want_stats=True)
            cnt = d_raw.shape[0] * d_raw.shape[1] * d_raw.shape[2]
            # d has two consumers with different activations (LeakyReLU below,
            # ReLU in the up path) -> no activation fused here.
            d = batchnorm_from_gemm_stats(d_raw, stats, cnt,
                                          blk["dn_g"], blk["dn_b"])
            u_inner = run(level + 1, d)                           # already ReLU'd
            # TODO(synk): split the GEMM K axis over the two concat operands to
            # avoid materializing this (bf16) channel concat in HBM.
            s_act = jnp.concatenate([u_inner, relu(d)], axis=-1)
        u = conv_transpose2d_k4s2p1(s_act, blk["up_w"], None, blk["outer_nc"])
        # up BatchNorm + consumer-side ReLU + bf16 cast fused in one pass.
        return batchnorm2d(u, blk["un_g"], blk["un_b"], slope=0.0)

    # outermost down conv: bias kept (no norm); dual consumers -> no act fused.
    h0 = conv2d_k4s2p1(x, params["in_w"], params["in_b"], params["ngf"])
    u0 = run(0, h0)
    s = jnp.concatenate([u0, relu(h0)], axis=-1)
    # outermost: ReLU already applied per operand; ConvTranspose + Tanh fused.
    y = conv_transpose2d_k4s2p1(s, params["out_w"], params["out_b"],
                                params["output_nc"], act="tanh",
                                out_dtype=jnp.float32)
    return jnp.transpose(y, (0, 3, 1, 2))                         # NHWC -> NCHW


if __name__ == "__main__":
    # small, module-consistent shapes: spatial must be >= 2**num_downs
    batch, input_nc, output_nc, ngf, num_downs, spatial = 2, 3, 3, 8, 5, 32

    key = jax.random.PRNGKey(0)
    pkey, xkey = jax.random.split(key)
    params = init_unet_params(pkey, input_nc, output_nc, num_downs, ngf)
    x = jax.random.normal(xkey, (batch, input_nc, spatial, spatial), jnp.float32)

    fwd = jax.jit(lambda inp: unet_forward(params, inp))
    y = jax.block_until_ready(fwd(x))

    assert y.shape == (batch, output_nc, spatial, spatial), y.shape
    assert bool(jnp.all(jnp.isfinite(y)))
    assert bool(jnp.all(jnp.abs(y) <= 1.0 + 1e-6))   # tanh output range
    print("KERNEL_OK")
</pallas_src>

<mosaic_0001>
module attributes {stable_mosaic.version = 11 : i64} {
  func.func @_gemm_kernel(%arg0: i32, %arg1: i32, %arg2: i32, %arg3: memref<512x48xbf16, #tpu.memory_space<vmem>>, %arg4: memref<48x128xbf16, #tpu.memory_space<vmem>>, %arg5: memref<1x128xf32, #tpu.memory_space<vmem>>, %arg6: memref<512x128xbf16, #tpu.memory_space<vmem>>, %arg7: memref<512x128xf32, #tpu.memory_space<vmem>>) attributes {dimension_semantics = [#tpu.dimension_semantics<parallel>, #tpu.dimension_semantics<parallel>, #tpu.dimension_semantics<arbitrary>], iteration_bounds = array<i64: 1, 1, 1>, scalar_prefetch = 0 : i64, scratch_operands = 1 : i64, tpu.core_type = #tpu.core_type<tc>, window_params = [{transform_indices = @transform_0, window_bounds = array<i64: 512, 48>}, {transform_indices = @transform_1, window_bounds = array<i64: 48, 128>}, {transform_indices = @transform_2, window_bounds = array<i64: 1, 128>}, {transform_indices = @transform_3, window_bounds = array<i64: 512, 128>}]} {
    %c0_i32 = arith.constant 0 : i32
    %0 = arith.cmpi eq, %arg2, %c0_i32 : i32
    %1 = arith.extui %0 : i1 to i32
    %c0_i32_0 = arith.constant 0 : i32
    %2 = arith.cmpi ne, %1, %c0_i32_0 : i32
    scf.if %2 {
      %cst_10 = arith.constant 0.000000e+00 : f32
      %12 = vector.broadcast %cst_10 : f32 to vector<512x128xf32>
      %c0_11 = arith.constant 0 : index
      %c0_12 = arith.constant 0 : index
      %13 = vector.load %arg7[%c0_11, %c0_12] : memref<512x128xf32, #tpu.memory_space<vmem>>, vector<512x128xf32>
      tpu.vector_store %arg7[%c0_11, %c0_12], %12 {strides = array<i32>} : memref<512x128xf32, #tpu.memory_space<vmem>>, vector<512x128xf32>,
    } else {
    }
    %c0 = arith.constant 0 : index
    %c0_1 = arith.constant 0 : index
    %3 = vector.load %arg7[%c0, %c0_1] : memref<512x128xf32, #tpu.memory_space<vmem>>, vector<512x128xf32>
    %c0_2 = arith.constant 0 : index
    %c0_3 = arith.constant 0 : index
    %4 = vector.load %arg3[%c0_2, %c0_3] : memref<512x48xbf16, #tpu.memory_space<vmem>>, vector<512x48xbf16>
    %c0_4 = arith.constant 0 : index
    %c0_5 = arith.constant 0 : index
    %5 = vector.load %arg4[%c0_4, %c0_5] : memref<48x128xbf16, #tpu.memory_space<vmem>>, vector<48x128xbf16>
    %cst = arith.constant dense<0.000000e+00> : vector<512x128xf32>
    %6 = tpu.matmul %4, %5, %cst {dimension_numbers = #tpu.dot_dimension_numbers<[1], [0], [0], [1], [0, 0, 1, 1], [], []>} : vector<512x48xbf16>, vector<48x128xbf16>, vector<512x128xf32> -> vector<512x128xf32>
    %7 = arith.addf %3, %6 : vector<512x128xf32>
    %c0_6 = arith.constant 0 : index
    %c0_7 = arith.constant 0 : index
    %8 = vector.load %arg7[%c0_6, %c0_7] : memref<512x128xf32, #tpu.memory_space<vmem>>, vector<512x128xf32>
    tpu.vector_store %arg7[%c0_6, %c0_7], %7 {strides = array<i32>} : memref<512x128xf32, #tpu.memory_space<vmem>>, vector<512x128xf32>,
    %c0_i32_8 = arith.constant 0 : i32
    %9 = arith.cmpi eq, %arg2, %c0_i32_8 : i32
    %10 = arith.extui %9 : i1 to i32
    %c0_i32_9 = arith.constant 0 : i32
    %11 = arith.cmpi ne, %10, %c0_i32_9 : i32
    scf.if %11 {
      %c0_10 = arith.constant 0 : index
      %c0_11 = arith.constant 0 : index
      %12 = vector.load %arg7[%c0_10, %c0_11] : memref<512x128xf32, #tpu.memory_space<vmem>>, vector<512x128xf32>
      %c0_12 = arith.constant 0 : index
      %c0_13 = arith.constant 0 : index
      %13 = vector.load %arg5[%c0_12, %c0_13] : memref<1x128xf32, #tpu.memory_space<vmem>>, vector<1x128xf32>
      %14 = vector.broadcast %13 : vector<1x128xf32> to vector<512x128xf32>
      %15 = arith.addf %12, %14 : vector<512x128xf32>
      %16 = arith.truncf %15 : vector<512x128xf32> to vector<512x128xbf16>
      %c0_14 = arith.constant 0 : index
      %c0_15 = arith.constant 0 : index
      %17 = vector.load %arg6[%c0_14, %c0_15] : memref<512x128xbf16, #tpu.memory_space<vmem>>, vector<512x128xbf16>
      tpu.vector_store %arg6[%c0_14, %c0_15], %16 {strides = array<i32>} : memref<512x128xbf16, #tpu.memory_space<vmem>>, vector<512x128xbf16>,
    } else {
    }
    return
  }
  func.func @transform_0(%arg0: i32, %arg1: i32, %arg2: i32) -> (i32, i32) {
    %c0_i32 = arith.constant 0 : i32
    return %arg0, %arg2 : i32, i32
  }
  func.func @transform_1(%arg0: i32, %arg1: i32, %arg2: i32) -> (i32, i32) {
    %c0_i32 = arith.constant 0 : i32
    return %arg2, %arg1 : i32, i32
  }
  func.func @transform_2(%arg0: i32, %arg1: i32, %arg2: i32) -> (i32, i32) {
    %c0_i32 = arith.constant 0 : i32
    %c0_i32_0 = arith.constant 0 : i32
    return %c0_i32, %arg1 : i32, i32
  }
  func.func @transform_3(%arg0: i32, %arg1: i32, %arg2: i32) -> (i32, i32) {
    %c0_i32 = arith.constant 0 : i32
    return %arg0, %arg1 : i32, i32
  }
}

module attributes {stable_mosaic.version = 11 : i64} {
  func.func @_gemm_kernel(%arg0: i32, %arg1: i32, %arg2: i32, %arg3: memref<128x128xbf16, #tpu.memory_space<vmem>>, %arg4: memref<128x128xbf16, #tpu.memory_space<vmem>>, %arg5: memref<128x128xbf16, #tpu.memory_space<vmem>>, %arg6: memref<1x1x128xf32, #tpu.memory_space<vmem>>, %arg7: memref<1x1x128xf32, #tpu.memory_space<vmem>>, %arg8: memref<128x128xf32, #tpu.memory_space<vmem>>) attributes {dimension_semantics = [#tpu.dimension_semantics<parallel>, #tpu.dimension_semantics<parallel>, #tpu.dimension_semantics<arbitrary>], iteration_bounds = array<i64: 1, 1, 1>, scalar_prefetch = 0 : i64, scratch_operands = 1 : i64, tpu.core_type = #tpu.core_type<tc>, window_params = [{transform_indices = @transform_0, window_bounds = array<i64: 128, 128>}, {transform_indices = @transform_1, window_bounds = array<i64: 128, 128>}, {transform_indices = @transform_2, window_bounds = array<i64: 128, 128>}, {transform_indices = @transform_3, window_bounds = array<i64: 1, 1, 128>}, {transform_indices = @transform_4, window_bounds = array<i64: 1, 1, 128>}]} {
    %c0_i32 = arith.constant 0 : i32
    %0 = arith.cmpi eq, %arg2, %c0_i32 : i32
    %1 = arith.extui %0 : i1 to i32
    %c0_i32_0 = arith.constant 0 : i32
    %2 = arith.cmpi ne, %1, %c0_i32_0 : i32
    scf.if %2 {
      %cst_10 = arith.constant 0.000000e+00 : f32
      %12 = vector.broadcast %cst_10 : f32 to vector<128x128xf32>
      %c0_11 = arith.constant 0 : index
      %c0_12 = arith.constant 0 : index
      %13 = vector.load %arg8[%c0_11, %c0_12] : memref<128x128xf32, #tpu.memory_space<vmem>>, vector<128x128xf32>
      tpu.vector_store %arg8[%c0_11, %c0_12], %12 {strides = array<i32>} : memref<128x128xf32, #tpu.memory_space<vmem>>, vector<128x128xf32>,
    } else {
    }
    %c0 = arith.constant 0 : index
    %c0_1 = arith.constant 0 : index
    %3 = vector.load %arg8[%c0, %c0_1] : memref<128x128xf32, #tpu.memory_space<vmem>>, vector<128x128xf32>
    %c0_2 = arith.constant 0 : index
    %c0_3 = arith.constant 0 : index
    %4 = vector.load %arg3[%c0_2, %c0_3] : memref<128x128xbf16, #tpu.memory_space<vmem>>, vector<128x128xbf16>
    %c0_4 = arith.constant 0 : index
    %c0_5 = arith.constant 0 : index
    %5 = vector.load %arg4[%c0_4, %c0_5] : memref<128x128xbf16, #tpu.memory_space<vmem>>, vector<128x128xbf16>
    %cst = arith.constant dense<0.000000e+00> : vector<128x128xf32>
    %6 = tpu.matmul %4, %5, %cst {dimension_numbers = #tpu.dot_dimension_numbers<[1], [0], [0], [1], [0, 0, 1, 1], [], []>} : vector<128x128xbf16>, vector<128x128xbf16>, vector<128x128xf32> -> vector<128x128xf32>
    %7 = arith.addf %3, %6 : vector<128x128xf32>
    %c0_6 = arith.constant 0 : index
    %c0_7 = arith.constant 0 : index
    %8 = vector.load %arg8[%c0_6, %c0_7] : memref<128x128xf32, #tpu.memory_space<vmem>>, vector<128x128xf32>
    tpu.vector_store %arg8[%c0_6, %c0_7], %7 {strides = array<i32>} : memref<128x128xf32, #tpu.memory_space<vmem>>, vector<128x128xf32>,
    %c0_i32_8 = arith.constant 0 : i32
    %9 = arith.cmpi eq, %arg2, %c0_i32_8 : i32
    %10 = arith.extui %9 : i1 to i32
    %c0_i32_9 = arith.constant 0 : i32
    %11 = arith.cmpi ne, %10, %c0_i32_9 : i32
    scf.if %11 {
      %c0_10 = arith.constant 0 : index
      %c0_11 = arith.constant 0 : index
      %12 = vector.load %arg8[%c0_10, %c0_11] : memref<128x128xf32, #tpu.memory_space<vmem>>, vector<128x128xf32>
      %13 = arith.truncf %12 : vector<128x128xf32> to vector<128x128xbf16>
      %c0_12 = arith.constant 0 : index
      %c0_13 = arith.constant 0 : index
      %14 = vector.load %arg5[%c0_12, %c0_13] : memref<128x128xbf16, #tpu.memory_space<vmem>>, vector<128x128xbf16>
      tpu.vector_store %arg5[%c0_12, %c0_13], %13 {strides = array<i32>} : memref<128x128xbf16, #tpu.memory_space<vmem>>, vector<128x128xbf16>,
      %cst_14 = arith.constant dense<0.000000e+00> : vector<128xf32>
      %15 = vector.multi_reduction <add>, %12, %cst_14 [0] : vector<128x128xf32> to vector<128xf32>
      %16 = vector.shape_cast %15 : vector<128xf32> to vector<1x1x128xf32>
      %c0_15 = arith.constant 0 : index
      %c0_16 = arith.constant 0 : index
      %c0_17 = arith.constant 0 : index
      %17 = vector.load %arg6[%c0_15, %c0_16, %c0_17] : memref<1x1x128xf32, #tpu.memory_space<vmem>>, vector<1x1x128xf32>
      tpu.vector_store %arg6[%c0_15, %c0_16, %c0_17], %16 {strides = array<i32>} : memref<1x1x128xf32, #tpu.memory_space<vmem>>, vector<1x1x128xf32>,
      %18 = arith.mulf %12, %12 : vector<128x128xf32>
      %cst_18 = arith.constant dense<0.000000e+00> : vector<128xf32>
      %19 = vector.multi_reduction <add>, %18, %cst_18 [0] : vector<128x128xf32> to vector<128xf32>
      %20 = vector.shape_cast %19 : vector<128xf32> to vector<1x1x128xf32>
      %c0_19 = arith.constant 0 : index
      %c0_20 = arith.constant 0 : index
      %c0_21 = arith.constant 0 : index
      %21 = vector.load %arg7[%c0_19, %c0_20, %c0_21] : memref<1x1x128xf32, #tpu.memory_space<vmem>>, vector<1x1x128xf32>
      tpu.vector_store %arg7[%c0_19, %c0_20, %c0_21], %20 {strides = array<i32>} : memref<1x1x128xf32, #tpu.memory_space<vmem>>, vector<1x1x128xf32>,
    } else {
    }
    return
  }
  func.func @transform_0(%arg0: i32, %arg1: i32, %arg2: i32) -> (i32, i32) {
    %c0_i32 = arith.constant 0 : i32
    return %arg0, %arg2 : i32, i32
  }
  func.func @transform_1(%arg0: i32, %arg1: i32, %arg2: i32) -> (i32, i32) {
    %c0_i32 = arith.constant 0 : i32
    return %arg2, %arg1 : i32, i32
  }
  func.func @transform_2(%arg0: i32, %arg1: i32, %arg2: i32) -> (i32, i32) {
    %c0_i32 = arith.constant 0 : i32
    return %arg0, %arg1 : i32, i32
  }
  func.func @transform_3(%arg0: i32, %arg1: i32, %arg2: i32) -> (i32, i32, i32) {
    %c0_i32 = arith.constant 0 : i32
    %c0_i32_0 = arith.constant 0 : i32
    return %arg0, %c0_i32, %arg1 : i32, i32, i32
  }
  func.func @transform_4(%arg0: i32, %arg1: i32, %arg2: i32) -> (i32, i32, i32) {
    %c0_i32 = arith.constant 0 : i32
    %c0_i32_0 = arith.constant 0 : i32
    return %arg0, %c0_i32, %arg1 : i32, i32, i32
  }
}

module attributes {stable_mosaic.version = 11 : i64} {
  func.func @_bn_act_kernel(%arg0: i32, %arg1: memref<16x128xbf16, #tpu.memory_space<vmem>>, %arg2: memref<1x128xf32, #tpu.memory_space<vmem>>, %arg3: memref<1x128xf32, #tpu.memory_space<vmem>>, %arg4: memref<16x128xbf16, #tpu.memory_space<vmem>>) attributes {dimension_semantics = [#tpu.dimension_semantics<parallel>], iteration_bounds = array<i64: 1>, scalar_prefetch = 0 : i64, scratch_operands = 0 : i64, tpu.core_type = #tpu.core_type<tc>, window_params = [{transform_indices = @transform_0, window_bounds = array<i64: 16, 128>}, {pipeline_mode = #tpu.pipeline_mode<synchronous>, transform_indices = @transform_1, window_bounds = array<i64: 1, 128>}, {pipeline_mode = #tpu.pipeline_mode<synchronous>, transform_indices = @transform_2, window_bounds = array<i64: 1, 128>}, {transform_indices = @transform_3, window_bounds = array<i64: 16, 128>}]} {
    %c0 = arith.constant 0 : index
    %c0_0 = arith.constant 0 : index
    %0 = vector.load %arg1[%c0, %c0_0] : memref<16x128xbf16, #tpu.memory_space<vmem>>, vector<16x128xbf16>
    %1 = arith.extf %0 : vector<16x128xbf16> to vector<16x128xf32>
    %c0_1 = arith.constant 0 : index
    %c0_2 = arith.constant 0 : index
    %2 = vector.load %arg2[%c0_1, %c0_2] : memref<1x128xf32, #tpu.memory_space<vmem>>, vector<1x128xf32>
    %3 = vector.broadcast %2 : vector<1x128xf32> to vector<16x128xf32>
    %4 = arith.mulf %1, %3 : vector<16x128xf32>
    %c0_3 = arith.constant 0 : index
    %c0_4 = arith.constant 0 : index
    %5 = vector.load %arg3[%c0_3, %c0_4] : memref<1x128xf32, #tpu.memory_space<vmem>>, vector<1x128xf32>
    %6 = vector.broadcast %5 : vector<1x128xf32> to vector<16x128xf32>
    %7 = arith.addf %4, %6 : vector<16x128xf32>
    %8 = arith.truncf %7 : vector<16x128xf32> to vector<16x128xbf16>
    %c0_5 = arith.constant 0 : index
    %c0_6 = arith.constant 0 : index
    %9 = vector.load %arg4[%c0_5, %c0_6] : memref<16x128xbf16, #tpu.memory_space<vmem>>, vector<16x128xbf16>
    tpu.vector_store %arg4[%c0_5, %c0_6], %8 {strides = array<i32>} : memref<16x128xbf16, #tpu.memory_space<vmem>>, vector<16x128xbf16>,
    return
  }
  func.func @transform_0(%arg0: i32) -> (i32, i32) {
    %c0_i32 = arith.constant 0 : i32
    %c0_i32_0 = arith.constant 0 : i32
    return %arg0, %c0_i32 : i32, i32
  }
  func.func @transform_1(%arg0: i32) -> (i32, i32) {
    %c0_i32 = arith.constant 0 : i32
    %c0_i32_0 = arith.constant 0 : i32
    %c0_i32_1 = arith.constant 0 : i32
    return %c0_i32, %c0_i32_0 : i32, i32
  }
  func.func @transform_2(%arg0: i32) -> (i32, i32) {
    %c0_i32 = arith.constant 0 : i32
    %c0_i32_0 = arith.constant 0 : i32
    %c0_i32_1 = arith.constant 0 : i32
    return %c0_i32, %c0_i32_0 : i32, i32
  }
  func.func @transform_3(%arg0: i32) -> (i32, i32) {
    %c0_i32 = arith.constant 0 : i32
    %c0_i32_0 = arith.constant 0 : i32
    return %arg0, %c0_i32 : i32, i32
  }
}

module attributes {stable_mosaic.version = 11 : i64} {
  func.func @_gemm_kernel(%arg0: i32, %arg1: i32, %arg2: i32, %arg3: memref<32x256xbf16, #tpu.memory_space<vmem>>, %arg4: memref<256x128xbf16, #tpu.memory_space<vmem>>, %arg5: memref<32x128xbf16, #tpu.memory_space<vmem>>, %arg6: memref<1x1x128xf32, #tpu.memory_space<vmem>>, %arg7: memref<1x1x128xf32, #tpu.memory_space<vmem>>, %arg8: memref<32x128xf32, #tpu.memory_space<vmem>>) attributes {dimension_semantics = [#tpu.dimension_semantics<parallel>, #tpu.dimension_semantics<parallel>, #tpu.dimension_semantics<arbitrary>], iteration_bounds = array<i64: 1, 1, 1>, scalar_prefetch = 0 : i64, scratch_operands = 1 : i64, tpu.core_type = #tpu.core_type<tc>, window_params = [{transform_indices = @transform_0, window_bounds = array<i64: 32, 256>}, {transform_indices = @transform_1, window_bounds = array<i64: 256, 128>}, {transform_indices = @transform_2, window_bounds = array<i64: 32, 128>}, {transform_indices = @transform_3, window_bounds = array<i64: 1, 1, 128>}, {transform_indices = @transform_4, window_bounds = array<i64: 1, 1, 128>}]} {
    %c0_i32 = arith.constant 0 : i32
    %0 = arith.cmpi eq, %arg2, %c0_i32 : i32
    %1 = arith.extui %0 : i1 to i32
    %c0_i32_0 = arith.constant 0 : i32
    %2 = arith.cmpi ne, %1, %c0_i32_0 : i32
    scf.if %2 {
      %cst_10 = arith.constant 0.000000e+00 : f32
      %12 = vector.broadcast %cst_10 : f32 to vector<32x128xf32>
      %c0_11 = arith.constant 0 : index
      %c0_12 = arith.constant 0 : index
      %13 = vector.load %arg8[%c0_11, %c0_12] : memref<32x128xf32, #tpu.memory_space<vmem>>, vector<32x128xf32>
      tpu.vector_store %arg8[%c0_11, %c0_12], %12 {strides = array<i32>} : memref<32x128xf32, #tpu.memory_space<vmem>>, vector<32x128xf32>,
    } else {
    }
    %c0 = arith.constant 0 : index
    %c0_1 = arith.constant 0 : index
    %3 = vector.load %arg8[%c0, %c0_1] : memref<32x128xf32, #tpu.memory_space<vmem>>, vector<32x128xf32>
    %c0_2 = arith.constant 0 : index
    %c0_3 = arith.constant 0 : index
    %4 = vector.load %arg3[%c0_2, %c0_3] : memref<32x256xbf16, #tpu.memory_space<vmem>>, vector<32x256xbf16>
    %c0_4 = arith.constant 0 : index
    %c0_5 = arith.constant 0 : index
    %5 = vector.load %arg4[%c0_4, %c0_5] : memref<256x128xbf16, #tpu.memory_space<vmem>>, vector<256x128xbf16>
    %cst = arith.constant dense<0.000000e+00> : vector<32x128xf32>
    %6 = tpu.matmul %4, %5, %cst {dimension_numbers = #tpu.dot_dimension_numbers<[1], [0], [0], [1], [0, 0, 1, 1], [], []>} : vector<32x256xbf16>, vector<256x128xbf16>, vector<32x128xf32> -> vector<32x128xf32>
    %7 = arith.addf %3, %6 : vector<32x128xf32>
    %c0_6 = arith.constant 0 : index
    %c0_7 = arith.constant 0 : index
    %8 = vector.load %arg8[%c0_6, %c0_7] : memref<32x128xf32, #tpu.memory_space<vmem>>, vector<32x128xf32>
    tpu.vector_store %arg8[%c0_6, %c0_7], %7 {strides = array<i32>} : memref<32x128xf32, #tpu.memory_space<vmem>>, vector<32x128xf32>,
    %c0_i32_8 = arith.constant 0 : i32
    %9 = arith.cmpi eq, %arg2, %c0_i32_8 : i32
    %10 = arith.extui %9 : i1 to i32
    %c0_i32_9 = arith.constant 0 : i32
    %11 = arith.cmpi ne, %10, %c0_i32_9 : i32
    scf.if %11 {
      %c0_10 = arith.constant 0 : index
      %c0_11 = arith.constant 0 : index
      %12 = vector.load %arg8[%c0_10, %c0_11] : memref<32x128xf32, #tpu.memory_space<vmem>>, vector<32x128xf32>
      %13 = arith.truncf %12 : vector<32x128xf32> to vector<32x128xbf16>
      %c0_12 = arith.constant 0 : index
      %c0_13 = arith.constant 0 : index
      %14 = vector.load %arg5[%c0_12, %c0_13] : memref<32x128xbf16, #tpu.memory_space<vmem>>, vector<32x128xbf16>
      tpu.vector_store %arg5[%c0_12, %c0_13], %13 {strides = array<i32>} : memref<32x128xbf16, #tpu.memory_space<vmem>>, vector<32x128xbf16>,
      %cst_14 = arith.constant dense<0.000000e+00> : vector<128xf32>
      %15 = vector.multi_reduction <add>, %12, %cst_14 [0] : vector<32x128xf32> to vector<128xf32>
      %16 = vector.shape_cast %15 : vector<128xf32> to vector<1x1x128xf32>
      %c0_15 = arith.constant 0 : index
      %c0_16 = arith.constant 0 : index
      %c0_17 = arith.constant 0 : index
      %17 = vector.load %arg6[%c0_15, %c0_16, %c0_17] : memref<1x1x128xf32, #tpu.memory_space<vmem>>, vector<1x1x128xf32>
      tpu.vector_store %arg6[%c0_15, %c0_16, %c0_17], %16 {strides = array<i32>} : memref<1x1x128xf32, #tpu.memory_space<vmem>>, vector<1x1x128xf32>,
      %18 = arith.mulf %12, %12 : vector<32x128xf32>
      %cst_18 = arith.constant dense<0.000000e+00> : vector<128xf32>
      %19 = vector.multi_reduction <add>, %18, %cst_18 [0] : vector<32x128xf32> to vector<128xf32>
      %20 = vector.shape_cast %19 : vector<128xf32> to vector<1x1x128xf32>
      %c0_19 = arith.constant 0 : index
      %c0_20 = arith.constant 0 : index
      %c0_21 = arith.constant 0 : index
      %21 = vector.load %arg7[%c0_19, %c0_20, %c0_21] : memref<1x1x128xf32, #tpu.memory_space<vmem>>, vector<1x1x128xf32>
      tpu.vector_store %arg7[%c0_19, %c0_20, %c0_21], %20 {strides = array<i32>} : memref<1x1x128xf32, #tpu.memory_space<vmem>>, vector<1x1x128xf32>,
    } else {
    }
    return
  }
  func.func @transform_0(%arg0: i32, %arg1: i32, %arg2: i32) -> (i32, i32) {
    %c0_i32 = arith.constant 0 : i32
    return %arg0, %arg2 : i32, i32
  }
  func.func @transform_1(%arg0: i32, %arg1: i32, %arg2: i32) -> (i32, i32) {
    %c0_i32 = arith.constant 0 : i32
    return %arg2, %arg1 : i32, i32
  }
  func.func @transform_2(%arg0: i32, %arg1: i32, %arg2: i32) -> (i32, i32) {
    %c0_i32 = arith.constant 0 : i32
    return %arg0, %arg1 : i32, i32
  }
  func.func @transform_3(%arg0: i32, %arg1: i32, %arg2: i32) -> (i32, i32, i32) {
    %c0_i32 = arith.constant 0 : i32
    %c0_i32_0 = arith.constant 0 : i32
    return %arg0, %c0_i32, %arg1 : i32, i32, i32
  }
  func.func @transform_4(%arg0: i32, %arg1: i32, %arg2: i32) -> (i32, i32, i32) {
    %c0_i32 = arith.constant 0 : i32
    %c0_i32_0 = arith.constant 0 : i32
    return %arg0, %c0_i32, %arg1 : i32, i32, i32
  }
}

module attributes {stable_mosaic.version = 11 : i64} {
  func.func @_bn_act_kernel(%arg0: i32, %arg1: memref<8x128xbf16, #tpu.memory_space<vmem>>, %arg2: memref<1x128xf32, #tpu.memory_space<vmem>>, %arg3: memref<1x128xf32, #tpu.memory_space<vmem>>, %arg4: memref<8x128xbf16, #tpu.memory_space<vmem>>) attributes {dimension_semantics = [#tpu.dimension_semantics<parallel>], iteration_bounds = array<i64: 1>, scalar_prefetch = 0 : i64, scratch_operands = 0 : i64, tpu.core_type = #tpu.core_type<tc>, window_params = [{transform_indices = @transform_0, window_bounds = array<i64: 8, 128>}, {pipeline_mode = #tpu.pipeline_mode<synchronous>, transform_indices = @transform_1, window_bounds = array<i64: 1, 128>}, {pipeline_mode = #tpu.pipeline_mode<synchronous>, transform_indices = @transform_2, window_bounds = array<i64: 1, 128>}, {transform_indices = @transform_3, window_bounds = array<i64: 8, 128>}]} {
    %c0 = arith.constant 0 : index
    %c0_0 = arith.constant 0 : index
    %0 = vector.load %arg1[%c0, %c0_0] : memref<8x128xbf16, #tpu.memory_space<vmem>>, vector<8x128xbf16>
    %1 = arith.extf %0 : vector<8x128xbf16> to vector<8x128xf32>
    %c0_1 = arith.constant 0 : index
    %c0_2 = arith.constant 0 : index
    %2 = vector.load %arg2[%c0_1, %c0_2] : memref<1x128xf32, #tpu.memory_space<vmem>>, vector<1x128xf32>
    %3 = vector.broadcast %2 : vector<1x128xf32> to vector<8x128xf32>
    %4 = arith.mulf %1, %3 : vector<8x128xf32>
    %c0_3 = arith.constant 0 : index
    %c0_4 = arith.constant 0 : index
    %5 = vector.load %arg3[%c0_3, %c0_4] : memref<1x128xf32, #tpu.memory_space<vmem>>, vector<1x128xf32>
    %6 = vector.broadcast %5 : vector<1x128xf32> to vector<8x128xf32>
    %7 = arith.addf %4, %6 : vector<8x128xf32>
    %8 = arith.truncf %7 : vector<8x128xf32> to vector<8x128xbf16>
    %c0_5 = arith.constant 0 : index
    %c0_6 = arith.constant 0 : index
    %9 = vector.load %arg4[%c0_5, %c0_6] : memref<8x128xbf16, #tpu.memory_space<vmem>>, vector<8x128xbf16>
    tpu.vector_store %arg4[%c0_5, %c0_6], %8 {strides = array<i32>} : memref<8x128xbf16, #tpu.memory_space<vmem>>, vector<8x128xbf16>,
    return
  }
  func.func @transform_0(%arg0: i32) -> (i32, i32) {
    %c0_i32 = arith.constant 0 : i32
    %c0_i32_0 = arith.constant 0 : i32
    return %arg0, %c0_i32 : i32, i32
  }
  func.func @transform_1(%arg0: i32) -> (i32, i32) {
    %c0_i32 = arith.constant 0 : i32
    %c0_i32_0 = arith.constant 0 : i32
    %c0_i32_1 = arith.constant 0 : i32
    return %c0_i32, %c0_i32_0 : i32, i32
  }
  func.func @transform_2(%arg0: i32) -> (i32, i32) {
    %c0_i32 = arith.constant 0 : i32
    %c0_i32_0 = arith.constant 0 : i32
    %c0_i32_1 = arith.constant 0 : i32
    return %c0_i32, %c0_i32_0 : i32, i32
  }
  func.func @transform_3(%arg0: i32) -> (i32, i32) {
    %c0_i32 = arith.constant 0 : i32
    %c0_i32_0 = arith.constant 0 : i32
    return %arg0, %c0_i32 : i32, i32
  }
}

module attributes {stable_mosaic.version = 11 : i64} {
  func.func @_gemm_kernel(%arg0: i32, %arg1: i32, %arg2: i32, %arg3: memref<8x512xbf16, #tpu.memory_space<vmem>>, %arg4: memref<512x128xbf16, #tpu.memory_space<vmem>>, %arg5: memref<8x128xbf16, #tpu.memory_space<vmem>>, %arg6: memref<1x1x128xf32, #tpu.memory_space<vmem>>, %arg7: memref<1x1x128xf32, #tpu.memory_space<vmem>>, %arg8: memref<8x128xf32, #tpu.memory_space<vmem>>) attributes {dimension_semantics = [#tpu.dimension_semantics<parallel>, #tpu.dimension_semantics<parallel>, #tpu.dimension_semantics<arbitrary>], iteration_bounds = array<i64: 1, 1, 1>, scalar_prefetch = 0 : i64, scratch_operands = 1 : i64, tpu.core_type = #tpu.core_type<tc>, window_params = [{transform_indices = @transform_0, window_bounds = array<i64: 8, 512>}, {transform_indices = @transform_1, window_bounds = array<i64: 512, 128>}, {transform_indices = @transform_2, window_bounds = array<i64: 8, 128>}, {transform_indices = @transform_3, window_bounds = array<i64: 1, 1, 128>}, {transform_indices = @transform_4, window_bounds = array<i64: 1, 1, 128>}]} {
    %c0_i32 = arith.constant 0 : i32
    %0 = arith.cmpi eq, %arg2, %c0_i32 : i32
    %1 = arith.extui %0 : i1 to i32
    %c0_i32_0 = arith.constant 0 : i32
    %2 = arith.cmpi ne, %1, %c0_i32_0 : i32
    scf.if %2 {
      %cst_10 = arith.constant 0.000000e+00 : f32
      %12 = vector.broadcast %cst_10 : f32 to vector<8x128xf32>
      %c0_11 = arith.constant 0 : index
      %c0_12 = arith.constant 0 : index
      %13 = vector.load %arg8[%c0_11, %c0_12] : memref<8x128xf32, #tpu.memory_space<vmem>>, vector<8x128xf32>
      tpu.vector_store %arg8[%c0_11, %c0_12], %12 {strides = array<i32>} : memref<8x128xf32, #tpu.memory_space<vmem>>, vector<8x128xf32>,
    } else {
    }
    %c0 = arith.constant 0 : index
    %c0_1 = arith.constant 0 : index
    %3 = vector.load %arg8[%c0, %c0_1] : memref<8x128xf32, #tpu.memory_space<vmem>>, vector<8x128xf32>
    %c0_2 = arith.constant 0 : index
    %c0_3 = arith.constant 0 : index
    %4 = vector.load %arg3[%c0_2, %c0_3] : memref<8x512xbf16, #tpu.memory_space<vmem>>, vector<8x512xbf16>
    %c0_4 = arith.constant 0 : index
    %c0_5 = arith.constant 0 : index
    %5 = vector.load %arg4[%c0_4, %c0_5] : memref<512x128xbf16, #tpu.memory_space<vmem>>, vector<512x128xbf16>
    %cst = arith.constant dense<0.000000e+00> : vector<8x128xf32>
    %6 = tpu.matmul %4, %5, %cst {dimension_numbers = #tpu.dot_dimension_numbers<[1], [0], [0], [1], [0, 0, 1, 1], [], []>} : vector<8x512xbf16>, vector<512x128xbf16>, vector<8x128xf32> -> vector<8x128xf32>
    %7 = arith.addf %3, %6 : vector<8x128xf32>
    %c0_6 = arith.constant 0 : index
    %c0_7 = arith.constant 0 : index
    %8 = vector.load %arg8[%c0_6, %c0_7] : memref<8x128xf32, #tpu.memory_space<vmem>>, vector<8x128xf32>
    tpu.vector_store %arg8[%c0_6, %c0_7], %7 {strides = array<i32>} : memref<8x128xf32, #tpu.memory_space<vmem>>, vector<8x128xf32>,
    %c0_i32_8 = arith.constant 0 : i32
    %9 = arith.cmpi eq, %arg2, %c0_i32_8 : i32
    %10 = arith.extui %9 : i1 to i32
    %c0_i32_9 = arith.constant 0 : i32
    %11 = arith.cmpi ne, %10, %c0_i32_9 : i32
    scf.if %11 {
      %c0_10 = arith.constant 0 : index
      %c0_11 = arith.constant 0 : index
      %12 = vector.load %arg8[%c0_10, %c0_11] : memref<8x128xf32, #tpu.memory_space<vmem>>, vector<8x128xf32>
      %13 = arith.truncf %12 : vector<8x128xf32> to vector<8x128xbf16>
      %c0_12 = arith.constant 0 : index
      %c0_13 = arith.constant 0 : index
      %14 = vector.load %arg5[%c0_12, %c0_13] : memref<8x128xbf16, #tpu.memory_space<vmem>>, vector<8x128xbf16>
      tpu.vector_store %arg5[%c0_12, %c0_13], %13 {strides = array<i32>} : memref<8x128xbf16, #tpu.memory_space<vmem>>, vector<8x128xbf16>,
      %cst_14 = arith.constant dense<0.000000e+00> : vector<128xf32>
      %15 = vector.multi_reduction <add>, %12, %cst_14 [0] : vector<8x128xf32> to vector<128xf32>
      %16 = vector.shape_cast %15 : vector<128xf32> to vector<1x1x128xf32>
      %c0_15 = arith.constant 0 : index
      %c0_16 = arith.constant 0 : index
      %c0_17 = arith.constant 0 : index
      %17 = vector.load %arg6[%c0_15, %c0_16, %c0_17] : memref<1x1x128xf32, #tpu.memory_space<vmem>>, vector<1x1x128xf32>
      tpu.vector_store %arg6[%c0_15, %c0_16, %c0_17], %16 {strides = array<i32>} : memref<1x1x128xf32, #tpu.memory_space<vmem>>, vector<1x1x128xf32>,
      %18 = arith.mulf %12, %12 : vector<8x128xf32>
      %cst_18 = arith.constant dense<0.000000e+00> : vector<128xf32>
      %19 = vector.multi_reduction <add>, %18, %cst_18 [0] : vector<8x128xf32> to vector<128xf32>
      %20 = vector.shape_cast %19 : vector<128xf32> to vector<1x1x128xf32>
      %c0_19 = arith.constant 0 : index
      %c0_20 = arith.constant 0 : index
      %c0_21 = arith.constant 0 : index
      %21 = vector.load %arg7[%c0_19, %c0_20, %c0_21] : memref<1x1x128xf32, #tpu.memory_space<vmem>>, vector<1x1x128xf32>
      tpu.vector_store %arg7[%c0_19, %c0_20, %c0_21], %20 {strides = array<i32>} : memref<1x1x128xf32, #tpu.memory_space<vmem>>, vector<1x1x128xf32>,
    } else {
    }
    return
  }
  func.func @transform_0(%arg0: i32, %arg1: i32, %arg2: i32) -> (i32, i32) {
    %c0_i32 = arith.constant 0 : i32
    return %arg0, %arg2 : i32, i32
  }
  func.func @transform_1(%arg0: i32, %arg1: i32, %arg2: i32) -> (i32, i32) {
    %c0_i32 = arith.constant 0 : i32
    return %arg2, %arg1 : i32, i32
  }
  func.func @transform_2(%arg0: i32, %arg1: i32, %arg2: i32) -> (i32, i32) {
    %c0_i32 = arith.constant 0 : i32
    return %arg0, %arg1 : i32, i32
  }
  func.func @transform_3(%arg0: i32, %arg1: i32, %arg2: i32) -> (i32, i32, i32) {
    %c0_i32 = arith.constant 0 : i32
    %c0_i32_0 = arith.constant 0 : i32
    return %arg0, %c0_i32, %arg1 : i32, i32, i32
  }
  func.func @transform_4(%arg0: i32, %arg1: i32, %arg2: i32) -> (i32, i32, i32) {
    %c0_i32 = arith.constant 0 : i32
    %c0_i32_0 = arith.constant 0 : i32
    return %arg0, %c0_i32, %arg1 : i32, i32, i32
  }
}

module attributes {stable_mosaic.version = 11 : i64} {
  func.func @_gemm_kernel(%arg0: i32, %arg1: i32, %arg2: i32, %arg3: memref<8x512xbf16, #tpu.memory_space<vmem>>, %arg4: memref<512x128xbf16, #tpu.memory_space<vmem>>, %arg5: memref<1x128xf32, #tpu.memory_space<vmem>>, %arg6: memref<8x128xbf16, #tpu.memory_space<vmem>>, %arg7: memref<8x128xf32, #tpu.memory_space<vmem>>) attributes {dimension_semantics = [#tpu.dimension_semantics<parallel>, #tpu.dimension_semantics<parallel>, #tpu.dimension_semantics<arbitrary>], iteration_bounds = array<i64: 1, 1, 2>, scalar_prefetch = 0 : i64, scratch_operands = 1 : i64, tpu.core_type = #tpu.core_type<tc>, window_params = [{transform_indices = @transform_0, window_bounds = array<i64: 8, 512>}, {transform_indices = @transform_1, window_bounds = array<i64: 512, 128>}, {transform_indices = @transform_2, window_bounds = array<i64: 1, 128>}, {transform_indices = @transform_3, window_bounds = array<i64: 8, 128>}]} {
    %c0_i32 = arith.constant 0 : i32
    %0 = arith.cmpi eq, %arg2, %c0_i32 : i32
    %1 = arith.extui %0 : i1 to i32
    %c0_i32_0 = arith.constant 0 : i32
    %2 = arith.cmpi ne, %1, %c0_i32_0 : i32
    scf.if %2 {
      %cst_9 = arith.constant 0.000000e+00 : f32
      %12 = vector.broadcast %cst_9 : f32 to vector<8x128xf32>
      %c0_10 = arith.constant 0 : index
      %c0_11 = arith.constant 0 : index
      %13 = vector.load %arg7[%c0_10, %c0_11] : memref<8x128xf32, #tpu.memory_space<vmem>>, vector<8x128xf32>
      tpu.vector_store %arg7[%c0_10, %c0_11], %12 {strides = array<i32>} : memref<8x128xf32, #tpu.memory_space<vmem>>, vector<8x128xf32>,
    } else {
    }
    %c0 = arith.constant 0 : index
    %c0_1 = arith.constant 0 : index
    %3 = vector.load %arg7[%c0, %c0_1] : memref<8x128xf32, #tpu.memory_space<vmem>>, vector<8x128xf32>
    %c0_2 = arith.constant 0 : index
    %c0_3 = arith.constant 0 : index
    %4 = vector.load %arg3[%c0_2, %c0_3] : memref<8x512xbf16, #tpu.memory_space<vmem>>, vector<8x512xbf16>
    %c0_4 = arith.constant 0 : index
    %c0_5 = arith.constant 0 : index
    %5 = vector.load %arg4[%c0_4, %c0_5] : memref<512x128xbf16, #tpu.memory_space<vmem>>, vector<512x128xbf16>
    %cst = arith.constant dense<0.000000e+00> : vector<8x128xf32>
    %6 = tpu.matmul %4, %5, %cst {dimension_numbers = #tpu.dot_dimension_numbers<[1], [0], [0], [1], [0, 0, 1, 1], [], []>} : vector<8x512xbf16>, vector<512x128xbf16>, vector<8x128xf32> -> vector<8x128xf32>
    %7 = arith.addf %3, %6 : vector<8x128xf32>
    %c0_6 = arith.constant 0 : index
    %c0_7 = arith.constant 0 : index
    %8 = vector.load %arg7[%c0_6, %c0_7] : memref<8x128xf32, #tpu.memory_space<vmem>>, vector<8x128xf32>
    tpu.vector_store %arg7[%c0_6, %c0_7], %7 {strides = array<i32>} : memref<8x128xf32, #tpu.memory_space<vmem>>, vector<8x128xf32>,
    %c1_i32 = arith.constant 1 : i32
    %9 = arith.cmpi eq, %arg2, %c1_i32 : i32
    %10 = arith.extui %9 : i1 to i32
    %c0_i32_8 = arith.constant 0 : i32
    %11 = arith.cmpi ne, %10, %c0_i32_8 : i32
    scf.if %11 {
      %c0_9 = arith.constant 0 : index
      %c0_10 = arith.constant 0 : index
      %12 = vector.load %arg7[%c0_9, %c0_10] : memref<8x128xf32, #tpu.memory_space<vmem>>, vector<8x128xf32>
      %c0_11 = arith.constant 0 : index
      %c0_12 = arith.constant 0 : index
      %13 = vector.load %arg5[%c0_11, %c0_12] : memref<1x128xf32, #tpu.memory_space<vmem>>, vector<1x128xf32>
      %14 = vector.broadcast %13 : vector<1x128xf32> to vector<8x128xf32>
      %15 = arith.addf %12, %14 : vector<8x128xf32>
      %cst_13 = arith.constant 0.000000e+00 : f32
      %16 = vector.broadcast %cst_13 : f32 to vector<8x128xf32>
      %17 = arith.maximumf %15, %16 : vector<8x128xf32>
      %18 = arith.truncf %17 : vector<8x128xf32> to vector<8x128xbf16>
      %c0_14 = arith.constant 0 : index
      %c0_15 = arith.constant 0 : index
      %19 = vector.load %arg6[%c0_14, %c0_15] : memref<8x128xbf16, #tpu.memory_space<vmem>>, vector<8x128xbf16>
      tpu.vector_store %arg6[%c0_14, %c0_15], %18 {strides = array<i32>} : memref<8x128xbf16, #tpu.memory_space<vmem>>, vector<8x128xbf16>,
    } else {
    }
    return
  }
  func.func @transform_0(%arg0: i32, %arg1: i32, %arg2: i32) -> (i32, i32) {
    %c0_i32 = arith.constant 0 : i32
    return %arg0, %arg2 : i32, i32
  }
  func.func @transform_1(%arg0: i32, %arg1: i32, %arg2: i32) -> (i32, i32) {
    %c0_i32 = arith.constant 0 : i32
    return %arg2, %arg1 : i32, i32
  }
  func.func @transform_2(%arg0: i32, %arg1: i32, %arg2: i32) -> (i32, i32) {
    %c0_i32 = arith.constant 0 : i32
    %c0_i32_0 = arith.constant 0 : i32
    return %c0_i32, %arg1 : i32, i32
  }
  func.func @transform_3(%arg0: i32, %arg1: i32, %arg2: i32) -> (i32, i32) {
    %c0_i32 = arith.constant 0 : i32
    return %arg0, %arg1 : i32, i32
  }
}

module attributes {stable_mosaic.version = 11 : i64} {
  func.func @_gemm_kernel(%arg0: i32, %arg1: i32, %arg2: i32, %arg3: memref<8x256xbf16, #tpu.memory_space<vmem>>, %arg4: memref<256x256xbf16, #tpu.memory_space<vmem>>, %arg5: memref<8x256xbf16, #tpu.memory_space<vmem>>, %arg6: memref<8x256xf32, #tpu.memory_space<vmem>>) attributes {dimension_semantics = [#tpu.dimension_semantics<parallel>, #tpu.dimension_semantics<parallel>, #tpu.dimension_semantics<arbitrary>], iteration_bounds = array<i64: 1, 1, 1>, scalar_prefetch = 0 : i64, scratch_operands = 1 : i64, tpu.core_type = #tpu.core_type<tc>, window_params = [{transform_indices = @transform_0, window_bounds = array<i64: 8, 256>}, {transform_indices = @transform_1, window_bounds = array<i64: 256, 256>}, {transform_indices = @transform_2, window_bounds = array<i64: 8, 256>}]} {
    %c0_i32 = arith.constant 0 : i32
    %0 = arith.cmpi eq, %arg2, %c0_i32 : i32
    %1 = arith.extui %0 : i1 to i32
    %c0_i32_0 = arith.constant 0 : i32
    %2 = arith.cmpi ne, %1, %c0_i32_0 : i32
    scf.if %2 {
      %cst_10 = arith.constant 0.000000e+00 : f32
      %12 = vector.broadcast %cst_10 : f32 to vector<8x256xf32>
      %c0_11 = arith.constant 0 : index
      %c0_12 = arith.constant 0 : index
      %13 = vector.load %arg6[%c0_11, %c0_12] : memref<8x256xf32, #tpu.memory_space<vmem>>, vector<8x256xf32>
      tpu.vector_store %arg6[%c0_11, %c0_12], %12 {strides = array<i32>} : memref<8x256xf32, #tpu.memory_space<vmem>>, vector<8x256xf32>,
    } else {
    }
    %c0 = arith.constant 0 : index
    %c0_1 = arith.constant 0 : index
    %3 = vector.load %arg6[%c0, %c0_1] : memref<8x256xf32, #tpu.memory_space<vmem>>, vector<8x256xf32>
    %c0_2 = arith.constant 0 : index
    %c0_3 = arith.constant 0 : index
    %4 = vector.load %arg3[%c0_2, %c0_3] : memref<8x256xbf16, #tpu.memory_space<vmem>>, vector<8x256xbf16>
    %c0_4 = arith.constant 0 : index
    %c0_5 = arith.constant 0 : index
    %5 = vector.load %arg4[%c0_4, %c0_5] : memref<256x256xbf16, #tpu.memory_space<vmem>>, vector<256x256xbf16>
    %cst = arith.constant dense<0.000000e+00> : vector<8x256xf32>
    %6 = tpu.matmul %4, %5, %cst {dimension_numbers = #tpu.dot_dimension_numbers<[1], [0], [0], [1], [0, 0, 1, 1], [], []>} : vector<8x256xbf16>, vector<256x256xbf16>, vector<8x256xf32> -> vector<8x256xf32>
    %7 = arith.addf %3, %6 : vector<8x256xf32>
    %c0_6 = arith.constant 0 : index
    %c0_7 = arith.constant 0 : index
    %8 = vector.load %arg6[%c0_6, %c0_7] : memref<8x256xf32, #tpu.memory_space<vmem>>, vector<8x256xf32>
    tpu.vector_store %arg6[%c0_6, %c0_7], %7 {strides = array<i32>} : memref<8x256xf32, #tpu.memory_space<vmem>>, vector<8x256xf32>,
    %c0_i32_8 = arith.constant 0 : i32
    %9 = arith.cmpi eq, %arg2, %c0_i32_8 : i32
    %10 = arith.extui %9 : i1 to i32
    %c0_i32_9 = arith.constant 0 : i32
    %11 = arith.cmpi ne, %10, %c0_i32_9 : i32
    scf.if %11 {
      %c0_10 = arith.constant 0 : index
      %c0_11 = arith.constant 0 : index
      %12 = vector.load %arg6[%c0_10, %c0_11] : memref<8x256xf32, #tpu.memory_space<vmem>>, vector<8x256xf32>
      %13 = arith.truncf %12 : vector<8x256xf32> to vector<8x256xbf16>
      %c0_12 = arith.constant 0 : index
      %c0_13 = arith.constant 0 : index
      %14 = vector.load %arg5[%c0_12, %c0_13] : memref<8x256xbf16, #tpu.memory_space<vmem>>, vector<8x256xbf16>
      tpu.vector_store %arg5[%c0_12, %c0_13], %13 {strides = array<i32>} : memref<8x256xbf16, #tpu.memory_space<vmem>>, vector<8x256xbf16>,
    } else {
    }
    return
  }
  func.func @transform_0(%arg0: i32, %arg1: i32, %arg2: i32) -> (i32, i32) {
    %c0_i32 = arith.constant 0 : i32
    return %arg0, %arg2 : i32, i32
  }
  func.func @transform_1(%arg0: i32, %arg1: i32, %arg2: i32) -> (i32, i32) {
    %c0_i32 = arith.constant 0 : i32
    return %arg2, %arg1 : i32, i32
  }
  func.func @transform_2(%arg0: i32, %arg1: i32, %arg2: i32) -> (i32, i32) {
    %c0_i32 = arith.constant 0 : i32
    return %arg0, %arg1 : i32, i32
  }
}

module attributes {stable_mosaic.version = 11 : i64} {
  func.func @_bn_act_kernel(%arg0: i32, %arg1: memref<8x128xbf16, #tpu.memory_space<vmem>>, %arg2: memref<1x128xf32, #tpu.memory_space<vmem>>, %arg3: memref<1x128xf32, #tpu.memory_space<vmem>>, %arg4: memref<8x128xbf16, #tpu.memory_space<vmem>>) attributes {dimension_semantics = [#tpu.dimension_semantics<parallel>], iteration_bounds = array<i64: 1>, scalar_prefetch = 0 : i64, scratch_operands = 0 : i64, tpu.core_type = #tpu.core_type<tc>, window_params = [{transform_indices = @transform_0, window_bounds = array<i64: 8, 128>}, {pipeline_mode = #tpu.pipeline_mode<synchronous>, transform_indices = @transform_1, window_bounds = array<i64: 1, 128>}, {pipeline_mode = #tpu.pipeline_mode<synchronous>, transform_indices = @transform_2, window_bounds = array<i64: 1, 128>}, {transform_indices = @transform_3, window_bounds = array<i64: 8, 128>}]} {
    %c0 = arith.constant 0 : index
    %c0_0 = arith.constant 0 : index
    %0 = vector.load %arg1[%c0, %c0_0] : memref<8x128xbf16, #tpu.memory_space<vmem>>, vector<8x128xbf16>
    %1 = arith.extf %0 : vector<8x128xbf16> to vector<8x128xf32>
    %c0_1 = arith.constant 0 : index
    %c0_2 = arith.constant 0 : index
    %2 = vector.load %arg2[%c0_1, %c0_2] : memref<1x128xf32, #tpu.memory_space<vmem>>, vector<1x128xf32>
    %3 = vector.broadcast %2 : vector<1x128xf32> to vector<8x128xf32>
    %4 = arith.mulf %1, %3 : vector<8x128xf32>
    %c0_3 = arith.constant 0 : index
    %c0_4 = arith.constant 0 : index
    %5 = vector.load %arg3[%c0_3, %c0_4] : memref<1x128xf32, #tpu.memory_space<vmem>>, vector<1x128xf32>
    %6 = vector.broadcast %5 : vector<1x128xf32> to vector<8x128xf32>
    %7 = arith.addf %4, %6 : vector<8x128xf32>
    %cst = arith.constant 0.000000e+00 : f32
    %8 = vector.broadcast %cst : f32 to vector<8x128xf32>
    %9 = arith.mulf %8, %7 : vector<8x128xf32>
    %10 = arith.maximumf %7, %9 : vector<8x128xf32>
    %11 = arith.truncf %10 : vector<8x128xf32> to vector<8x128xbf16>
    %c0_5 = arith.constant 0 : index
    %c0_6 = arith.constant 0 : index
    %12 = vector.load %arg4[%c0_5, %c0_6] : memref<8x128xbf16, #tpu.memory_space<vmem>>, vector<8x128xbf16>
    tpu.vector_store %arg4[%c0_5, %c0_6], %11 {strides = array<i32>} : memref<8x128xbf16, #tpu.memory_space<vmem>>, vector<8x128xbf16>,
    return
  }
  func.func @transform_0(%arg0: i32) -> (i32, i32) {
    %c0_i32 = arith.constant 0 : i32
    %c0_i32_0 = arith.constant 0 : i32
    return %arg0, %c0_i32 : i32, i32
  }
  func.func @transform_1(%arg0: i32) -> (i32, i32) {
    %c0_i32 = arith.constant 0 : i32
    %c0_i32_0 = arith.constant 0 : i32
    %c0_i32_1 = arith.constant 0 : i32
    return %c0_i32, %c0_i32_0 : i32, i32
  }
  func.func @transform_2(%arg0: i32) -> (i32, i32) {
    %c0_i32 = arith.constant 0 : i32
    %c0_i32_0 = arith.constant 0 : i32
    %c0_i32_1 = arith.constant 0 : i32
    return %c0_i32, %c0_i32_0 : i32, i32
  }
  func.func @transform_3(%arg0: i32) -> (i32, i32) {
    %c0_i32 = arith.constant 0 : i32
    %c0_i32_0 = arith.constant 0 : i32
    return %arg0, %c0_i32 : i32, i32
  }
}

module attributes {stable_mosaic.version = 11 : i64} {
  func.func @_gemm_kernel(%arg0: i32, %arg1: i32, %arg2: i32, %arg3: memref<24x512xbf16, #tpu.memory_space<vmem>>, %arg4: memref<512x128xbf16, #tpu.memory_space<vmem>>, %arg5: memref<24x128xbf16, #tpu.memory_space<vmem>>, %arg6: memref<24x128xf32, #tpu.memory_space<vmem>>) attributes {dimension_semantics = [#tpu.dimension_semantics<parallel>, #tpu.dimension_semantics<parallel>, #tpu.dimension_semantics<arbitrary>], iteration_bounds = array<i64: 1, 1, 1>, scalar_prefetch = 0 : i64, scratch_operands = 1 : i64, tpu.core_type = #tpu.core_type<tc>, window_params = [{transform_indices = @transform_0, window_bounds = array<i64: 24, 512>}, {transform_indices = @transform_1, window_bounds = array<i64: 512, 128>}, {transform_indices = @transform_2, window_bounds = array<i64: 24, 128>}]} {
    %c0_i32 = arith.constant 0 : i32
    %0 = arith.cmpi eq, %arg2, %c0_i32 : i32
    %1 = arith.extui %0 : i1 to i32
    %c0_i32_0 = arith.constant 0 : i32
    %2 = arith.cmpi ne, %1, %c0_i32_0 : i32
    scf.if %2 {
      %cst_10 = arith.constant 0.000000e+00 : f32
      %12 = vector.broadcast %cst_10 : f32 to vector<24x128xf32>
      %c0_11 = arith.constant 0 : index
      %c0_12 = arith.constant 0 : index
      %13 = vector.load %arg6[%c0_11, %c0_12] : memref<24x128xf32, #tpu.memory_space<vmem>>, vector<24x128xf32>
      tpu.vector_store %arg6[%c0_11, %c0_12], %12 {strides = array<i32>} : memref<24x128xf32, #tpu.memory_space<vmem>>, vector<24x128xf32>,
    } else {
    }
    %c0 = arith.constant 0 : index
    %c0_1 = arith.constant 0 : index
    %3 = vector.load %arg6[%c0, %c0_1] : memref<24x128xf32, #tpu.memory_space<vmem>>, vector<24x128xf32>
    %c0_2 = arith.constant 0 : index
    %c0_3 = arith.constant 0 : index
    %4 = vector.load %arg3[%c0_2, %c0_3] : memref<24x512xbf16, #tpu.memory_space<vmem>>, vector<24x512xbf16>
    %c0_4 = arith.constant 0 : index
    %c0_5 = arith.constant 0 : index
    %5 = vector.load %arg4[%c0_4, %c0_5] : memref<512x128xbf16, #tpu.memory_space<vmem>>, vector<512x128xbf16>
    %cst = arith.constant dense<0.000000e+00> : vector<24x128xf32>
    %6 = tpu.matmul %4, %5, %cst {dimension_numbers = #tpu.dot_dimension_numbers<[1], [0], [0], [1], [0, 0, 1, 1], [], []>} : vector<24x512xbf16>, vector<512x128xbf16>, vector<24x128xf32> -> vector<24x128xf32>
    %7 = arith.addf %3, %6 : vector<24x128xf32>
    %c0_6 = arith.constant 0 : index
    %c0_7 = arith.constant 0 : index
    %8 = vector.load %arg6[%c0_6, %c0_7] : memref<24x128xf32, #tpu.memory_space<vmem>>, vector<24x128xf32>
    tpu.vector_store %arg6[%c0_6, %c0_7], %7 {strides = array<i32>} : memref<24x128xf32, #tpu.memory_space<vmem>>, vector<24x128xf32>,
    %c0_i32_8 = arith.constant 0 : i32
    %9 = arith.cmpi eq, %arg2, %c0_i32_8 : i32
    %10 = arith.extui %9 : i1 to i32
    %c0_i32_9 = arith.constant 0 : i32
    %11 = arith.cmpi ne, %10, %c0_i32_9 : i32
    scf.if %11 {
      %c0_10 = arith.constant 0 : index
      %c0_11 = arith.constant 0 : index
      %12 = vector.load %arg6[%c0_10, %c0_11] : memref<24x128xf32, #tpu.memory_space<vmem>>, vector<24x128xf32>
      %13 = arith.truncf %12 : vector<24x128xf32> to vector<24x128xbf16>
      %c0_12 = arith.constant 0 : index
      %c0_13 = arith.constant 0 : index
      %14 = vector.load %arg5[%c0_12, %c0_13] : memref<24x128xbf16, #tpu.memory_space<vmem>>, vector<24x128xbf16>
      tpu.vector_store %arg5[%c0_12, %c0_13], %13 {strides = array<i32>} : memref<24x128xbf16, #tpu.memory_space<vmem>>, vector<24x128xbf16>,
    } else {
    }
    return
  }
  func.func @transform_0(%arg0: i32, %arg1: i32, %arg2: i32) -> (i32, i32) {
    %c0_i32 = arith.constant 0 : i32
    return %arg0, %arg2 : i32, i32
  }
  func.func @transform_1(%arg0: i32, %arg1: i32, %arg2: i32) -> (i32, i32) {
    %c0_i32 = arith.constant 0 : i32
    return %arg2, %arg1 : i32, i32
  }
  func.func @transform_2(%arg0: i32, %arg1: i32, %arg2: i32) -> (i32, i32) {
    %c0_i32 = arith.constant 0 : i32
    return %arg0, %arg1 : i32, i32
  }
}

module attributes {stable_mosaic.version = 11 : i64} {
  func.func @_gemm_kernel(%arg0: i32, %arg1: i32, %arg2: i32, %arg3: memref<56x256xbf16, #tpu.memory_space<vmem>>, %arg4: memref<256x128xbf16, #tpu.memory_space<vmem>>, %arg5: memref<56x128xbf16, #tpu.memory_space<vmem>>, %arg6: memref<56x128xf32, #tpu.memory_space<vmem>>) attributes {dimension_semantics = [#tpu.dimension_semantics<parallel>, #tpu.dimension_semantics<parallel>, #tpu.dimension_semantics<arbitrary>], iteration_bounds = array<i64: 1, 1, 1>, scalar_prefetch = 0 : i64, scratch_operands = 1 : i64, tpu.core_type = #tpu.core_type<tc>, window_params = [{transform_indices = @transform_0, window_bounds = array<i64: 56, 256>}, {transform_indices = @transform_1, window_bounds = array<i64: 256, 128>}, {transform_indices = @transform_2, window_bounds = array<i64: 56, 128>}]} {
    %c0_i32 = arith.constant 0 : i32
    %0 = arith.cmpi eq, %arg2, %c0_i32 : i32
    %1 = arith.extui %0 : i1 to i32
    %c0_i32_0 = arith.constant 0 : i32
    %2 = arith.cmpi ne, %1, %c0_i32_0 : i32
    scf.if %2 {
      %cst_10 = arith.constant 0.000000e+00 : f32
      %12 = vector.broadcast %cst_10 : f32 to vector<56x128xf32>
      %c0_11 = arith.constant 0 : index
      %c0_12 = arith.constant 0 : index
      %13 = vector.load %arg6[%c0_11, %c0_12] : memref<56x128xf32, #tpu.memory_space<vmem>>, vector<56x128xf32>
      tpu.vector_store %arg6[%c0_11, %c0_12], %12 {strides = array<i32>} : memref<56x128xf32, #tpu.memory_space<vmem>>, vector<56x128xf32>,
    } else {
    }
    %c0 = arith.constant 0 : index
    %c0_1 = arith.constant 0 : index
    %3 = vector.load %arg6[%c0, %c0_1] : memref<56x128xf32, #tpu.memory_space<vmem>>, vector<56x128xf32>
    %c0_2 = arith.constant 0 : index
    %c0_3 = arith.constant 0 : index
    %4 = vector.load %arg3[%c0_2, %c0_3] : memref<56x256xbf16, #tpu.memory_space<vmem>>, vector<56x256xbf16>
    %c0_4 = arith.constant 0 : index
    %c0_5 = arith.constant 0 : index
    %5 = vector.load %arg4[%c0_4, %c0_5] : memref<256x128xbf16, #tpu.memory_space<vmem>>, vector<256x128xbf16>
    %cst = arith.constant dense<0.000000e+00> : vector<56x128xf32>
    %6 = tpu.matmul %4, %5, %cst {dimension_numbers = #tpu.dot_dimension_numbers<[1], [0], [0], [1], [0, 0, 1, 1], [], []>} : vector<56x256xbf16>, vector<256x128xbf16>, vector<56x128xf32> -> vector<56x128xf32>
    %7 = arith.addf %3, %6 : vector<56x128xf32>
    %c0_6 = arith.constant 0 : index
    %c0_7 = arith.constant 0 : index
    %8 = vector.load %arg6[%c0_6, %c0_7] : memref<56x128xf32, #tpu.memory_space<vmem>>, vector<56x128xf32>
    tpu.vector_store %arg6[%c0_6, %c0_7], %7 {strides = array<i32>} : memref<56x128xf32, #tpu.memory_space<vmem>>, vector<56x128xf32>,
    %c0_i32_8 = arith.constant 0 : i32
    %9 = arith.cmpi eq, %arg2, %c0_i32_8 : i32
    %10 = arith.extui %9 : i1 to i32
    %c0_i32_9 = arith.constant 0 : i32
    %11 = arith.cmpi ne, %10, %c0_i32_9 : i32
    scf.if %11 {
      %c0_10 = arith.constant 0 : index
      %c0_11 = arith.constant 0 : index
      %12 = vector.load %arg6[%c0_10, %c0_11] : memref<56x128xf32, #tpu.memory_space<vmem>>, vector<56x128xf32>
      %13 = arith.truncf %12 : vector<56x128xf32> to vector<56x128xbf16>
      %c0_12 = arith.constant 0 : index
      %c0_13 = arith.constant 0 : index
      %14 = vector.load %arg5[%c0_12, %c0_13] : memref<56x128xbf16, #tpu.memory_space<vmem>>, vector<56x128xbf16>
      tpu.vector_store %arg5[%c0_12, %c0_13], %13 {strides = array<i32>} : memref<56x128xbf16, #tpu.memory_space<vmem>>, vector<56x128xbf16>,
    } else {
    }
    return
  }
  func.func @transform_0(%arg0: i32, %arg1: i32, %arg2: i32) -> (i32, i32) {
    %c0_i32 = arith.constant 0 : i32
    return %arg0, %arg2 : i32, i32
  }
  func.func @transform_1(%arg0: i32, %arg1: i32, %arg2: i32) -> (i32, i32) {
    %c0_i32 = arith.constant 0 : i32
    return %arg2, %arg1 : i32, i32
  }
  func.func @transform_2(%arg0: i32, %arg1: i32, %arg2: i32) -> (i32, i32) {
    %c0_i32 = arith.constant 0 : i32
    return %arg0, %arg1 : i32, i32
  }
}

module attributes {stable_mosaic.version = 11 : i64} {
  func.func @_bn_act_kernel(%arg0: i32, %arg1: memref<16x128xbf16, #tpu.memory_space<vmem>>, %arg2: memref<1x128xf32, #tpu.memory_space<vmem>>, %arg3: memref<1x128xf32, #tpu.memory_space<vmem>>, %arg4: memref<16x128xbf16, #tpu.memory_space<vmem>>) attributes {dimension_semantics = [#tpu.dimension_semantics<parallel>], iteration_bounds = array<i64: 1>, scalar_prefetch = 0 : i64, scratch_operands = 0 : i64, tpu.core_type = #tpu.core_type<tc>, window_params = [{transform_indices = @transform_0, window_bounds = array<i64: 16, 128>}, {pipeline_mode = #tpu.pipeline_mode<synchronous>, transform_indices = @transform_1, window_bounds = array<i64: 1, 128>}, {pipeline_mode = #tpu.pipeline_mode<synchronous>, transform_indices = @transform_2, window_bounds = array<i64: 1, 128>}, {transform_indices = @transform_3, window_bounds = array<i64: 16, 128>}]} {
    %c0 = arith.constant 0 : index
    %c0_0 = arith.constant 0 : index
    %0 = vector.load %arg1[%c0, %c0_0] : memref<16x128xbf16, #tpu.memory_space<vmem>>, vector<16x128xbf16>
    %1 = arith.extf %0 : vector<16x128xbf16> to vector<16x128xf32>
    %c0_1 = arith.constant 0 : index
    %c0_2 = arith.constant 0 : index
    %2 = vector.load %arg2[%c0_1, %c0_2] : memref<1x128xf32, #tpu.memory_space<vmem>>, vector<1x128xf32>
    %3 = vector.broadcast %2 : vector<1x128xf32> to vector<16x128xf32>
    %4 = arith.mulf %1, %3 : vector<16x128xf32>
    %c0_3 = arith.constant 0 : index
    %c0_4 = arith.constant 0 : index
    %5 = vector.load %arg3[%c0_3, %c0_4] : memref<1x128xf32, #tpu.memory_space<vmem>>, vector<1x128xf32>
    %6 = vector.broadcast %5 : vector<1x128xf32> to vector<16x128xf32>
    %7 = arith.addf %4, %6 : vector<16x128xf32>
    %cst = arith.constant 0.000000e+00 : f32
    %8 = vector.broadcast %cst : f32 to vector<16x128xf32>
    %9 = arith.mulf %8, %7 : vector<16x128xf32>
    %10 = arith.maximumf %7, %9 : vector<16x128xf32>
    %11 = arith.truncf %10 : vector<16x128xf32> to vector<16x128xbf16>
    %c0_5 = arith.constant 0 : index
    %c0_6 = arith.constant 0 : index
    %12 = vector.load %arg4[%c0_5, %c0_6] : memref<16x128xbf16, #tpu.memory_space<vmem>>, vector<16x128xbf16>
    tpu.vector_store %arg4[%c0_5, %c0_6], %11 {strides = array<i32>} : memref<16x128xbf16, #tpu.memory_space<vmem>>, vector<16x128xbf16>,
    return
  }
  func.func @transform_0(%arg0: i32) -> (i32, i32) {
    %c0_i32 = arith.constant 0 : i32
    %c0_i32_0 = arith.constant 0 : i32
    return %arg0, %c0_i32 : i32, i32
  }
  func.func @transform_1(%arg0: i32) -> (i32, i32) {
    %c0_i32 = arith.constant 0 : i32
    %c0_i32_0 = arith.constant 0 : i32
    %c0_i32_1 = arith.constant 0 : i32
    return %c0_i32, %c0_i32_0 : i32, i32
  }
  func.func @transform_2(%arg0: i32) -> (i32, i32) {
    %c0_i32 = arith.constant 0 : i32
    %c0_i32_0 = arith.constant 0 : i32
    %c0_i32_1 = arith.constant 0 : i32
    return %c0_i32, %c0_i32_0 : i32, i32
  }
  func.func @transform_3(%arg0: i32) -> (i32, i32) {
    %c0_i32 = arith.constant 0 : i32
    %c0_i32_0 = arith.constant 0 : i32
    return %arg0, %c0_i32 : i32, i32
  }
}

module attributes {stable_mosaic.version = 11 : i64} {
  func.func @_gemm_kernel(%arg0: i32, %arg1: i32, %arg2: i32, %arg3: memref<168x128xbf16, #tpu.memory_space<vmem>>, %arg4: memref<128x128xbf16, #tpu.memory_space<vmem>>, %arg5: memref<168x128xbf16, #tpu.memory_space<vmem>>, %arg6: memref<168x128xf32, #tpu.memory_space<vmem>>) attributes {dimension_semantics = [#tpu.dimension_semantics<parallel>, #tpu.dimension_semantics<parallel>, #tpu.dimension_semantics<arbitrary>], iteration_bounds = array<i64: 1, 1, 1>, scalar_prefetch = 0 : i64, scratch_operands = 1 : i64, tpu.core_type = #tpu.core_type<tc>, window_params = [{transform_indices = @transform_0, window_bounds = array<i64: 168, 128>}, {transform_indices = @transform_1, window_bounds = array<i64: 128, 128>}, {transform_indices = @transform_2, window_bounds = array<i64: 168, 128>}]} {
    %c0_i32 = arith.constant 0 : i32
    %0 = arith.cmpi eq, %arg2, %c0_i32 : i32
    %1 = arith.extui %0 : i1 to i32
    %c0_i32_0 = arith.constant 0 : i32
    %2 = arith.cmpi ne, %1, %c0_i32_0 : i32
    scf.if %2 {
      %cst_10 = arith.constant 0.000000e+00 : f32
      %12 = vector.broadcast %cst_10 : f32 to vector<168x128xf32>
      %c0_11 = arith.constant 0 : index
      %c0_12 = arith.constant 0 : index
      %13 = vector.load %arg6[%c0_11, %c0_12] : memref<168x128xf32, #tpu.memory_space<vmem>>, vector<168x128xf32>
      tpu.vector_store %arg6[%c0_11, %c0_12], %12 {strides = array<i32>} : memref<168x128xf32, #tpu.memory_space<vmem>>, vector<168x128xf32>,
    } else {
    }
    %c0 = arith.constant 0 : index
    %c0_1 = arith.constant 0 : index
    %3 = vector.load %arg6[%c0, %c0_1] : memref<168x128xf32, #tpu.memory_space<vmem>>, vector<168x128xf32>
    %c0_2 = arith.constant 0 : index
    %c0_3 = arith.constant 0 : index
    %4 = vector.load %arg3[%c0_2, %c0_3] : memref<168x128xbf16, #tpu.memory_space<vmem>>, vector<168x128xbf16>
    %c0_4 = arith.constant 0 : index
    %c0_5 = arith.constant 0 : index
    %5 = vector.load %arg4[%c0_4, %c0_5] : memref<128x128xbf16, #tpu.memory_space<vmem>>, vector<128x128xbf16>
    %cst = arith.constant dense<0.000000e+00> : vector<168x128xf32>
    %6 = tpu.matmul %4, %5, %cst {dimension_numbers = #tpu.dot_dimension_numbers<[1], [0], [0], [1], [0, 0, 1, 1], [], []>} : vector<168x128xbf16>, vector<128x128xbf16>, vector<168x128xf32> -> vector<168x128xf32>
    %7 = arith.addf %3, %6 : vector<168x128xf32>
    %c0_6 = arith.constant 0 : index
    %c0_7 = arith.constant 0 : index
    %8 = vector.load %arg6[%c0_6, %c0_7] : memref<168x128xf32, #tpu.memory_space<vmem>>, vector<168x128xf32>
    tpu.vector_store %arg6[%c0_6, %c0_7], %7 {strides = array<i32>} : memref<168x128xf32, #tpu.memory_space<vmem>>, vector<168x128xf32>,
    %c0_i32_8 = arith.constant 0 : i32
    %9 = arith.cmpi eq, %arg2, %c0_i32_8 : i32
    %10 = arith.extui %9 : i1 to i32
    %c0_i32_9 = arith.constant 0 : i32
    %11 = arith.cmpi ne, %10, %c0_i32_9 : i32
    scf.if %11 {
      %c0_10 = arith.constant 0 : index
      %c0_11 = arith.constant 0 : index
      %12 = vector.load %arg6[%c0_10, %c0_11] : memref<168x128xf32, #tpu.memory_space<vmem>>, vector<168x128xf32>
      %13 = arith.truncf %12 : vector<168x128xf32> to vector<168x128xbf16>
      %c0_12 = arith.constant 0 : index
      %c0_13 = arith.constant 0 : index
      %14 = vector.load %arg5[%c0_12, %c0_13] : memref<168x128xbf16, #tpu.memory_space<vmem>>, vector<168x128xbf16>
      tpu.vector_store %arg5[%c0_12, %c0_13], %13 {strides = array<i32>} : memref<168x128xbf16, #tpu.memory_space<vmem>>, vector<168x128xbf16>,
    } else {
    }
    return
  }
  func.func @transform_0(%arg0: i32, %arg1: i32, %arg2: i32) -> (i32, i32) {
    %c0_i32 = arith.constant 0 : i32
    return %arg0, %arg2 : i32, i32
  }
  func.func @transform_1(%arg0: i32, %arg1: i32, %arg2: i32) -> (i32, i32) {
    %c0_i32 = arith.constant 0 : i32
    return %arg2, %arg1 : i32, i32
  }
  func.func @transform_2(%arg0: i32, %arg1: i32, %arg2: i32) -> (i32, i32) {
    %c0_i32 = arith.constant 0 : i32
    return %arg0, %arg1 : i32, i32
  }
}

module attributes {stable_mosaic.version = 11 : i64} {
  func.func @_bn_act_kernel(%arg0: i32, %arg1: memref<32x128xbf16, #tpu.memory_space<vmem>>, %arg2: memref<1x128xf32, #tpu.memory_space<vmem>>, %arg3: memref<1x128xf32, #tpu.memory_space<vmem>>, %arg4: memref<32x128xbf16, #tpu.memory_space<vmem>>) attributes {dimension_semantics = [#tpu.dimension_semantics<parallel>], iteration_bounds = array<i64: 1>, scalar_prefetch = 0 : i64, scratch_operands = 0 : i64, tpu.core_type = #tpu.core_type<tc>, window_params = [{transform_indices = @transform_0, window_bounds = array<i64: 32, 128>}, {pipeline_mode = #tpu.pipeline_mode<synchronous>, transform_indices = @transform_1, window_bounds = array<i64: 1, 128>}, {pipeline_mode = #tpu.pipeline_mode<synchronous>, transform_indices = @transform_2, window_bounds = array<i64: 1, 128>}, {transform_indices = @transform_3, window_bounds = array<i64: 32, 128>}]} {
    %c0 = arith.constant 0 : index
    %c0_0 = arith.constant 0 : index
    %0 = vector.load %arg1[%c0, %c0_0] : memref<32x128xbf16, #tpu.memory_space<vmem>>, vector<32x128xbf16>
    %1 = arith.extf %0 : vector<32x128xbf16> to vector<32x128xf32>
    %c0_1 = arith.constant 0 : index
    %c0_2 = arith.constant 0 : index
    %2 = vector.load %arg2[%c0_1, %c0_2] : memref<1x128xf32, #tpu.memory_space<vmem>>, vector<1x128xf32>
    %3 = vector.broadcast %2 : vector<1x128xf32> to vector<32x128xf32>
    %4 = arith.mulf %1, %3 : vector<32x128xf32>
    %c0_3 = arith.constant 0 : index
    %c0_4 = arith.constant 0 : index
    %5 = vector.load %arg3[%c0_3, %c0_4] : memref<1x128xf32, #tpu.memory_space<vmem>>, vector<1x128xf32>
    %6 = vector.broadcast %5 : vector<1x128xf32> to vector<32x128xf32>
    %7 = arith.addf %4, %6 : vector<32x128xf32>
    %cst = arith.constant 0.000000e+00 : f32
    %8 = vector.broadcast %cst : f32 to vector<32x128xf32>
    %9 = arith.mulf %8, %7 : vector<32x128xf32>
    %10 = arith.maximumf %7, %9 : vector<32x128xf32>
    %11 = arith.truncf %10 : vector<32x128xf32> to vector<32x128xbf16>
    %c0_5 = arith.constant 0 : index
    %c0_6 = arith.constant 0 : index
    %12 = vector.load %arg4[%c0_5, %c0_6] : memref<32x128xbf16, #tpu.memory_space<vmem>>, vector<32x128xbf16>
    tpu.vector_store %arg4[%c0_5, %c0_6], %11 {strides = array<i32>} : memref<32x128xbf16, #tpu.memory_space<vmem>>, vector<32x128xbf16>,
    return
  }
  func.func @transform_0(%arg0: i32) -> (i32, i32) {
    %c0_i32 = arith.constant 0 : i32
    %c0_i32_0 = arith.constant 0 : i32
    return %arg0, %c0_i32 : i32, i32
  }
  func.func @transform_1(%arg0: i32) -> (i32, i32) {
    %c0_i32 = arith.constant 0 : i32
    %c0_i32_0 = arith.constant 0 : i32
    %c0_i32_1 = arith.constant 0 : i32
    return %c0_i32, %c0_i32_0 : i32, i32
  }
  func.func @transform_2(%arg0: i32) -> (i32, i32) {
    %c0_i32 = arith.constant 0 : i32
    %c0_i32_0 = arith.constant 0 : i32
    %c0_i32_1 = arith.constant 0 : i32
    return %c0_i32, %c0_i32_0 : i32, i32
  }
  func.func @transform_3(%arg0: i32) -> (i32, i32) {
    %c0_i32 = arith.constant 0 : i32
    %c0_i32_0 = arith.constant 0 : i32
    return %arg0, %c0_i32 : i32, i32
  }
}

module attributes {stable_mosaic.version = 11 : i64} {
  func.func @_gemm_kernel(%arg0: i32, %arg1: i32, %arg2: i32, %arg3: memref<584x64xbf16, #tpu.memory_space<vmem>>, %arg4: memref<64x128xbf16, #tpu.memory_space<vmem>>, %arg5: memref<1x128xf32, #tpu.memory_space<vmem>>, %arg6: memref<584x128xf32, #tpu.memory_space<vmem>>, %arg7: memref<584x128xf32, #tpu.memory_space<vmem>>) attributes {dimension_semantics = [#tpu.dimension_semantics<parallel>, #tpu.dimension_semantics<parallel>, #tpu.dimension_semantics<arbitrary>], iteration_bounds = array<i64: 1, 1, 1>, scalar_prefetch = 0 : i64, scratch_operands = 1 : i64, tpu.core_type = #tpu.core_type<tc>, window_params = [{transform_indices = @transform_0, window_bounds = array<i64: 584, 64>}, {transform_indices = @transform_1, window_bounds = array<i64: 64, 128>}, {transform_indices = @transform_2, window_bounds = array<i64: 1, 128>}, {transform_indices = @transform_3, window_bounds = array<i64: 584, 128>}]} {
    %c0_i32 = arith.constant 0 : i32
    %0 = arith.cmpi eq, %arg2, %c0_i32 : i32
    %1 = arith.extui %0 : i1 to i32
    %c0_i32_0 = arith.constant 0 : i32
    %2 = arith.cmpi ne, %1, %c0_i32_0 : i32
    scf.if %2 {
      %cst_10 = arith.constant 0.000000e+00 : f32
      %12 = vector.broadcast %cst_10 : f32 to vector<584x128xf32>
      %c0_11 = arith.constant 0 : index
      %c0_12 = arith.constant 0 : index
      %13 = vector.load %arg7[%c0_11, %c0_12] : memref<584x128xf32, #tpu.memory_space<vmem>>, vector<584x128xf32>
      tpu.vector_store %arg7[%c0_11, %c0_12], %12 {strides = array<i32>} : memref<584x128xf32, #tpu.memory_space<vmem>>, vector<584x128xf32>,
    } else {
    }
    %c0 = arith.constant 0 : index
    %c0_1 = arith.constant 0 : index
    %3 = vector.load %arg7[%c0, %c0_1] : memref<584x128xf32, #tpu.memory_space<vmem>>, vector<584x128xf32>
    %c0_2 = arith.constant 0 : index
    %c0_3 = arith.constant 0 : index
    %4 = vector.load %arg3[%c0_2, %c0_3] : memref<584x64xbf16, #tpu.memory_space<vmem>>, vector<584x64xbf16>
    %c0_4 = arith.constant 0 : index
    %c0_5 = arith.constant 0 : index
    %5 = vector.load %arg4[%c0_4, %c0_5] : memref<64x128xbf16, #tpu.memory_space<vmem>>, vector<64x128xbf16>
    %cst = arith.constant dense<0.000000e+00> : vector<584x128xf32>
    %6 = tpu.matmul %4, %5, %cst {dimension_numbers = #tpu.dot_dimension_numbers<[1], [0], [0], [1], [0, 0, 1, 1], [], []>} : vector<584x64xbf16>, vector<64x128xbf16>, vector<584x128xf32> -> vector<584x128xf32>
    %7 = arith.addf %3, %6 : vector<584x128xf32>
    %c0_6 = arith.constant 0 : index
    %c0_7 = arith.constant 0 : index
    %8 = vector.load %arg7[%c0_6, %c0_7] : memref<584x128xf32, #tpu.memory_space<vmem>>, vector<584x128xf32>
    tpu.vector_store %arg7[%c0_6, %c0_7], %7 {strides = array<i32>} : memref<584x128xf32, #tpu.memory_space<vmem>>, vector<584x128xf32>,
    %c0_i32_8 = arith.constant 0 : i32
    %9 = arith.cmpi eq, %arg2, %c0_i32_8 : i32
    %10 = arith.extui %9 : i1 to i32
    %c0_i32_9 = arith.constant 0 : i32
    %11 = arith.cmpi ne, %10, %c0_i32_9 : i32
    scf.if %11 {
      %c0_10 = arith.constant 0 : index
      %c0_11 = arith.constant 0 : index
      %12 = vector.load %arg7[%c0_10, %c0_11] : memref<584x128xf32, #tpu.memory_space<vmem>>, vector<584x128xf32>
      %c0_12 = arith.constant 0 : index
      %c0_13 = arith.constant 0 : index
      %13 = vector.load %arg5[%c0_12, %c0_13] : memref<1x128xf32, #tpu.memory_space<vmem>>, vector<1x128xf32>
      %14 = vector.broadcast %13 : vector<1x128xf32> to vector<584x128xf32>
      %15 = arith.addf %12, %14 : vector<584x128xf32>
      %16 = math.tanh %15 : vector<584x128xf32>
      %c0_14 = arith.constant 0 : index
      %c0_15 = arith.constant 0 : index
      %17 = vector.load %arg6[%c0_14, %c0_15] : memref<584x128xf32, #tpu.memory_space<vmem>>, vector<584x128xf32>
      tpu.vector_store %arg6[%c0_14, %c0_15], %16 {strides = array<i32>} : memref<584x128xf32, #tpu.memory_space<vmem>>, vector<584x128xf32>,
    } else {
    }
    return
  }
  func.func @transform_0(%arg0: i32, %arg1: i32, %arg2: i32) -> (i32, i32) {
    %c0_i32 = arith.constant 0 : i32
    return %arg0, %arg2 : i32, i32
  }
  func.func @transform_1(%arg0: i32, %arg1: i32, %arg2: i32) -> (i32, i32) {
    %c0_i32 = arith.constant 0 : i32
    return %arg2, %arg1 : i32, i32
  }
  func.func @transform_2(%arg0: i32, %arg1: i32, %arg2: i32) -> (i32, i32) {
    %c0_i32 = arith.constant 0 : i32
    %c0_i32_0 = arith.constant 0 : i32
    return %c0_i32, %arg1 : i32, i32
  }
  func.func @transform_3(%arg0: i32, %arg1: i32, %arg2: i32) -> (i32, i32) {
    %c0_i32 = arith.constant 0 : i32
    return %arg0, %arg1 : i32, i32
  }
}

</mosaic_0001>

<llo_original>
// kernel: _lambda_.17
$region0: #{_lambda_.17}
  #allocation0 [shape = 'u32[]', space=smem, size = 0x4, offset = 0x4, fixed_abs, tag = 'smem constant byte address 0x4 - core index']
  #allocation1 [shape = 'u32[144,128]{1,0:T(1,128)}', space=vmem, size = 0x12000, scoped, tag = 'internal scratch']
  #allocation2 [shape = 'f32[512,128]{1,0:T(8,128)}', space=vmem, size = 0x40000, scoped, tag = 'scratch operand']
  %s0 = inlined_call_operand.vmem [shape: bf16[512,48], index: 0, kind: input, shape index: {}]
  %s1 = inlined_call_operand.vmem [shape: bf16[48,128], index: 1, kind: input, shape index: {}]
  %s2 = inlined_call_operand.vmem [shape: f32[1,128], index: 2, kind: input, shape index: {}]
  %s3 = inlined_call_operand.vmem [shape: bf16[512,128], index: 3, kind: output, shape index: {}]
  %s4 = sld [smem:[#allocation0]]
  $region30: #{_lambda_.17} parent=0
    _
  %s6 = ssub.s32 1, %s4
  %s7 = scalar_select 0, %s6, %s4
  // Predicated region
  $region2: #{_lambda_.17} parent=0 // pred_check
    _
  $region3: #{_lambda_.17} parent=0 // pred_check_branch
    %9 = sbr.rel (0) target = $region5
  $region4: #{_lambda_.17} parent=0 // pred_region
    _
  $region5: #{_lambda_.17} parent=0 // pred_fallthru
    _
  // Predicated region
  $region6: #{_lambda_.17} parent=0 // pred_check
    _
  $region7: #{_lambda_.17} parent=0 // pred_check_branch
    %11 = sbr.rel (0) target = $region9
  $region8: #{_lambda_.17} parent=0 // pred_region
    _
  $region9: #{_lambda_.17} parent=0 // pred_fallthru
    _
  // Predicated region
  $region10: #{_lambda_.17} parent=0 // pred_check
    _
  $region11: #{_lambda_.17} parent=0 // pred_check_branch
    %13 = sbr.rel (0) target = $region13
  $region12: #{_lambda_.17} parent=0 // pred_region
    _
  $region13: #{_lambda_.17} parent=0 // pred_fallthru
    _
  %p15 = scmp.eq.s32.totalorder 0, 0
  // Predicated region
  $region14: #{_lambda_.17} parent=0 // pred_check
    %p16 = pneg %p15
  $region15: #{_lambda_.17} parent=0 // pred_check_branch
    %18 = sbr.rel (%p16) target = $region17
  $region16: #{_lambda_.17} parent=0 // pred_region
    %19 = vst [vmem:[#allocation2] sm:$0xff] 0.0
    %20 = vst [vmem:[#allocation2 + $0x8] sm:$0xff] 0.0
    %21 = vst [vmem:[#allocation2 + $0x10] sm:$0xff] 0.0
    %22 = vst [vmem:[#allocation2 + $0x18] sm:$0xff] 0.0
    %23 = vst [vmem:[#allocation2 + $0x20] sm:$0xff] 0.0
    %24 = vst [vmem:[#allocation2 + $0x28] sm:$0xff] 0.0
    %25 = vst [vmem:[#allocation2 + $0x30] sm:$0xff] 0.0
    %26 = vst [vmem:[#allocation2 + $0x38] sm:$0xff] 0.0
    %27 = vst [vmem:[#allocation2 + $0x40] sm:$0xff] 0.0
    %28 = vst [vmem:[#allocation2 + $0x48] sm:$0xff] 0.0
    %29 = vst [vmem:[#allocation2 + $0x50] sm:$0xff] 0.0
    %30 = vst [vmem:[#allocation2 + $0x58] sm:$0xff] 0.0
    %31 = vst [vmem:[#allocation2 + $0x60] sm:$0xff] 0.0
    %32 = vst [vmem:[#allocation2 + $0x68] sm:$0xff] 0.0
    %33 = vst [vmem:[#allocation2 + $0x70] sm:$0xff] 0.0
    %34 = vst [vmem:[#allocation2 + $0x78] sm:$0xff] 0.0
    %35 = vst [vmem:[#allocation2 + $0x80] sm:$0xff] 0.0
    %36 = vst [vmem:[#allocation2 + $0x88] sm:$0xff] 0.0
    %37 = vst [vmem:[#allocation2 + $0x90] sm:$0xff] 0.0
    %38 = vst [vmem:[#allocation2 + $0x98] sm:$0xff] 0.0
    %39 = vst [vmem:[#allocation2 + $0xa0] sm:$0xff] 0.0
    %40 = vst [vmem:[#allocation2 + $0xa8] sm:$0xff] 0.0
    %41 = vst [vmem:[#allocation2 + $0xb0] sm:$0xff] 0.0
    %42 = vst [vmem:[#allocation2 + $0xb8] sm:$0xff] 0.0
    %43 = vst [vmem:[#allocation2 + $0xc0] sm:$0xff] 0.0
    %44 = vst [vmem:[#allocation2 + $0xc8] sm:$0xff] 0.0
    %45 = vst [vmem:[#allocation2 + $0xd0] sm:$0xff] 0.0
    %46 = vst [vmem:[#allocation2 + $0xd8] sm:$0xff] 0.0
    %47 = vst [vmem:[#allocation2 + $0xe0] sm:$0xff] 0.0
    %48 = vst [vmem:[#allocation2 + $0xe8] sm:$0xff] 0.0
    %49 = vst [vmem:[#allocation2 + $0xf0] sm:$0xff] 0.0
    %50 = vst [vmem:[#allocation2 + $0xf8] sm:$0xff] 0.0
    %51 = vst [vmem:[#allocation2 + $0x100] sm:$0xff] 0.0
    %52 = vst [vmem:[#allocation2 + $0x108] sm:$0xff] 0.0
    %53 = vst [vmem:[#allocation2 + $0x110] sm:$0xff] 0.0
    %54 = vst [vmem:[#allocation2 + $0x118] sm:$0xff] 0.0
    %55 = vst [vmem:[#allocation2 + $0x120] sm:$0xff] 0.0
    %56 = vst [vmem:[#allocation2 + $0x128] sm:$0xff] 0.0
    %57 = vst [vmem:[#allocation2 + $0x130] sm:$0xff] 0.0
    %58 = vst [vmem:[#allocation2 + $0x138] sm:$0xff] 0.0
    %59 = vst [vmem:[#allocation2 + $0x140] sm:$0xff] 0.0
    %60 = vst [vmem:[#allocation2 + $0x148] sm:$0xff] 0.0
    %61 = vst [vmem:[#allocation2 + $0x150] sm:$0xff] 0.0
    %62 = vst [vmem:[#allocation2 + $0x158] sm:$0xff] 0.0
    %63 = vst [vmem:[#allocation2 + $0x160] sm:$0xff] 0.0
    %64 = vst [vmem:[#allocation2 + $0x168] sm:$0xff] 0.0
    %65 = vst [vmem:[#allocation2 + $0x170] sm:$0xff] 0.0
    %66 = vst [vmem:[#allocation2 + $0x178] sm:$0xff] 0.0
    %67 = vst [vmem:[#allocation2 + $0x180] sm:$0xff] 0.0
    %68 = vst [vmem:[#allocation2 + $0x188] sm:$0xff] 0.0
    %69 = vst [vmem:[#allocation2 + $0x190] sm:$0xff] 0.0
    %70 = vst [vmem:[#allocation2 + $0x198] sm:$0xff] 0.0
    %71 = vst [vmem:[#allocation2 + $0x1a0] sm:$0xff] 0.0
    %72 = vst [vmem:[#allocation2 + $0x1a8] sm:$0xff] 0.0
    %73 = vst [vmem:[#allocation2 + $0x1b0] sm:$0xff] 0.0
    %74 = vst [vmem:[#allocation2 + $0x1b8] sm:$0xff] 0.0
    %75 = vst [vmem:[#allocation2 + $0x1c0] sm:$0xff] 0.0
    %76 = vst [vmem:[#allocation2 + $0x1c8] sm:$0xff] 0.0
    %77 = vst [vmem:[#allocation2 + $0x1d0] sm:$0xff] 0.0
    %78 = vst [vmem:[#allocation2 + $0x1d8] sm:$0xff] 0.0
    %79 = vst [vmem:[#allocation2 + $0x1e0] sm:$0xff] 0.0
    %80 = vst [vmem:[#allocation2 + $0x1e8] sm:$0xff] 0.0
    %81 = vst [vmem:[#allocation2 + $0x1f0] sm:$0xff] 0.0
    %82 = vst [vmem:[#allocation2 + $0x1f8] sm:$0xff] 0.0
  $region17: #{_lambda_.17} parent=0 // pred_fallthru
    _
  %v83 = vld [vmem:[#allocation2] sm:$0xff]
  %v84 = vld [vmem:[#allocation2 + $0x8] sm:$0xff]
  %v85 = vld [vmem:[#allocation2 + $0x10] sm:$0xff]
  %v86 = vld [vmem:[#allocation2 + $0x18] sm:$0xff]
  %v87 = vld [vmem:[#allocation2 + $0x20] sm:$0xff]
  %v88 = vld [vmem:[#allocation2 + $0x28] sm:$0xff]
  %v89 = vld [vmem:[#allocation2 + $0x30] sm:$0xff]
  %v90 = vld [vmem:[#allocation2 + $0x38] sm:$0xff]
  %v91 = vld [vmem:[#allocation2 + $0x40] sm:$0xff]
  %v92 = vld [vmem:[#allocation2 + $0x48] sm:$0xff]
  %v93 = vld [vmem:[#allocation2 + $0x50] sm:$0xff]
  %v94 = vld [vmem:[#allocation2 + $0x58] sm:$0xff]
  %v95 = vld [vmem:[#allocation2 + $0x60] sm:$0xff]
  %v96 = vld [vmem:[#allocation2 + $0x68] sm:$0xff]
  %v97 = vld [vmem:[#allocation2 + $0x70] sm:$0xff]
  %v98 = vld [vmem:[#allocation2 + $0x78] sm:$0xff]
  %v99 = vld [vmem:[#allocation2 + $0x80] sm:$0xff]
  %v100 = vld [vmem:[#allocation2 + $0x88] sm:$0xff]
  %v101 = vld [vmem:[#allocation2 + $0x90] sm:$0xff]
  %v102 = vld [vmem:[#allocation2 + $0x98] sm:$0xff]
  %v103 = vld [vmem:[#allocation2 + $0xa0] sm:$0xff]
  %v104 = vld [vmem:[#allocation2 + $0xa8] sm:$0xff]
  %v105 = vld [vmem:[#allocation2 + $0xb0] sm:$0xff]
  %v106 = vld [vmem:[#allocation2 + $0xb8] sm:$0xff]
  %v107 = vld [vmem:[#allocation2 + $0xc0] sm:$0xff]
  %v108 = vld [vmem:[#allocation2 + $0xc8] sm:$0xff]
  %v109 = vld [vmem:[#allocation2 + $0xd0] sm:$0xff]
  %v110 = vld [vmem:[#allocation2 + $0xd8] sm:$0xff]
  %v111 = vld [vmem:[#allocation2 + $0xe0] sm:$0xff]
  %v112 = vld [vmem:[#allocation2 + $0xe8] sm:$0xff]
  %v113 = vld [vmem:[#allocation2 + $0xf0] sm:$0xff]
  %v114 = vld [vmem:[#allocation2 + $0xf8] sm:$0xff]
  %v115 = vld [vmem:[#allocation2 + $0x100] sm:$0xff]
  %v116 = vld [vmem:[#allocation2 + $0x108] sm:$0xff]
  %v117 = vld [vmem:[#allocation2 + $0x110] sm:$0xff]
  %v118 = vld [vmem:[#allocation2 + $0x118] sm:$0xff]
  %v119 = vld [vmem:[#allocation2 + $0x120] sm:$0xff]
  %v120 = vld [vmem:[#allocation2 + $0x128] sm:$0xff]
  %v121 = vld [vmem:[#allocation2 + $0x130] sm:$0xff]
  %v122 = vld [vmem:[#allocation2 + $0x138] sm:$0xff]
  %v123 = vld [vmem:[#allocation2 + $0x140] sm:$0xff]
  %v124 = vld [vmem:[#allocation2 + $0x148] sm:$0xff]
  %v125 = vld [vmem:[#allocation2 + $0x150] sm:$0xff]
  %v126 = vld [vmem:[#allocation2 + $0x158] sm:$0xff]
  %v127 = vld [vmem:[#allocation2 + $0x160] sm:$0xff]
  %v128 = vld [vmem:[#allocation2 + $0x168] sm:$0xff]
  %v129 = vld [vmem:[#allocation2 + $0x170] sm:$0xff]
  %v130 = vld [vmem:[#allocation2 + $0x178] sm:$0xff]
  %v131 = vld [vmem:[#allocation2 + $0x180] sm:$0xff]
  %v132 = vld [vmem:[#allocation2 + $0x188] sm:$0xff]
  %v133 = vld [vmem:[#allocation2 + $0x190] sm:$0xff]
  %v134 = vld [vmem:[#allocation2 + $0x198] sm:$0xff]
  %v135 = vld [vmem:[#allocation2 + $0x1a0] sm:$0xff]
  %v136 = vld [vmem:[#allocation2 + $0x1a8] sm:$0xff]
  %v137 = vld [vmem:[#allocation2 + $0x1b0] sm:$0xff]
  %v138 = vld [vmem:[#allocation2 + $0x1b8] sm:$0xff]
  %v139 = vld [vmem:[#allocation2 + $0x1c0] sm:$0xff]
  %v140 = vld [vmem:[#allocation2 + $0x1c8] sm:$0xff]
  %v141 = vld [vmem:[#allocation2 + $0x1d0] sm:$0xff]
  %v142 = vld [vmem:[#allocation2 + $0x1d8] sm:$0xff]
  %v143 = vld [vmem:[#allocation2 + $0x1e0] sm:$0xff]
  %v144 = vld [vmem:[#allocation2 + $0x1e8] sm:$0xff]
  %v145 = vld [vmem:[#allocation2 + $0x1f0] sm:$0xff]
  %v146 = vld [vmem:[#allocation2 + $0x1f8] sm:$0xff]
  %v147 = vld [vmem:[%s0] sm:$0xf]
  %v148 = vld [vmem:[%s0 + $0x4] sm:$0xf]
  %v149 = vld [vmem:[%s0 + $0x8] sm:$0xf]
  %v150 = vld [vmem:[%s0 + $0xc] sm:$0xf]
  %v151 = vld [vmem:[%s0 + $0x10] sm:$0xf]
  %v152 = vld [vmem:[%s0 + $0x14] sm:$0xf]
  %v153 = vld [vmem:[%s0 + $0x18] sm:$0xf]
  %v154 = vld [vmem:[%s0 + $0x1c] sm:$0xf]
  %v155 = vld [vmem:[%s0 + $0x20] sm:$0xf]
  %v156 = vld [vmem:[%s0 + $0x24] sm:$0xf]
  %v157 = vld [vmem:[%s0 + $0x28] sm:$0xf]
  %v158 = vld [vmem:[%s0 + $0x2c] sm:$0xf]
  %v159 = vld [vmem:[%s0 + $0x30] sm:$0xf]
  %v160 = vld [vmem:[%s0 + $0x34] sm:$0xf]
  %v161 = vld [vmem:[%s0 + $0x38] sm:$0xf]
  %v162 = vld [vmem:[%s0 + $0x3c] sm:$0xf]
  %v163 = vld [vmem:[%s0 + $0x40] sm:$0xf]
  %v164 = vld [vmem:[%s0 + $0x44] sm:$0xf]
  %v165 = vld [vmem:[%s0 + $0x48] sm:$0xf]
  %v166 = vld [vmem:[%s0 + $0x4c] sm:$0xf]
  %v167 = vld [vmem:[%s0 + $0x50] sm:$0xf]
  %v168 = vld [vmem:[%s0 + $0x54] sm:$0xf]
  %v169 = vld [vmem:[%s0 + $0x58] sm:$0xf]
  %v170 = vld [vmem:[%s0 + $0x5c] sm:$0xf]
  %v171 = vld [vmem:[%s0 + $0x60] sm:$0xf]
  %v172 = vld [vmem:[%s0 + $0x64] sm:$0xf]
  %v173 = vld [vmem:[%s0 + $0x68] sm:$0xf]
  %v174 = vld [vmem:[%s0 + $0x6c] sm:$0xf]
  %v175 = vld [vmem:[%s0 + $0x70] sm:$0xf]
  %v176 = vld [vmem:[%s0 + $0x74] sm:$0xf]
  %v177 = vld [vmem:[%s0 + $0x78] sm:$0xf]
  %v178 = vld [vmem:[%s0 + $0x7c] sm:$0xf]
  %v179 = vld [vmem:[%s0 + $0x80] sm:$0xf]
  %v180 = vld [vmem:[%s0 + $0x84] sm:$0xf]
  %v181 = vld [vmem:[%s0 + $0x88] sm:$0xf]
  %v182 = vld [vmem:[%s0 + $0x8c] sm:$0xf]
  %v183 = vld [vmem:[%s0 + $0x90] sm:$0xf]
  %v184 = vld [vmem:[%s0 + $0x94] sm:$0xf]
  %v185 = vld [vmem:[%s0 + $0x98] sm:$0xf]
  %v186 = vld [vmem:[%s0 + $0x9c] sm:$0xf]
  %v187 = vld [vmem:[%s0 + $0xa0] sm:$0xf]
  %v188 = vld [vmem:[%s0 + $0xa4] sm:$0xf]
  %v189 = vld [vmem:[%s0 + $0xa8] sm:$0xf]
  %v190 = vld [vmem:[%s0 + $0xac] sm:$0xf]
  %v191 = vld [vmem:[%s0 + $0xb0] sm:$0xf]
  %v192 = vld [vmem:[%s0 + $0xb4] sm:$0xf]
  %v193 = vld [vmem:[%s0 + $0xb8] sm:$0xf]
  %v194 = vld [vmem:[%s0 + $0xbc] sm:$0xf]
  %v195 = vld [vmem:[%s0 + $0xc0] sm:$0xf]
  %v196 = vld [vmem:[%s0 + $0xc4] sm:$0xf]
  %v197 = vld [vmem:[%s0 + $0xc8] sm:$0xf]
  %v198 = vld [vmem:[%s0 + $0xcc] sm:$0xf]
  %v199 = vld [vmem:[%s0 + $0xd0] sm:$0xf]
  %v200 = vld [vmem:[%s0 + $0xd4] sm:$0xf]
  %v201 = vld [vmem:[%s0 + $0xd8] sm:$0xf]
  %v202 = vld [vmem:[%s0 + $0xdc] sm:$0xf]
  %v203 = vld [vmem:[%s0 + $0xe0] sm:$0xf]
  %v204 = vld [vmem:[%s0 + $0xe4] sm:$0xf]
  %v205 = vld [vmem:[%s0 + $0xe8] sm:$0xf]
  %v206 = vld [vmem:[%s0 + $0xec] sm:$0xf]
  %v207 = vld [vmem:[%s0 + $0xf0] sm:$0xf]
  %v208 = vld [vmem:[%s0 + $0xf4] sm:$0xf]
  %v209 = vld [vmem:[%s0 + $0xf8] sm:$0xf]
  %v210 = vld [vmem:[%s0 + $0xfc] sm:$0xf]
  %v211 = vld [vmem:[%s1] sm:$0xf]
  %v212 = vld [vmem:[%s1 + $0x4] sm:$0xf]
  %v213 = vld [vmem:[%s1 + $0x8] sm:$0xf]
  %v214 = vld [vmem:[%s1 + $0xc] sm:$0xf]
  %v215 = vld [vmem:[%s1 + $0x10] sm:$0xf]
  %v216 = vld [vmem:[%s1 + $0x14] sm:$0xf]
  %v281 = vunpack.c.l.b16 %v147
  %v282 = vunpack.c.l.b16 %v148
  %v283 = vunpack.c.l.b16 %v149
  %v284 = vunpack.c.l.b16 %v150
  %v285 = vunpack.c.l.b16 %v151
  %v286 = vunpack.c.l.b16 %v152
  %v287 = vunpack.c.l.b16 %v153
  %v288 = vunpack.c.l.b16 %v154
  %v289 = vunpack.c.l.b16 %v155
  %v290 = vunpack.c.l.b16 %v156
  %v291 = vunpack.c.l.b16 %v157
  %v292 = vunpack.c.l.b16 %v158
  %v293 = vunpack.c.l.b16 %v159
  %v294 = vunpack.c.l.b16 %v160
  %v295 = vunpack.c.l.b16 %v161
  %v296 = vunpack.c.l.b16 %v162
  %v297 = vunpack.c.l.b16 %v163
  %v298 = vunpack.c.l.b16 %v164
  %v299 = vunpack.c.l.b16 %v165
  %v300 = vunpack.c.l.b16 %v166
  %v301 = vunpack.c.l.b16 %v167
  %v302 = vunpack.c.l.b16 %v168
  %v303 = vunpack.c.l.b16 %v169
  %v304 = vunpack.c.l.b16 %v170
  %v305 = vunpack.c.l.b16 %v171
  %v306 = vunpack.c.l.b16 %v172
  %v307 = vunpack.c.l.b16 %v173
  %v308 = vunpack.c.l.b16 %v174
  %v309 = vunpack.c.l.b16 %v175
  %v310 = vunpack.c.l.b16 %v176
  %v311 = vunpack.c.l.b16 %v177
  %v312 = vunpack.c.l.b16 %v178
  %v313 = vunpack.c.l.b16 %v179
  %v314 = vunpack.c.l.b16 %v180
  %v315 = vunpack.c.l.b16 %v181
  %v316 = vunpack.c.l.b16 %v182
  %v317 = vunpack.c.l.b16 %v183
  %v318 = vunpack.c.l.b16 %v184
  %v319 = vunpack.c.l.b16 %v185
  %v320 = vunpack.c.l.b16 %v186
  %v321 = vunpack.c.l.b16 %v187
  %v322 = vunpack.c.l.b16 %v188
  %v323 = vunpack.c.l.b16 %v189
  %v324 = vunpack.c.l.b16 %v190
  %v325 = vunpack.c.l.b16 %v191
  %v326 = vunpack.c.l.b16 %v192
  %v327 = vunpack.c.l.b16 %v193
  %v328 = vunpack.c.l.b16 %v194
  %v329 = vunpack.c.l.b16 %v195
  %v330 = vunpack.c.l.b16 %v196
  %v331 = vunpack.c.l.b16 %v197
  %v332 = vunpack.c.l.b16 %v198
  %v333 = vunpack.c.l.b16 %v199
  %v334 = vunpack.c.l.b16 %v200
  %v335 = vunpack.c.l.b16 %v201
  %v336 = vunpack.c.l.b16 %v202
  %v337 = vunpack.c.l.b16 %v203
  %v338 = vunpack.c.l.b16 %v204
  %v339 = vunpack.c.l.b16 %v205
  %v340 = vunpack.c.l.b16 %v206
  %v341 = vunpack.c.l.b16 %v207
  %v342 = vunpack.c.l.b16 %v208
  %v343 = vunpack.c.l.b16 %v209
  %v344 = vunpack.c.l.b16 %v210
  %v345 = vpack.c.b16 %v282, %v281
  %v346 = vpack.c.b16 %v284, %v283
  %v347 = vpack.c.b16 %v286, %v285
  %v348 = vpack.c.b16 %v288, %v287
  %v349 = vpack.c.b16 %v290, %v289
  %v350 = vpack.c.b16 %v292, %v291
  %v351 = vpack.c.b16 %v294, %v293
  %v352 = vpack.c.b16 %v296, %v295
  %v353 = vpack.c.b16 %v298, %v297
  %v354 = vpack.c.b16 %v300, %v299
  %v355 = vpack.c.b16 %v302, %v301
  %v356 = vpack.c.b16 %v304, %v303
  %v357 = vpack.c.b16 %v306, %v305
  %v358 = vpack.c.b16 %v308, %v307
  %v359 = vpack.c.b16 %v310, %v309
  %v360 = vpack.c.b16 %v312, %v311
  %v361 = vpack.c.b16 %v314, %v313
  %v362 = vpack.c.b16 %v316, %v315
  %v363 = vpack.c.b16 %v318, %v317
  %v364 = vpack.c.b16 %v320, %v319
  %v365 = vpack.c.b16 %v322, %v321
  %v366 = vpack.c.b16 %v324, %v323
  %v367 = vpack.c.b16 %v326, %v325
  %v368 = vpack.c.b16 %v328, %v327
  %v369 = vpack.c.b16 %v330, %v329
  %v370 = vpack.c.b16 %v332, %v331
  %v371 = vpack.c.b16 %v334, %v333
  %v372 = vpack.c.b16 %v336, %v335
  %v373 = vpack.c.b16 %v338, %v337
  %v374 = vpack.c.b16 %v340, %v339
  %v375 = vpack.c.b16 %v342, %v341
  %v376 = vpack.c.b16 %v344, %v343
  %v383 = vunpack.c.l.b16 %v211
  %v384 = vunpack.c.l.b16 %v212
  %v385 = vunpack.c.l.b16 %v213
  %v386 = vunpack.c.l.b16 %v214
  %v387 = vunpack.c.l.b16 %v215
  %v388 = vunpack.c.l.b16 %v216
  %v389 = vpack.c.b16 %v384, %v383
  %v390 = vpack.c.b16 %v386, %v385
  %v391 = vpack.c.b16 %v388, %v387
  %vm395 = vcmask 392192
  %v397 = vsel %vm395, %v345, 0
  %v400 = vsel %vm395, %v346, 0
  %v403 = vsel %vm395, %v347, 0
  %v406 = vsel %vm395, %v348, 0
  %v409 = vsel %vm395, %v349, 0
  %v412 = vsel %vm395, %v350, 0
  %v415 = vsel %vm395, %v351, 0
  %v418 = vsel %vm395, %v352, 0
  %v421 = vsel %vm395, %v353, 0
  %v424 = vsel %vm395, %v354, 0
  %v427 = vsel %vm395, %v355, 0
  %v430 = vsel %vm395, %v356, 0
  %v433 = vsel %vm395, %v357, 0
  %v436 = vsel %vm395, %v358, 0
  %v439 = vsel %vm395, %v359, 0
  %v442 = vsel %vm395, %v360, 0
  %v445 = vsel %vm395, %v361, 0
  %v448 = vsel %vm395, %v362, 0
  %v451 = vsel %vm395, %v363, 0
  %v454 = vsel %vm395, %v364, 0
  %v457 = vsel %vm395, %v365, 0
  %v460 = vsel %vm395, %v366, 0
  %v463 = vsel %vm395, %v367, 0
  %v466 = vsel %vm395, %v368, 0
  %v469 = vsel %vm395, %v369, 0
  %v472 = vsel %vm395, %v370, 0
  %v475 = vsel %vm395, %v371, 0
  %v478 = vsel %vm395, %v372, 0
  %v481 = vsel %vm395, %v373, 0
  %v484 = vsel %vm395, %v374, 0
  %v487 = vsel %vm395, %v375, 0
  %v490 = vsel %vm395, %v376, 0
  %492 = vmatprep.subr.bf16.mxu0 0
  %493 = vmatpush1.bf16.msra.mxu0 0
  %494 = vmatprep.subr.bf16.mxu0 0
  %495 = vmatpush1.bf16.msra.mxu0 0
  %496 = vmatprep.subr.bf16.mxu0 0
  %497 = vmatpush1.bf16.msra.mxu0 0
  %498 = vmatprep.subr.bf16.mxu0 0
  %499 = vmatpush1.bf16.msra.mxu0 0
  %500 = vmatprep.subr.bf16.mxu0 0
  %501 = vmatpush1.bf16.msra.mxu0 0
  %502 = vmatprep.subr.bf16.mxu0 0
  %503 = vmatpush1.bf16.msra.mxu0 %v391
  %504 = vmatprep.subr.bf16.mxu0 0
  %505 = vmatpush1.bf16.msra.mxu0 %v390
  %506 = vmatprep.subr.bf16.mxu0 0
  %507 = vmatpush1.bf16.msra.mxu0 %v389
  %508 = vmatprep.subr.bf16.mxu0 0
  %509 = vmatpush2.bf16.msra.mxu0 0
  %510 = vmatprep.subr.bf16.mxu0 0
  %511 = vmatpush2.bf16.msra.mxu0 0
  %512 = vmatprep.subr.bf16.mxu0 0
  %513 = vmatpush2.bf16.msra.mxu0 0
  %514 = vmatprep.subr.bf16.mxu0 0
  %515 = vmatpush2.bf16.msra.mxu0 0
  %516 = vmatprep.subr.bf16.mxu0 0
  %517 = vmatpush2.bf16.msra.mxu0 0
  %518 = vmatprep.subr.bf16.mxu0 0
  %519 = vmatpush2.bf16.msra.mxu0 0
  %520 = vmatprep.subr.bf16.mxu0 0
  %521 = vmatpush2.bf16.msra.mxu0 0
  %522 = vmatprep.subr.bf16.mxu0 0
  %523 = vmatpush2.bf16.msra.mxu0 0
  %524 = vmatprep.mubr.bf16.mxu0 0
  %525 = vmatmul.mubr.bf16.gmra.mxu0 %v397
  %v526 = vpop.f32.mrf.mxu0
  %v527 = vadd.f32 0.0, %v526
  %v528 = vpop.f32.mrf.mxu0
  %v529 = vpop.f32.mrf.mxu0
  %v530 = vadd.f32 0.0, %v529
  %v531 = vpop.f32.mrf.mxu0
  %532 = vmatprep.mubr.bf16.mxu0 0
  %533 = vmatmul.mubr.bf16.gmra.mxu0 %v400
  %v534 = vpop.f32.mrf.mxu0
  %v535 = vadd.f32 0.0, %v534
  %v536 = vpop.f32.mrf.mxu0
  %v537 = vpop.f32.mrf.mxu0
  %v538 = vadd.f32 0.0, %v537
  %v539 = vpop.f32.mrf.mxu0
  %540 = vmatprep.mubr.bf16.mxu0 0
  %541 = vmatmul.mubr.bf16.gmra.mxu0 %v403
  %v542 = vpop.f32.mrf.mxu0
  %v543 = vadd.f32 0.0, %v542
  %v544 = vpop.f32.mrf.mxu0
  %v545 = vpop.f32.mrf.mxu0
  %v546 = vadd.f32 0.0, %v545
  %v547 = vpop.f32.mrf.mxu0
  %548 = vmatprep.mubr.bf16.mxu0 0
  %549 = vmatmul.mubr.bf16.gmra.mxu0 %v406
  %v550 = vpop.f32.mrf.mxu0
  %v551 = vadd.f32 0.0, %v550
  %v552 = vpop.f32.mrf.mxu0
  %v553 = vpop.f32.mrf.mxu0
  %v554 = vadd.f32 0.0, %v553
  %v555 = vpop.f32.mrf.mxu0
  %556 = vmatprep.mubr.bf16.mxu0 0
  %557 = vmatmul.mubr.bf16.gmra.mxu0 %v409
  %v558 = vpop.f32.mrf.mxu0
  %v559 = vadd.f32 0.0, %v558
  %v560 = vpop.f32.mrf.mxu0
  %v561 = vpop.f32.mrf.mxu0
  %v562 = vadd.f32 0.0, %v561
  %v563 = vpop.f32.mrf.mxu0
  %564 = vmatprep.mubr.bf16.mxu0 0
  %565 = vmatmul.mubr.bf16.gmra.mxu0 %v412
  %v566 = vpop.f32.mrf.mxu0
  %v567 = vadd.f32 0.0, %v566
  %v568 = vpop.f32.mrf.mxu0
  %v569 = vpop.f32.mrf.mxu0
  %v570 = vadd.f32 0.0, %v569
  %v571 = vpop.f32.mrf.mxu0
  %572 = vmatprep.mubr.bf16.mxu0 0
  %573 = vmatmul.mubr.bf16.gmra.mxu0 %v415
  %v574 = vpop.f32.mrf.mxu0
  %v575 = vadd.f32 0.0, %v574
  %v576 = vpop.f32.mrf.mxu0
  %v577 = vpop.f32.mrf.mxu0
  %v578 = vadd.f32 0.0, %v577
  %v579 = vpop.f32.mrf.mxu0
  %580 = vmatprep.mubr.bf16.mxu0 0
  %581 = vmatmul.mubr.bf16.gmra.mxu0 %v418
  %v582 = vpop.f32.mrf.mxu0
  %v583 = vadd.f32 0.0, %v582
  %v584 = vpop.f32.mrf.mxu0
  %v585 = vpop.f32.mrf.mxu0
  %v586 = vadd.f32 0.0, %v585
  %v587 = vpop.f32.mrf.mxu0
  %588 = vmatprep.mubr.bf16.mxu0 0
  %589 = vmatmul.mubr.bf16.gmra.mxu0 %v421
  %v590 = vpop.f32.mrf.mxu0
  %v591 = vadd.f32 0.0, %v590
  %v592 = vpop.f32.mrf.mxu0
  %v593 = vpop.f32.mrf.mxu0
  %v594 = vadd.f32 0.0, %v593
  %v595 = vpop.f32.mrf.mxu0
  %596 = vmatprep.mubr.bf16.mxu0 0
  %597 = vmatmul.mubr.bf16.gmra.mxu0 %v424
  %v598 = vpop.f32.mrf.mxu0
  %v599 = vadd.f32 0.0, %v598
  %v600 = vpop.f32.mrf.mxu0
  %v601 = vpop.f32.mrf.mxu0
  %v602 = vadd.f32 0.0, %v601
  %v603 = vpop.f32.mrf.mxu0
  %604 = vmatprep.mubr.bf16.mxu0 0
  %605 = vmatmul.mubr.bf16.gmra.mxu0 %v427
  %v606 = vpop.f32.mrf.mxu0
  %v607 = vadd.f32 0.0, %v606
  %v608 = vpop.f32.mrf.mxu0
  %v609 = vpop.f32.mrf.mxu0
  %v610 = vadd.f32 0.0, %v609
  %v611 = vpop.f32.mrf.mxu0
  %612 = vmatprep.mubr.bf16.mxu0 0
  %613 = vmatmul.mubr.bf16.gmra.mxu0 %v430
  %v614 = vpop.f32.mrf.mxu0
  %v615 = vadd.f32 0.0, %v614
  %v616 = vpop.f32.mrf.mxu0
  %v617 = vpop.f32.mrf.mxu0
  %v618 = vadd.f32 0.0, %v617
  %v619 = vpop.f32.mrf.mxu0
  %620 = vmatprep.mubr.bf16.mxu0 0
  %621 = vmatmul.mubr.bf16.gmra.mxu0 %v433
  %v622 = vpop.f32.mrf.mxu0
  %v623 = vadd.f32 0.0, %v622
  %v624 = vpop.f32.mrf.mxu0
  %v625 = vpop.f32.mrf.mxu0
  %v626 = vadd.f32 0.0, %v625
  %v627 = vpop.f32.mrf.mxu0
  %628 = vmatprep.mubr.bf16.mxu0 0
  %629 = vmatmul.mubr.bf16.gmra.mxu0 %v436
  %v630 = vpop.f32.mrf.mxu0
  %v631 = vadd.f32 0.0, %v630
  %v632 = vpop.f32.mrf.mxu0
  %v633 = vpop.f32.mrf.mxu0
  %v634 = vadd.f32 0.0, %v633
  %v635 = vpop.f32.mrf.mxu0
  %636 = vmatprep.mubr.bf16.mxu0 0
  %637 = vmatmul.mubr.bf16.gmra.mxu0 %v439
  %v638 = vpop.f32.mrf.mxu0
  %v639 = vadd.f32 0.0, %v638
  %v640 = vpop.f32.mrf.mxu0
  %v641 = vpop.f32.mrf.mxu0
  %v642 = vadd.f32 0.0, %v641
  %v643 = vpop.f32.mrf.mxu0
  %644 = vmatprep.mubr.bf16.mxu0 0
  %645 = vmatmul.mubr.bf16.gmra.mxu0 %v442
  %v646 = vpop.f32.mrf.mxu0
  %v647 = vadd.f32 0.0, %v646
  %v648 = vpop.f32.mrf.mxu0
  %v649 = vpop.f32.mrf.mxu0
  %v650 = vadd.f32 0.0, %v649
  %v651 = vpop.f32.mrf.mxu0
  %652 = vmatprep.mubr.bf16.mxu0 0
  %653 = vmatmul.mubr.bf16.gmra.mxu0 %v445
  %v654 = vpop.f32.mrf.mxu0
  %v655 = vadd.f32 0.0, %v654
  %v656 = vpop.f32.mrf.mxu0
  %v657 = vpop.f32.mrf.mxu0
  %v658 = vadd.f32 0.0, %v657
  %v659 = vpop.f32.mrf.mxu0
  %660 = vmatprep.mubr.bf16.mxu0 0
  %661 = vmatmul.mubr.bf16.gmra.mxu0 %v448
  %v662 = vpop.f32.mrf.mxu0
  %v663 = vadd.f32 0.0, %v662
  %v664 = vpop.f32.mrf.mxu0
  %v665 = vpop.f32.mrf.mxu0
  %v666 = vadd.f32 0.0, %v665
  %v667 = vpop.f32.mrf.mxu0
  %668 = vmatprep.mubr.bf16.mxu0 0
  %669 = vmatmul.mubr.bf16.gmra.mxu0 %v451
  %v670 = vpop.f32.mrf.mxu0
  %v671 = vadd.f32 0.0, %v670
  %v672 = vpop.f32.mrf.mxu0
  %v673 = vpop.f32.mrf.mxu0
  %v674 = vadd.f32 0.0, %v673
  %v675 = vpop.f32.mrf.mxu0
  %676 = vmatprep.mubr.bf16.mxu0 0
  %677 = vmatmul.mubr.bf16.gmra.mxu0 %v454
  %v678 = vpop.f32.mrf.mxu0
  %v679 = vadd.f32 0.0, %v678
  %v680 = vpop.f32.mrf.mxu0
  %v681 = vpop.f32.mrf.mxu0
  %v682 = vadd.f32 0.0, %v681
  %v683 = vpop.f32.mrf.mxu0
  %684 = vmatprep.mubr.bf16.mxu0 0
  %685 = vmatmul.mubr.bf16.gmra.mxu0 %v457
  %v686 = vpop.f32.mrf.mxu0
  %v687 = vadd.f32 0.0, %v686
  %v688 = vpop.f32.mrf.mxu0
  %v689 = vpop.f32.mrf.mxu0
  %v690 = vadd.f32 0.0, %v689
  %v691 = vpop.f32.mrf.mxu0
  %692 = vmatprep.mubr.bf16.mxu0 0
  %693 = vmatmul.mubr.bf16.gmra.mxu0 %v460
  %v694 = vpop.f32.mrf.mxu0
  %v695 = vadd.f32 0.0, %v694
  %v696 = vpop.f32.mrf.mxu0
  %v697 = vpop.f32.mrf.mxu0
  %v698 = vadd.f32 0.0, %v697
  %v699 = vpop.f32.mrf.mxu0
  %700 = vmatprep.mubr.bf16.mxu0 0
  %701 = vmatmul.mubr.bf16.gmra.mxu0 %v463
  %v702 = vpop.f32.mrf.mxu0
  %v703 = vadd.f32 0.0, %v702
  %v704 = vpop.f32.mrf.mxu0
  %v705 = vpop.f32.mrf.mxu0
  %v706 = vadd.f32 0.0, %v705
  %v707 = vpop.f32.mrf.mxu0
  %708 = vmatprep.mubr.bf16.mxu0 0
  %709 = vmatmul.mubr.bf16.gmra.mxu0 %v466
  %v710 = vpop.f32.mrf.mxu0
  %v711 = vadd.f32 0.0, %v710
  %v712 = vpop.f32.mrf.mxu0
  %v713 = vpop.f32.mrf.mxu0
  %v714 = vadd.f32 0.0, %v713
  %v715 = vpop.f32.mrf.mxu0
  %716 = vmatprep.mubr.bf16.mxu0 0
  %717 = vmatmul.mubr.bf16.gmra.mxu0 %v469
  %v718 = vpop.f32.mrf.mxu0
  %v719 = vadd.f32 0.0, %v718
  %v720 = vpop.f32.mrf.mxu0
  %v721 = vpop.f32.mrf.mxu0
  %v722 = vadd.f32 0.0, %v721
  %v723 = vpop.f32.mrf.mxu0
  %724 = vmatprep.mubr.bf16.mxu0 0
  %725 = vmatmul.mubr.bf16.gmra.mxu0 %v472
  %v726 = vpop.f32.mrf.mxu0
  %v727 = vadd.f32 0.0, %v726
  %v728 = vpop.f32.mrf.mxu0
  %v729 = vpop.f32.mrf.mxu0
  %v730 = vadd.f32 0.0, %v729
  %v731 = vpop.f32.mrf.mxu0
  %732 = vmatprep.mubr.bf16.mxu0 0
  %733 = vmatmul.mubr.bf16.gmra.mxu0 %v475
  %v734 = vpop.f32.mrf.mxu0
  %v735 = vadd.f32 0.0, %v734
  %v736 = vpop.f32.mrf.mxu0
  %v737 = vpop.f32.mrf.mxu0
  %v738 = vadd.f32 0.0, %v737
  %v739 = vpop.f32.mrf.mxu0
  %740 = vmatprep.mubr.bf16.mxu0 0
  %741 = vmatmul.mubr.bf16.gmra.mxu0 %v478
  %v742 = vpop.f32.mrf.mxu0
  %v743 = vadd.f32 0.0, %v742
  %v744 = vpop.f32.mrf.mxu0
  %v745 = vpop.f32.mrf.mxu0
  %v746 = vadd.f32 0.0, %v745
  %v747 = vpop.f32.mrf.mxu0
  %748 = vmatprep.mubr.bf16.mxu0 0
  %749 = vmatmul.mubr.bf16.gmra.mxu0 %v481
  %v750 = vpop.f32.mrf.mxu0
  %v751 = vadd.f32 0.0, %v750
  %v752 = vpop.f32.mrf.mxu0
  %v753 = vpop.f32.mrf.mxu0
  %v754 = vadd.f32 0.0, %v753
  %v755 = vpop.f32.mrf.mxu0
  %756 = vmatprep.mubr.bf16.mxu0 0
  %757 = vmatmul.mubr.bf16.gmra.mxu0 %v484
  %v758 = vpop.f32.mrf.mxu0
  %v759 = vadd.f32 0.0, %v758
  %v760 = vpop.f32.mrf.mxu0
  %v761 = vpop.f32.mrf.mxu0
  %v762 = vadd.f32 0.0, %v761
  %v763 = vpop.f32.mrf.mxu0
  %764 = vmatprep.mubr.bf16.mxu0 0
  %765 = vmatmul.mubr.bf16.gmra.mxu0 %v487
  %v766 = vpop.f32.mrf.mxu0
  %v767 = vadd.f32 0.0, %v766
  %v768 = vpop.f32.mrf.mxu0
  %v769 = vpop.f32.mrf.mxu0
  %v770 = vadd.f32 0.0, %v769
  %v771 = vpop.f32.mrf.mxu0
  %772 = vmatprep.mubr.bf16.mxu0 0
  %773 = vmatmul.mubr.bf16.gmra.mxu0 %v490
  %v774 = vpop.f32.mrf.mxu0
  %v775 = vadd.f32 0.0, %v774
  %v776 = vpop.f32.mrf.mxu0
  %v777 = vpop.f32.mrf.mxu0
  %v778 = vadd.f32 0.0, %v777
  %v779 = vpop.f32.mrf.mxu0
  %780 = vdwg.mxu0
  %v781 = vadd.f32 %v83, %v527
  %v782 = vadd.f32 %v84, %v530
  %v783 = vadd.f32 %v85, %v535
  %v784 = vadd.f32 %v86, %v538
  %v785 = vadd.f32 %v87, %v543
  %v786 = vadd.f32 %v88, %v546
  %v787 = vadd.f32 %v89, %v551
  %v788 = vadd.f32 %v90, %v554
  %v789 = vadd.f32 %v91, %v559
  %v790 = vadd.f32 %v92, %v562
  %v791 = vadd.f32 %v93, %v567
  %v792 = vadd.f32 %v94, %v570
  %v793 = vadd.f32 %v95, %v575
  %v794 = vadd.f32 %v96, %v578
  %v795 = vadd.f32 %v97, %v583
  %v796 = vadd.f32 %v98, %v586
  %v797 = vadd.f32 %v99, %v591
  %v798 = vadd.f32 %v100, %v594
  %v799 = vadd.f32 %v101, %v599
  %v800 = vadd.f32 %v102, %v602
  %v801 = vadd.f32 %v103, %v607
  %v802 = vadd.f32 %v104, %v610
  %v803 = vadd.f32 %v105, %v615
  %v804 = vadd.f32 %v106, %v618
  %v805 = vadd.f32 %v107, %v623
  %v806 = vadd.f32 %v108, %v626
  %v807 = vadd.f32 %v109, %v631
  %v808 = vadd.f32 %v110, %v634
  %v809 = vadd.f32 %v111, %v639
  %v810 = vadd.f32 %v112, %v642
  %v811 = vadd.f32 %v113, %v647
  %v812 = vadd.f32 %v114, %v650
  %v813 = vadd.f32 %v115, %v655
  %v814 = vadd.f32 %v116, %v658
  %v815 = vadd.f32 %v117, %v663
  %v816 = vadd.f32 %v118, %v666
  %v817 = vadd.f32 %v119, %v671
  %v818 = vadd.f32 %v120, %v674
  %v819 = vadd.f32 %v121, %v679
  %v820 = vadd.f32 %v122, %v682
  %v821 = vadd.f32 %v123, %v687
  %v822 = vadd.f32 %v124, %v690
  %v823 = vadd.f32 %v125, %v695
  %v824 = vadd.f32 %v126, %v698
  %v825 = vadd.f32 %v127, %v703
  %v826 = vadd.f32 %v128, %v706
  %v827 = vadd.f32 %v129, %v711
  %v828 = vadd.f32 %v130, %v714
  %v829 = vadd.f32 %v131, %v719
  %v830 = vadd.f32 %v132, %v722
  %v831 = vadd.f32 %v133, %v727
  %v832 = vadd.f32 %v134, %v730
  %v833 = vadd.f32 %v135, %v735
  %v834 = vadd.f32 %v136, %v738
  %v835 = vadd.f32 %v137, %v743
  %v836 = vadd.f32 %v138, %v746
  %v837 = vadd.f32 %v139, %v751
  %v838 = vadd.f32 %v140, %v754
  %v839 = vadd.f32 %v141, %v759
  %v840 = vadd.f32 %v142, %v762
  %v841 = vadd.f32 %v143, %v767
  %v842 = vadd.f32 %v144, %v770
  %v843 = vadd.f32 %v145, %v775
  %v844 = vadd.f32 %v146, %v778
  %845 = vst [vmem:[#allocation2] sm:$0xff] %v781
  %846 = vst [vmem:[#allocation2 + $0x8] sm:$0xff] %v782
  %847 = vst [vmem:[#allocation2 + $0x10] sm:$0xff] %v783
  %848 = vst [vmem:[#allocation2 + $0x18] sm:$0xff] %v784
  %849 = vst [vmem:[#allocation2 + $0x20] sm:$0xff] %v785
  %850 = vst [vmem:[#allocation2 + $0x28] sm:$0xff] %v786
  %851 = vst [vmem:[#allocation2 + $0x30] sm:$0xff] %v787
  %852 = vst [vmem:[#allocation2 + $0x38] sm:$0xff] %v788
  %853 = vst [vmem:[#allocation2 + $0x40] sm:$0xff] %v789
  %854 = vst [vmem:[#allocation2 + $0x48] sm:$0xff] %v790
  %855 = vst [vmem:[#allocation2 + $0x50] sm:$0xff] %v791
  %856 = vst [vmem:[#allocation2 + $0x58] sm:$0xff] %v792
  %857 = vst [vmem:[#allocation2 + $0x60] sm:$0xff] %v793
  %858 = vst [vmem:[#allocation2 + $0x68] sm:$0xff] %v794
  %859 = vst [vmem:[#allocation2 + $0x70] sm:$0xff] %v795
  %860 = vst [vmem:[#allocation2 + $0x78] sm:$0xff] %v796
  %861 = vst [vmem:[#allocation2 + $0x80] sm:$0xff] %v797
  %862 = vst [vmem:[#allocation2 + $0x88] sm:$0xff] %v798
  %863 = vst [vmem:[#allocation2 + $0x90] sm:$0xff] %v799
  %864 = vst [vmem:[#allocation2 + $0x98] sm:$0xff] %v800
  %865 = vst [vmem:[#allocation2 + $0xa0] sm:$0xff] %v801
  %866 = vst [vmem:[#allocation2 + $0xa8] sm:$0xff] %v802
  %867 = vst [vmem:[#allocation2 + $0xb0] sm:$0xff] %v803
  %868 = vst [vmem:[#allocation2 + $0xb8] sm:$0xff] %v804
  %869 = vst [vmem:[#allocation2 + $0xc0] sm:$0xff] %v805
  %870 = vst [vmem:[#allocation2 + $0xc8] sm:$0xff] %v806
  %871 = vst [vmem:[#allocation2 + $0xd0] sm:$0xff] %v807
  %872 = vst [vmem:[#allocation2 + $0xd8] sm:$0xff] %v808
  %873 = vst [vmem:[#allocation2 + $0xe0] sm:$0xff] %v809
  %874 = vst [vmem:[#allocation2 + $0xe8] sm:$0xff] %v810
  %875 = vst [vmem:[#allocation2 + $0xf0] sm:$0xff] %v811
  %876 = vst [vmem:[#allocation2 + $0xf8] sm:$0xff] %v812
  %877 = vst [vmem:[#allocation2 + $0x100] sm:$0xff] %v813
  %878 = vst [vmem:[#allocation2 + $0x108] sm:$0xff] %v814
  %879 = vst [vmem:[#allocation2 + $0x110] sm:$0xff] %v815
  %880 = vst [vmem:[#allocation2 + $0x118] sm:$0xff] %v816
  %881 = vst [vmem:[#allocation2 + $0x120] sm:$0xff] %v817
  %882 = vst [vmem:[#allocation2 + $0x128] sm:$0xff] %v818
  %883 = vst [vmem:[#allocation2 + $0x130] sm:$0xff] %v819
  %884 = vst [vmem:[#allocation2 + $0x138] sm:$0xff] %v820
  %885 = vst [vmem:[#allocation2 + $0x140] sm:$0xff] %v821
  %886 = vst [vmem:[#allocation2 + $0x148] sm:$0xff] %v822
  %887 = vst [vmem:[#allocation2 + $0x150] sm:$0xff] %v823
  %888 = vst [vmem:[#allocation2 + $0x158] sm:$0xff] %v824
  %889 = vst [vmem:[#allocation2 + $0x160] sm:$0xff] %v825
  %890 = vst [vmem:[#allocation2 + $0x168] sm:$0xff] %v826
  %891 = vst [vmem:[#allocation2 + $0x170] sm:$0xff] %v827
  %892 = vst [vmem:[#allocation2 + $0x178] sm:$0xff] %v828
  %893 = vst [vmem:[#allocation2 + $0x180] sm:$0xff] %v829
  %894 = vst [vmem:[#allocation2 + $0x188] sm:$0xff] %v830
  %895 = vst [vmem:[#allocation2 + $0x190] sm:$0xff] %v831
  %896 = vst [vmem:[#allocation2 + $0x198] sm:$0xff] %v832
  %897 = vst [vmem:[#allocation2 + $0x1a0] sm:$0xff] %v833
  %898 = vst [vmem:[#allocation2 + $0x1a8] sm:$0xff] %v834
  %899 = vst [vmem:[#allocation2 + $0x1b0] sm:$0xff] %v835
  %900 = vst [vmem:[#allocation2 + $0x1b8] sm:$0xff] %v836
  %901 = vst [vmem:[#allocation2 + $0x1c0] sm:$0xff] %v837
  %902 = vst [vmem:[#allocation2 + $0x1c8] sm:$0xff] %v838
  %903 = vst [vmem:[#allocation2 + $0x1d0] sm:$0xff] %v839
  %904 = vst [vmem:[#allocation2 + $0x1d8] sm:$0xff] %v840
  %905 = vst [vmem:[#allocation2 + $0x1e0] sm:$0xff] %v841
  %906 = vst [vmem:[#allocation2 + $0x1e8] sm:$0xff] %v842
  %907 = vst [vmem:[#allocation2 + $0x1f0] sm:$0xff] %v843
  %908 = vst [vmem:[#allocation2 + $0x1f8] sm:$0xff] %v844
  // Predicated region
  $region18: #{_lambda_.17} parent=0 // pred_check
    %p909 = pneg %p15
  $region19: #{_lambda_.17} parent=0 // pred_check_branch
    %911 = sbr.rel (%p909) target = $region21
  $region20: #{_lambda_.17} parent=0 // pred_region
    %v912 = vld [vmem:[#allocation2] sm:$0xff]
    %v913 = vld [vmem:[#allocation2 + $0x8] sm:$0xff]
    %v914 = vld [vmem:[#allocation2 + $0x10] sm:$0xff]
    %v915 = vld [vmem:[#allocation2 + $0x18] sm:$0xff]
    %v916 = vld [vmem:[#allocation2 + $0x20] sm:$0xff]
    %v917 = vld [vmem:[#allocation2 + $0x28] sm:$0xff]
    %v918 = vld [vmem:[#allocation2 + $0x30] sm:$0xff]
    %v919 = vld [vmem:[#allocation2 + $0x38] sm:$0xff]
    %v920 = vld [vmem:[#allocation2 + $0x40] sm:$0xff]
    %v921 = vld [vmem:[#allocation2 + $0x48] sm:$0xff]
    %v922 = vld [vmem:[#allocation2 + $0x50] sm:$0xff]
    %v923 = vld [vmem:[#allocation2 + $0x58] sm:$0xff]
    %v924 = vld [vmem:[#allocation2 + $0x60] sm:$0xff]
    %v925 = vld [vmem:[#allocation2 + $0x68] sm:$0xff]
    %v926 = vld [vmem:[#allocation2 + $0x70] sm:$0xff]
    %v927 = vld [vmem:[#allocation2 + $0x78] sm:$0xff]
    %v928 = vld [vmem:[#allocation2 + $0x80] sm:$0xff]
    %v929 = vld [vmem:[#allocation2 + $0x88] sm:$0xff]
    %v930 = vld [vmem:[#allocation2 + $0x90] sm:$0xff]
    %v931 = vld [vmem:[#allocation2 + $0x98] sm:$0xff]
    %v932 = vld [vmem:[#allocation2 + $0xa0] sm:$0xff]
    %v933 = vld [vmem:[#allocation2 + $0xa8] sm:$0xff]
    %v934 = vld [vmem:[#allocation2 + $0xb0] sm:$0xff]
    %v935 = vld [vmem:[#allocation2 + $0xb8] sm:$0xff]
    %v936 = vld [vmem:[#allocation2 + $0xc0] sm:$0xff]
    %v937 = vld [vmem:[#allocation2 + $0xc8] sm:$0xff]
    %v938 = vld [vmem:[#allocation2 + $0xd0] sm:$0xff]
    %v939 = vld [vmem:[#allocation2 + $0xd8] sm:$0xff]
    %v940 = vld [vmem:[#allocation2 + $0xe0] sm:$0xff]
    %v941 = vld [vmem:[#allocation2 + $0xe8] sm:$0xff]
    %v942 = vld [vmem:[#allocation2 + $0xf0] sm:$0xff]
    %v943 = vld [vmem:[#allocation2 + $0xf8] sm:$0xff]
    %v944 = vld [vmem:[#allocation2 + $0x100] sm:$0xff]
    %v945 = vld [vmem:[#allocation2 + $0x108] sm:$0xff]
    %v946 = vld [vmem:[#allocation2 + $0x110] sm:$0xff]
    %v947 = vld [vmem:[#allocation2 + $0x118] sm:$0xff]
    %v948 = vld [vmem:[#allocation2 + $0x120] sm:$0xff]
    %v949 = vld [vmem:[#allocation2 + $0x128] sm:$0xff]
    %v950 = vld [vmem:[#allocation2 + $0x130] sm:$0xff]
    %v951 = vld [vmem:[#allocation2 + $0x138] sm:$0xff]
    %v952 = vld [vmem:[#allocation2 + $0x140] sm:$0xff]
    %v953 = vld [vmem:[#allocation2 + $0x148] sm:$0xff]
    %v954 = vld [vmem:[#allocation2 + $0x150] sm:$0xff]
    %v955 = vld [vmem:[#allocation2 + $0x158] sm:$0xff]
    %v956 = vld [vmem:[#allocation2 + $0x160] sm:$0xff]
    %v957 = vld [vmem:[#allocation2 + $0x168] sm:$0xff]
    %v958 = vld [vmem:[#allocation2 + $0x170] sm:$0xff]
    %v959 = vld [vmem:[#allocation2 + $0x178] sm:$0xff]
    %v960 = vld [vmem:[#allocation2 + $0x180] sm:$0xff]
    %v961 = vld [vmem:[#allocation2 + $0x188] sm:$0xff]
    %v962 = vld [vmem:[#allocation2 + $0x190] sm:$0xff]
    %v963 = vld [vmem:[#allocation2 + $0x198] sm:$0xff]
    %v964 = vld [vmem:[#allocation2 + $0x1a0] sm:$0xff]
    %v965 = vld [vmem:[#allocation2 + $0x1a8] sm:$0xff]
    %v966 = vld [vmem:[#allocation2 + $0x1b0] sm:$0xff]
    %v967 = vld [vmem:[#allocation2 + $0x1b8] sm:$0xff]
    %v968 = vld [vmem:[#allocation2 + $0x1c0] sm:$0xff]
    %v969 = vld [vmem:[#allocation2 + $0x1c8] sm:$0xff]
    %v970 = vld [vmem:[#allocation2 + $0x1d0] sm:$0xff]
    %v971 = vld [vmem:[#allocation2 + $0x1d8] sm:$0xff]
    %v972 = vld [vmem:[#allocation2 + $0x1e0] sm:$0xff]
    %v973 = vld [vmem:[#allocation2 + $0x1e8] sm:$0xff]
    %v974 = vld [vmem:[#allocation2 + $0x1f0] sm:$0xff]
    %v975 = vld [vmem:[#allocation2 + $0x1f8] sm:$0xff]
    %v976 = vld [vmem:[%s2] sm:$0x1]
    %v978 = vlaneseq
    %v979 = vshrl.u32 %v978, 7
    %v980 = vsub.s32 0, %v979
    %v981 = vrot.slane %v976, %v980
    %v983 = vadd.f32 %v912, %v981
    %v984 = vadd.f32 %v913, %v981
    %v985 = vadd.f32 %v914, %v981
    %v986 = vadd.f32 %v915, %v981
    %v987 = vadd.f32 %v916, %v981
    %v988 = vadd.f32 %v917, %v981
    %v989 = vadd.f32 %v918, %v981
    %v990 = vadd.f32 %v919, %v981
    %v991 = vadd.f32 %v920, %v981
    %v992 = vadd.f32 %v921, %v981
    %v993 = vadd.f32 %v922, %v981
    %v994 = vadd.f32 %v923, %v981
    %v995 = vadd.f32 %v924, %v981
    %v996 = vadd.f32 %v925, %v981
    %v997 = vadd.f32 %v926, %v981
    %v998 = vadd.f32 %v927, %v981
    %v999 = vadd.f32 %v928, %v981
    %v1000 = vadd.f32 %v929, %v981
    %v1001 = vadd.f32 %v930, %v981
    %v1002 = vadd.f32 %v931, %v981
    %v1003 = vadd.f32 %v932, %v981
    %v1004 = vadd.f32 %v933, %v981
    %v1005 = vadd.f32 %v934, %v981
    %v1006 = vadd.f32 %v935, %v981
    %v1007 = vadd.f32 %v936, %v981
    %v1008 = vadd.f32 %v937, %v981
    %v1009 = vadd.f32 %v938, %v981
    %v1010 = vadd.f32 %v939, %v981
    %v1011 = vadd.f32 %v940, %v981
    %v1012 = vadd.f32 %v941, %v981
    %v1013 = vadd.f32 %v942, %v981
    %v1014 = vadd.f32 %v943, %v981
    %v1015 = vadd.f32 %v944, %v981
    %v1016 = vadd.f32 %v945, %v981
    %v1017 = vadd.f32 %v946, %v981
    %v1018 = vadd.f32 %v947, %v981
    %v1019 = vadd.f32 %v948, %v981
    %v1020 = vadd.f32 %v949, %v981
    %v1021 = vadd.f32 %v950, %v981
    %v1022 = vadd.f32 %v951, %v981
    %v1023 = vadd.f32 %v952, %v981
    %v1024 = vadd.f32 %v953, %v981
    %v1025 = vadd.f32 %v954, %v981
    %v1026 = vadd.f32 %v955, %v981
    %v1027 = vadd.f32 %v956, %v981
    %v1028 = vadd.f32 %v957, %v981
    %v1029 = vadd.f32 %v958, %v981
    %v1030 = vadd.f32 %v959, %v981
    %v1031 = vadd.f32 %v960, %v981
    %v1032 = vadd.f32 %v961, %v981
    %v1033 = vadd.f32 %v962, %v981
    %v1034 = vadd.f32 %v963, %v981
    %v1035 = vadd.f32 %v964, %v981
    %v1036 = vadd.f32 %v965, %v981
    %v1037 = vadd.f32 %v966, %v981
    %v1038 = vadd.f32 %v967, %v981
    %v1039 = vadd.f32 %v968, %v981
    %v1040 = vadd.f32 %v969, %v981
    %v1041 = vadd.f32 %v970, %v981
    %v1042 = vadd.f32 %v971, %v981
    %v1043 = vadd.f32 %v972, %v981
    %v1044 = vadd.f32 %v973, %v981
    %v1045 = vadd.f32 %v974, %v981
    %v1046 = vadd.f32 %v975, %v981
    %v1047 = vpack.c.bf16 %v984, %v983
    %v1048 = vpack.c.bf16 %v986, %v985
    %v1049 = vpack.c.bf16 %v988, %v987
    %v1050 = vpack.c.bf16 %v990, %v989
    %v1051 = vpack.c.bf16 %v992, %v991
    %v1052 = vpack.c.bf16 %v994, %v993
    %v1053 = vpack.c.bf16 %v996, %v995
    %v1054 = vpack.c.bf16 %v998, %v997
    %v1055 = vpack.c.bf16 %v1000, %v999
    %v1056 = vpack.c.bf16 %v1002, %v1001
    %v1057 = vpack.c.bf16 %v1004, %v1003
    %v1058 = vpack.c.bf16 %v1006, %v1005
    %v1059 = vpack.c.bf16 %v1008, %v1007
    %v1060 = vpack.c.bf16 %v1010, %v1009
    %v1061 = vpack.c.bf16 %v1012, %v1011
    %v1062 = vpack.c.bf16 %v1014, %v1013
    %v1063 = vpack.c.bf16 %v1016, %v1015
    %v1064 = vpack.c.bf16 %v1018, %v1017
    %v1065 = vpack.c.bf16 %v1020, %v1019
    %v1066 = vpack.c.bf16 %v1022, %v1021
    %v1067 = vpack.c.bf16 %v1024, %v1023
    %v1068 = vpack.c.bf16 %v1026, %v1025
    %v1069 = vpack.c.bf16 %v1028, %v1027
    %v1070 = vpack.c.bf16 %v1030, %v1029
    %v1071 = vpack.c.bf16 %v1032, %v1031
    %v1072 = vpack.c.bf16 %v1034, %v1033
    %v1073 = vpack.c.bf16 %v1036, %v1035
    %v1074 = vpack.c.bf16 %v1038, %v1037
    %v1075 = vpack.c.bf16 %v1040, %v1039
    %v1076 = vpack.c.bf16 %v1042, %v1041
    %v1077 = vpack.c.bf16 %v1044, %v1043
    %v1078 = vpack.c.bf16 %v1046, %v1045
    %v1111 = vunpack.c.l.b16 %v1047
    %v1112 = vunpack.c.h.b16 %v1047
    %v1113 = vunpack.c.l.b16 %v1048
    %v1114 = vunpack.c.h.b16 %v1048
    %v1115 = vunpack.c.l.b16 %v1049
    %v1116 = vunpack.c.h.b16 %v1049
    %v1117 = vunpack.c.l.b16 %v1050
    %v1118 = vunpack.c.h.b16 %v1050
    %v1119 = vunpack.c.l.b16 %v1051
    %v1120 = vunpack.c.h.b16 %v1051
    %v1121 = vunpack.c.l.b16 %v1052
    %v1122 = vunpack.c.h.b16 %v1052
    %v1123 = vunpack.c.l.b16 %v1053
    %v1124 = vunpack.c.h.b16 %v1053
    %v1125 = vunpack.c.l.b16 %v1054
    %v1126 = vunpack.c.h.b16 %v1054
    %v1127 = vunpack.c.l.b16 %v1055
    %v1128 = vunpack.c.h.b16 %v1055
    %v1129 = vunpack.c.l.b16 %v1056
    %v1130 = vunpack.c.h.b16 %v1056
    %v1131 = vunpack.c.l.b16 %v1057
    %v1132 = vunpack.c.h.b16 %v1057
    %v1133 = vunpack.c.l.b16 %v1058
    %v1134 = vunpack.c.h.b16 %v1058
    %v1135 = vunpack.c.l.b16 %v1059
    %v1136 = vunpack.c.h.b16 %v1059
    %v1137 = vunpack.c.l.b16 %v1060
    %v1138 = vunpack.c.h.b16 %v1060
    %v1139 = vunpack.c.l.b16 %v1061
    %v1140 = vunpack.c.h.b16 %v1061
    %v1141 = vunpack.c.l.b16 %v1062
    %v1142 = vunpack.c.h.b16 %v1062
    %v1143 = vunpack.c.l.b16 %v1063
    %v1144 = vunpack.c.h.b16 %v1063
    %v1145 = vunpack.c.l.b16 %v1064
    %v1146 = vunpack.c.h.b16 %v1064
    %v1147 = vunpack.c.l.b16 %v1065
    %v1148 = vunpack.c.h.b16 %v1065
    %v1149 = vunpack.c.l.b16 %v1066
    %v1150 = vunpack.c.h.b16 %v1066
    %v1151 = vunpack.c.l.b16 %v1067
    %v1152 = vunpack.c.h.b16 %v1067
    %v1153 = vunpack.c.l.b16 %v1068
    %v1154 = vunpack.c.h.b16 %v1068
    %v1155 = vunpack.c.l.b16 %v1069
    %v1156 = vunpack.c.h.b16 %v1069
    %v1157 = vunpack.c.l.b16 %v1070
    %v1158 = vunpack.c.h.b16 %v1070
    %v1159 = vunpack.c.l.b16 %v1071
    %v1160 = vunpack.c.h.b16 %v1071
    %v1161 = vunpack.c.l.b16 %v1072
    %v1162 = vunpack.c.h.b16 %v1072
    %v1163 = vunpack.c.l.b16 %v1073
    %v1164 = vunpack.c.h.b16 %v1073
    %v1165 = vunpack.c.l.b16 %v1074
    %v1166 = vunpack.c.h.b16 %v1074
    %v1167 = vunpack.c.l.b16 %v1075
    %v1168 = vunpack.c.h.b16 %v1075
    %v1169 = vunpack.c.l.b16 %v1076
    %v1170 = vunpack.c.h.b16 %v1076
    %v1171 = vunpack.c.l.b16 %v1077
    %v1172 = vunpack.c.h.b16 %v1077
    %v1173 = vunpack.c.l.b16 %v1078
    %v1174 = vunpack.c.h.b16 %v1078
    %v1175 = vpack.c.b16 %v1111, %v1111
    %v1176 = vpack.c.b16 %v1112, %v1112
    %v1177 = vpack.c.b16 %v1113, %v1113
    %v1178 = vpack.c.b16 %v1114, %v1114
    %v1179 = vpack.c.b16 %v1115, %v1115
    %v1180 = vpack.c.b16 %v1116, %v1116
    %v1181 = vpack.c.b16 %v1117, %v1117
    %v1182 = vpack.c.b16 %v1118, %v1118
    %v1183 = vpack.c.b16 %v1119, %v1119
    %v1184 = vpack.c.b16 %v1120, %v1120
    %v1185 = vpack.c.b16 %v1121, %v1121
    %v1186 = vpack.c.b16 %v1122, %v1122
    %v1187 = vpack.c.b16 %v1123, %v1123
    %v1188 = vpack.c.b16 %v1124, %v1124
    %v1189 = vpack.c.b16 %v1125, %v1125
    %v1190 = vpack.c.b16 %v1126, %v1126
    %v1191 = vpack.c.b16 %v1127, %v1127
    %v1192 = vpack.c.b16 %v1128, %v1128
    %v1193 = vpack.c.b16 %v1129, %v1129
    %v1194 = vpack.c.b16 %v1130, %v1130
    %v1195 = vpack.c.b16 %v1131, %v1131
    %v1196 = vpack.c.b16 %v1132, %v1132
    %v1197 = vpack.c.b16 %v1133, %v1133
    %v1198 = vpack.c.b16 %v1134, %v1134
    %v1199 = vpack.c.b16 %v1135, %v1135
    %v1200 = vpack.c.b16 %v1136, %v1136
    %v1201 = vpack.c.b16 %v1137, %v1137
    %v1202 = vpack.c.b16 %v1138, %v1138
    %v1203 = vpack.c.b16 %v1139, %v1139
    %v1204 = vpack.c.b16 %v1140, %v1140
    %v1205 = vpack.c.b16 %v1141, %v1141
    %v1206 = vpack.c.b16 %v1142, %v1142
    %v1207 = vpack.c.b16 %v1143, %v1143
    %v1208 = vpack.c.b16 %v1144, %v1144
    %v1209 = vpack.c.b16 %v1145, %v1145
    %v1210 = vpack.c.b16 %v1146, %v1146
    %v1211 = vpack.c.b16 %v1147, %v1147
    %v1212 = vpack.c.b16 %v1148, %v1148
    %v1213 = vpack.c.b16 %v1149, %v1149
    %v1214 = vpack.c.b16 %v1150, %v1150
    %v1215 = vpack.c.b16 %v1151, %v1151
    %v1216 = vpack.c.b16 %v1152, %v1152
    %v1217 = vpack.c.b16 %v1153, %v1153
    %v1218 = vpack.c.b16 %v1154, %v1154
    %v1219 = vpack.c.b16 %v1155, %v1155
    %v1220 = vpack.c.b16 %v1156, %v1156
    %v1221 = vpack.c.b16 %v1157, %v1157
    %v1222 = vpack.c.b16 %v1158, %v1158
    %v1223 = vpack.c.b16 %v1159, %v1159
    %v1224 = vpack.c.b16 %v1160, %v1160
    %v1225 = vpack.c.b16 %v1161, %v1161
    %v1226 = vpack.c.b16 %v1162, %v1162
    %v1227 = vpack.c.b16 %v1163, %v1163
    %v1228 = vpack.c.b16 %v1164, %v1164
    %v1229 = vpack.c.b16 %v1165, %v1165
    %v1230 = vpack.c.b16 %v1166, %v1166
    %v1231 = vpack.c.b16 %v1167, %v1167
    %v1232 = vpack.c.b16 %v1168, %v1168
    %v1233 = vpack.c.b16 %v1169, %v1169
    %v1234 = vpack.c.b16 %v1170, %v1170
    %v1235 = vpack.c.b16 %v1171, %v1171
    %v1236 = vpack.c.b16 %v1172, %v1172
    %v1237 = vpack.c.b16 %v1173, %v1173
    %v1238 = vpack.c.b16 %v1174, %v1174
    %1303 = vst [vmem:[%s3] sm:$0xf] %v1175
    %1304 = vst [vmem:[%s3 + $0x4] sm:$0xf] %v1176
    %1305 = vst [vmem:[%s3 + $0x8] sm:$0xf] %v1177
    %1306 = vst [vmem:[%s3 + $0xc] sm:$0xf] %v1178
    %1307 = vst [vmem:[%s3 + $0x10] sm:$0xf] %v1179
    %1308 = vst [vmem:[%s3 + $0x14] sm:$0xf] %v1180
    %1309 = vst [vmem:[%s3 + $0x18] sm:$0xf] %v1181
    %1310 = vst [vmem:[%s3 + $0x1c] sm:$0xf] %v1182
    %1311 = vst [vmem:[%s3 + $0x20] sm:$0xf] %v1183
    %1312 = vst [vmem:[%s3 + $0x24] sm:$0xf] %v1184
    %1313 = vst [vmem:[%s3 + $0x28] sm:$0xf] %v1185
    %1314 = vst [vmem:[%s3 + $0x2c] sm:$0xf] %v1186
    %1315 = vst [vmem:[%s3 + $0x30] sm:$0xf] %v1187
    %1316 = vst [vmem:[%s3 + $0x34] sm:$0xf] %v1188
    %1317 = vst [vmem:[%s3 + $0x38] sm:$0xf] %v1189
    %1318 = vst [vmem:[%s3 + $0x3c] sm:$0xf] %v1190
    %1319 = vst [vmem:[%s3 + $0x40] sm:$0xf] %v1191
    %1320 = vst [vmem:[%s3 + $0x44] sm:$0xf] %v1192
    %1321 = vst [vmem:[%s3 + $0x48] sm:$0xf] %v1193
    %1322 = vst [vmem:[%s3 + $0x4c] sm:$0xf] %v1194
    %1323 = vst [vmem:[%s3 + $0x50] sm:$0xf] %v1195
    %1324 = vst [vmem:[%s3 + $0x54] sm:$0xf] %v1196
    %1325 = vst [vmem:[%s3 + $0x58] sm:$0xf] %v1197
    %1326 = vst [vmem:[%s3 + $0x5c] sm:$0xf] %v1198
    %1327 = vst [vmem:[%s3 + $0x60] sm:$0xf] %v1199
    %1328 = vst [vmem:[%s3 + $0x64] sm:$0xf] %v1200
    %1329 = vst [vmem:[%s3 + $0x68] sm:$0xf] %v1201
    %1330 = vst [vmem:[%s3 + $0x6c] sm:$0xf] %v1202
    %1331 = vst [vmem:[%s3 + $0x70] sm:$0xf] %v1203
    %1332 = vst [vmem:[%s3 + $0x74] sm:$0xf] %v1204
    %1333 = vst [vmem:[%s3 + $0x78] sm:$0xf] %v1205
    %1334 = vst [vmem:[%s3 + $0x7c] sm:$0xf] %v1206
    %1335 = vst [vmem:[%s3 + $0x80] sm:$0xf] %v1207
    %1336 = vst [vmem:[%s3 + $0x84] sm:$0xf] %v1208
    %1337 = vst [vmem:[%s3 + $0x88] sm:$0xf] %v1209
    %1338 = vst [vmem:[%s3 + $0x8c] sm:$0xf] %v1210
    %1339 = vst [vmem:[%s3 + $0x90] sm:$0xf] %v1211
    %1340 = vst [vmem:[%s3 + $0x94] sm:$0xf] %v1212
    %1341 = vst [vmem:[%s3 + $0x98] sm:$0xf] %v1213
    %1342 = vst [vmem:[%s3 + $0x9c] sm:$0xf] %v1214
    %1343 = vst [vmem:[%s3 + $0xa0] sm:$0xf] %v1215
    %1344 = vst [vmem:[%s3 + $0xa4] sm:$0xf] %v1216
    %1345 = vst [vmem:[%s3 + $0xa8] sm:$0xf] %v1217
    %1346 = vst [vmem:[%s3 + $0xac] sm:$0xf] %v1218
    %1347 = vst [vmem:[%s3 + $0xb0] sm:$0xf] %v1219
    %1348 = vst [vmem:[%s3 + $0xb4] sm:$0xf] %v1220
    %1349 = vst [vmem:[%s3 + $0xb8] sm:$0xf] %v1221
    %1350 = vst [vmem:[%s3 + $0xbc] sm:$0xf] %v1222
    %1351 = vst [vmem:[%s3 + $0xc0] sm:$0xf] %v1223
    %1352 = vst [vmem:[%s3 + $0xc4] sm:$0xf] %v1224
    %1353 = vst [vmem:[%s3 + $0xc8] sm:$0xf] %v1225
    %1354 = vst [vmem:[%s3 + $0xcc] sm:$0xf] %v1226
    %1355 = vst [vmem:[%s3 + $0xd0] sm:$0xf] %v1227
    %1356 = vst [vmem:[%s3 + $0xd4] sm:$0xf] %v1228
    %1357 = vst [vmem:[%s3 + $0xd8] sm:$0xf] %v1229
    %1358 = vst [vmem:[%s3 + $0xdc] sm:$0xf] %v1230
    %1359 = vst [vmem:[%s3 + $0xe0] sm:$0xf] %v1231
    %1360 = vst [vmem:[%s3 + $0xe4] sm:$0xf] %v1232
    %1361 = vst [vmem:[%s3 + $0xe8] sm:$0xf] %v1233
    %1362 = vst [vmem:[%s3 + $0xec] sm:$0xf] %v1234
    %1363 = vst [vmem:[%s3 + $0xf0] sm:$0xf] %v1235
    %1364 = vst [vmem:[%s3 + $0xf4] sm:$0xf] %v1236
    %1365 = vst [vmem:[%s3 + $0xf8] sm:$0xf] %v1237
    %1366 = vst [vmem:[%s3 + $0xfc] sm:$0xf] %v1238
  $region21: #{_lambda_.17} parent=0 // pred_fallthru
    _
  // Predicated region
  $region22: #{_lambda_.17} parent=0 // pred_check
    _
  $region23: #{_lambda_.17} parent=0 // pred_check_branch
    %1368 = sbr.rel (0) target = $region25
  $region24: #{_lambda_.17} parent=0 // pred_region
    _
  $region25: #{_lambda_.17} parent=0 // pred_fallthru
    _
  // Predicated region
  $region26: #{_lambda_.17} parent=0 // pred_check
    _
  $region27: #{_lambda_.17} parent=0 // pred_check_branch
    %1370 = sbr.rel (0) target = $region29
  $region28: #{_lambda_.17} parent=0 // pred_region
    _
  $region29: #{_lambda_.17} parent=0 // pred_fallthru
    _

// kernel: tile.73
$region0: #{tile.73}
  #allocation0 [shape = 's32[1]{0}', space=sflag, size = 0x4, scoped, tag = 'scoped memory for tile.73']
  %s0 = inlined_call_operand.vmem [shape: f32[16], index: 0, kind: input, shape index: {}]
  %s1 = inlined_call_operand.vmem [shape: f32[8,16], index: 1, kind: output, shape index: {}]
  // Predicated region
  $region2: #{tile.73} parent=0 // pred_check
    _
  $region3: #{tile.73} parent=0 // pred_check_branch
    %3 = sbr.rel (0) target = $region5
  $region4: #{tile.73} parent=0 // pred_region
    _
  $region5: #{tile.73} parent=0 // pred_fallthru
    _
  %v4 = vld [vmem:[%s0] ss:$0 sm:$0xff]
  %5 = vst [vmem:[%s1] sm:$0xff] %v4

// kernel: tile.74
$region0: #{tile.74}
  %s0 = inlined_call_operand.vmem [shape: f32[8,16], index: 0, kind: input, shape index: {}]
  %s1 = inlined_call_operand.vmem [shape: f32[1,128], index: 1, kind: output, shape index: {}]
  $region1: #{tile.74} parent=0
    #allocation0 [shape = 'u8[4096]{0}', space=vmem, size = 0x1000, scoped, tag = 'scoped mem for output reshape']
    %v2 = vld [vmem:[%s0] sm:$0x1]
    %vm3 = vcmask 130048
    %4 = vst.msk [vmem:[#allocation0] sm:$0x1] %vm3, %v2
    %s5 = scalar_lea.vmem %s0, 7
    %v6 = vld [vmem:[%s5] sm:$0x1]
    %7 = vrot.lane.b32.xlu0 %v6, 112
    %v8 = vpop.permute.xlu0 %7
    %vm9 = vcmask 1048448
    %10 = vst.msk [vmem:[#allocation0] sm:$0x1] %vm9, %v8
    %s11 = scalar_lea.vmem %s0, 6
    %v12 = vld [vmem:[%s11] sm:$0x1]
    %13 = vrot.lane.b32.xlu0 %v12, 96
    %v14 = vpop.permute.xlu0 %13
    %vm15 = vcmask 917248
    %16 = vst.msk [vmem:[#allocation0] sm:$0x1] %vm15, %v14
    %s17 = scalar_lea.vmem %s0, 5
    %v18 = vld [vmem:[%s17] sm:$0x1]
    %19 = vrot.lane.b32.xlu0 %v18, 80
    %v20 = vpop.permute.xlu0 %19
    %vm21 = vcmask 786048
    %22 = vst.msk [vmem:[#allocation0] sm:$0x1] %vm21, %v20
    %s23 = scalar_lea.vmem %s0, 4
    %v24 = vld [vmem:[%s23] sm:$0x1]
    %25 = vrot.lane.b32.xlu0 %v24, 64
    %v26 = vpop.permute.xlu0 %25
    %vm27 = vcmask 654848
    %28 = vst.msk [vmem:[#allocation0] sm:$0x1] %vm27, %v26
    %s29 = scalar_lea.vmem %s0, 3
    %v30 = vld [vmem:[%s29] sm:$0x1]
    %31 = vrot.lane.b32.xlu0 %v30, 48
    %v32 = vpop.permute.xlu0 %31
    %vm33 = vcmask 523648
    %34 = vst.msk [vmem:[#allocation0] sm:$0x1] %vm33, %v32
    %s35 = scalar_lea.vmem %s0, 2
    %v36 = vld [vmem:[%s35] sm:$0x1]
    %37 = vrot.lane.b32.xlu0 %v36, 32
    %v38 = vpop.permute.xlu0 %37
    %vm39 = vcmask 392448
    %40 = vst.msk [vmem:[#allocation0] sm:$0x1] %vm39, %v38
    %s41 = scalar_lea.vmem %s0, 1
    %v42 = vld [vmem:[%s41] sm:$0x1]
    %43 = vrot.lane.b32.xlu0 %v42, 16
    %v44 = vpop.permute.xlu0 %43
    %vm45 = vcmask 261248
    %46 = vst.msk [vmem:[#allocation0] sm:$0x1] %vm45, %v44
    %s48 = sshll.u32 1, 1
    %s49 = ssub.s32 %s48, 1
    %v51 = vld [vmem:[#allocation0] sm:%s49]
    %s52 = sshll.u32 1, 1
    %s53 = ssub.s32 %s52, 1
    %54 = vst [vmem:[%s1] sm:%s53] %v51

// kernel: _lambda_.19
$region0: #{_lambda_.19}
  #allocation0 [shape = 'u32[]', space=smem, size = 0x4, offset = 0x4, fixed_abs, tag = 'smem constant byte address 0x4 - core index']
  #allocation1 [shape = 'u32[144,128]{1,0:T(1,128)}', space=vmem, size = 0x12000, scoped, tag = 'internal scratch']
  %s0 = inlined_call_operand.vmem [shape: bf16[16,128], index: 0, kind: input, shape index: {}]
  %s1 = inlined_call_operand.vmem [shape: f32[1,128], index: 1, kind: input, shape index: {}]
  %s2 = inlined_call_operand.vmem [shape: f32[1,128], index: 2, kind: input, shape index: {}]
  %s3 = inlined_call_operand.vmem [shape: bf16[16,128], index: 3, kind: output, shape index: {}]
  %s4 = sld [smem:[#allocation0]]
  $region22: #{_lambda_.19} parent=0
    _
  %s6 = ssub.s32 1, %s4
  %s7 = scalar_select 0, %s6, %s4
  // Predicated region
  $region2: #{_lambda_.19} parent=0 // pred_check
    _
  $region3: #{_lambda_.19} parent=0 // pred_check_branch
    %9 = sbr.rel (0) target = $region5
  $region4: #{_lambda_.19} parent=0 // pred_region
    _
  $region5: #{_lambda_.19} parent=0 // pred_fallthru
    _
  // Predicated region
  $region6: #{_lambda_.19} parent=0 // pred_check
    _
  $region7: #{_lambda_.19} parent=0 // pred_check_branch
    %11 = sbr.rel (0) target = $region9
  $region8: #{_lambda_.19} parent=0 // pred_region
    _
  $region9: #{_lambda_.19} parent=0 // pred_fallthru
    _
  // Predicated region
  $region10: #{_lambda_.19} parent=0 // pred_check
    _
  $region11: #{_lambda_.19} parent=0 // pred_check_branch
    %13 = sbr.rel (0) target = $region13
  $region12: #{_lambda_.19} parent=0 // pred_region
    _
  $region13: #{_lambda_.19} parent=0 // pred_fallthru
    _
  %v14 = vld [vmem:[%s0] sm:$0xf]
  %v15 = vld [vmem:[%s0 + $0x4] sm:$0xf]
  %v16 = vunpack.c.l.bf16 %v14
  %v17 = vunpack.c.l.bf16 %v15
  %v18 = vld [vmem:[%s1] sm:$0x1]
  %v20 = vlaneseq
  %v21 = vshrl.u32 %v20, 7
  %v22 = vsub.s32 0, %v21
  %v23 = vrot.slane %v18, %v22
  %v25 = vmul.f32 %v16, %v23
  %v26 = vmul.f32 %v17, %v23
  %v27 = vld [vmem:[%s2] sm:$0x1]
  %v29 = vlaneseq
  %v30 = vshrl.u32 %v29, 7
  %v31 = vsub.s32 0, %v30
  %v32 = vrot.slane %v27, %v31
  %v34 = vadd.f32 %v25, %v32
  %v35 = vadd.f32 %v26, %v32
  %v36 = vpack.c.bf16 %v35, %v34
  %v38 = vunpack.c.l.b16 %v36
  %v39 = vunpack.c.h.b16 %v36
  %v40 = vpack.c.b16 %v38, %v38
  %v41 = vpack.c.b16 %v39, %v39
  %44 = vst [vmem:[%s3] sm:$0xf] %v40
  %45 = vst [vmem:[%s3 + $0x4] sm:$0xf] %v41
  // Predicated region
  $region14: #{_lambda_.19} parent=0 // pred_check
    _
  $region15: #{_lambda_.19} parent=0 // pred_check_branch
    %47 = sbr.rel (0) target = $region17
  $region16: #{_lambda_.19} parent=0 // pred_region
    _
  $region17: #{_lambda_.19} parent=0 // pred_fallthru
    _
  // Predicated region
  $region18: #{_lambda_.19} parent=0 // pred_check
    _
  $region19: #{_lambda_.19} parent=0 // pred_check_branch
    %49 = sbr.rel (0) target = $region21
  $region20: #{_lambda_.19} parent=0 // pred_region
    _
  $region21: #{_lambda_.19} parent=0 // pred_fallthru
    _

// kernel: _lambda_.18
$region0: #{_lambda_.18}
  #allocation0 [shape = 'u32[]', space=smem, size = 0x4, offset = 0x4, fixed_abs, tag = 'smem constant byte address 0x4 - core index']
  #allocation1 [shape = 'u32[144,128]{1,0:T(1,128)}', space=vmem, size = 0x12000, scoped, tag = 'internal scratch']
  #allocation2 [shape = 'f32[128,128]{1,0:T(8,128)}', space=vmem, size = 0x10000, scoped, tag = 'scratch operand']
  %s0 = inlined_call_operand.vmem [shape: bf16[128,128], index: 0, kind: input, shape index: {}]
  %s1 = inlined_call_operand.vmem [shape: bf16[128,128], index: 1, kind: input, shape index: {}]
  %s2 = inlined_call_operand.vmem [shape: bf16[128,128], index: 2, kind: output, shape index: {0}]
  %s3 = inlined_call_operand.vmem [shape: f32[1,1,128], index: 3, kind: output, shape index: {1}]
  %s4 = inlined_call_operand.vmem [shape: f32[1,1,128], index: 4, kind: output, shape index: {2}]
  %5 = xla_tuple %s2, %s3, %s4
  %s6 = sld [smem:[#allocation0]]
  $region42: #{_lambda_.18} parent=0
    _
  %s8 = ssub.s32 1, %s6
  %s9 = scalar_select 0, %s8, %s6
  // Predicated region
  $region2: #{_lambda_.18} parent=0 // pred_check
    _
  $region3: #{_lambda_.18} parent=0 // pred_check_branch
    %11 = sbr.rel (0) target = $region5
  $region4: #{_lambda_.18} parent=0 // pred_region
    _
  $region5: #{_lambda_.18} parent=0 // pred_fallthru
    _
  // Predicated region
  $region6: #{_lambda_.18} parent=0 // pred_check
    _
  $region7: #{_lambda_.18} parent=0 // pred_check_branch
    %13 = sbr.rel (0) target = $region9
  $region8: #{_lambda_.18} parent=0 // pred_region
    _
  $region9: #{_lambda_.18} parent=0 // pred_fallthru
    _
  %p15 = scmp.eq.s32.totalorder 0, 0
  // Predicated region
  $region10: #{_lambda_.18} parent=0 // pred_check
    %p16 = pneg %p15
  $region11: #{_lambda_.18} parent=0 // pred_check_branch
    %18 = sbr.rel (%p16) target = $region13
  $region12: #{_lambda_.18} parent=0 // pred_region
    %19 = vst [vmem:[#allocation2] sm:$0xff] 0.0
    %20 = vst [vmem:[#allocation2 + $0x8] sm:$0xff] 0.0
    %21 = vst [vmem:[#allocation2 + $0x10] sm:$0xff] 0.0
    %22 = vst [vmem:[#allocation2 + $0x18] sm:$0xff] 0.0
    %23 = vst [vmem:[#allocation2 + $0x20] sm:$0xff] 0.0
    %24 = vst [vmem:[#allocation2 + $0x28] sm:$0xff] 0.0
    %25 = vst [vmem:[#allocation2 + $0x30] sm:$0xff] 0.0
    %26 = vst [vmem:[#allocation2 + $0x38] sm:$0xff] 0.0
    %27 = vst [vmem:[#allocation2 + $0x40] sm:$0xff] 0.0
    %28 = vst [vmem:[#allocation2 + $0x48] sm:$0xff] 0.0
    %29 = vst [vmem:[#allocation2 + $0x50] sm:$0xff] 0.0
    %30 = vst [vmem:[#allocation2 + $0x58] sm:$0xff] 0.0
    %31 = vst [vmem:[#allocation2 + $0x60] sm:$0xff] 0.0
    %32 = vst [vmem:[#allocation2 + $0x68] sm:$0xff] 0.0
    %33 = vst [vmem:[#allocation2 + $0x70] sm:$0xff] 0.0
    %34 = vst [vmem:[#allocation2 + $0x78] sm:$0xff] 0.0
  $region13: #{_lambda_.18} parent=0 // pred_fallthru
    _
  %v35 = vld [vmem:[#allocation2] sm:$0xff]
  %v36 = vld [vmem:[#allocation2 + $0x8] sm:$0xff]
  %v37 = vld [vmem:[#allocation2 + $0x10] sm:$0xff]
  %v38 = vld [vmem:[#allocation2 + $0x18] sm:$0xff]
  %v39 = vld [vmem:[#allocation2 + $0x20] sm:$0xff]
  %v40 = vld [vmem:[#allocation2 + $0x28] sm:$0xff]
  %v41 = vld [vmem:[#allocation2 + $0x30] sm:$0xff]
  %v42 = vld [vmem:[#allocation2 + $0x38] sm:$0xff]
  %v43 = vld [vmem:[#allocation2 + $0x40] sm:$0xff]
  %v44 = vld [vmem:[#allocation2 + $0x48] sm:$0xff]
  %v45 = vld [vmem:[#allocation2 + $0x50] sm:$0xff]
  %v46 = vld [vmem:[#allocation2 + $0x58] sm:$0xff]
  %v47 = vld [vmem:[#allocation2 + $0x60] sm:$0xff]
  %v48 = vld [vmem:[#allocation2 + $0x68] sm:$0xff]
  %v49 = vld [vmem:[#allocation2 + $0x70] sm:$0xff]
  %v50 = vld [vmem:[#allocation2 + $0x78] sm:$0xff]
  %v51 = vld [vmem:[%s0] sm:$0xf]
  %v52 = vld [vmem:[%s0 + $0x4] sm:$0xf]
  %v53 = vld [vmem:[%s0 + $0x8] sm:$0xf]
  %v54 = vld [vmem:[%s0 + $0xc] sm:$0xf]
  %v55 = vld [vmem:[%s0 + $0x10] sm:$0xf]
  %v56 = vld [vmem:[%s0 + $0x14] sm:$0xf]
  %v57 = vld [vmem:[%s0 + $0x18] sm:$0xf]
  %v58 = vld [vmem:[%s0 + $0x1c] sm:$0xf]
  %v59 = vld [vmem:[%s0 + $0x20] sm:$0xf]
  %v60 = vld [vmem:[%s0 + $0x24] sm:$0xf]
  %v61 = vld [vmem:[%s0 + $0x28] sm:$0xf]
  %v62 = vld [vmem:[%s0 + $0x2c] sm:$0xf]
  %v63 = vld [vmem:[%s0 + $0x30] sm:$0xf]
  %v64 = vld [vmem:[%s0 + $0x34] sm:$0xf]
  %v65 = vld [vmem:[%s0 + $0x38] sm:$0xf]
  %v66 = vld [vmem:[%s0 + $0x3c] sm:$0xf]
  %v67 = vld [vmem:[%s1] sm:$0xf]
  %v68 = vld [vmem:[%s1 + $0x4] sm:$0xf]
  %v69 = vld [vmem:[%s1 + $0x8] sm:$0xf]
  %v70 = vld [vmem:[%s1 + $0xc] sm:$0xf]
  %v71 = vld [vmem:[%s1 + $0x10] sm:$0xf]
  %v72 = vld [vmem:[%s1 + $0x14] sm:$0xf]
  %v73 = vld [vmem:[%s1 + $0x18] sm:$0xf]
  %v74 = vld [vmem:[%s1 + $0x1c] sm:$0xf]
  %v75 = vld [vmem:[%s1 + $0x20] sm:$0xf]
  %v76 = vld [vmem:[%s1 + $0x24] sm:$0xf]
  %v77 = vld [vmem:[%s1 + $0x28] sm:$0xf]
  %v78 = vld [vmem:[%s1 + $0x2c] sm:$0xf]
  %v79 = vld [vmem:[%s1 + $0x30] sm:$0xf]
  %v80 = vld [vmem:[%s1 + $0x34] sm:$0xf]
  %v81 = vld [vmem:[%s1 + $0x38] sm:$0xf]
  %v82 = vld [vmem:[%s1 + $0x3c] sm:$0xf]
  %v99 = vunpack.c.l.b16 %v51
  %v100 = vunpack.c.l.b16 %v52
  %v101 = vunpack.c.l.b16 %v53
  %v102 = vunpack.c.l.b16 %v54
  %v103 = vunpack.c.l.b16 %v55
  %v104 = vunpack.c.l.b16 %v56
  %v105 = vunpack.c.l.b16 %v57
  %v106 = vunpack.c.l.b16 %v58
  %v107 = vunpack.c.l.b16 %v59
  %v108 = vunpack.c.l.b16 %v60
  %v109 = vunpack.c.l.b16 %v61
  %v110 = vunpack.c.l.b16 %v62
  %v111 = vunpack.c.l.b16 %v63
  %v112 = vunpack.c.l.b16 %v64
  %v113 = vunpack.c.l.b16 %v65
  %v114 = vunpack.c.l.b16 %v66
  %v115 = vpack.c.b16 %v100, %v99
  %v116 = vpack.c.b16 %v102, %v101
  %v117 = vpack.c.b16 %v104, %v103
  %v118 = vpack.c.b16 %v106, %v105
  %v119 = vpack.c.b16 %v108, %v107
  %v120 = vpack.c.b16 %v110, %v109
  %v121 = vpack.c.b16 %v112, %v111
  %v122 = vpack.c.b16 %v114, %v113
  %v147 = vunpack.c.l.b16 %v67
  %v148 = vunpack.c.l.b16 %v68
  %v149 = vunpack.c.l.b16 %v69
  %v150 = vunpack.c.l.b16 %v70
  %v151 = vunpack.c.l.b16 %v71
  %v152 = vunpack.c.l.b16 %v72
  %v153 = vunpack.c.l.b16 %v73
  %v154 = vunpack.c.l.b16 %v74
  %v155 = vunpack.c.l.b16 %v75
  %v156 = vunpack.c.l.b16 %v76
  %v157 = vunpack.c.l.b16 %v77
  %v158 = vunpack.c.l.b16 %v78
  %v159 = vunpack.c.l.b16 %v79
  %v160 = vunpack.c.l.b16 %v80
  %v161 = vunpack.c.l.b16 %v81
  %v162 = vunpack.c.l.b16 %v82
  %v163 = vpack.c.b16 %v148, %v147
  %v164 = vpack.c.b16 %v150, %v149
  %v165 = vpack.c.b16 %v152, %v151
  %v166 = vpack.c.b16 %v154, %v153
  %v167 = vpack.c.b16 %v156, %v155
  %v168 = vpack.c.b16 %v158, %v157
  %v169 = vpack.c.b16 %v160, %v159
  %v170 = vpack.c.b16 %v162, %v161
  %179 = vmatprep.subr.bf16.mxu0 0
  %180 = vmatpush1.bf16.msra.mxu0 %v170
  %181 = vmatprep.subr.bf16.mxu0 0
  %182 = vmatpush1.bf16.msra.mxu0 %v169
  %183 = vmatprep.subr.bf16.mxu0 0
  %184 = vmatpush1.bf16.msra.mxu0 %v168
  %185 = vmatprep.subr.bf16.mxu0 0
  %186 = vmatpush1.bf16.msra.mxu0 %v167
  %187 = vmatprep.subr.bf16.mxu0 0
  %188 = vmatpush1.bf16.msra.mxu0 %v166
  %189 = vmatprep.subr.bf16.mxu0 0
  %190 = vmatpush1.bf16.msra.mxu0 %v165
  %191 = vmatprep.subr.bf16.mxu0 0
  %192 = vmatpush1.bf16.msra.mxu0 %v164
  %193 = vmatprep.subr.bf16.mxu0 0
  %194 = vmatpush1.bf16.msra.mxu0 %v163
  %195 = vmatprep.subr.bf16.mxu0 0
  %196 = vmatpush2.bf16.msra.mxu0 0
  %197 = vmatprep.subr.bf16.mxu0 0
  %198 = vmatpush2.bf16.msra.mxu0 0
  %199 = vmatprep.subr.bf16.mxu0 0
  %200 = vmatpush2.bf16.msra.mxu0 0
  %201 = vmatprep.subr.bf16.mxu0 0
  %202 = vmatpush2.bf16.msra.mxu0 0
  %203 = vmatprep.subr.bf16.mxu0 0
  %204 = vmatpush2.bf16.msra.mxu0 0
  %205 = vmatprep.subr.bf16.mxu0 0
  %206 = vmatpush2.bf16.msra.mxu0 0
  %207 = vmatprep.subr.bf16.mxu0 0
  %208 = vmatpush2.bf16.msra.mxu0 0
  %209 = vmatprep.subr.bf16.mxu0 0
  %210 = vmatpush2.bf16.msra.mxu0 0
  %211 = vmatprep.mubr.bf16.mxu0 0
  %212 = vmatmul.mubr.bf16.gmra.mxu0 %v115
  %v213 = vpop.f32.mrf.mxu0
  %v214 = vadd.f32 0.0, %v213
  %v215 = vpop.f32.mrf.mxu0
  %v216 = vpop.f32.mrf.mxu0
  %v217 = vadd.f32 0.0, %v216
  %v218 = vpop.f32.mrf.mxu0
  %219 = vmatprep.mubr.bf16.mxu0 0
  %220 = vmatmul.mubr.bf16.gmra.mxu0 %v116
  %v221 = vpop.f32.mrf.mxu0
  %v222 = vadd.f32 0.0, %v221
  %v223 = vpop.f32.mrf.mxu0
  %v224 = vpop.f32.mrf.mxu0
  %v225 = vadd.f32 0.0, %v224
  %v226 = vpop.f32.mrf.mxu0
  %227 = vmatprep.mubr.bf16.mxu0 0
  %228 = vmatmul.mubr.bf16.gmra.mxu0 %v117
  %v229 = vpop.f32.mrf.mxu0
  %v230 = vadd.f32 0.0, %v229
  %v231 = vpop.f32.mrf.mxu0
  %v232 = vpop.f32.mrf.mxu0
  %v233 = vadd.f32 0.0, %v232
  %v234 = vpop.f32.mrf.mxu0
  %235 = vmatprep.mubr.bf16.mxu0 0
  %236 = vmatmul.mubr.bf16.gmra.mxu0 %v118
  %v237 = vpop.f32.mrf.mxu0
  %v238 = vadd.f32 0.0, %v237
  %v239 = vpop.f32.mrf.mxu0
  %v240 = vpop.f32.mrf.mxu0
  %v241 = vadd.f32 0.0, %v240
  %v242 = vpop.f32.mrf.mxu0
  %243 = vmatprep.mubr.bf16.mxu0 0
  %244 = vmatmul.mubr.bf16.gmra.mxu0 %v119
  %v245 = vpop.f32.mrf.mxu0
  %v246 = vadd.f32 0.0, %v245
  %v247 = vpop.f32.mrf.mxu0
  %v248 = vpop.f32.mrf.mxu0
  %v249 = vadd.f32 0.0, %v248
  %v250 = vpop.f32.mrf.mxu0
  %251 = vmatprep.mubr.bf16.mxu0 0
  %252 = vmatmul.mubr.bf16.gmra.mxu0 %v120
  %v253 = vpop.f32.mrf.mxu0
  %v254 = vadd.f32 0.0, %v253
  %v255 = vpop.f32.mrf.mxu0
  %v256 = vpop.f32.mrf.mxu0
  %v257 = vadd.f32 0.0, %v256
  %v258 = vpop.f32.mrf.mxu0
  %259 = vmatprep.mubr.bf16.mxu0 0
  %260 = vmatmul.mubr.bf16.gmra.mxu0 %v121
  %v261 = vpop.f32.mrf.mxu0
  %v262 = vadd.f32 0.0, %v261
  %v263 = vpop.f32.mrf.mxu0
  %v264 = vpop.f32.mrf.mxu0
  %v265 = vadd.f32 0.0, %v264
  %v266 = vpop.f32.mrf.mxu0
  %267 = vmatprep.mubr.bf16.mxu0 0
  %268 = vmatmul.mubr.bf16.gmra.mxu0 %v122
  %v269 = vpop.f32.mrf.mxu0
  %v270 = vadd.f32 0.0, %v269
  %v271 = vpop.f32.mrf.mxu0
  %v272 = vpop.f32.mrf.mxu0
  %v273 = vadd.f32 0.0, %v272
  %v274 = vpop.f32.mrf.mxu0
  %275 = vdwg.mxu0
  %v276 = vadd.f32 %v35, %v214
  %v277 = vadd.f32 %v36, %v217
  %v278 = vadd.f32 %v37, %v222
  %v279 = vadd.f32 %v38, %v225
  %v280 = vadd.f32 %v39, %v230
  %v281 = vadd.f32 %v40, %v233
  %v282 = vadd.f32 %v41, %v238
  %v283 = vadd.f32 %v42, %v241
  %v284 = vadd.f32 %v43, %v246
  %v285 = vadd.f32 %v44, %v249
  %v286 = vadd.f32 %v45, %v254
  %v287 = vadd.f32 %v46, %v257
  %v288 = vadd.f32 %v47, %v262
  %v289 = vadd.f32 %v48, %v265
  %v290 = vadd.f32 %v49, %v270
  %v291 = vadd.f32 %v50, %v273
  %292 = vst [vmem:[#allocation2] sm:$0xff] %v276
  %293 = vst [vmem:[#allocation2 + $0x8] sm:$0xff] %v277
  %294 = vst [vmem:[#allocation2 + $0x10] sm:$0xff] %v278
  %295 = vst [vmem:[#allocation2 + $0x18] sm:$0xff] %v279
  %296 = vst [vmem:[#allocation2 + $0x20] sm:$0xff] %v280
  %297 = vst [vmem:[#allocation2 + $0x28] sm:$0xff] %v281
  %298 = vst [vmem:[#allocation2 + $0x30] sm:$0xff] %v282
  %299 = vst [vmem:[#allocation2 + $0x38] sm:$0xff] %v283
  %300 = vst [vmem:[#allocation2 + $0x40] sm:$0xff] %v284
  %301 = vst [vmem:[#allocation2 + $0x48] sm:$0xff] %v285
  %302 = vst [vmem:[#allocation2 + $0x50] sm:$0xff] %v286
  %303 = vst [vmem:[#allocation2 + $0x58] sm:$0xff] %v287
  %304 = vst [vmem:[#allocation2 + $0x60] sm:$0xff] %v288
  %305 = vst [vmem:[#allocation2 + $0x68] sm:$0xff] %v289
  %306 = vst [vmem:[#allocation2 + $0x70] sm:$0xff] %v290
  %307 = vst [vmem:[#allocation2 + $0x78] sm:$0xff] %v291
  // Predicated region
  $region14: #{_lambda_.18} parent=0 // pred_check
    %p308 = pneg %p15
  $region15: #{_lambda_.18} parent=0 // pred_check_branch
    %310 = sbr.rel (%p308) target = $region17
  $region16: #{_lambda_.18} parent=0 // pred_region
    %v311 = vld [vmem:[#allocation2] sm:$0xff]
    %v312 = vld [vmem:[#allocation2 + $0x8] sm:$0xff]
    %v313 = vld [vmem:[#allocation2 + $0x10] sm:$0xff]
    %v314 = vld [vmem:[#allocation2 + $0x18] sm:$0xff]
    %v315 = vld [vmem:[#allocation2 + $0x20] sm:$0xff]
    %v316 = vld [vmem:[#allocation2 + $0x28] sm:$0xff]
    %v317 = vld [vmem:[#allocation2 + $0x30] sm:$0xff]
    %v318 = vld [vmem:[#allocation2 + $0x38] sm:$0xff]
    %v319 = vld [vmem:[#allocation2 + $0x40] sm:$0xff]
    %v320 = vld [vmem:[#allocation2 + $0x48] sm:$0xff]
    %v321 = vld [vmem:[#allocation2 + $0x50] sm:$0xff]
    %v322 = vld [vmem:[#allocation2 + $0x58] sm:$0xff]
    %v323 = vld [vmem:[#allocation2 + $0x60] sm:$0xff]
    %v324 = vld [vmem:[#allocation2 + $0x68] sm:$0xff]
    %v325 = vld [vmem:[#allocation2 + $0x70] sm:$0xff]
    %v326 = vld [vmem:[#allocation2 + $0x78] sm:$0xff]
    %v327 = vpack.c.bf16 %v312, %v311
    %v328 = vpack.c.bf16 %v314, %v313
    %v329 = vpack.c.bf16 %v316, %v315
    %v330 = vpack.c.bf16 %v318, %v317
    %v331 = vpack.c.bf16 %v320, %v319
    %v332 = vpack.c.bf16 %v322, %v321
    %v333 = vpack.c.bf16 %v324, %v323
    %v334 = vpack.c.bf16 %v326, %v325
    %v343 = vunpack.c.l.b16 %v327
    %v344 = vunpack.c.h.b16 %v327
    %v345 = vunpack.c.l.b16 %v328
    %v346 = vunpack.c.h.b16 %v328
    %v347 = vunpack.c.l.b16 %v329
    %v348 = vunpack.c.h.b16 %v329
    %v349 = vunpack.c.l.b16 %v330
    %v350 = vunpack.c.h.b16 %v330
    %v351 = vunpack.c.l.b16 %v331
    %v352 = vunpack.c.h.b16 %v331
    %v353 = vunpack.c.l.b16 %v332
    %v354 = vunpack.c.h.b16 %v332
    %v355 = vunpack.c.l.b16 %v333
    %v356 = vunpack.c.h.b16 %v333
    %v357 = vunpack.c.l.b16 %v334
    %v358 = vunpack.c.h.b16 %v334
    %v359 = vpack.c.b16 %v343, %v343
    %v360 = vpack.c.b16 %v344, %v344
    %v361 = vpack.c.b16 %v345, %v345
    %v362 = vpack.c.b16 %v346, %v346
    %v363 = vpack.c.b16 %v347, %v347
    %v364 = vpack.c.b16 %v348, %v348
    %v365 = vpack.c.b16 %v349, %v349
    %v366 = vpack.c.b16 %v350, %v350
    %v367 = vpack.c.b16 %v351, %v351
    %v368 = vpack.c.b16 %v352, %v352
    %v369 = vpack.c.b16 %v353, %v353
    %v370 = vpack.c.b16 %v354, %v354
    %v371 = vpack.c.b16 %v355, %v355
    %v372 = vpack.c.b16 %v356, %v356
    %v373 = vpack.c.b16 %v357, %v357
    %v374 = vpack.c.b16 %v358, %v358
    %391 = vst [vmem:[%s2] sm:$0xf] %v359
    %392 = vst [vmem:[%s2 + $0x4] sm:$0xf] %v360
    %393 = vst [vmem:[%s2 + $0x8] sm:$0xf] %v361
    %394 = vst [vmem:[%s2 + $0xc] sm:$0xf] %v362
    %395 = vst [vmem:[%s2 + $0x10] sm:$0xf] %v363
    %396 = vst [vmem:[%s2 + $0x14] sm:$0xf] %v364
    %397 = vst [vmem:[%s2 + $0x18] sm:$0xf] %v365
    %398 = vst [vmem:[%s2 + $0x1c] sm:$0xf] %v366
    %399 = vst [vmem:[%s2 + $0x20] sm:$0xf] %v367
    %400 = vst [vmem:[%s2 + $0x24] sm:$0xf] %v368
    %401 = vst [vmem:[%s2 + $0x28] sm:$0xf] %v369
    %402 = vst [vmem:[%s2 + $0x2c] sm:$0xf] %v370
    %403 = vst [vmem:[%s2 + $0x30] sm:$0xf] %v371
    %404 = vst [vmem:[%s2 + $0x34] sm:$0xf] %v372
    %405 = vst [vmem:[%s2 + $0x38] sm:$0xf] %v373
    %406 = vst [vmem:[%s2 + $0x3c] sm:$0xf] %v374
    %v407 = vadd.f32 %v311, %v312
    %v408 = vadd.f32 %v407, %v313
    %v409 = vadd.f32 %v408, %v314
    %v410 = vadd.f32 %v409, %v315
    %v411 = vadd.f32 %v410, %v316
    %v412 = vadd.f32 %v411, %v317
    %v413 = vadd.f32 %v412, %v318
    %v414 = vadd.f32 %v413, %v319
    %v415 = vadd.f32 %v414, %v320
    %v416 = vadd.f32 %v415, %v321
    %v417 = vadd.f32 %v416, %v322
    %v418 = vadd.f32 %v417, %v323
    %v419 = vadd.f32 %v418, %v324
    %v420 = vadd.f32 %v419, %v325
    %v421 = vadd.f32 %v420, %v326
    %v422 = vrot.slane %v421, 4
    %v423 = vadd.f32 %v421, %v422
    %v424 = vrot.slane %v423, 2
    %v425 = vadd.f32 %v423, %v424
    %v426 = vrot.slane %v425, 1
    %v427 = vadd.f32 %v425, %v426
    %428 = vst [vmem:[%s3] sm:$0x1] %v427
    %v429 = vmul.f32 %v311, %v311
    %v430 = vmul.f32 %v312, %v312
    %v431 = vmul.f32 %v313, %v313
    %v432 = vmul.f32 %v314, %v314
    %v433 = vmul.f32 %v315, %v315
    %v434 = vmul.f32 %v316, %v316
    %v435 = vmul.f32 %v317, %v317
    %v436 = vmul.f32 %v318, %v318
    %v437 = vmul.f32 %v319, %v319
    %v438 = vmul.f32 %v320, %v320
    %v439 = vmul.f32 %v321, %v321
    %v440 = vmul.f32 %v322, %v322
    %v441 = vmul.f32 %v323, %v323
    %v442 = vmul.f32 %v324, %v324
    %v443 = vmul.f32 %v325, %v325
    %v444 = vmul.f32 %v326, %v326
    %v445 = vadd.f32 %v429, %v430
    %v446 = vadd.f32 %v445, %v431
    %v447 = vadd.f32 %v446, %v432
    %v448 = vadd.f32 %v447, %v433
    %v449 = vadd.f32 %v448, %v434
    %v450 = vadd.f32 %v449, %v435
    %v451 = vadd.f32 %v450, %v436
    %v452 = vadd.f32 %v451, %v437
    %v453 = vadd.f32 %v452, %v438
    %v454 = vadd.f32 %v453, %v439
    %v455 = vadd.f32 %v454, %v440
    %v456 = vadd.f32 %v455, %v441
    %v457 = vadd.f32 %v456, %v442
    %v458 = vadd.f32 %v457, %v443
    %v459 = vadd.f32 %v458, %v444
    %v460 = vrot.slane %v459, 4
    %v461 = vadd.f32 %v459, %v460
    %v462 = vrot.slane %v461, 2
    %v463 = vadd.f32 %v461, %v462
    %v464 = vrot.slane %v463, 1
    %v465 = vadd.f32 %v463, %v464
    %466 = vst [vmem:[%s4] sm:$0x1] %v465
  $region17: #{_lambda_.18} parent=0 // pred_fallthru
    _
  // Predicated region
  $region18: #{_lambda_.18} parent=0 // pred_check
    _
  $region19: #{_lambda_.18} parent=0 // pred_check_branch
    %468 = sbr.rel (0) target = $region21
  $region20: #{_lambda_.18} parent=0 // pred_region
    _
  $region21: #{_lambda_.18} parent=0 // pred_fallthru
    _
  // Predicated region
  $region22: #{_lambda_.18} parent=0 // pred_check
    _
  $region23: #{_lambda_.18} parent=0 // pred_check_branch
    %470 = sbr.rel (0) target = $region25
  $region24: #{_lambda_.18} parent=0 // pred_region
    _
  $region25: #{_lambda_.18} parent=0 // pred_fallthru
    _
  // Predicated region
  $region26: #{_lambda_.18} parent=0 // pred_check
    _
  $region27: #{_lambda_.18} parent=0 // pred_check_branch
    %472 = sbr.rel (0) target = $region29
  $region28: #{_lambda_.18} parent=0 // pred_region
    _
  $region29: #{_lambda_.18} parent=0 // pred_fallthru
    _
  // Predicated region
  $region30: #{_lambda_.18} parent=0 // pred_check
    _
  $region31: #{_lambda_.18} parent=0 // pred_check_branch
    %474 = sbr.rel (0) target = $region33
  $region32: #{_lambda_.18} parent=0 // pred_region
    _
  $region33: #{_lambda_.18} parent=0 // pred_fallthru
    _
  // Predicated region
  $region34: #{_lambda_.18} parent=0 // pred_check
    _
  $region35: #{_lambda_.18} parent=0 // pred_check_branch
    %476 = sbr.rel (0) target = $region37
  $region36: #{_lambda_.18} parent=0 // pred_region
    _
  $region37: #{_lambda_.18} parent=0 // pred_fallthru
    _
  // Predicated region
  $region38: #{_lambda_.18} parent=0 // pred_check
    _
  $region39: #{_lambda_.18} parent=0 // pred_check_branch
    %478 = sbr.rel (0) target = $region41
  $region40: #{_lambda_.18} parent=0 // pred_region
    _
  $region41: #{_lambda_.18} parent=0 // pred_fallthru
    _

// kernel: tile.83
$region0: #{tile.83}
  #allocation0 [shape = 's32[1]{0}', space=sflag, size = 0x4, scoped, tag = 'scoped memory for tile.83']
  %s0 = inlined_call_operand.vmem [shape: f32[32], index: 0, kind: input, shape index: {}]
  %s1 = inlined_call_operand.vmem [shape: f32[4,32], index: 1, kind: output, shape index: {}]
  // Predicated region
  $region2: #{tile.83} parent=0 // pred_check
    _
  $region3: #{tile.83} parent=0 // pred_check_branch
    %3 = sbr.rel (0) target = $region5
  $region4: #{tile.83} parent=0 // pred_region
    _
  $region5: #{tile.83} parent=0 // pred_fallthru
    _
  %v4 = vld [vmem:[%s0] ss:$0 sm:$0xff]
  %5 = vst [vmem:[%s1] sm:$0xf] %v4

// kernel: tile.84
$region0: #{tile.84}
  %s0 = inlined_call_operand.vmem [shape: f32[4,32], index: 0, kind: input, shape index: {}]
  %s1 = inlined_call_operand.vmem [shape: f32[1,128], index: 1, kind: output, shape index: {}]
  $region1: #{tile.84} parent=0
    #allocation0 [shape = 'u8[4096]{0}', space=vmem, size = 0x1000, scoped, tag = 'scoped mem for output reshape']
    #allocation1 [shape = 'u8[4096]{0}', space=vmem, size = 0x1000, scoped, tag = 'scoped mem for input reshape']
    %s3 = sshll.u32 1, 4
    %s4 = ssub.s32 %s3, 1
    %v5 = vld [vmem:[%s0] sm:%s4]
    %6 = vst [vmem:[#allocation1] sm:%s4] %v5
    %v7 = vld [vmem:[#allocation1] sm:$0x1]
    %vm8 = vcmask 261120
    %9 = vst.msk [vmem:[#allocation0] sm:$0x1] %vm8, %v7
    %s10 = scalar_lea.vmem [#allocation1], 3
    %v11 = vld [vmem:[%s10] sm:$0x1]
    %12 = vrot.lane.b32.xlu0 %v11, 96
    %v13 = vpop.permute.xlu0 %12
    %vm14 = vcmask 1048320
    %15 = vst.msk [vmem:[#allocation0] sm:$0x1] %vm14, %v13
    %s16 = scalar_lea.vmem [#allocation1], 2
    %v17 = vld [vmem:[%s16] sm:$0x1]
    %18 = vrot.lane.b32.xlu0 %v17, 64
    %v19 = vpop.permute.xlu0 %18
    %vm20 = vcmask 785920
    %21 = vst.msk [vmem:[#allocation0] sm:$0x1] %vm20, %v19
    %s22 = scalar_lea.vmem [#allocation1], 1
    %v23 = vld [vmem:[%s22] sm:$0x1]
    %24 = vrot.lane.b32.xlu0 %v23, 32
    %v25 = vpop.permute.xlu0 %24
    %vm26 = vcmask 523520
    %27 = vst.msk [vmem:[#allocation0] sm:$0x1] %vm26, %v25
    %s29 = sshll.u32 1, 1
    %s30 = ssub.s32 %s29, 1
    %v32 = vld [vmem:[#allocation0] sm:%s30]
    %s33 = sshll.u32 1, 1
    %s34 = ssub.s32 %s33, 1
    %35 = vst [vmem:[%s1] sm:%s34] %v32

// kernel: _lambda_.21
$region0: #{_lambda_.21}
  #allocation0 [shape = 'u32[]', space=smem, size = 0x4, offset = 0x4, fixed_abs, tag = 'smem constant byte address 0x4 - core index']
  #allocation1 [shape = 'u32[144,128]{1,0:T(1,128)}', space=vmem, size = 0x12000, scoped, tag = 'internal scratch']
  %s0 = inlined_call_operand.vmem [shape: bf16[8,128], index: 0, kind: input, shape index: {}]
  %s1 = inlined_call_operand.vmem [shape: f32[1,128], index: 1, kind: input, shape index: {}]
  %s2 = inlined_call_operand.vmem [shape: f32[1,128], index: 2, kind: input, shape index: {}]
  %s3 = inlined_call_operand.vmem [shape: bf16[8,128], index: 3, kind: output, shape index: {}]
  %s4 = sld [smem:[#allocation0]]
  $region22: #{_lambda_.21} parent=0
    _
  %s6 = ssub.s32 1, %s4
  %s7 = scalar_select 0, %s6, %s4
  // Predicated region
  $region2: #{_lambda_.21} parent=0 // pred_check
    _
  $region3: #{_lambda_.21} parent=0 // pred_check_branch
    %9 = sbr.rel (0) target = $region5
  $region4: #{_lambda_.21} parent=0 // pred_region
    _
  $region5: #{_lambda_.21} parent=0 // pred_fallthru
    _
  // Predicated region
  $region6: #{_lambda_.21} parent=0 // pred_check
    _
  $region7: #{_lambda_.21} parent=0 // pred_check_branch
    %11 = sbr.rel (0) target = $region9
  $region8: #{_lambda_.21} parent=0 // pred_region
    _
  $region9: #{_lambda_.21} parent=0 // pred_fallthru
    _
  // Predicated region
  $region10: #{_lambda_.21} parent=0 // pred_check
    _
  $region11: #{_lambda_.21} parent=0 // pred_check_branch
    %13 = sbr.rel (0) target = $region13
  $region12: #{_lambda_.21} parent=0 // pred_region
    _
  $region13: #{_lambda_.21} parent=0 // pred_fallthru
    _
  %v14 = vld [vmem:[%s0] sm:$0xf]
  %v15 = vunpack.c.l.bf16 %v14
  %v16 = vld [vmem:[%s1] sm:$0x1]
  %v18 = vlaneseq
  %v19 = vshrl.u32 %v18, 7
  %v20 = vsub.s32 0, %v19
  %v21 = vrot.slane %v16, %v20
  %v23 = vmul.f32 %v15, %v21
  %v24 = vld [vmem:[%s2] sm:$0x1]
  %v26 = vlaneseq
  %v27 = vshrl.u32 %v26, 7
  %v28 = vsub.s32 0, %v27
  %v29 = vrot.slane %v24, %v28
  %v31 = vadd.f32 %v23, %v29
  %v32 = vpack.c.bf16 %v31, %v31
  %33 = vst [vmem:[%s3] sm:$0xf] %v32
  // Predicated region
  $region14: #{_lambda_.21} parent=0 // pred_check
    _
  $region15: #{_lambda_.21} parent=0 // pred_check_branch
    %35 = sbr.rel (0) target = $region17
  $region16: #{_lambda_.21} parent=0 // pred_region
    _
  $region17: #{_lambda_.21} parent=0 // pred_fallthru
    _
  // Predicated region
  $region18: #{_lambda_.21} parent=0 // pred_check
    _
  $region19: #{_lambda_.21} parent=0 // pred_check_branch
    %37 = sbr.rel (0) target = $region21
  $region20: #{_lambda_.21} parent=0 // pred_region
    _
  $region21: #{_lambda_.21} parent=0 // pred_fallthru
    _

// kernel: _lambda_.20
$region0: #{_lambda_.20}
  #allocation0 [shape = 'u32[]', space=smem, size = 0x4, offset = 0x4, fixed_abs, tag = 'smem constant byte address 0x4 - core index']
  #allocation1 [shape = 'u32[144,128]{1,0:T(1,128)}', space=vmem, size = 0x12000, scoped, tag = 'internal scratch']
  #allocation2 [shape = 'f32[32,128]{1,0:T(8,128)}', space=vmem, size = 0x4000, scoped, tag = 'scratch operand']
  %s0 = inlined_call_operand.vmem [shape: bf16[32,256], index: 0, kind: input, shape index: {}]
  %s1 = inlined_call_operand.vmem [shape: bf16[256,128], index: 1, kind: input, shape index: {}]
  %s2 = inlined_call_operand.vmem [shape: bf16[32,128], index: 2, kind: output, shape index: {0}]
  %s3 = inlined_call_operand.vmem [shape: f32[1,1,128], index: 3, kind: output, shape index: {1}]
  %s4 = inlined_call_operand.vmem [shape: f32[1,1,128], index: 4, kind: output, shape index: {2}]
  %5 = xla_tuple %s2, %s3, %s4
  %s6 = sld [smem:[#allocation0]]
  $region42: #{_lambda_.20} parent=0
    _
  %s8 = ssub.s32 1, %s6
  %s9 = scalar_select 0, %s8, %s6
  // Predicated region
  $region2: #{_lambda_.20} parent=0 // pred_check
    _
  $region3: #{_lambda_.20} parent=0 // pred_check_branch
    %11 = sbr.rel (0) target = $region5
  $region4: #{_lambda_.20} parent=0 // pred_region
    _
  $region5: #{_lambda_.20} parent=0 // pred_fallthru
    _
  // Predicated region
  $region6: #{_lambda_.20} parent=0 // pred_check
    _
  $region7: #{_lambda_.20} parent=0 // pred_check_branch
    %13 = sbr.rel (0) target = $region9
  $region8: #{_lambda_.20} parent=0 // pred_region
    _
  $region9: #{_lambda_.20} parent=0 // pred_fallthru
    _
  %p15 = scmp.eq.s32.totalorder 0, 0
  // Predicated region
  $region10: #{_lambda_.20} parent=0 // pred_check
    %p16 = pneg %p15
  $region11: #{_lambda_.20} parent=0 // pred_check_branch
    %18 = sbr.rel (%p16) target = $region13
  $region12: #{_lambda_.20} parent=0 // pred_region
    %19 = vst [vmem:[#allocation2] sm:$0xff] 0.0
    %20 = vst [vmem:[#allocation2 + $0x8] sm:$0xff] 0.0
    %21 = vst [vmem:[#allocation2 + $0x10] sm:$0xff] 0.0
    %22 = vst [vmem:[#allocation2 + $0x18] sm:$0xff] 0.0
  $region13: #{_lambda_.20} parent=0 // pred_fallthru
    _
  %v23 = vld [vmem:[#allocation2] sm:$0xff]
  %v24 = vld [vmem:[#allocation2 + $0x8] sm:$0xff]
  %v25 = vld [vmem:[#allocation2 + $0x10] sm:$0xff]
  %v26 = vld [vmem:[#allocation2 + $0x18] sm:$0xff]
  %v27 = vld [vmem:[%s0] sm:$0xff]
  %v28 = vld [vmem:[%s0 + $0x8] sm:$0xff]
  %v29 = vld [vmem:[%s0 + $0x10] sm:$0xff]
  %v30 = vld [vmem:[%s0 + $0x18] sm:$0xff]
  %v31 = vld [vmem:[%s1] sm:$0xf]
  %v32 = vld [vmem:[%s1 + $0x4] sm:$0xf]
  %v33 = vld [vmem:[%s1 + $0x8] sm:$0xf]
  %v34 = vld [vmem:[%s1 + $0xc] sm:$0xf]
  %v35 = vld [vmem:[%s1 + $0x10] sm:$0xf]
  %v36 = vld [vmem:[%s1 + $0x14] sm:$0xf]
  %v37 = vld [vmem:[%s1 + $0x18] sm:$0xf]
  %v38 = vld [vmem:[%s1 + $0x1c] sm:$0xf]
  %v39 = vld [vmem:[%s1 + $0x20] sm:$0xf]
  %v40 = vld [vmem:[%s1 + $0x24] sm:$0xf]
  %v41 = vld [vmem:[%s1 + $0x28] sm:$0xf]
  %v42 = vld [vmem:[%s1 + $0x2c] sm:$0xf]
  %v43 = vld [vmem:[%s1 + $0x30] sm:$0xf]
  %v44 = vld [vmem:[%s1 + $0x34] sm:$0xf]
  %v45 = vld [vmem:[%s1 + $0x38] sm:$0xf]
  %v46 = vld [vmem:[%s1 + $0x3c] sm:$0xf]
  %v47 = vld [vmem:[%s1 + $0x40] sm:$0xf]
  %v48 = vld [vmem:[%s1 + $0x44] sm:$0xf]
  %v49 = vld [vmem:[%s1 + $0x48] sm:$0xf]
  %v50 = vld [vmem:[%s1 + $0x4c] sm:$0xf]
  %v51 = vld [vmem:[%s1 + $0x50] sm:$0xf]
  %v52 = vld [vmem:[%s1 + $0x54] sm:$0xf]
  %v53 = vld [vmem:[%s1 + $0x58] sm:$0xf]
  %v54 = vld [vmem:[%s1 + $0x5c] sm:$0xf]
  %v55 = vld [vmem:[%s1 + $0x60] sm:$0xf]
  %v56 = vld [vmem:[%s1 + $0x64] sm:$0xf]
  %v57 = vld [vmem:[%s1 + $0x68] sm:$0xf]
  %v58 = vld [vmem:[%s1 + $0x6c] sm:$0xf]
  %v59 = vld [vmem:[%s1 + $0x70] sm:$0xf]
  %v60 = vld [vmem:[%s1 + $0x74] sm:$0xf]
  %v61 = vld [vmem:[%s1 + $0x78] sm:$0xf]
  %v62 = vld [vmem:[%s1 + $0x7c] sm:$0xf]
  %v67 = vunpack.c.l.b16 %v27
  %v68 = vunpack.c.h.b16 %v27
  %v69 = vunpack.c.l.b16 %v28
  %v70 = vunpack.c.h.b16 %v28
  %v71 = vunpack.c.l.b16 %v29
  %v72 = vunpack.c.h.b16 %v29
  %v73 = vunpack.c.l.b16 %v30
  %v74 = vunpack.c.h.b16 %v30
  %v75 = vpack.c.b16 %v69, %v67
  %v76 = vpack.c.b16 %v70, %v68
  %v77 = vpack.c.b16 %v73, %v71
  %v78 = vpack.c.b16 %v74, %v72
  %v115 = vunpack.c.l.b16 %v31
  %v116 = vunpack.c.l.b16 %v32
  %v117 = vunpack.c.l.b16 %v33
  %v118 = vunpack.c.l.b16 %v34
  %v119 = vunpack.c.l.b16 %v35
  %v120 = vunpack.c.l.b16 %v36
  %v121 = vunpack.c.l.b16 %v37
  %v122 = vunpack.c.l.b16 %v38
  %v123 = vunpack.c.l.b16 %v39
  %v124 = vunpack.c.l.b16 %v40
  %v125 = vunpack.c.l.b16 %v41
  %v126 = vunpack.c.l.b16 %v42
  %v127 = vunpack.c.l.b16 %v43
  %v128 = vunpack.c.l.b16 %v44
  %v129 = vunpack.c.l.b16 %v45
  %v130 = vunpack.c.l.b16 %v46
  %v131 = vunpack.c.l.b16 %v47
  %v132 = vunpack.c.l.b16 %v48
  %v133 = vunpack.c.l.b16 %v49
  %v134 = vunpack.c.l.b16 %v50
  %v135 = vunpack.c.l.b16 %v51
  %v136 = vunpack.c.l.b16 %v52
  %v137 = vunpack.c.l.b16 %v53
  %v138 = vunpack.c.l.b16 %v54
  %v139 = vunpack.c.l.b16 %v55
  %v140 = vunpack.c.l.b16 %v56
  %v141 = vunpack.c.l.b16 %v57
  %v142 = vunpack.c.l.b16 %v58
  %v143 = vunpack.c.l.b16 %v59
  %v144 = vunpack.c.l.b16 %v60
  %v145 = vunpack.c.l.b16 %v61
  %v146 = vunpack.c.l.b16 %v62
  %v147 = vpack.c.b16 %v116, %v115
  %v148 = vpack.c.b16 %v118, %v117
  %v149 = vpack.c.b16 %v120, %v119
  %v150 = vpack.c.b16 %v122, %v121
  %v151 = vpack.c.b16 %v124, %v123
  %v152 = vpack.c.b16 %v126, %v125
  %v153 = vpack.c.b16 %v128, %v127
  %v154 = vpack.c.b16 %v130, %v129
  %v155 = vpack.c.b16 %v132, %v131
  %v156 = vpack.c.b16 %v134, %v133
  %v157 = vpack.c.b16 %v136, %v135
  %v158 = vpack.c.b16 %v138, %v137
  %v159 = vpack.c.b16 %v140, %v139
  %v160 = vpack.c.b16 %v142, %v141
  %v161 = vpack.c.b16 %v144, %v143
  %v162 = vpack.c.b16 %v146, %v145
  %179 = vmatprep.subr.bf16.mxu0 0
  %180 = vmatpush1.bf16.msra.mxu0 %v154
  %181 = vmatprep.subr.bf16.mxu0 0
  %182 = vmatpush1.bf16.msra.mxu0 %v153
  %183 = vmatprep.subr.bf16.mxu0 0
  %184 = vmatpush1.bf16.msra.mxu0 %v152
  %185 = vmatprep.subr.bf16.mxu0 0
  %186 = vmatpush1.bf16.msra.mxu0 %v151
  %187 = vmatprep.subr.bf16.mxu0 0
  %188 = vmatpush1.bf16.msra.mxu0 %v150
  %189 = vmatprep.subr.bf16.mxu0 0
  %190 = vmatpush1.bf16.msra.mxu0 %v149
  %191 = vmatprep.subr.bf16.mxu0 0
  %192 = vmatpush1.bf16.msra.mxu0 %v148
  %193 = vmatprep.subr.bf16.mxu0 0
  %194 = vmatpush1.bf16.msra.mxu0 %v147
  %195 = vmatprep.subr.bf16.mxu0 0
  %196 = vmatpush2.bf16.msra.mxu0 %v162
  %197 = vmatprep.subr.bf16.mxu0 0
  %198 = vmatpush2.bf16.msra.mxu0 %v161
  %199 = vmatprep.subr.bf16.mxu0 0
  %200 = vmatpush2.bf16.msra.mxu0 %v160
  %201 = vmatprep.subr.bf16.mxu0 0
  %202 = vmatpush2.bf16.msra.mxu0 %v159
  %203 = vmatprep.subr.bf16.mxu0 0
  %204 = vmatpush2.bf16.msra.mxu0 %v158
  %205 = vmatprep.subr.bf16.mxu0 0
  %206 = vmatpush2.bf16.msra.mxu0 %v157
  %207 = vmatprep.subr.bf16.mxu0 0
  %208 = vmatpush2.bf16.msra.mxu0 %v156
  %209 = vmatprep.subr.bf16.mxu0 0
  %210 = vmatpush2.bf16.msra.mxu0 %v155
  %211 = vmatprep.mubr.bf16.mxu0 %v76
  %212 = vmatmul.mubr.bf16.gmra.mxu0 %v75
  %v213 = vpop.f32.mrf.mxu0
  %v214 = vadd.f32 0.0, %v213
  %v215 = vpop.f32.mrf.mxu0
  %v216 = vpop.f32.mrf.mxu0
  %v217 = vadd.f32 0.0, %v216
  %v218 = vpop.f32.mrf.mxu0
  %219 = vmatprep.mubr.bf16.mxu0 %v78
  %220 = vmatmul.mubr.bf16.gmra.mxu0 %v77
  %v221 = vpop.f32.mrf.mxu0
  %v222 = vadd.f32 0.0, %v221
  %v223 = vpop.f32.mrf.mxu0
  %v224 = vpop.f32.mrf.mxu0
  %v225 = vadd.f32 0.0, %v224
  %v226 = vpop.f32.mrf.mxu0
  %227 = vdwg.mxu0
  %v228 = vadd.f32 %v23, %v214
  %v229 = vadd.f32 %v24, %v217
  %v230 = vadd.f32 %v25, %v222
  %v231 = vadd.f32 %v26, %v225
  %232 = vst [vmem:[#allocation2] sm:$0xff] %v228
  %233 = vst [vmem:[#allocation2 + $0x8] sm:$0xff] %v229
  %234 = vst [vmem:[#allocation2 + $0x10] sm:$0xff] %v230
  %235 = vst [vmem:[#allocation2 + $0x18] sm:$0xff] %v231
  // Predicated region
  $region14: #{_lambda_.20} parent=0 // pred_check
    %p236 = pneg %p15
  $region15: #{_lambda_.20} parent=0 // pred_check_branch
    %238 = sbr.rel (%p236) target = $region17
  $region16: #{_lambda_.20} parent=0 // pred_region
    %v239 = vld [vmem:[#allocation2] sm:$0xff]
    %v240 = vld [vmem:[#allocation2 + $0x8] sm:$0xff]
    %v241 = vld [vmem:[#allocation2 + $0x10] sm:$0xff]
    %v242 = vld [vmem:[#allocation2 + $0x18] sm:$0xff]
    %v243 = vpack.c.bf16 %v240, %v239
    %v244 = vpack.c.bf16 %v242, %v241
    %v247 = vunpack.c.l.b16 %v243
    %v248 = vunpack.c.h.b16 %v243
    %v249 = vunpack.c.l.b16 %v244
    %v250 = vunpack.c.h.b16 %v244
    %v251 = vpack.c.b16 %v247, %v247
    %v252 = vpack.c.b16 %v248, %v248
    %v253 = vpack.c.b16 %v249, %v249
    %v254 = vpack.c.b16 %v250, %v250
    %259 = vst [vmem:[%s2] sm:$0xf] %v251
    %260 = vst [vmem:[%s2 + $0x4] sm:$0xf] %v252
    %261 = vst [vmem:[%s2 + $0x8] sm:$0xf] %v253
    %262 = vst [vmem:[%s2 + $0xc] sm:$0xf] %v254
    %v263 = vadd.f32 %v239, %v240
    %v264 = vadd.f32 %v263, %v241
    %v265 = vadd.f32 %v264, %v242
    %v266 = vrot.slane %v265, 4
    %v267 = vadd.f32 %v265, %v266
    %v268 = vrot.slane %v267, 2
    %v269 = vadd.f32 %v267, %v268
    %v270 = vrot.slane %v269, 1
    %v271 = vadd.f32 %v269, %v270
    %272 = vst [vmem:[%s3] sm:$0x1] %v271
    %v273 = vmul.f32 %v239, %v239
    %v274 = vmul.f32 %v240, %v240
    %v275 = vmul.f32 %v241, %v241
    %v276 = vmul.f32 %v242, %v242
    %v277 = vadd.f32 %v273, %v274
    %v278 = vadd.f32 %v277, %v275
    %v279 = vadd.f32 %v278, %v276
    %v280 = vrot.slane %v279, 4
    %v281 = vadd.f32 %v279, %v280
    %v282 = vrot.slane %v281, 2
    %v283 = vadd.f32 %v281, %v282
    %v284 = vrot.slane %v283, 1
    %v285 = vadd.f32 %v283, %v284
    %286 = vst [vmem:[%s4] sm:$0x1] %v285
  $region17: #{_lambda_.20} parent=0 // pred_fallthru
    _
  // Predicated region
  $region18: #{_lambda_.20} parent=0 // pred_check
    _
  $region19: #{_lambda_.20} parent=0 // pred_check_branch
    %288 = sbr.rel (0) target = $region21
  $region20: #{_lambda_.20} parent=0 // pred_region
    _
  $region21: #{_lambda_.20} parent=0 // pred_fallthru
    _
  // Predicated region
  $region22: #{_lambda_.20} parent=0 // pred_check
    _
  $region23: #{_lambda_.20} parent=0 // pred_check_branch
    %290 = sbr.rel (0) target = $region25
  $region24: #{_lambda_.20} parent=0 // pred_region
    _
  $region25: #{_lambda_.20} parent=0 // pred_fallthru
    _
  // Predicated region
  $region26: #{_lambda_.20} parent=0 // pred_check
    _
  $region27: #{_lambda_.20} parent=0 // pred_check_branch
    %292 = sbr.rel (0) target = $region29
  $region28: #{_lambda_.20} parent=0 // pred_region
    _
  $region29: #{_lambda_.20} parent=0 // pred_fallthru
    _
  // Predicated region
  $region30: #{_lambda_.20} parent=0 // pred_check
    _
  $region31: #{_lambda_.20} parent=0 // pred_check_branch
    %294 = sbr.rel (0) target = $region33
  $region32: #{_lambda_.20} parent=0 // pred_region
    _
  $region33: #{_lambda_.20} parent=0 // pred_fallthru
    _
  // Predicated region
  $region34: #{_lambda_.20} parent=0 // pred_check
    _
  $region35: #{_lambda_.20} parent=0 // pred_check_branch
    %296 = sbr.rel (0) target = $region37
  $region36: #{_lambda_.20} parent=0 // pred_region
    _
  $region37: #{_lambda_.20} parent=0 // pred_fallthru
    _
  // Predicated region
  $region38: #{_lambda_.20} parent=0 // pred_check
    _
  $region39: #{_lambda_.20} parent=0 // pred_check_branch
    %298 = sbr.rel (0) target = $region41
  $region40: #{_lambda_.20} parent=0 // pred_region
    _
  $region41: #{_lambda_.20} parent=0 // pred_fallthru
    _

// kernel: tile.93
$region0: #{tile.93}
  #allocation0 [shape = 's32[1]{0}', space=sflag, size = 0x4, scoped, tag = 'scoped memory for tile.93']
  %s0 = inlined_call_operand.vmem [shape: f32[64], index: 0, kind: input, shape index: {}]
  %s1 = inlined_call_operand.vmem [shape: f32[2,64], index: 1, kind: output, shape index: {}]
  // Predicated region
  $region2: #{tile.93} parent=0 // pred_check
    _
  $region3: #{tile.93} parent=0 // pred_check_branch
    %3 = sbr.rel (0) target = $region5
  $region4: #{tile.93} parent=0 // pred_region
    _
  $region5: #{tile.93} parent=0 // pred_fallthru
    _
  %v4 = vld [vmem:[%s0] ss:$0 sm:$0xff]
  %5 = vst [vmem:[%s1] sm:$0x3] %v4

// kernel: tile.94
$region0: #{tile.94}
  %s0 = inlined_call_operand.vmem [shape: f32[2,64], index: 0, kind: input, shape index: {}]
  %s1 = inlined_call_operand.vmem [shape: f32[1,128], index: 1, kind: output, shape index: {}]
  $region1: #{tile.94} parent=0
    #allocation0 [shape = 'u8[4096]{0}', space=vmem, size = 0x1000, scoped, tag = 'scoped mem for output reshape']
    #allocation1 [shape = 'u8[4096]{0}', space=vmem, size = 0x1000, scoped, tag = 'scoped mem for input reshape']
    %s3 = sshll.u32 1, 2
    %s4 = ssub.s32 %s3, 1
    %v5 = vld [vmem:[%s0] sm:%s4]
    %6 = vst [vmem:[#allocation1] sm:%s4] %v5
    %v7 = vld [vmem:[#allocation1] sm:$0x1]
    %vm8 = vcmask 523264
    %9 = vst.msk [vmem:[#allocation0] sm:$0x1] %vm8, %v7
    %s10 = scalar_lea.vmem [#allocation1], 1
    %v11 = vld [vmem:[%s10] sm:$0x1]
    %12 = vrot.lane.b32.xlu0 %v11, 64
    %v13 = vpop.permute.xlu0 %12
    %vm14 = vcmask 1048064
    %15 = vst.msk [vmem:[#allocation0] sm:$0x1] %vm14, %v13
    %s17 = sshll.u32 1, 1
    %s18 = ssub.s32 %s17, 1
    %v20 = vld [vmem:[#allocation0] sm:%s18]
    %s21 = sshll.u32 1, 1
    %s22 = ssub.s32 %s21, 1
    %23 = vst [vmem:[%s1] sm:%s22] %v20

// kernel: _lambda_.22
$region0: #{_lambda_.22}
  #allocation0 [shape = 'u32[]', space=smem, size = 0x4, offset = 0x4, fixed_abs, tag = 'smem constant byte address 0x4 - core index']
  #allocation1 [shape = 'u32[144,128]{1,0:T(1,128)}', space=vmem, size = 0x12000, scoped, tag = 'internal scratch']
  #allocation2 [shape = 'f32[8,128]{1,0:T(8,128)}', space=vmem, size = 0x1000, scoped, tag = 'scratch operand']
  %s0 = inlined_call_operand.vmem [shape: bf16[8,512], index: 0, kind: input, shape index: {}]
  %s1 = inlined_call_operand.vmem [shape: bf16[512,128], index: 1, kind: input, shape index: {}]
  %s2 = inlined_call_operand.vmem [shape: bf16[8,128], index: 2, kind: output, shape index: {0}]
  %s3 = inlined_call_operand.vmem [shape: f32[1,1,128], index: 3, kind: output, shape index: {1}]
  %s4 = inlined_call_operand.vmem [shape: f32[1,1,128], index: 4, kind: output, shape index: {2}]
  %5 = xla_tuple %s2, %s3, %s4
  %s6 = sld [smem:[#allocation0]]
  $region42: #{_lambda_.22} parent=0
    _
  %s8 = ssub.s32 1, %s6
  %s9 = scalar_select 0, %s8, %s6
  // Predicated region
  $region2: #{_lambda_.22} parent=0 // pred_check
    _
  $region3: #{_lambda_.22} parent=0 // pred_check_branch
    %11 = sbr.rel (0) target = $region5
  $region4: #{_lambda_.22} parent=0 // pred_region
    _
  $region5: #{_lambda_.22} parent=0 // pred_fallthru
    _
  // Predicated region
  $region6: #{_lambda_.22} parent=0 // pred_check
    _
  $region7: #{_lambda_.22} parent=0 // pred_check_branch
    %13 = sbr.rel (0) target = $region9
  $region8: #{_lambda_.22} parent=0 // pred_region
    _
  $region9: #{_lambda_.22} parent=0 // pred_fallthru
    _
  %p15 = scmp.eq.s32.totalorder 0, 0
  // Predicated region
  $region10: #{_lambda_.22} parent=0 // pred_check
    %p16 = pneg %p15
  $region11: #{_lambda_.22} parent=0 // pred_check_branch
    %18 = sbr.rel (%p16) target = $region13
  $region12: #{_lambda_.22} parent=0 // pred_region
    %19 = vst [vmem:[#allocation2] sm:$0xff] 0.0
  $region13: #{_lambda_.22} parent=0 // pred_fallthru
    _
  %v20 = vld [vmem:[#allocation2] sm:$0xff]
  %v21 = vld [vmem:[%s0] sm:$0xff]
  %v22 = vld [vmem:[%s0 + $0x8] sm:$0xff]
  %v23 = vld [vmem:[%s1] sm:$0xf]
  %v24 = vld [vmem:[%s1 + $0x4] sm:$0xf]
  %v25 = vld [vmem:[%s1 + $0x8] sm:$0xf]
  %v26 = vld [vmem:[%s1 + $0xc] sm:$0xf]
  %v27 = vld [vmem:[%s1 + $0x10] sm:$0xf]
  %v28 = vld [vmem:[%s1 + $0x14] sm:$0xf]
  %v29 = vld [vmem:[%s1 + $0x18] sm:$0xf]
  %v30 = vld [vmem:[%s1 + $0x1c] sm:$0xf]
  %v31 = vld [vmem:[%s1 + $0x20] sm:$0xf]
  %v32 = vld [vmem:[%s1 + $0x24] sm:$0xf]
  %v33 = vld [vmem:[%s1 + $0x28] sm:$0xf]
  %v34 = vld [vmem:[%s1 + $0x2c] sm:$0xf]
  %v35 = vld [vmem:[%s1 + $0x30] sm:$0xf]
  %v36 = vld [vmem:[%s1 + $0x34] sm:$0xf]
  %v37 = vld [vmem:[%s1 + $0x38] sm:$0xf]
  %v38 = vld [vmem:[%s1 + $0x3c] sm:$0xf]
  %v39 = vld [vmem:[%s1 + $0x40] sm:$0xf]
  %v40 = vld [vmem:[%s1 + $0x44] sm:$0xf]
  %v41 = vld [vmem:[%s1 + $0x48] sm:$0xf]
  %v42 = vld [vmem:[%s1 + $0x4c] sm:$0xf]
  %v43 = vld [vmem:[%s1 + $0x50] sm:$0xf]
  %v44 = vld [vmem:[%s1 + $0x54] sm:$0xf]
  %v45 = vld [vmem:[%s1 + $0x58] sm:$0xf]
  %v46 = vld [vmem:[%s1 + $0x5c] sm:$0xf]
  %v47 = vld [vmem:[%s1 + $0x60] sm:$0xf]
  %v48 = vld [vmem:[%s1 + $0x64] sm:$0xf]
  %v49 = vld [vmem:[%s1 + $0x68] sm:$0xf]
  %v50 = vld [vmem:[%s1 + $0x6c] sm:$0xf]
  %v51 = vld [vmem:[%s1 + $0x70] sm:$0xf]
  %v52 = vld [vmem:[%s1 + $0x74] sm:$0xf]
  %v53 = vld [vmem:[%s1 + $0x78] sm:$0xf]
  %v54 = vld [vmem:[%s1 + $0x7c] sm:$0xf]
  %v55 = vld [vmem:[%s1 + $0x80] sm:$0xf]
  %v56 = vld [vmem:[%s1 + $0x84] sm:$0xf]
  %v57 = vld [vmem:[%s1 + $0x88] sm:$0xf]
  %v58 = vld [vmem:[%s1 + $0x8c] sm:$0xf]
  %v59 = vld [vmem:[%s1 + $0x90] sm:$0xf]
  %v60 = vld [vmem:[%s1 + $0x94] sm:$0xf]
  %v61 = vld [vmem:[%s1 + $0x98] sm:$0xf]
  %v62 = vld [vmem:[%s1 + $0x9c] sm:$0xf]
  %v63 = vld [vmem:[%s1 + $0xa0] sm:$0xf]
  %v64 = vld [vmem:[%s1 + $0xa4] sm:$0xf]
  %v65 = vld [vmem:[%s1 + $0xa8] sm:$0xf]
  %v66 = vld [vmem:[%s1 + $0xac] sm:$0xf]
  %v67 = vld [vmem:[%s1 + $0xb0] sm:$0xf]
  %v68 = vld [vmem:[%s1 + $0xb4] sm:$0xf]
  %v69 = vld [vmem:[%s1 + $0xb8] sm:$0xf]
  %v70 = vld [vmem:[%s1 + $0xbc] sm:$0xf]
  %v71 = vld [vmem:[%s1 + $0xc0] sm:$0xf]
  %v72 = vld [vmem:[%s1 + $0xc4] sm:$0xf]
  %v73 = vld [vmem:[%s1 + $0xc8] sm:$0xf]
  %v74 = vld [vmem:[%s1 + $0xcc] sm:$0xf]
  %v75 = vld [vmem:[%s1 + $0xd0] sm:$0xf]
  %v76 = vld [vmem:[%s1 + $0xd4] sm:$0xf]
  %v77 = vld [vmem:[%s1 + $0xd8] sm:$0xf]
  %v78 = vld [vmem:[%s1 + $0xdc] sm:$0xf]
  %v79 = vld [vmem:[%s1 + $0xe0] sm:$0xf]
  %v80 = vld [vmem:[%s1 + $0xe4] sm:$0xf]
  %v81 = vld [vmem:[%s1 + $0xe8] sm:$0xf]
  %v82 = vld [vmem:[%s1 + $0xec] sm:$0xf]
  %v83 = vld [vmem:[%s1 + $0xf0] sm:$0xf]
  %v84 = vld [vmem:[%s1 + $0xf4] sm:$0xf]
  %v85 = vld [vmem:[%s1 + $0xf8] sm:$0xf]
  %v86 = vld [vmem:[%s1 + $0xfc] sm:$0xf]
  %v89 = vunpack.c.l.b16 %v21
  %v90 = vunpack.c.h.b16 %v21
  %v91 = vunpack.c.l.b16 %v22
  %v92 = vunpack.c.h.b16 %v22
  %v93 = vpack.c.b16 %v89, %v89
  %v94 = vpack.c.b16 %v90, %v90
  %v95 = vpack.c.b16 %v91, %v91
  %v96 = vpack.c.b16 %v92, %v92
  %v165 = vunpack.c.l.b16 %v23
  %v166 = vunpack.c.l.b16 %v24
  %v167 = vunpack.c.l.b16 %v25
  %v168 = vunpack.c.l.b16 %v26
  %v169 = vunpack.c.l.b16 %v27
  %v170 = vunpack.c.l.b16 %v28
  %v171 = vunpack.c.l.b16 %v29
  %v172 = vunpack.c.l.b16 %v30
  %v173 = vunpack.c.l.b16 %v31
  %v174 = vunpack.c.l.b16 %v32
  %v175 = vunpack.c.l.b16 %v33
  %v176 = vunpack.c.l.b16 %v34
  %v177 = vunpack.c.l.b16 %v35
  %v178 = vunpack.c.l.b16 %v36
  %v179 = vunpack.c.l.b16 %v37
  %v180 = vunpack.c.l.b16 %v38
  %v181 = vunpack.c.l.b16 %v39
  %v182 = vunpack.c.l.b16 %v40
  %v183 = vunpack.c.l.b16 %v41
  %v184 = vunpack.c.l.b16 %v42
  %v185 = vunpack.c.l.b16 %v43
  %v186 = vunpack.c.l.b16 %v44
  %v187 = vunpack.c.l.b16 %v45
  %v188 = vunpack.c.l.b16 %v46
  %v189 = vunpack.c.l.b16 %v47
  %v190 = vunpack.c.l.b16 %v48
  %v191 = vunpack.c.l.b16 %v49
  %v192 = vunpack.c.l.b16 %v50
  %v193 = vunpack.c.l.b16 %v51
  %v194 = vunpack.c.l.b16 %v52
  %v195 = vunpack.c.l.b16 %v53
  %v196 = vunpack.c.l.b16 %v54
  %v197 = vunpack.c.l.b16 %v55
  %v198 = vunpack.c.l.b16 %v56
  %v199 = vunpack.c.l.b16 %v57
  %v200 = vunpack.c.l.b16 %v58
  %v201 = vunpack.c.l.b16 %v59
  %v202 = vunpack.c.l.b16 %v60
  %v203 = vunpack.c.l.b16 %v61
  %v204 = vunpack.c.l.b16 %v62
  %v205 = vunpack.c.l.b16 %v63
  %v206 = vunpack.c.l.b16 %v64
  %v207 = vunpack.c.l.b16 %v65
  %v208 = vunpack.c.l.b16 %v66
  %v209 = vunpack.c.l.b16 %v67
  %v210 = vunpack.c.l.b16 %v68
  %v211 = vunpack.c.l.b16 %v69
  %v212 = vunpack.c.l.b16 %v70
  %v213 = vunpack.c.l.b16 %v71
  %v214 = vunpack.c.l.b16 %v72
  %v215 = vunpack.c.l.b16 %v73
  %v216 = vunpack.c.l.b16 %v74
  %v217 = vunpack.c.l.b16 %v75
  %v218 = vunpack.c.l.b16 %v76
  %v219 = vunpack.c.l.b16 %v77
  %v220 = vunpack.c.l.b16 %v78
  %v221 = vunpack.c.l.b16 %v79
  %v222 = vunpack.c.l.b16 %v80
  %v223 = vunpack.c.l.b16 %v81
  %v224 = vunpack.c.l.b16 %v82
  %v225 = vunpack.c.l.b16 %v83
  %v226 = vunpack.c.l.b16 %v84
  %v227 = vunpack.c.l.b16 %v85
  %v228 = vunpack.c.l.b16 %v86
  %v229 = vpack.c.b16 %v166, %v165
  %v230 = vpack.c.b16 %v168, %v167
  %v231 = vpack.c.b16 %v170, %v169
  %v232 = vpack.c.b16 %v172, %v171
  %v233 = vpack.c.b16 %v174, %v173
  %v234 = vpack.c.b16 %v176, %v175
  %v235 = vpack.c.b16 %v178, %v177
  %v236 = vpack.c.b16 %v180, %v179
  %v237 = vpack.c.b16 %v182, %v181
  %v238 = vpack.c.b16 %v184, %v183
  %v239 = vpack.c.b16 %v186, %v185
  %v240 = vpack.c.b16 %v188, %v187
  %v241 = vpack.c.b16 %v190, %v189
  %v242 = vpack.c.b16 %v192, %v191
  %v243 = vpack.c.b16 %v194, %v193
  %v244 = vpack.c.b16 %v196, %v195
  %v245 = vpack.c.b16 %v198, %v197
  %v246 = vpack.c.b16 %v200, %v199
  %v247 = vpack.c.b16 %v202, %v201
  %v248 = vpack.c.b16 %v204, %v203
  %v249 = vpack.c.b16 %v206, %v205
  %v250 = vpack.c.b16 %v208, %v207
  %v251 = vpack.c.b16 %v210, %v209
  %v252 = vpack.c.b16 %v212, %v211
  %v253 = vpack.c.b16 %v214, %v213
  %v254 = vpack.c.b16 %v216, %v215
  %v255 = vpack.c.b16 %v218, %v217
  %v256 = vpack.c.b16 %v220, %v219
  %v257 = vpack.c.b16 %v222, %v221
  %v258 = vpack.c.b16 %v224, %v223
  %v259 = vpack.c.b16 %v226, %v225
  %v260 = vpack.c.b16 %v228, %v227
  %293 = vmatprep.subr.bf16.mxu0 0
  %294 = vmatpush1.bf16.msra.mxu0 %v236
  %295 = vmatprep.subr.bf16.mxu0 0
  %296 = vmatpush1.bf16.msra.mxu0 %v235
  %297 = vmatprep.subr.bf16.mxu0 0
  %298 = vmatpush1.bf16.msra.mxu0 %v234
  %299 = vmatprep.subr.bf16.mxu0 0
  %300 = vmatpush1.bf16.msra.mxu0 %v233
  %301 = vmatprep.subr.bf16.mxu0 0
  %302 = vmatpush1.bf16.msra.mxu0 %v232
  %303 = vmatprep.subr.bf16.mxu0 0
  %304 = vmatpush1.bf16.msra.mxu0 %v231
  %305 = vmatprep.subr.bf16.mxu0 0
  %306 = vmatpush1.bf16.msra.mxu0 %v230
  %307 = vmatprep.subr.bf16.mxu0 0
  %308 = vmatpush1.bf16.msra.mxu0 %v229
  %309 = vmatprep.subr.bf16.mxu0 0
  %310 = vmatpush2.bf16.msra.mxu0 %v244
  %311 = vmatprep.subr.bf16.mxu0 0
  %312 = vmatpush2.bf16.msra.mxu0 %v243
  %313 = vmatprep.subr.bf16.mxu0 0
  %314 = vmatpush2.bf16.msra.mxu0 %v242
  %315 = vmatprep.subr.bf16.mxu0 0
  %316 = vmatpush2.bf16.msra.mxu0 %v241
  %317 = vmatprep.subr.bf16.mxu0 0
  %318 = vmatpush2.bf16.msra.mxu0 %v240
  %319 = vmatprep.subr.bf16.mxu0 0
  %320 = vmatpush2.bf16.msra.mxu0 %v239
  %321 = vmatprep.subr.bf16.mxu0 0
  %322 = vmatpush2.bf16.msra.mxu0 %v238
  %323 = vmatprep.subr.bf16.mxu0 0
  %324 = vmatpush2.bf16.msra.mxu0 %v237
  %325 = vmatprep.mubr.bf16.mxu0 %v94
  %326 = vmatmul.mubr.bf16.gmra.mxu0 %v93
  %v327 = vpop.f32.mrf.mxu0
  %v328 = vadd.f32 0.0, %v327
  %v329 = vpop.f32.mrf.mxu0
  %v330 = vpop.f32.mrf.mxu0
  %v331 = vpop.f32.mrf.mxu0
  %332 = vdwg.mxu0
  %333 = vmatprep.subr.bf16.mxu0 0
  %334 = vmatpush1.bf16.msra.mxu0 %v252
  %335 = vmatprep.subr.bf16.mxu0 0
  %336 = vmatpush1.bf16.msra.mxu0 %v251
  %337 = vmatprep.subr.bf16.mxu0 0
  %338 = vmatpush1.bf16.msra.mxu0 %v250
  %339 = vmatprep.subr.bf16.mxu0 0
  %340 = vmatpush1.bf16.msra.mxu0 %v249
  %341 = vmatprep.subr.bf16.mxu0 0
  %342 = vmatpush1.bf16.msra.mxu0 %v248
  %343 = vmatprep.subr.bf16.mxu0 0
  %344 = vmatpush1.bf16.msra.mxu0 %v247
  %345 = vmatprep.subr.bf16.mxu0 0
  %346 = vmatpush1.bf16.msra.mxu0 %v246
  %347 = vmatprep.subr.bf16.mxu0 0
  %348 = vmatpush1.bf16.msra.mxu0 %v245
  %349 = vmatprep.subr.bf16.mxu0 0
  %350 = vmatpush2.bf16.msra.mxu0 %v260
  %351 = vmatprep.subr.bf16.mxu0 0
  %352 = vmatpush2.bf16.msra.mxu0 %v259
  %353 = vmatprep.subr.bf16.mxu0 0
  %354 = vmatpush2.bf16.msra.mxu0 %v258
  %355 = vmatprep.subr.bf16.mxu0 0
  %356 = vmatpush2.bf16.msra.mxu0 %v257
  %357 = vmatprep.subr.bf16.mxu0 0
  %358 = vmatpush2.bf16.msra.mxu0 %v256
  %359 = vmatprep.subr.bf16.mxu0 0
  %360 = vmatpush2.bf16.msra.mxu0 %v255
  %361 = vmatprep.subr.bf16.mxu0 0
  %362 = vmatpush2.bf16.msra.mxu0 %v254
  %363 = vmatprep.subr.bf16.mxu0 0
  %364 = vmatpush2.bf16.msra.mxu0 %v253
  %365 = vmatprep.mubr.bf16.mxu0 %v96
  %366 = vmatmul.mubr.bf16.gmra.mxu0 %v95
  %v367 = vpop.f32.mrf.mxu0
  %v368 = vadd.f32 %v328, %v367
  %v369 = vpop.f32.mrf.mxu0
  %v370 = vpop.f32.mrf.mxu0
  %v371 = vpop.f32.mrf.mxu0
  %372 = vdwg.mxu0
  %v373 = vadd.f32 %v20, %v368
  %374 = vst [vmem:[#allocation2] sm:$0xff] %v373
  // Predicated region
  $region14: #{_lambda_.22} parent=0 // pred_check
    %p375 = pneg %p15
  $region15: #{_lambda_.22} parent=0 // pred_check_branch
    %377 = sbr.rel (%p375) target = $region17
  $region16: #{_lambda_.22} parent=0 // pred_region
    %v378 = vld [vmem:[#allocation2] sm:$0xff]
    %v379 = vpack.c.bf16 %v378, %v378
    %380 = vst [vmem:[%s2] sm:$0xf] %v379
    %v381 = vrot.slane %v378, 4
    %v382 = vadd.f32 %v378, %v381
    %v383 = vrot.slane %v382, 2
    %v384 = vadd.f32 %v382, %v383
    %v385 = vrot.slane %v384, 1
    %v386 = vadd.f32 %v384, %v385
    %387 = vst [vmem:[%s3] sm:$0x1] %v386
    %v388 = vmul.f32 %v378, %v378
    %v389 = vrot.slane %v388, 4
    %v390 = vadd.f32 %v388, %v389
    %v391 = vrot.slane %v390, 2
    %v392 = vadd.f32 %v390, %v391
    %v393 = vrot.slane %v392, 1
    %v394 = vadd.f32 %v392, %v393
    %395 = vst [vmem:[%s4] sm:$0x1] %v394
  $region17: #{_lambda_.22} parent=0 // pred_fallthru
    _
  // Predicated region
  $region18: #{_lambda_.22} parent=0 // pred_check
    _
  $region19: #{_lambda_.22} parent=0 // pred_check_branch
    %397 = sbr.rel (0) target = $region21
  $region20: #{_lambda_.22} parent=0 // pred_region
    _
  $region21: #{_lambda_.22} parent=0 // pred_fallthru
    _
  // Predicated region
  $region22: #{_lambda_.22} parent=0 // pred_check
    _
  $region23: #{_lambda_.22} parent=0 // pred_check_branch
    %399 = sbr.rel (0) target = $region25
  $region24: #{_lambda_.22} parent=0 // pred_region
    _
  $region25: #{_lambda_.22} parent=0 // pred_fallthru
    _
  // Predicated region
  $region26: #{_lambda_.22} parent=0 // pred_check
    _
  $region27: #{_lambda_.22} parent=0 // pred_check_branch
    %401 = sbr.rel (0) target = $region29
  $region28: #{_lambda_.22} parent=0 // pred_region
    _
  $region29: #{_lambda_.22} parent=0 // pred_fallthru
    _
  // Predicated region
  $region30: #{_lambda_.22} parent=0 // pred_check
    _
  $region31: #{_lambda_.22} parent=0 // pred_check_branch
    %403 = sbr.rel (0) target = $region33
  $region32: #{_lambda_.22} parent=0 // pred_region
    _
  $region33: #{_lambda_.22} parent=0 // pred_fallthru
    _
  // Predicated region
  $region34: #{_lambda_.22} parent=0 // pred_check
    _
  $region35: #{_lambda_.22} parent=0 // pred_check_branch
    %405 = sbr.rel (0) target = $region37
  $region36: #{_lambda_.22} parent=0 // pred_region
    _
  $region37: #{_lambda_.22} parent=0 // pred_fallthru
    _
  // Predicated region
  $region38: #{_lambda_.22} parent=0 // pred_check
    _
  $region39: #{_lambda_.22} parent=0 // pred_check_branch
    %407 = sbr.rel (0) target = $region41
  $region40: #{_lambda_.22} parent=0 // pred_region
    _
  $region41: #{_lambda_.22} parent=0 // pred_fallthru
    _

// kernel: _lambda_.24
$region0: #{_lambda_.24}
  #allocation0 [shape = 'u32[]', space=smem, size = 0x4, offset = 0x4, fixed_abs, tag = 'smem constant byte address 0x4 - core index']
  #allocation1 [shape = 'u32[144,128]{1,0:T(1,128)}', space=vmem, size = 0x12000, scoped, tag = 'internal scratch']
  #allocation2 [shape = 'f32[8,128]{1,0:T(8,128)}', space=vmem, size = 0x1000, scoped, tag = 'scratch operand']
  %s0 = inlined_call_operand.vmem [shape: bf16[8,1024], index: 0, kind: input, shape index: {}]
  %s1 = inlined_call_operand.vmem [shape: bf16[1024,128], index: 1, kind: input, shape index: {}]
  %s2 = inlined_call_operand.vmem [shape: f32[1,128], index: 2, kind: input, shape index: {}]
  %s3 = inlined_call_operand.vmem [shape: bf16[8,128], index: 3, kind: output, shape index: {}]
  %s4 = sld [smem:[#allocation0]]
  $region53: #{_lambda_.24} parent=0
    _
  %s6 = ssub.s32 1, %s4
  %s7 = scalar_select 0, %s6, %s4
  loop: start=0, step=1, limit=4
  $region2: #{_lambda_.24} parent=0 // loop_pre_header
    _
  $region3: #{_lambda_.24} parent=0 // loop_header
    %s9 = sphi 0, %s13
    %p10 = scmp.ge.s32.totalorder %s9, 4
    %s16 = sphi 0, %s35
    %s17 = sphi 0, %s31
    %s18 = sphi 0, %s27
    %s19 = sphi 0, %s16
    %s20 = sphi 0, %s17
    %s21 = sphi 0, %s18
    %s22 = sphi 0, %s19
    %s23 = sphi 0, %s20
    %s24 = sphi 0, %s21
    %s40 = sphi 0, %s42
    %s43 = sphi 0, %s40
    %s44 = sphi 0, %s43
    %s60 = sphi 0, %s44
    %s68 = sphi 0, %s70
    %s71 = sphi 0, %s68
    %s72 = sphi 0, %s71
    %s88 = sphi 0, %s72
    %s94 = sphi 0, %s96
    %s97 = sphi 0, %s94
    %s98 = sphi 0, %s97
    %s114 = sphi 0, %s98
    %s122 = sphi 0, %s124
    %s125 = sphi 0, %s122
    %s126 = sphi 0, %s125
    %s142 = sphi 0, %s126
  $region4: #{_lambda_.24} parent=0 // loop_header_branch
    %12 = sbr.rel (%p10) target = $region8
  $region5: #{_lambda_.24} parent=0 // loop_body
    %s14 = ssub.s32 %s9, 1
    %s15 = ssub.s32 %s9, 2
    %s25 = sadd.s32 1, %s18
    %p26 = scmp.ge.s32.totalorder %s25, 2
    %s27 = scalar_select %p26, 0, %s25
    %s28 = sadd.s32 1, %s17
    %s29 = scalar_select %p26, %s28, %s17
    %p30 = scmp.ge.s32.totalorder %s29, 1
    %s31 = scalar_select %p30, 0, %s29
    %s32 = sadd.s32 1, %s16
    %s33 = scalar_select %p30, %s32, %s16
    %p34 = scmp.ge.s32.totalorder %s33, 1
    %s35 = scalar_select %p34, 0, %s33
    %s36 = ssub.s32 %s16, %s35
    %s37 = ssub.s32 %s18, %s27
    %s38 = sor.u32 %s36, %s37
    %p39 = scmp.eq.s32.totalorder %s38, 0
    %s41 = sadd.s32 %s40, 1
    %s42 = scalar_select %p39, %s40, %s41
    %p45 = pneg %p39
    %p46 = scmp.eq.s32.totalorder %s9, 1
    %p47 = por %p45, %p46
    %p48 = scmp.ne.s32.totalorder %s40, %s43
    %p49 = scmp.eq.s32.totalorder %s9, 0
    %p50 = por %p48, %p49
    %p51 = scmp.ne.s32.totalorder %s40, %s43
    %p52 = scmp.eq.s32.totalorder %s14, 1
    %p53 = por %p51, %p52
    %p54 = scmp.ne.s32.totalorder %s43, %s44
    %p55 = scmp.eq.s32.totalorder %s14, 0
    %p56 = por %p54, %p55
    %p57 = scmp.ne.s32.totalorder %s43, %s44
    %p58 = scmp.eq.s32.totalorder %s15, 1
    %p59 = por %p57, %p58
    %p61 = scmp.ne.s32.totalorder %s44, %s60
    %p62 = scmp.eq.s32.totalorder %s15, 0
    %p63 = por %p61, %p62
    %s64 = ssub.s32 %s18, %s27
    %s65 = ssub.s32 %s17, %s31
    %s66 = sor.u32 %s64, %s65
    %p67 = scmp.eq.s32.totalorder %s66, 0
    %s69 = sadd.s32 %s68, 1
    %s70 = scalar_select %p67, %s68, %s69
    %p73 = pneg %p67
    %p74 = scmp.eq.s32.totalorder %s9, 1
    %p75 = por %p73, %p74
    %p76 = scmp.ne.s32.totalorder %s68, %s71
    %p77 = scmp.eq.s32.totalorder %s9, 0
    %p78 = por %p76, %p77
    %p79 = scmp.ne.s32.totalorder %s68, %s71
    %p80 = scmp.eq.s32.totalorder %s14, 1
    %p81 = por %p79, %p80
    %p82 = scmp.ne.s32.totalorder %s71, %s72
    %p83 = scmp.eq.s32.totalorder %s14, 0
    %p84 = por %p82, %p83
    %p85 = scmp.ne.s32.totalorder %s71, %s72
    %p86 = scmp.eq.s32.totalorder %s15, 1
    %p87 = por %p85, %p86
    %p89 = scmp.ne.s32.totalorder %s72, %s88
    %p90 = scmp.eq.s32.totalorder %s15, 0
    %p91 = por %p89, %p90
    %s92 = ssub.s32 %s17, %s31
    %p93 = scmp.eq.s32.totalorder %s92, 0
    %s95 = sadd.s32 %s94, 1
    %s96 = scalar_select %p93, %s94, %s95
    %p99 = pneg %p93
    %p100 = scmp.eq.s32.totalorder %s9, 1
    %p101 = por %p99, %p100
    %p102 = scmp.ne.s32.totalorder %s94, %s97
    %p103 = scmp.eq.s32.totalorder %s9, 0
    %p104 = por %p102, %p103
    %p105 = scmp.ne.s32.totalorder %s94, %s97
    %p106 = scmp.eq.s32.totalorder %s14, 1
    %p107 = por %p105, %p106
    %p108 = scmp.ne.s32.totalorder %s97, %s98
    %p109 = scmp.eq.s32.totalorder %s14, 0
    %p110 = por %p108, %p109
    %p111 = scmp.ne.s32.totalorder %s97, %s98
    %p112 = scmp.eq.s32.totalorder %s15, 1
    %p113 = por %p111, %p112
    %p115 = scmp.ne.s32.totalorder %s98, %s114
    %p116 = scmp.eq.s32.totalorder %s15, 0
    %p117 = por %p115, %p116
    %s118 = ssub.s32 %s16, %s35
    %s119 = ssub.s32 %s17, %s31
    %s120 = sor.u32 %s118, %s119
    %p121 = scmp.eq.s32.totalorder %s120, 0
    %s123 = sadd.s32 %s122, 1
    %s124 = scalar_select %p121, %s122, %s123
    %p127 = pneg %p121
    %p128 = scmp.eq.s32.totalorder %s9, 1
    %p129 = por %p127, %p128
    %p130 = scmp.ne.s32.totalorder %s122, %s125
    %p131 = scmp.eq.s32.totalorder %s9, 0
    %p132 = por %p130, %p131
    %p133 = scmp.ne.s32.totalorder %s122, %s125
    %p134 = scmp.eq.s32.totalorder %s14, 1
    %p135 = por %p133, %p134
    %p136 = scmp.ne.s32.totalorder %s125, %s126
    %p137 = scmp.eq.s32.totalorder %s14, 0
    %p138 = por %p136, %p137
    %p139 = scmp.ne.s32.totalorder %s125, %s126
    %p140 = scmp.eq.s32.totalorder %s15, 1
    %p141 = por %p139, %p140
    %p143 = scmp.ne.s32.totalorder %s126, %s142
    %p144 = scmp.eq.s32.totalorder %s15, 0
    %p145 = por %p143, %p144
    %p146 = scmp.le.s32.totalorder 1, %s9
    %p147 = scmp.lt.s32.totalorder %s9, 3
    %p148 = pnand %p146, %p147
    %p149 = pneg %p148
    // Predicated region
    $region9: #{_lambda_.24} parent=5 // pred_check
      _
    $region10: #{_lambda_.24} parent=5 // pred_check_branch
      %151 = sbr.rel (%p148) target = $region12
    $region11: #{_lambda_.24} parent=5 // pred_region
      %s152 = ssub.s32 %s9, 1
      // Predicated region
      $region13: #{_lambda_.24} parent=11 // pred_check
        %p153 = pneg %p110
      $region14: #{_lambda_.24} parent=11 // pred_check_branch
        %155 = sbr.rel (%p153) target = $region16
      $region15: #{_lambda_.24} parent=11 // pred_region
        %p156 = scmp.lt.s32.totalorder %s20, 0
        %s157 = scalar_select %p156, %s20, 0
        %s158 = scalar_lea.vmem %s2, %s157
      $region16: #{_lambda_.24} parent=11 // pred_fallthru
        _
    $region12: #{_lambda_.24} parent=5 // pred_fallthru
      _
    %p159 = scmp.lt.s32.totalorder %s9, 2
    // Predicated region
    $region17: #{_lambda_.24} parent=5 // pred_check
      %p160 = pneg %p159
    $region18: #{_lambda_.24} parent=5 // pred_check_branch
      %162 = sbr.rel (%p160) target = $region20
    $region19: #{_lambda_.24} parent=5 // pred_region
      // Predicated region
      $region21: #{_lambda_.24} parent=19 // pred_check
        %p163 = pneg %p50
      $region22: #{_lambda_.24} parent=19 // pred_check_branch
        %165 = sbr.rel (%p163) target = $region24
      $region23: #{_lambda_.24} parent=19 // pred_region
        %s166 = smul.u32 4, %s18
        %p167 = scmp.lt.s32.totalorder %s16, 0
        %s168 = scalar_select %p167, %s16, 0
        %p169 = scmp.lt.s32.totalorder %s166, 7
        %s170 = scalar_select %p169, %s166, 7
        %s171 = smul.addr %s168, 8
        %s172 = sadd.s32 %s170, %s171
        %s173 = smul.addr %s172, 4
        %s174 = scalar_lea.vmem %s0, %s173
        %s175 = smul.u32 4, %s18
      $region24: #{_lambda_.24} parent=19 // pred_fallthru
        _
      // Predicated region
      $region25: #{_lambda_.24} parent=19 // pred_check
        %p176 = pneg %p78
      $region26: #{_lambda_.24} parent=19 // pred_check_branch
        %178 = sbr.rel (%p176) target = $region28
      $region27: #{_lambda_.24} parent=19 // pred_region
        %s179 = smul.u32 64, %s18
        %p180 = scmp.lt.s32.totalorder %s179, 127
        %s181 = scalar_select %p180, %s179, 127
        %p182 = scmp.lt.s32.totalorder %s17, 0
        %s183 = scalar_select %p182, %s17, 0
        %s184 = sadd.s32 %s183, %s181
        %s185 = smul.addr %s184, 4
        %s186 = scalar_lea.vmem %s1, %s185
        %s187 = smul.u32 64, %s18
      $region28: #{_lambda_.24} parent=19 // pred_fallthru
        _
    $region20: #{_lambda_.24} parent=5 // pred_fallthru
      _
    %p188 = scmp.le.s32.totalorder 1, %s9
    %p189 = scmp.lt.s32.totalorder %s9, 3
    %p190 = pnand %p188, %p189
    %p191 = pneg %p190
    // Predicated region
    $region29: #{_lambda_.24} parent=5 // pred_check
      _
    $region30: #{_lambda_.24} parent=5 // pred_check_branch
      %193 = sbr.rel (%p190) target = $region32
    $region31: #{_lambda_.24} parent=5 // pred_region
      %s194 = ssub.s32 %s9, 1
      %s195 = smul.u32 4, %s21
      %p196 = scmp.lt.s32.totalorder %s19, 0
      %s197 = scalar_select %p196, %s19, 0
      %p198 = scmp.lt.s32.totalorder %s195, 7
      %s199 = scalar_select %p198, %s195, 7
      %s200 = smul.addr %s197, 8
      %s201 = sadd.s32 %s199, %s200
      %s202 = smul.addr %s201, 4
      %s203 = scalar_lea.vmem %s0, %s202
      %p204 = pneg %p56
      %p205 = pneg %p53
      %s206 = smul.u32 64, %s21
      %p207 = scmp.lt.s32.totalorder %s206, 127
      %s208 = scalar_select %p207, %s206, 127
      %p209 = scmp.lt.s32.totalorder %s20, 0
      %s210 = scalar_select %p209, %s20, 0
      %s211 = sadd.s32 %s210, %s208
      %s212 = smul.addr %s211, 4
      %s213 = scalar_lea.vmem %s1, %s212
      %p214 = pneg %p84
      %p215 = pneg %p81
      %p216 = scmp.lt.s32.totalorder %s20, 0
      %s217 = scalar_select %p216, %s20, 0
      %s218 = scalar_lea.vmem %s2, %s217
      %p219 = pneg %p110
      %p220 = pneg %p107
      %p221 = pneg %p138
      %p222 = pneg %p135
      %p223 = scmp.lt.s32.totalorder %s19, 0
      %s224 = scalar_select %p223, %s19, 0
      %p225 = scmp.lt.s32.totalorder %s20, 0
      %s226 = scalar_select %p225, %s20, 0
      %s227 = sadd.s32 %s226, %s224
      %s228 = smul.addr %s227, 4
      %s229 = scalar_lea.vmem %s3, %s228
      %s230 = smul.u32 4, %s21
      %p231 = scmp.lt.s32.totalorder %s19, 0
      %s232 = scalar_select %p231, %s19, 0
      %p233 = scmp.lt.s32.totalorder %s230, 7
      %s234 = scalar_select %p233, %s230, 7
      %s235 = smul.addr %s232, 8
      %s236 = sadd.s32 %s234, %s235
      %s237 = smul.addr %s236, 4
      %s238 = scalar_lea.vmem %s0, %s237
      %s239 = smul.u32 4, %s21
      %s240 = smul.u32 64, %s21
      %p241 = scmp.lt.s32.totalorder %s240, 127
      %s242 = scalar_select %p241, %s240, 127
      %p243 = scmp.lt.s32.totalorder %s20, 0
      %s244 = scalar_select %p243, %s20, 0
      %s245 = sadd.s32 %s244, %s242
      %s246 = smul.addr %s245, 4
      %s247 = scalar_lea.vmem %s1, %s246
      %s248 = smul.u32 64, %s21
      %p249 = scmp.lt.s32.totalorder %s20, 0
      %s250 = scalar_select %p249, %s20, 0
      %s251 = scalar_lea.vmem %s2, %s250
      %p252 = scmp.lt.s32.totalorder %s19, 0
      %s253 = scalar_select %p252, %s19, 0
      %p254 = scmp.lt.s32.totalorder %s20, 0
      %s255 = scalar_select %p254, %s20, 0
      %s256 = sadd.s32 %s255, %s253
      %s257 = smul.addr %s256, 4
      %s258 = scalar_lea.vmem %s3, %s257
      %p260 = scmp.eq.s32.totalorder %s21, 0
      // Predicated region
      $region33: #{_lambda_.24} parent=31 // pred_check
        %p261 = pneg %p260
      $region34: #{_lambda_.24} parent=31 // pred_check_branch
        %263 = sbr.rel (%p261) target = $region36
      $region35: #{_lambda_.24} parent=31 // pred_region
        %264 = vst [vmem:[#allocation2] sm:$0xff] 0.0
      $region36: #{_lambda_.24} parent=31 // pred_fallthru
        _
      %v265 = vld [vmem:[#allocation2] sm:$0xff]
      %v266 = vld [vmem:[%s238] sm:$0xff]
      %v267 = vld [vmem:[%s238 + $0x8] sm:$0xff]
      %v268 = vld [vmem:[%s247] sm:$0xf]
      %v269 = vld [vmem:[%s247 + $0x4] sm:$0xf]
      %v270 = vld [vmem:[%s247 + $0x8] sm:$0xf]
      %v271 = vld [vmem:[%s247 + $0xc] sm:$0xf]
      %v272 = vld [vmem:[%s247 + $0x10] sm:$0xf]
      %v273 = vld [vmem:[%s247 + $0x14] sm:$0xf]
      %v274 = vld [vmem:[%s247 + $0x18] sm:$0xf]
      %v275 = vld [vmem:[%s247 + $0x1c] sm:$0xf]
      %v276 = vld [vmem:[%s247 + $0x20] sm:$0xf]
      %v277 = vld [vmem:[%s247 + $0x24] sm:$0xf]
      %v278 = vld [vmem:[%s247 + $0x28] sm:$0xf]
      %v279 = vld [vmem:[%s247 + $0x2c] sm:$0xf]
      %v280 = vld [vmem:[%s247 + $0x30] sm:$0xf]
      %v281 = vld [vmem:[%s247 + $0x34] sm:$0xf]
      %v282 = vld [vmem:[%s247 + $0x38] sm:$0xf]
      %v283 = vld [vmem:[%s247 + $0x3c] sm:$0xf]
      %v284 = vld [vmem:[%s247 + $0x40] sm:$0xf]
      %v285 = vld [vmem:[%s247 + $0x44] sm:$0xf]
      %v286 = vld [vmem:[%s247 + $0x48] sm:$0xf]
      %v287 = vld [vmem:[%s247 + $0x4c] sm:$0xf]
      %v288 = vld [vmem:[%s247 + $0x50] sm:$0xf]
      %v289 = vld [vmem:[%s247 + $0x54] sm:$0xf]
      %v290 = vld [vmem:[%s247 + $0x58] sm:$0xf]
      %v291 = vld [vmem:[%s247 + $0x5c] sm:$0xf]
      %v292 = vld [vmem:[%s247 + $0x60] sm:$0xf]
      %v293 = vld [vmem:[%s247 + $0x64] sm:$0xf]
      %v294 = vld [vmem:[%s247 + $0x68] sm:$0xf]
      %v295 = vld [vmem:[%s247 + $0x6c] sm:$0xf]
      %v296 = vld [vmem:[%s247 + $0x70] sm:$0xf]
      %v297 = vld [vmem:[%s247 + $0x74] sm:$0xf]
      %v298 = vld [vmem:[%s247 + $0x78] sm:$0xf]
      %v299 = vld [vmem:[%s247 + $0x7c] sm:$0xf]
      %v300 = vld [vmem:[%s247 + $0x80] sm:$0xf]
      %v301 = vld [vmem:[%s247 + $0x84] sm:$0xf]
      %v302 = vld [vmem:[%s247 + $0x88] sm:$0xf]
      %v303 = vld [vmem:[%s247 + $0x8c] sm:$0xf]
      %v304 = vld [vmem:[%s247 + $0x90] sm:$0xf]
      %v305 = vld [vmem:[%s247 + $0x94] sm:$0xf]
      %v306 = vld [vmem:[%s247 + $0x98] sm:$0xf]
      %v307 = vld [vmem:[%s247 + $0x9c] sm:$0xf]
      %v308 = vld [vmem:[%s247 + $0xa0] sm:$0xf]
      %v309 = vld [vmem:[%s247 + $0xa4] sm:$0xf]
      %v310 = vld [vmem:[%s247 + $0xa8] sm:$0xf]
      %v311 = vld [vmem:[%s247 + $0xac] sm:$0xf]
      %v312 = vld [vmem:[%s247 + $0xb0] sm:$0xf]
      %v313 = vld [vmem:[%s247 + $0xb4] sm:$0xf]
      %v314 = vld [vmem:[%s247 + $0xb8] sm:$0xf]
      %v315 = vld [vmem:[%s247 + $0xbc] sm:$0xf]
      %v316 = vld [vmem:[%s247 + $0xc0] sm:$0xf]
      %v317 = vld [vmem:[%s247 + $0xc4] sm:$0xf]
      %v318 = vld [vmem:[%s247 + $0xc8] sm:$0xf]
      %v319 = vld [vmem:[%s247 + $0xcc] sm:$0xf]
      %v320 = vld [vmem:[%s247 + $0xd0] sm:$0xf]
      %v321 = vld [vmem:[%s247 + $0xd4] sm:$0xf]
      %v322 = vld [vmem:[%s247 + $0xd8] sm:$0xf]
      %v323 = vld [vmem:[%s247 + $0xdc] sm:$0xf]
      %v324 = vld [vmem:[%s247 + $0xe0] sm:$0xf]
      %v325 = vld [vmem:[%s247 + $0xe4] sm:$0xf]
      %v326 = vld [vmem:[%s247 + $0xe8] sm:$0xf]
      %v327 = vld [vmem:[%s247 + $0xec] sm:$0xf]
      %v328 = vld [vmem:[%s247 + $0xf0] sm:$0xf]
      %v329 = vld [vmem:[%s247 + $0xf4] sm:$0xf]
      %v330 = vld [vmem:[%s247 + $0xf8] sm:$0xf]
      %v331 = vld [vmem:[%s247 + $0xfc] sm:$0xf]
      %v334 = vunpack.c.l.b16 %v266
      %v335 = vunpack.c.h.b16 %v266
      %v336 = vunpack.c.l.b16 %v267
      %v337 = vunpack.c.h.b16 %v267
      %v338 = vpack.c.b16 %v334, %v334
      %v339 = vpack.c.b16 %v335, %v335
      %v340 = vpack.c.b16 %v336, %v336
      %v341 = vpack.c.b16 %v337, %v337
      %v410 = vunpack.c.l.b16 %v268
      %v411 = vunpack.c.l.b16 %v269
      %v412 = vunpack.c.l.b16 %v270
      %v413 = vunpack.c.l.b16 %v271
      %v414 = vunpack.c.l.b16 %v272
      %v415 = vunpack.c.l.b16 %v273
      %v416 = vunpack.c.l.b16 %v274
      %v417 = vunpack.c.l.b16 %v275
      %v418 = vunpack.c.l.b16 %v276
      %v419 = vunpack.c.l.b16 %v277
      %v420 = vunpack.c.l.b16 %v278
      %v421 = vunpack.c.l.b16 %v279
      %v422 = vunpack.c.l.b16 %v280
      %v423 = vunpack.c.l.b16 %v281
      %v424 = vunpack.c.l.b16 %v282
      %v425 = vunpack.c.l.b16 %v283
      %v426 = vunpack.c.l.b16 %v284
      %v427 = vunpack.c.l.b16 %v285
      %v428 = vunpack.c.l.b16 %v286
      %v429 = vunpack.c.l.b16 %v287
      %v430 = vunpack.c.l.b16 %v288
      %v431 = vunpack.c.l.b16 %v289
      %v432 = vunpack.c.l.b16 %v290
      %v433 = vunpack.c.l.b16 %v291
      %v434 = vunpack.c.l.b16 %v292
      %v435 = vunpack.c.l.b16 %v293
      %v436 = vunpack.c.l.b16 %v294
      %v437 = vunpack.c.l.b16 %v295
      %v438 = vunpack.c.l.b16 %v296
      %v439 = vunpack.c.l.b16 %v297
      %v440 = vunpack.c.l.b16 %v298
      %v441 = vunpack.c.l.b16 %v299
      %v442 = vunpack.c.l.b16 %v300
      %v443 = vunpack.c.l.b16 %v301
      %v444 = vunpack.c.l.b16 %v302
      %v445 = vunpack.c.l.b16 %v303
      %v446 = vunpack.c.l.b16 %v304
      %v447 = vunpack.c.l.b16 %v305
      %v448 = vunpack.c.l.b16 %v306
      %v449 = vunpack.c.l.b16 %v307
      %v450 = vunpack.c.l.b16 %v308
      %v451 = vunpack.c.l.b16 %v309
      %v452 = vunpack.c.l.b16 %v310
      %v453 = vunpack.c.l.b16 %v311
      %v454 = vunpack.c.l.b16 %v312
      %v455 = vunpack.c.l.b16 %v313
      %v456 = vunpack.c.l.b16 %v314
      %v457 = vunpack.c.l.b16 %v315
      %v458 = vunpack.c.l.b16 %v316
      %v459 = vunpack.c.l.b16 %v317
      %v460 = vunpack.c.l.b16 %v318
      %v461 = vunpack.c.l.b16 %v319
      %v462 = vunpack.c.l.b16 %v320
      %v463 = vunpack.c.l.b16 %v321
      %v464 = vunpack.c.l.b16 %v322
      %v465 = vunpack.c.l.b16 %v323
      %v466 = vunpack.c.l.b16 %v324
      %v467 = vunpack.c.l.b16 %v325
      %v468 = vunpack.c.l.b16 %v326
      %v469 = vunpack.c.l.b16 %v327
      %v470 = vunpack.c.l.b16 %v328
      %v471 = vunpack.c.l.b16 %v329
      %v472 = vunpack.c.l.b16 %v330
      %v473 = vunpack.c.l.b16 %v331
      %v474 = vpack.c.b16 %v411, %v410
      %v475 = vpack.c.b16 %v413, %v412
      %v476 = vpack.c.b16 %v415, %v414
      %v477 = vpack.c.b16 %v417, %v416
      %v478 = vpack.c.b16 %v419, %v418
      %v479 = vpack.c.b16 %v421, %v420
      %v480 = vpack.c.b16 %v423, %v422
      %v481 = vpack.c.b16 %v425, %v424
      %v482 = vpack.c.b16 %v427, %v426
      %v483 = vpack.c.b16 %v429, %v428
      %v484 = vpack.c.b16 %v431, %v430
      %v485 = vpack.c.b16 %v433, %v432
      %v486 = vpack.c.b16 %v435, %v434
      %v487 = vpack.c.b16 %v437, %v436
      %v488 = vpack.c.b16 %v439, %v438
      %v489 = vpack.c.b16 %v441, %v440
      %v490 = vpack.c.b16 %v443, %v442
      %v491 = vpack.c.b16 %v445, %v444
      %v492 = vpack.c.b16 %v447, %v446
      %v493 = vpack.c.b16 %v449, %v448
      %v494 = vpack.c.b16 %v451, %v450
      %v495 = vpack.c.b16 %v453, %v452
      %v496 = vpack.c.b16 %v455, %v454
      %v497 = vpack.c.b16 %v457, %v456
      %v498 = vpack.c.b16 %v459, %v458
      %v499 = vpack.c.b16 %v461, %v460
      %v500 = vpack.c.b16 %v463, %v462
      %v501 = vpack.c.b16 %v465, %v464
      %v502 = vpack.c.b16 %v467, %v466
      %v503 = vpack.c.b16 %v469, %v468
      %v504 = vpack.c.b16 %v471, %v470
      %v505 = vpack.c.b16 %v473, %v472
      %538 = vmatprep.subr.bf16.mxu0 0
      %539 = vmatpush1.bf16.msra.mxu0 %v481
      %540 = vmatprep.subr.bf16.mxu0 0
      %541 = vmatpush1.bf16.msra.mxu0 %v480
      %542 = vmatprep.subr.bf16.mxu0 0
      %543 = vmatpush1.bf16.msra.mxu0 %v479
      %544 = vmatprep.subr.bf16.mxu0 0
      %545 = vmatpush1.bf16.msra.mxu0 %v478
      %546 = vmatprep.subr.bf16.mxu0 0
      %547 = vmatpush1.bf16.msra.mxu0 %v477
      %548 = vmatprep.subr.bf16.mxu0 0
      %549 = vmatpush1.bf16.msra.mxu0 %v476
      %550 = vmatprep.subr.bf16.mxu0 0
      %551 = vmatpush1.bf16.msra.mxu0 %v475
      %552 = vmatprep.subr.bf16.mxu0 0
      %553 = vmatpush1.bf16.msra.mxu0 %v474
      %554 = vmatprep.subr.bf16.mxu0 0
      %555 = vmatpush2.bf16.msra.mxu0 %v489
      %556 = vmatprep.subr.bf16.mxu0 0
      %557 = vmatpush2.bf16.msra.mxu0 %v488
      %558 = vmatprep.subr.bf16.mxu0 0
      %559 = vmatpush2.bf16.msra.mxu0 %v487
      %560 = vmatprep.subr.bf16.mxu0 0
      %561 = vmatpush2.bf16.msra.mxu0 %v486
      %562 = vmatprep.subr.bf16.mxu0 0
      %563 = vmatpush2.bf16.msra.mxu0 %v485
      %564 = vmatprep.subr.bf16.mxu0 0
      %565 = vmatpush2.bf16.msra.mxu0 %v484
      %566 = vmatprep.subr.bf16.mxu0 0
      %567 = vmatpush2.bf16.msra.mxu0 %v483
      %568 = vmatprep.subr.bf16.mxu0 0
      %569 = vmatpush2.bf16.msra.mxu0 %v482
      %570 = vmatprep.mubr.bf16.mxu0 %v339
      %571 = vmatmul.mubr.bf16.gmra.mxu0 %v338
      %v572 = vpop.f32.mrf.mxu0
      %v573 = vadd.f32 0.0, %v572
      %v574 = vpop.f32.mrf.mxu0
      %v575 = vpop.f32.mrf.mxu0
      %v576 = vpop.f32.mrf.mxu0
      %577 = vdwg.mxu0
      %578 = vmatprep.subr.bf16.mxu0 0
      %579 = vmatpush1.bf16.msra.mxu0 %v497
      %580 = vmatprep.subr.bf16.mxu0 0
      %581 = vmatpush1.bf16.msra.mxu0 %v496
      %582 = vmatprep.subr.bf16.mxu0 0
      %583 = vmatpush1.bf16.msra.mxu0 %v495
      %584 = vmatprep.subr.bf16.mxu0 0
      %585 = vmatpush1.bf16.msra.mxu0 %v494
      %586 = vmatprep.subr.bf16.mxu0 0
      %587 = vmatpush1.bf16.msra.mxu0 %v493
      %588 = vmatprep.subr.bf16.mxu0 0
      %589 = vmatpush1.bf16.msra.mxu0 %v492
      %590 = vmatprep.subr.bf16.mxu0 0
      %591 = vmatpush1.bf16.msra.mxu0 %v491
      %592 = vmatprep.subr.bf16.mxu0 0
      %593 = vmatpush1.bf16.msra.mxu0 %v490
      %594 = vmatprep.subr.bf16.mxu0 0
      %595 = vmatpush2.bf16.msra.mxu0 %v505
      %596 = vmatprep.subr.bf16.mxu0 0
      %597 = vmatpush2.bf16.msra.mxu0 %v504
      %598 = vmatprep.subr.bf16.mxu0 0
      %599 = vmatpush2.bf16.msra.mxu0 %v503
      %600 = vmatprep.subr.bf16.mxu0 0
      %601 = vmatpush2.bf16.msra.mxu0 %v502
      %602 = vmatprep.subr.bf16.mxu0 0
      %603 = vmatpush2.bf16.msra.mxu0 %v501
      %604 = vmatprep.subr.bf16.mxu0 0
      %605 = vmatpush2.bf16.msra.mxu0 %v500
      %606 = vmatprep.subr.bf16.mxu0 0
      %607 = vmatpush2.bf16.msra.mxu0 %v499
      %608 = vmatprep.subr.bf16.mxu0 0
      %609 = vmatpush2.bf16.msra.mxu0 %v498
      %610 = vmatprep.mubr.bf16.mxu0 %v341
      %611 = vmatmul.mubr.bf16.gmra.mxu0 %v340
      %v612 = vpop.f32.mrf.mxu0
      %v613 = vadd.f32 %v573, %v612
      %v614 = vpop.f32.mrf.mxu0
      %v615 = vpop.f32.mrf.mxu0
      %v616 = vpop.f32.mrf.mxu0
      %617 = vdwg.mxu0
      %v618 = vadd.f32 %v265, %v613
      %619 = vst [vmem:[#allocation2] sm:$0xff] %v618
      %p620 = scmp.eq.s32.totalorder %s21, 1
      // Predicated region
      $region37: #{_lambda_.24} parent=31 // pred_check
        %p621 = pneg %p620
      $region38: #{_lambda_.24} parent=31 // pred_check_branch
        %623 = sbr.rel (%p621) target = $region40
      $region39: #{_lambda_.24} parent=31 // pred_region
        %v624 = vld [vmem:[#allocation2] sm:$0xff]
        %v625 = vld [vmem:[%s251] sm:$0x1]
        %v627 = vlaneseq
        %v628 = vshrl.u32 %v627, 7
        %v629 = vsub.s32 0, %v628
        %v630 = vrot.slane %v625, %v629
        %v632 = vadd.f32 %v624, %v630
        %v633 = vmax.f32 %v632, 0.0
        %v634 = vpack.c.bf16 %v633, %v633
        %635 = vst [vmem:[%s258] sm:$0xf] %v634
      $region40: #{_lambda_.24} parent=31 // pred_fallthru
        _
      %p636 = scmp.lt.s32.totalorder %s19, 0
      %s637 = scalar_select %p636, %s19, 0
      %p638 = scmp.lt.s32.totalorder %s20, 0
      %s639 = scalar_select %p638, %s20, 0
      %s640 = sadd.s32 %s639, %s637
      %s641 = smul.addr %s640, 4
      %s642 = scalar_lea.vmem %s3, %s641
      // Predicated region
      $region41: #{_lambda_.24} parent=31 // pred_check
        %p643 = pneg %p135
      $region42: #{_lambda_.24} parent=31 // pred_check_branch
        %645 = sbr.rel (%p643) target = $region44
      $region43: #{_lambda_.24} parent=31 // pred_region
        _
      $region44: #{_lambda_.24} parent=31 // pred_fallthru
        _
      // Predicated region
      $region45: #{_lambda_.24} parent=31 // pred_check
        %p646 = pneg %p135
      $region46: #{_lambda_.24} parent=31 // pred_check_branch
        %648 = sbr.rel (%p646) target = $region48
      $region47: #{_lambda_.24} parent=31 // pred_region
        %p649 = scmp.lt.s32.totalorder %s19, 0
        %s650 = scalar_select %p649, %s19, 0
        %p651 = scmp.lt.s32.totalorder %s20, 0
        %s652 = scalar_select %p651, %s20, 0
        %s653 = sadd.s32 %s652, %s650
        %s654 = smul.addr %s653, 4
        %s655 = scalar_lea.vmem %s3, %s654
      $region48: #{_lambda_.24} parent=31 // pred_fallthru
        _
    $region32: #{_lambda_.24} parent=5 // pred_fallthru
      _
    %p656 = scmp.le.s32.totalorder 2, %s9
    // Predicated region
    $region49: #{_lambda_.24} parent=5 // pred_check
      %p657 = pneg %p656
    $region50: #{_lambda_.24} parent=5 // pred_check_branch
      %659 = sbr.rel (%p657) target = $region52
    $region51: #{_lambda_.24} parent=5 // pred_region
      %s660 = ssub.s32 %s9, 2
    $region52: #{_lambda_.24} parent=5 // pred_fallthru
      _
  $region6: #{_lambda_.24} parent=0 // loop_footer
    %s13 = sadd.s32 1, %s9
  $region7: #{_lambda_.24} parent=0 // loop_footer_branch
    %8 = sbr.rel target = $region3
  $region8: #{_lambda_.24} parent=0 // loop_exit
    _

// kernel: _lambda_.25
$region0: #{_lambda_.25}
  #allocation0 [shape = 'u32[]', space=smem, size = 0x4, offset = 0x4, fixed_abs, tag = 'smem constant byte address 0x4 - core index']
  #allocation1 [shape = 'u32[144,128]{1,0:T(1,128)}', space=vmem, size = 0x12000, scoped, tag = 'internal scratch']
  #allocation2 [shape = 'f32[8,256]{1,0:T(8,128)}', space=vmem, size = 0x2000, scoped, tag = 'scratch operand']
  %s0 = inlined_call_operand.vmem [shape: bf16[8,256], index: 0, kind: input, shape index: {}]
  %s1 = inlined_call_operand.vmem [shape: bf16[256,256], index: 1, kind: input, shape index: {}]
  %s2 = inlined_call_operand.vmem [shape: bf16[8,256], index: 2, kind: output, shape index: {}]
  %s3 = sld [smem:[#allocation0]]
  $region26: #{_lambda_.25} parent=0
    _
  %s5 = ssub.s32 1, %s3
  %s6 = scalar_select 0, %s5, %s3
  // Predicated region
  $region2: #{_lambda_.25} parent=0 // pred_check
    _
  $region3: #{_lambda_.25} parent=0 // pred_check_branch
    %8 = sbr.rel (0) target = $region5
  $region4: #{_lambda_.25} parent=0 // pred_region
    _
  $region5: #{_lambda_.25} parent=0 // pred_fallthru
    _
  // Predicated region
  $region6: #{_lambda_.25} parent=0 // pred_check
    _
  $region7: #{_lambda_.25} parent=0 // pred_check_branch
    %10 = sbr.rel (0) target = $region9
  $region8: #{_lambda_.25} parent=0 // pred_region
    _
  $region9: #{_lambda_.25} parent=0 // pred_fallthru
    _
  %p11 = scmp.eq.s32.totalorder 0, 0
  // Predicated region
  $region10: #{_lambda_.25} parent=0 // pred_check
    %p12 = pneg %p11
  $region11: #{_lambda_.25} parent=0 // pred_check_branch
    %14 = sbr.rel (%p12) target = $region13
  $region12: #{_lambda_.25} parent=0 // pred_region
    %15 = vst [vmem:[#allocation2] sm:$0xff] 0.0
    %16 = vst [vmem:[#allocation2 + $0x8] sm:$0xff] 0.0
  $region13: #{_lambda_.25} parent=0 // pred_fallthru
    _
  %v17 = vld [vmem:[#allocation2] sm:$0xff]
  %v18 = vld [vmem:[#allocation2 + $0x8] sm:$0xff]
  %v19 = vld [vmem:[%s0] sm:$0xff]
  %v20 = vld [vmem:[%s1] sm:$0xff]
  %v21 = vld [vmem:[%s1 + $0x8] sm:$0xff]
  %v22 = vld [vmem:[%s1 + $0x10] sm:$0xff]
  %v23 = vld [vmem:[%s1 + $0x18] sm:$0xff]
  %v24 = vld [vmem:[%s1 + $0x20] sm:$0xff]
  %v25 = vld [vmem:[%s1 + $0x28] sm:$0xff]
  %v26 = vld [vmem:[%s1 + $0x30] sm:$0xff]
  %v27 = vld [vmem:[%s1 + $0x38] sm:$0xff]
  %v28 = vld [vmem:[%s1 + $0x40] sm:$0xff]
  %v29 = vld [vmem:[%s1 + $0x48] sm:$0xff]
  %v30 = vld [vmem:[%s1 + $0x50] sm:$0xff]
  %v31 = vld [vmem:[%s1 + $0x58] sm:$0xff]
  %v32 = vld [vmem:[%s1 + $0x60] sm:$0xff]
  %v33 = vld [vmem:[%s1 + $0x68] sm:$0xff]
  %v34 = vld [vmem:[%s1 + $0x70] sm:$0xff]
  %v35 = vld [vmem:[%s1 + $0x78] sm:$0xff]
  %v36 = vld [vmem:[%s1 + $0x80] sm:$0xff]
  %v37 = vld [vmem:[%s1 + $0x88] sm:$0xff]
  %v38 = vld [vmem:[%s1 + $0x90] sm:$0xff]
  %v39 = vld [vmem:[%s1 + $0x98] sm:$0xff]
  %v40 = vld [vmem:[%s1 + $0xa0] sm:$0xff]
  %v41 = vld [vmem:[%s1 + $0xa8] sm:$0xff]
  %v42 = vld [vmem:[%s1 + $0xb0] sm:$0xff]
  %v43 = vld [vmem:[%s1 + $0xb8] sm:$0xff]
  %v44 = vld [vmem:[%s1 + $0xc0] sm:$0xff]
  %v45 = vld [vmem:[%s1 + $0xc8] sm:$0xff]
  %v46 = vld [vmem:[%s1 + $0xd0] sm:$0xff]
  %v47 = vld [vmem:[%s1 + $0xd8] sm:$0xff]
  %v48 = vld [vmem:[%s1 + $0xe0] sm:$0xff]
  %v49 = vld [vmem:[%s1 + $0xe8] sm:$0xff]
  %v50 = vld [vmem:[%s1 + $0xf0] sm:$0xff]
  %v51 = vld [vmem:[%s1 + $0xf8] sm:$0xff]
  %v53 = vunpack.c.l.b16 %v19
  %v54 = vunpack.c.h.b16 %v19
  %v55 = vpack.c.b16 %v53, %v53
  %v56 = vpack.c.b16 %v54, %v54
  %v91 = vunpack.c.l.b16 %v20
  %v92 = vunpack.c.h.b16 %v20
  %v93 = vunpack.c.l.b16 %v21
  %v94 = vunpack.c.h.b16 %v21
  %v95 = vunpack.c.l.b16 %v22
  %v96 = vunpack.c.h.b16 %v22
  %v97 = vunpack.c.l.b16 %v23
  %v98 = vunpack.c.h.b16 %v23
  %v99 = vunpack.c.l.b16 %v24
  %v100 = vunpack.c.h.b16 %v24
  %v101 = vunpack.c.l.b16 %v25
  %v102 = vunpack.c.h.b16 %v25
  %v103 = vunpack.c.l.b16 %v26
  %v104 = vunpack.c.h.b16 %v26
  %v105 = vunpack.c.l.b16 %v27
  %v106 = vunpack.c.h.b16 %v27
  %v107 = vunpack.c.l.b16 %v28
  %v108 = vunpack.c.h.b16 %v28
  %v109 = vunpack.c.l.b16 %v29
  %v110 = vunpack.c.h.b16 %v29
  %v111 = vunpack.c.l.b16 %v30
  %v112 = vunpack.c.h.b16 %v30
  %v113 = vunpack.c.l.b16 %v31
  %v114 = vunpack.c.h.b16 %v31
  %v115 = vunpack.c.l.b16 %v32
  %v116 = vunpack.c.h.b16 %v32
  %v117 = vunpack.c.l.b16 %v33
  %v118 = vunpack.c.h.b16 %v33
  %v119 = vunpack.c.l.b16 %v34
  %v120 = vunpack.c.h.b16 %v34
  %v121 = vunpack.c.l.b16 %v35
  %v122 = vunpack.c.h.b16 %v35
  %v123 = vunpack.c.l.b16 %v36
  %v124 = vunpack.c.h.b16 %v36
  %v125 = vunpack.c.l.b16 %v37
  %v126 = vunpack.c.h.b16 %v37
  %v127 = vunpack.c.l.b16 %v38
  %v128 = vunpack.c.h.b16 %v38
  %v129 = vunpack.c.l.b16 %v39
  %v130 = vunpack.c.h.b16 %v39
  %v131 = vunpack.c.l.b16 %v40
  %v132 = vunpack.c.h.b16 %v40
  %v133 = vunpack.c.l.b16 %v41
  %v134 = vunpack.c.h.b16 %v41
  %v135 = vunpack.c.l.b16 %v42
  %v136 = vunpack.c.h.b16 %v42
  %v137 = vunpack.c.l.b16 %v43
  %v138 = vunpack.c.h.b16 %v43
  %v139 = vunpack.c.l.b16 %v44
  %v140 = vunpack.c.h.b16 %v44
  %v141 = vunpack.c.l.b16 %v45
  %v142 = vunpack.c.h.b16 %v45
  %v143 = vunpack.c.l.b16 %v46
  %v144 = vunpack.c.h.b16 %v46
  %v145 = vunpack.c.l.b16 %v47
  %v146 = vunpack.c.h.b16 %v47
  %v147 = vunpack.c.l.b16 %v48
  %v148 = vunpack.c.h.b16 %v48
  %v149 = vunpack.c.l.b16 %v49
  %v150 = vunpack.c.h.b16 %v49
  %v151 = vunpack.c.l.b16 %v50
  %v152 = vunpack.c.h.b16 %v50
  %v153 = vunpack.c.l.b16 %v51
  %v154 = vunpack.c.h.b16 %v51
  %v155 = vpack.c.b16 %v93, %v91
  %v156 = vpack.c.b16 %v94, %v92
  %v157 = vpack.c.b16 %v97, %v95
  %v158 = vpack.c.b16 %v98, %v96
  %v159 = vpack.c.b16 %v101, %v99
  %v160 = vpack.c.b16 %v102, %v100
  %v161 = vpack.c.b16 %v105, %v103
  %v162 = vpack.c.b16 %v106, %v104
  %v163 = vpack.c.b16 %v109, %v107
  %v164 = vpack.c.b16 %v110, %v108
  %v165 = vpack.c.b16 %v113, %v111
  %v166 = vpack.c.b16 %v114, %v112
  %v167 = vpack.c.b16 %v117, %v115
  %v168 = vpack.c.b16 %v118, %v116
  %v169 = vpack.c.b16 %v121, %v119
  %v170 = vpack.c.b16 %v122, %v120
  %v171 = vpack.c.b16 %v125, %v123
  %v172 = vpack.c.b16 %v126, %v124
  %v173 = vpack.c.b16 %v129, %v127
  %v174 = vpack.c.b16 %v130, %v128
  %v175 = vpack.c.b16 %v133, %v131
  %v176 = vpack.c.b16 %v134, %v132
  %v177 = vpack.c.b16 %v137, %v135
  %v178 = vpack.c.b16 %v138, %v136
  %v179 = vpack.c.b16 %v141, %v139
  %v180 = vpack.c.b16 %v142, %v140
  %v181 = vpack.c.b16 %v145, %v143
  %v182 = vpack.c.b16 %v146, %v144
  %v183 = vpack.c.b16 %v149, %v147
  %v184 = vpack.c.b16 %v150, %v148
  %v185 = vpack.c.b16 %v153, %v151
  %v186 = vpack.c.b16 %v154, %v152
  %219 = vmatprep.subr.bf16.mxu0 %v170
  %220 = vmatpush1.bf16.msra.mxu0 %v169
  %221 = vmatprep.subr.bf16.mxu0 %v168
  %222 = vmatpush1.bf16.msra.mxu0 %v167
  %223 = vmatprep.subr.bf16.mxu0 %v166
  %224 = vmatpush1.bf16.msra.mxu0 %v165
  %225 = vmatprep.subr.bf16.mxu0 %v164
  %226 = vmatpush1.bf16.msra.mxu0 %v163
  %227 = vmatprep.subr.bf16.mxu0 %v162
  %228 = vmatpush1.bf16.msra.mxu0 %v161
  %229 = vmatprep.subr.bf16.mxu0 %v160
  %230 = vmatpush1.bf16.msra.mxu0 %v159
  %231 = vmatprep.subr.bf16.mxu0 %v158
  %232 = vmatpush1.bf16.msra.mxu0 %v157
  %233 = vmatprep.subr.bf16.mxu0 %v156
  %234 = vmatpush1.bf16.msra.mxu0 %v155
  %235 = vmatprep.subr.bf16.mxu0 %v186
  %236 = vmatpush2.bf16.msra.mxu0 %v185
  %237 = vmatprep.subr.bf16.mxu0 %v184
  %238 = vmatpush2.bf16.msra.mxu0 %v183
  %239 = vmatprep.subr.bf16.mxu0 %v182
  %240 = vmatpush2.bf16.msra.mxu0 %v181
  %241 = vmatprep.subr.bf16.mxu0 %v180
  %242 = vmatpush2.bf16.msra.mxu0 %v179
  %243 = vmatprep.subr.bf16.mxu0 %v178
  %244 = vmatpush2.bf16.msra.mxu0 %v177
  %245 = vmatprep.subr.bf16.mxu0 %v176
  %246 = vmatpush2.bf16.msra.mxu0 %v175
  %247 = vmatprep.subr.bf16.mxu0 %v174
  %248 = vmatpush2.bf16.msra.mxu0 %v173
  %249 = vmatprep.subr.bf16.mxu0 %v172
  %250 = vmatpush2.bf16.msra.mxu0 %v171
  %251 = vmatprep.mubr.bf16.mxu0 %v56
  %252 = vmatmul.mubr.bf16.gmra.mxu0 %v55
  %v253 = vpop.f32.mrf.mxu0
  %v254 = vadd.f32 0.0, %v253
  %v255 = vpop.f32.mrf.mxu0
  %v256 = vadd.f32 0.0, %v255
  %v257 = vpop.f32.mrf.mxu0
  %v258 = vpop.f32.mrf.mxu0
  %259 = vdwg.mxu0
  %v260 = vadd.f32 %v17, %v254
  %v261 = vadd.f32 %v18, %v256
  %262 = vst [vmem:[#allocation2] sm:$0xff] %v260
  %263 = vst [vmem:[#allocation2 + $0x8] sm:$0xff] %v261
  // Predicated region
  $region14: #{_lambda_.25} parent=0 // pred_check
    %p264 = pneg %p11
  $region15: #{_lambda_.25} parent=0 // pred_check_branch
    %266 = sbr.rel (%p264) target = $region17
  $region16: #{_lambda_.25} parent=0 // pred_region
    %v267 = vld [vmem:[#allocation2] sm:$0xff]
    %v268 = vld [vmem:[#allocation2 + $0x8] sm:$0xff]
    %v269 = vpack.c.bf16 %v267, %v267
    %v270 = vpack.c.bf16 %v268, %v268
    %v273 = vunpack.c.l.b16 %v269
    %v274 = vunpack.c.l.b16 %v270
    %v275 = vpack.c.b16 %v274, %v273
    %277 = vst [vmem:[%s2] sm:$0xff] %v275
  $region17: #{_lambda_.25} parent=0 // pred_fallthru
    _
  // Predicated region
  $region18: #{_lambda_.25} parent=0 // pred_check
    _
  $region19: #{_lambda_.25} parent=0 // pred_check_branch
    %279 = sbr.rel (0) target = $region21
  $region20: #{_lambda_.25} parent=0 // pred_region
    _
  $region21: #{_lambda_.25} parent=0 // pred_fallthru
    _
  // Predicated region
  $region22: #{_lambda_.25} parent=0 // pred_check
    _
  $region23: #{_lambda_.25} parent=0 // pred_check_branch
    %281 = sbr.rel (0) target = $region25
  $region24: #{_lambda_.25} parent=0 // pred_region
    _
  $region25: #{_lambda_.25} parent=0 // pred_fallthru
    _

// kernel: _lambda_.26
$region0: #{_lambda_.26}
  #allocation0 [shape = 'u32[]', space=smem, size = 0x4, offset = 0x4, fixed_abs, tag = 'smem constant byte address 0x4 - core index']
  #allocation1 [shape = 'u32[144,128]{1,0:T(1,128)}', space=vmem, size = 0x12000, scoped, tag = 'internal scratch']
  %s0 = inlined_call_operand.vmem [shape: bf16[8,128], index: 0, kind: input, shape index: {}]
  %s1 = inlined_call_operand.vmem [shape: f32[1,128], index: 1, kind: input, shape index: {}]
  %s2 = inlined_call_operand.vmem [shape: f32[1,128], index: 2, kind: input, shape index: {}]
  %s3 = inlined_call_operand.vmem [shape: bf16[8,128], index: 3, kind: output, shape index: {}]
  %s4 = sld [smem:[#allocation0]]
  $region22: #{_lambda_.26} parent=0
    _
  %s6 = ssub.s32 1, %s4
  %s7 = scalar_select 0, %s6, %s4
  // Predicated region
  $region2: #{_lambda_.26} parent=0 // pred_check
    _
  $region3: #{_lambda_.26} parent=0 // pred_check_branch
    %9 = sbr.rel (0) target = $region5
  $region4: #{_lambda_.26} parent=0 // pred_region
    _
  $region5: #{_lambda_.26} parent=0 // pred_fallthru
    _
  // Predicated region
  $region6: #{_lambda_.26} parent=0 // pred_check
    _
  $region7: #{_lambda_.26} parent=0 // pred_check_branch
    %11 = sbr.rel (0) target = $region9
  $region8: #{_lambda_.26} parent=0 // pred_region
    _
  $region9: #{_lambda_.26} parent=0 // pred_fallthru
    _
  // Predicated region
  $region10: #{_lambda_.26} parent=0 // pred_check
    _
  $region11: #{_lambda_.26} parent=0 // pred_check_branch
    %13 = sbr.rel (0) target = $region13
  $region12: #{_lambda_.26} parent=0 // pred_region
    _
  $region13: #{_lambda_.26} parent=0 // pred_fallthru
    _
  %v14 = vld [vmem:[%s0] sm:$0xf]
  %v15 = vunpack.c.l.bf16 %v14
  %v16 = vld [vmem:[%s1] sm:$0x1]
  %v18 = vlaneseq
  %v19 = vshrl.u32 %v18, 7
  %v20 = vsub.s32 0, %v19
  %v21 = vrot.slane %v16, %v20
  %v23 = vmul.f32 %v15, %v21
  %v24 = vld [vmem:[%s2] sm:$0x1]
  %v26 = vlaneseq
  %v27 = vshrl.u32 %v26, 7
  %v28 = vsub.s32 0, %v27
  %v29 = vrot.slane %v24, %v28
  %v31 = vadd.f32 %v23, %v29
  %v32 = vmul.f32 %v31, 0.0
  %v33 = vmax.f32 %v31, %v32
  %v34 = vpack.c.bf16 %v33, %v33
  %35 = vst [vmem:[%s3] sm:$0xf] %v34
  // Predicated region
  $region14: #{_lambda_.26} parent=0 // pred_check
    _
  $region15: #{_lambda_.26} parent=0 // pred_check_branch
    %37 = sbr.rel (0) target = $region17
  $region16: #{_lambda_.26} parent=0 // pred_region
    _
  $region17: #{_lambda_.26} parent=0 // pred_fallthru
    _
  // Predicated region
  $region18: #{_lambda_.26} parent=0 // pred_check
    _
  $region19: #{_lambda_.26} parent=0 // pred_check_branch
    %39 = sbr.rel (0) target = $region21
  $region20: #{_lambda_.26} parent=0 // pred_region
    _
  $region21: #{_lambda_.26} parent=0 // pred_fallthru
    _

// kernel: _lambda_.27
$region0: #{_lambda_.27}
  #allocation0 [shape = 'u32[]', space=smem, size = 0x4, offset = 0x4, fixed_abs, tag = 'smem constant byte address 0x4 - core index']
  #allocation1 [shape = 'u32[144,128]{1,0:T(1,128)}', space=vmem, size = 0x12000, scoped, tag = 'internal scratch']
  #allocation2 [shape = 'f32[24,128]{1,0:T(8,128)}', space=vmem, size = 0x3000, scoped, tag = 'scratch operand']
  %s0 = inlined_call_operand.vmem [shape: bf16[24,512], index: 0, kind: input, shape index: {}]
  %s1 = inlined_call_operand.vmem [shape: bf16[512,128], index: 1, kind: input, shape index: {}]
  %s2 = inlined_call_operand.vmem [shape: bf16[24,128], index: 2, kind: output, shape index: {}]
  %s3 = sld [smem:[#allocation0]]
  $region26: #{_lambda_.27} parent=0
    _
  %s5 = ssub.s32 1, %s3
  %s6 = scalar_select 0, %s5, %s3
  // Predicated region
  $region2: #{_lambda_.27} parent=0 // pred_check
    _
  $region3: #{_lambda_.27} parent=0 // pred_check_branch
    %8 = sbr.rel (0) target = $region5
  $region4: #{_lambda_.27} parent=0 // pred_region
    _
  $region5: #{_lambda_.27} parent=0 // pred_fallthru
    _
  // Predicated region
  $region6: #{_lambda_.27} parent=0 // pred_check
    _
  $region7: #{_lambda_.27} parent=0 // pred_check_branch
    %10 = sbr.rel (0) target = $region9
  $region8: #{_lambda_.27} parent=0 // pred_region
    _
  $region9: #{_lambda_.27} parent=0 // pred_fallthru
    _
  %p12 = scmp.eq.s32.totalorder 0, 0
  // Predicated region
  $region10: #{_lambda_.27} parent=0 // pred_check
    %p13 = pneg %p12
  $region11: #{_lambda_.27} parent=0 // pred_check_branch
    %15 = sbr.rel (%p13) target = $region13
  $region12: #{_lambda_.27} parent=0 // pred_region
    %16 = vst [vmem:[#allocation2] sm:$0xff] 0.0
    %17 = vst [vmem:[#allocation2 + $0x8] sm:$0xff] 0.0
    %18 = vst [vmem:[#allocation2 + $0x10] sm:$0xff] 0.0
  $region13: #{_lambda_.27} parent=0 // pred_fallthru
    _
  %v19 = vld [vmem:[#allocation2] sm:$0xff]
  %v20 = vld [vmem:[#allocation2 + $0x8] sm:$0xff]
  %v21 = vld [vmem:[#allocation2 + $0x10] sm:$0xff]
  %v22 = vld [vmem:[%s0] sm:$0xff]
  %v23 = vld [vmem:[%s0 + $0x8] sm:$0xff]
  %v24 = vld [vmem:[%s0 + $0x10] sm:$0xff]
  %v25 = vld [vmem:[%s0 + $0x18] sm:$0xff]
  %v26 = vld [vmem:[%s0 + $0x20] sm:$0xff]
  %v27 = vld [vmem:[%s0 + $0x28] sm:$0xff]
  %v28 = vld [vmem:[%s1] sm:$0xf]
  %v29 = vld [vmem:[%s1 + $0x4] sm:$0xf]
  %v30 = vld [vmem:[%s1 + $0x8] sm:$0xf]
  %v31 = vld [vmem:[%s1 + $0xc] sm:$0xf]
  %v32 = vld [vmem:[%s1 + $0x10] sm:$0xf]
  %v33 = vld [vmem:[%s1 + $0x14] sm:$0xf]
  %v34 = vld [vmem:[%s1 + $0x18] sm:$0xf]
  %v35 = vld [vmem:[%s1 + $0x1c] sm:$0xf]
  %v36 = vld [vmem:[%s1 + $0x20] sm:$0xf]
  %v37 = vld [vmem:[%s1 + $0x24] sm:$0xf]
  %v38 = vld [vmem:[%s1 + $0x28] sm:$0xf]
  %v39 = vld [vmem:[%s1 + $0x2c] sm:$0xf]
  %v40 = vld [vmem:[%s1 + $0x30] sm:$0xf]
  %v41 = vld [vmem:[%s1 + $0x34] sm:$0xf]
  %v42 = vld [vmem:[%s1 + $0x38] sm:$0xf]
  %v43 = vld [vmem:[%s1 + $0x3c] sm:$0xf]
  %v44 = vld [vmem:[%s1 + $0x40] sm:$0xf]
  %v45 = vld [vmem:[%s1 + $0x44] sm:$0xf]
  %v46 = vld [vmem:[%s1 + $0x48] sm:$0xf]
  %v47 = vld [vmem:[%s1 + $0x4c] sm:$0xf]
  %v48 = vld [vmem:[%s1 + $0x50] sm:$0xf]
  %v49 = vld [vmem:[%s1 + $0x54] sm:$0xf]
  %v50 = vld [vmem:[%s1 + $0x58] sm:$0xf]
  %v51 = vld [vmem:[%s1 + $0x5c] sm:$0xf]
  %v52 = vld [vmem:[%s1 + $0x60] sm:$0xf]
  %v53 = vld [vmem:[%s1 + $0x64] sm:$0xf]
  %v54 = vld [vmem:[%s1 + $0x68] sm:$0xf]
  %v55 = vld [vmem:[%s1 + $0x6c] sm:$0xf]
  %v56 = vld [vmem:[%s1 + $0x70] sm:$0xf]
  %v57 = vld [vmem:[%s1 + $0x74] sm:$0xf]
  %v58 = vld [vmem:[%s1 + $0x78] sm:$0xf]
  %v59 = vld [vmem:[%s1 + $0x7c] sm:$0xf]
  %v60 = vld [vmem:[%s1 + $0x80] sm:$0xf]
  %v61 = vld [vmem:[%s1 + $0x84] sm:$0xf]
  %v62 = vld [vmem:[%s1 + $0x88] sm:$0xf]
  %v63 = vld [vmem:[%s1 + $0x8c] sm:$0xf]
  %v64 = vld [vmem:[%s1 + $0x90] sm:$0xf]
  %v65 = vld [vmem:[%s1 + $0x94] sm:$0xf]
  %v66 = vld [vmem:[%s1 + $0x98] sm:$0xf]
  %v67 = vld [vmem:[%s1 + $0x9c] sm:$0xf]
  %v68 = vld [vmem:[%s1 + $0xa0] sm:$0xf]
  %v69 = vld [vmem:[%s1 + $0xa4] sm:$0xf]
  %v70 = vld [vmem:[%s1 + $0xa8] sm:$0xf]
  %v71 = vld [vmem:[%s1 + $0xac] sm:$0xf]
  %v72 = vld [vmem:[%s1 + $0xb0] sm:$0xf]
  %v73 = vld [vmem:[%s1 + $0xb4] sm:$0xf]
  %v74 = vld [vmem:[%s1 + $0xb8] sm:$0xf]
  %v75 = vld [vmem:[%s1 + $0xbc] sm:$0xf]
  %v76 = vld [vmem:[%s1 + $0xc0] sm:$0xf]
  %v77 = vld [vmem:[%s1 + $0xc4] sm:$0xf]
  %v78 = vld [vmem:[%s1 + $0xc8] sm:$0xf]
  %v79 = vld [vmem:[%s1 + $0xcc] sm:$0xf]
  %v80 = vld [vmem:[%s1 + $0xd0] sm:$0xf]
  %v81 = vld [vmem:[%s1 + $0xd4] sm:$0xf]
  %v82 = vld [vmem:[%s1 + $0xd8] sm:$0xf]
  %v83 = vld [vmem:[%s1 + $0xdc] sm:$0xf]
  %v84 = vld [vmem:[%s1 + $0xe0] sm:$0xf]
  %v85 = vld [vmem:[%s1 + $0xe4] sm:$0xf]
  %v86 = vld [vmem:[%s1 + $0xe8] sm:$0xf]
  %v87 = vld [vmem:[%s1 + $0xec] sm:$0xf]
  %v88 = vld [vmem:[%s1 + $0xf0] sm:$0xf]
  %v89 = vld [vmem:[%s1 + $0xf4] sm:$0xf]
  %v90 = vld [vmem:[%s1 + $0xf8] sm:$0xf]
  %v91 = vld [vmem:[%s1 + $0xfc] sm:$0xf]
  %v98 = vunpack.c.l.b16 %v22
  %v99 = vunpack.c.h.b16 %v22
  %v100 = vunpack.c.l.b16 %v23
  %v101 = vunpack.c.h.b16 %v23
  %v102 = vunpack.c.l.b16 %v24
  %v103 = vunpack.c.h.b16 %v24
  %v104 = vunpack.c.l.b16 %v25
  %v105 = vunpack.c.h.b16 %v25
  %v106 = vunpack.c.l.b16 %v26
  %v107 = vunpack.c.h.b16 %v26
  %v108 = vunpack.c.l.b16 %v27
  %v109 = vunpack.c.h.b16 %v27
  %v110 = vpack.c.b16 %v102, %v98
  %v111 = vpack.c.b16 %v103, %v99
  %v112 = vpack.c.b16 %v104, %v100
  %v113 = vpack.c.b16 %v105, %v101
  %v114 = vpack.c.b16 %v106, %v106
  %v115 = vpack.c.b16 %v107, %v107
  %v116 = vpack.c.b16 %v108, %v108
  %v117 = vpack.c.b16 %v109, %v109
  %v190 = vunpack.c.l.b16 %v28
  %v191 = vunpack.c.l.b16 %v29
  %v192 = vunpack.c.l.b16 %v30
  %v193 = vunpack.c.l.b16 %v31
  %v194 = vunpack.c.l.b16 %v32
  %v195 = vunpack.c.l.b16 %v33
  %v196 = vunpack.c.l.b16 %v34
  %v197 = vunpack.c.l.b16 %v35
  %v198 = vunpack.c.l.b16 %v36
  %v199 = vunpack.c.l.b16 %v37
  %v200 = vunpack.c.l.b16 %v38
  %v201 = vunpack.c.l.b16 %v39
  %v202 = vunpack.c.l.b16 %v40
  %v203 = vunpack.c.l.b16 %v41
  %v204 = vunpack.c.l.b16 %v42
  %v205 = vunpack.c.l.b16 %v43
  %v206 = vunpack.c.l.b16 %v44
  %v207 = vunpack.c.l.b16 %v45
  %v208 = vunpack.c.l.b16 %v46
  %v209 = vunpack.c.l.b16 %v47
  %v210 = vunpack.c.l.b16 %v48
  %v211 = vunpack.c.l.b16 %v49
  %v212 = vunpack.c.l.b16 %v50
  %v213 = vunpack.c.l.b16 %v51
  %v214 = vunpack.c.l.b16 %v52
  %v215 = vunpack.c.l.b16 %v53
  %v216 = vunpack.c.l.b16 %v54
  %v217 = vunpack.c.l.b16 %v55
  %v218 = vunpack.c.l.b16 %v56
  %v219 = vunpack.c.l.b16 %v57
  %v220 = vunpack.c.l.b16 %v58
  %v221 = vunpack.c.l.b16 %v59
  %v222 = vunpack.c.l.b16 %v60
  %v223 = vunpack.c.l.b16 %v61
  %v224 = vunpack.c.l.b16 %v62
  %v225 = vunpack.c.l.b16 %v63
  %v226 = vunpack.c.l.b16 %v64
  %v227 = vunpack.c.l.b16 %v65
  %v228 = vunpack.c.l.b16 %v66
  %v229 = vunpack.c.l.b16 %v67
  %v230 = vunpack.c.l.b16 %v68
  %v231 = vunpack.c.l.b16 %v69
  %v232 = vunpack.c.l.b16 %v70
  %v233 = vunpack.c.l.b16 %v71
  %v234 = vunpack.c.l.b16 %v72
  %v235 = vunpack.c.l.b16 %v73
  %v236 = vunpack.c.l.b16 %v74
  %v237 = vunpack.c.l.b16 %v75
  %v238 = vunpack.c.l.b16 %v76
  %v239 = vunpack.c.l.b16 %v77
  %v240 = vunpack.c.l.b16 %v78
  %v241 = vunpack.c.l.b16 %v79
  %v242 = vunpack.c.l.b16 %v80
  %v243 = vunpack.c.l.b16 %v81
  %v244 = vunpack.c.l.b16 %v82
  %v245 = vunpack.c.l.b16 %v83
  %v246 = vunpack.c.l.b16 %v84
  %v247 = vunpack.c.l.b16 %v85
  %v248 = vunpack.c.l.b16 %v86
  %v249 = vunpack.c.l.b16 %v87
  %v250 = vunpack.c.l.b16 %v88
  %v251 = vunpack.c.l.b16 %v89
  %v252 = vunpack.c.l.b16 %v90
  %v253 = vunpack.c.l.b16 %v91
  %v254 = vpack.c.b16 %v191, %v190
  %v255 = vpack.c.b16 %v193, %v192
  %v256 = vpack.c.b16 %v195, %v194
  %v257 = vpack.c.b16 %v197, %v196
  %v258 = vpack.c.b16 %v199, %v198
  %v259 = vpack.c.b16 %v201, %v200
  %v260 = vpack.c.b16 %v203, %v202
  %v261 = vpack.c.b16 %v205, %v204
  %v262 = vpack.c.b16 %v207, %v206
  %v263 = vpack.c.b16 %v209, %v208
  %v264 = vpack.c.b16 %v211, %v210
  %v265 = vpack.c.b16 %v213, %v212
  %v266 = vpack.c.b16 %v215, %v214
  %v267 = vpack.c.b16 %v217, %v216
  %v268 = vpack.c.b16 %v219, %v218
  %v269 = vpack.c.b16 %v221, %v220
  %v270 = vpack.c.b16 %v223, %v222
  %v271 = vpack.c.b16 %v225, %v224
  %v272 = vpack.c.b16 %v227, %v226
  %v273 = vpack.c.b16 %v229, %v228
  %v274 = vpack.c.b16 %v231, %v230
  %v275 = vpack.c.b16 %v233, %v232
  %v276 = vpack.c.b16 %v235, %v234
  %v277 = vpack.c.b16 %v237, %v236
  %v278 = vpack.c.b16 %v239, %v238
  %v279 = vpack.c.b16 %v241, %v240
  %v280 = vpack.c.b16 %v243, %v242
  %v281 = vpack.c.b16 %v245, %v244
  %v282 = vpack.c.b16 %v247, %v246
  %v283 = vpack.c.b16 %v249, %v248
  %v284 = vpack.c.b16 %v251, %v250
  %v285 = vpack.c.b16 %v253, %v252
  %318 = vmatprep.subr.bf16.mxu0 0
  %319 = vmatpush1.bf16.msra.mxu0 %v261
  %320 = vmatprep.subr.bf16.mxu0 0
  %321 = vmatpush1.bf16.msra.mxu0 %v260
  %322 = vmatprep.subr.bf16.mxu0 0
  %323 = vmatpush1.bf16.msra.mxu0 %v259
  %324 = vmatprep.subr.bf16.mxu0 0
  %325 = vmatpush1.bf16.msra.mxu0 %v258
  %326 = vmatprep.subr.bf16.mxu0 0
  %327 = vmatpush1.bf16.msra.mxu0 %v257
  %328 = vmatprep.subr.bf16.mxu0 0
  %329 = vmatpush1.bf16.msra.mxu0 %v256
  %330 = vmatprep.subr.bf16.mxu0 0
  %331 = vmatpush1.bf16.msra.mxu0 %v255
  %332 = vmatprep.subr.bf16.mxu0 0
  %333 = vmatpush1.bf16.msra.mxu0 %v254
  %334 = vmatprep.subr.bf16.mxu0 0
  %335 = vmatpush2.bf16.msra.mxu0 %v269
  %336 = vmatprep.subr.bf16.mxu0 0
  %337 = vmatpush2.bf16.msra.mxu0 %v268
  %338 = vmatprep.subr.bf16.mxu0 0
  %339 = vmatpush2.bf16.msra.mxu0 %v267
  %340 = vmatprep.subr.bf16.mxu0 0
  %341 = vmatpush2.bf16.msra.mxu0 %v266
  %342 = vmatprep.subr.bf16.mxu0 0
  %343 = vmatpush2.bf16.msra.mxu0 %v265
  %344 = vmatprep.subr.bf16.mxu0 0
  %345 = vmatpush2.bf16.msra.mxu0 %v264
  %346 = vmatprep.subr.bf16.mxu0 0
  %347 = vmatpush2.bf16.msra.mxu0 %v263
  %348 = vmatprep.subr.bf16.mxu0 0
  %349 = vmatpush2.bf16.msra.mxu0 %v262
  %350 = vmatprep.mubr.bf16.mxu0 %v111
  %351 = vmatmul.mubr.bf16.gmra.mxu0 %v110
  %v352 = vpop.f32.mrf.mxu0
  %v353 = vadd.f32 0.0, %v352
  %v354 = vpop.f32.mrf.mxu0
  %v355 = vpop.f32.mrf.mxu0
  %v356 = vadd.f32 0.0, %v355
  %v357 = vpop.f32.mrf.mxu0
  %358 = vmatprep.mubr.bf16.mxu0 %v115
  %359 = vmatmul.mubr.bf16.gmra.mxu0 %v114
  %v360 = vpop.f32.mrf.mxu0
  %v361 = vadd.f32 0.0, %v360
  %v362 = vpop.f32.mrf.mxu0
  %v363 = vpop.f32.mrf.mxu0
  %v364 = vpop.f32.mrf.mxu0
  %365 = vdwg.mxu0
  %366 = vmatprep.subr.bf16.mxu0 0
  %367 = vmatpush1.bf16.msra.mxu0 %v277
  %368 = vmatprep.subr.bf16.mxu0 0
  %369 = vmatpush1.bf16.msra.mxu0 %v276
  %370 = vmatprep.subr.bf16.mxu0 0
  %371 = vmatpush1.bf16.msra.mxu0 %v275
  %372 = vmatprep.subr.bf16.mxu0 0
  %373 = vmatpush1.bf16.msra.mxu0 %v274
  %374 = vmatprep.subr.bf16.mxu0 0
  %375 = vmatpush1.bf16.msra.mxu0 %v273
  %376 = vmatprep.subr.bf16.mxu0 0
  %377 = vmatpush1.bf16.msra.mxu0 %v272
  %378 = vmatprep.subr.bf16.mxu0 0
  %379 = vmatpush1.bf16.msra.mxu0 %v271
  %380 = vmatprep.subr.bf16.mxu0 0
  %381 = vmatpush1.bf16.msra.mxu0 %v270
  %382 = vmatprep.subr.bf16.mxu0 0
  %383 = vmatpush2.bf16.msra.mxu0 %v285
  %384 = vmatprep.subr.bf16.mxu0 0
  %385 = vmatpush2.bf16.msra.mxu0 %v284
  %386 = vmatprep.subr.bf16.mxu0 0
  %387 = vmatpush2.bf16.msra.mxu0 %v283
  %388 = vmatprep.subr.bf16.mxu0 0
  %389 = vmatpush2.bf16.msra.mxu0 %v282
  %390 = vmatprep.subr.bf16.mxu0 0
  %391 = vmatpush2.bf16.msra.mxu0 %v281
  %392 = vmatprep.subr.bf16.mxu0 0
  %393 = vmatpush2.bf16.msra.mxu0 %v280
  %394 = vmatprep.subr.bf16.mxu0 0
  %395 = vmatpush2.bf16.msra.mxu0 %v279
  %396 = vmatprep.subr.bf16.mxu0 0
  %397 = vmatpush2.bf16.msra.mxu0 %v278
  %398 = vmatprep.mubr.bf16.mxu0 %v113
  %399 = vmatmul.mubr.bf16.gmra.mxu0 %v112
  %v400 = vpop.f32.mrf.mxu0
  %v401 = vadd.f32 %v353, %v400
  %v402 = vpop.f32.mrf.mxu0
  %v403 = vpop.f32.mrf.mxu0
  %v404 = vadd.f32 %v356, %v403
  %v405 = vpop.f32.mrf.mxu0
  %406 = vmatprep.mubr.bf16.mxu0 %v117
  %407 = vmatmul.mubr.bf16.gmra.mxu0 %v116
  %v408 = vpop.f32.mrf.mxu0
  %v409 = vadd.f32 %v361, %v408
  %v410 = vpop.f32.mrf.mxu0
  %v411 = vpop.f32.mrf.mxu0
  %v412 = vpop.f32.mrf.mxu0
  %413 = vdwg.mxu0
  %v414 = vadd.f32 %v19, %v401
  %v415 = vadd.f32 %v20, %v404
  %v416 = vadd.f32 %v21, %v409
  %417 = vst [vmem:[#allocation2] sm:$0xff] %v414
  %418 = vst [vmem:[#allocation2 + $0x8] sm:$0xff] %v415
  %419 = vst [vmem:[#allocation2 + $0x10] sm:$0xff] %v416
  // Predicated region
  $region14: #{_lambda_.27} parent=0 // pred_check
    %p420 = pneg %p12
  $region15: #{_lambda_.27} parent=0 // pred_check_branch
    %422 = sbr.rel (%p420) target = $region17
  $region16: #{_lambda_.27} parent=0 // pred_region
    %v423 = vld [vmem:[#allocation2] sm:$0xff]
    %v424 = vld [vmem:[#allocation2 + $0x8] sm:$0xff]
    %v425 = vld [vmem:[#allocation2 + $0x10] sm:$0xff]
    %v426 = vpack.c.bf16 %v424, %v423
    %v427 = vpack.c.bf16 %v425, %v425
    %v430 = vunpack.c.l.b16 %v426
    %v431 = vunpack.c.h.b16 %v426
    %v432 = vunpack.c.l.b16 %v427
    %v433 = vpack.c.b16 %v430, %v430
    %v434 = vpack.c.b16 %v431, %v431
    %v435 = vpack.c.b16 %v432, %v432
    %439 = vst [vmem:[%s2] sm:$0xf] %v433
    %440 = vst [vmem:[%s2 + $0x4] sm:$0xf] %v434
    %441 = vst [vmem:[%s2 + $0x8] sm:$0xf] %v435
  $region17: #{_lambda_.27} parent=0 // pred_fallthru
    _
  // Predicated region
  $region18: #{_lambda_.27} parent=0 // pred_check
    _
  $region19: #{_lambda_.27} parent=0 // pred_check_branch
    %443 = sbr.rel (0) target = $region21
  $region20: #{_lambda_.27} parent=0 // pred_region
    _
  $region21: #{_lambda_.27} parent=0 // pred_fallthru
    _
  // Predicated region
  $region22: #{_lambda_.27} parent=0 // pred_check
    _
  $region23: #{_lambda_.27} parent=0 // pred_check_branch
    %445 = sbr.rel (0) target = $region25
  $region24: #{_lambda_.27} parent=0 // pred_region
    _
  $region25: #{_lambda_.27} parent=0 // pred_fallthru
    _

// kernel: _lambda_.29
$region0: #{_lambda_.29}
  #allocation0 [shape = 'u32[]', space=smem, size = 0x4, offset = 0x4, fixed_abs, tag = 'smem constant byte address 0x4 - core index']
  #allocation1 [shape = 'u32[144,128]{1,0:T(1,128)}', space=vmem, size = 0x12000, scoped, tag = 'internal scratch']
  #allocation2 [shape = 'f32[56,128]{1,0:T(8,128)}', space=vmem, size = 0x7000, scoped, tag = 'scratch operand']
  %s0 = inlined_call_operand.vmem [shape: bf16[56,256], index: 0, kind: input, shape index: {}]
  %s1 = inlined_call_operand.vmem [shape: bf16[256,128], index: 1, kind: input, shape index: {}]
  %s2 = inlined_call_operand.vmem [shape: bf16[56,128], index: 2, kind: output, shape index: {}]
  %s3 = sld [smem:[#allocation0]]
  $region26: #{_lambda_.29} parent=0
    _
  %s5 = ssub.s32 1, %s3
  %s6 = scalar_select 0, %s5, %s3
  // Predicated region
  $region2: #{_lambda_.29} parent=0 // pred_check
    _
  $region3: #{_lambda_.29} parent=0 // pred_check_branch
    %8 = sbr.rel (0) target = $region5
  $region4: #{_lambda_.29} parent=0 // pred_region
    _
  $region5: #{_lambda_.29} parent=0 // pred_fallthru
    _
  // Predicated region
  $region6: #{_lambda_.29} parent=0 // pred_check
    _
  $region7: #{_lambda_.29} parent=0 // pred_check_branch
    %10 = sbr.rel (0) target = $region9
  $region8: #{_lambda_.29} parent=0 // pred_region
    _
  $region9: #{_lambda_.29} parent=0 // pred_fallthru
    _
  %p12 = scmp.eq.s32.totalorder 0, 0
  // Predicated region
  $region10: #{_lambda_.29} parent=0 // pred_check
    %p13 = pneg %p12
  $region11: #{_lambda_.29} parent=0 // pred_check_branch
    %15 = sbr.rel (%p13) target = $region13
  $region12: #{_lambda_.29} parent=0 // pred_region
    %16 = vst [vmem:[#allocation2] sm:$0xff] 0.0
    %17 = vst [vmem:[#allocation2 + $0x8] sm:$0xff] 0.0
    %18 = vst [vmem:[#allocation2 + $0x10] sm:$0xff] 0.0
    %19 = vst [vmem:[#allocation2 + $0x18] sm:$0xff] 0.0
    %20 = vst [vmem:[#allocation2 + $0x20] sm:$0xff] 0.0
    %21 = vst [vmem:[#allocation2 + $0x28] sm:$0xff] 0.0
    %22 = vst [vmem:[#allocation2 + $0x30] sm:$0xff] 0.0
  $region13: #{_lambda_.29} parent=0 // pred_fallthru
    _
  %v23 = vld [vmem:[#allocation2] sm:$0xff]
  %v24 = vld [vmem:[#allocation2 + $0x8] sm:$0xff]
  %v25 = vld [vmem:[#allocation2 + $0x10] sm:$0xff]
  %v26 = vld [vmem:[#allocation2 + $0x18] sm:$0xff]
  %v27 = vld [vmem:[#allocation2 + $0x20] sm:$0xff]
  %v28 = vld [vmem:[#allocation2 + $0x28] sm:$0xff]
  %v29 = vld [vmem:[#allocation2 + $0x30] sm:$0xff]
  %v30 = vld [vmem:[%s0] sm:$0xff]
  %v31 = vld [vmem:[%s0 + $0x8] sm:$0xff]
  %v32 = vld [vmem:[%s0 + $0x10] sm:$0xff]
  %v33 = vld [vmem:[%s0 + $0x18] sm:$0xff]
  %v34 = vld [vmem:[%s0 + $0x20] sm:$0xff]
  %v35 = vld [vmem:[%s0 + $0x28] sm:$0xff]
  %v36 = vld [vmem:[%s0 + $0x30] sm:$0xff]
  %v37 = vld [vmem:[%s1] sm:$0xf]
  %v38 = vld [vmem:[%s1 + $0x4] sm:$0xf]
  %v39 = vld [vmem:[%s1 + $0x8] sm:$0xf]
  %v40 = vld [vmem:[%s1 + $0xc] sm:$0xf]
  %v41 = vld [vmem:[%s1 + $0x10] sm:$0xf]
  %v42 = vld [vmem:[%s1 + $0x14] sm:$0xf]
  %v43 = vld [vmem:[%s1 + $0x18] sm:$0xf]
  %v44 = vld [vmem:[%s1 + $0x1c] sm:$0xf]
  %v45 = vld [vmem:[%s1 + $0x20] sm:$0xf]
  %v46 = vld [vmem:[%s1 + $0x24] sm:$0xf]
  %v47 = vld [vmem:[%s1 + $0x28] sm:$0xf]
  %v48 = vld [vmem:[%s1 + $0x2c] sm:$0xf]
  %v49 = vld [vmem:[%s1 + $0x30] sm:$0xf]
  %v50 = vld [vmem:[%s1 + $0x34] sm:$0xf]
  %v51 = vld [vmem:[%s1 + $0x38] sm:$0xf]
  %v52 = vld [vmem:[%s1 + $0x3c] sm:$0xf]
  %v53 = vld [vmem:[%s1 + $0x40] sm:$0xf]
  %v54 = vld [vmem:[%s1 + $0x44] sm:$0xf]
  %v55 = vld [vmem:[%s1 + $0x48] sm:$0xf]
  %v56 = vld [vmem:[%s1 + $0x4c] sm:$0xf]
  %v57 = vld [vmem:[%s1 + $0x50] sm:$0xf]
  %v58 = vld [vmem:[%s1 + $0x54] sm:$0xf]
  %v59 = vld [vmem:[%s1 + $0x58] sm:$0xf]
  %v60 = vld [vmem:[%s1 + $0x5c] sm:$0xf]
  %v61 = vld [vmem:[%s1 + $0x60] sm:$0xf]
  %v62 = vld [vmem:[%s1 + $0x64] sm:$0xf]
  %v63 = vld [vmem:[%s1 + $0x68] sm:$0xf]
  %v64 = vld [vmem:[%s1 + $0x6c] sm:$0xf]
  %v65 = vld [vmem:[%s1 + $0x70] sm:$0xf]
  %v66 = vld [vmem:[%s1 + $0x74] sm:$0xf]
  %v67 = vld [vmem:[%s1 + $0x78] sm:$0xf]
  %v68 = vld [vmem:[%s1 + $0x7c] sm:$0xf]
  %v76 = vunpack.c.l.b16 %v30
  %v77 = vunpack.c.h.b16 %v30
  %v78 = vunpack.c.l.b16 %v31
  %v79 = vunpack.c.h.b16 %v31
  %v80 = vunpack.c.l.b16 %v32
  %v81 = vunpack.c.h.b16 %v32
  %v82 = vunpack.c.l.b16 %v33
  %v83 = vunpack.c.h.b16 %v33
  %v84 = vunpack.c.l.b16 %v34
  %v85 = vunpack.c.h.b16 %v34
  %v86 = vunpack.c.l.b16 %v35
  %v87 = vunpack.c.h.b16 %v35
  %v88 = vunpack.c.l.b16 %v36
  %v89 = vunpack.c.h.b16 %v36
  %v90 = vpack.c.b16 %v78, %v76
  %v91 = vpack.c.b16 %v79, %v77
  %v92 = vpack.c.b16 %v82, %v80
  %v93 = vpack.c.b16 %v83, %v81
  %v94 = vpack.c.b16 %v86, %v84
  %v95 = vpack.c.b16 %v87, %v85
  %v96 = vpack.c.b16 %v88, %v88
  %v97 = vpack.c.b16 %v89, %v89
  %v138 = vunpack.c.l.b16 %v37
  %v139 = vunpack.c.l.b16 %v38
  %v140 = vunpack.c.l.b16 %v39
  %v141 = vunpack.c.l.b16 %v40
  %v142 = vunpack.c.l.b16 %v41
  %v143 = vunpack.c.l.b16 %v42
  %v144 = vunpack.c.l.b16 %v43
  %v145 = vunpack.c.l.b16 %v44
  %v146 = vunpack.c.l.b16 %v45
  %v147 = vunpack.c.l.b16 %v46
  %v148 = vunpack.c.l.b16 %v47
  %v149 = vunpack.c.l.b16 %v48
  %v150 = vunpack.c.l.b16 %v49
  %v151 = vunpack.c.l.b16 %v50
  %v152 = vunpack.c.l.b16 %v51
  %v153 = vunpack.c.l.b16 %v52
  %v154 = vunpack.c.l.b16 %v53
  %v155 = vunpack.c.l.b16 %v54
  %v156 = vunpack.c.l.b16 %v55
  %v157 = vunpack.c.l.b16 %v56
  %v158 = vunpack.c.l.b16 %v57
  %v159 = vunpack.c.l.b16 %v58
  %v160 = vunpack.c.l.b16 %v59
  %v161 = vunpack.c.l.b16 %v60
  %v162 = vunpack.c.l.b16 %v61
  %v163 = vunpack.c.l.b16 %v62
  %v164 = vunpack.c.l.b16 %v63
  %v165 = vunpack.c.l.b16 %v64
  %v166 = vunpack.c.l.b16 %v65
  %v167 = vunpack.c.l.b16 %v66
  %v168 = vunpack.c.l.b16 %v67
  %v169 = vunpack.c.l.b16 %v68
  %v170 = vpack.c.b16 %v139, %v138
  %v171 = vpack.c.b16 %v141, %v140
  %v172 = vpack.c.b16 %v143, %v142
  %v173 = vpack.c.b16 %v145, %v144
  %v174 = vpack.c.b16 %v147, %v146
  %v175 = vpack.c.b16 %v149, %v148
  %v176 = vpack.c.b16 %v151, %v150
  %v177 = vpack.c.b16 %v153, %v152
  %v178 = vpack.c.b16 %v155, %v154
  %v179 = vpack.c.b16 %v157, %v156
  %v180 = vpack.c.b16 %v159, %v158
  %v181 = vpack.c.b16 %v161, %v160
  %v182 = vpack.c.b16 %v163, %v162
  %v183 = vpack.c.b16 %v165, %v164
  %v184 = vpack.c.b16 %v167, %v166
  %v185 = vpack.c.b16 %v169, %v168
  %202 = vmatprep.subr.bf16.mxu0 0
  %203 = vmatpush1.bf16.msra.mxu0 %v177
  %204 = vmatprep.subr.bf16.mxu0 0
  %205 = vmatpush1.bf16.msra.mxu0 %v176
  %206 = vmatprep.subr.bf16.mxu0 0
  %207 = vmatpush1.bf16.msra.mxu0 %v175
  %208 = vmatprep.subr.bf16.mxu0 0
  %209 = vmatpush1.bf16.msra.mxu0 %v174
  %210 = vmatprep.subr.bf16.mxu0 0
  %211 = vmatpush1.bf16.msra.mxu0 %v173
  %212 = vmatprep.subr.bf16.mxu0 0
  %213 = vmatpush1.bf16.msra.mxu0 %v172
  %214 = vmatprep.subr.bf16.mxu0 0
  %215 = vmatpush1.bf16.msra.mxu0 %v171
  %216 = vmatprep.subr.bf16.mxu0 0
  %217 = vmatpush1.bf16.msra.mxu0 %v170
  %218 = vmatprep.subr.bf16.mxu0 0
  %219 = vmatpush2.bf16.msra.mxu0 %v185
  %220 = vmatprep.subr.bf16.mxu0 0
  %221 = vmatpush2.bf16.msra.mxu0 %v184
  %222 = vmatprep.subr.bf16.mxu0 0
  %223 = vmatpush2.bf16.msra.mxu0 %v183
  %224 = vmatprep.subr.bf16.mxu0 0
  %225 = vmatpush2.bf16.msra.mxu0 %v182
  %226 = vmatprep.subr.bf16.mxu0 0
  %227 = vmatpush2.bf16.msra.mxu0 %v181
  %228 = vmatprep.subr.bf16.mxu0 0
  %229 = vmatpush2.bf16.msra.mxu0 %v180
  %230 = vmatprep.subr.bf16.mxu0 0
  %231 = vmatpush2.bf16.msra.mxu0 %v179
  %232 = vmatprep.subr.bf16.mxu0 0
  %233 = vmatpush2.bf16.msra.mxu0 %v178
  %234 = vmatprep.mubr.bf16.mxu0 %v91
  %235 = vmatmul.mubr.bf16.gmra.mxu0 %v90
  %v236 = vpop.f32.mrf.mxu0
  %v237 = vadd.f32 0.0, %v236
  %v238 = vpop.f32.mrf.mxu0
  %v239 = vpop.f32.mrf.mxu0
  %v240 = vadd.f32 0.0, %v239
  %v241 = vpop.f32.mrf.mxu0
  %242 = vmatprep.mubr.bf16.mxu0 %v93
  %243 = vmatmul.mubr.bf16.gmra.mxu0 %v92
  %v244 = vpop.f32.mrf.mxu0
  %v245 = vadd.f32 0.0, %v244
  %v246 = vpop.f32.mrf.mxu0
  %v247 = vpop.f32.mrf.mxu0
  %v248 = vadd.f32 0.0, %v247
  %v249 = vpop.f32.mrf.mxu0
  %250 = vmatprep.mubr.bf16.mxu0 %v95
  %251 = vmatmul.mubr.bf16.gmra.mxu0 %v94
  %v252 = vpop.f32.mrf.mxu0
  %v253 = vadd.f32 0.0, %v252
  %v254 = vpop.f32.mrf.mxu0
  %v255 = vpop.f32.mrf.mxu0
  %v256 = vadd.f32 0.0, %v255
  %v257 = vpop.f32.mrf.mxu0
  %258 = vmatprep.mubr.bf16.mxu0 %v97
  %259 = vmatmul.mubr.bf16.gmra.mxu0 %v96
  %v260 = vpop.f32.mrf.mxu0
  %v261 = vadd.f32 0.0, %v260
  %v262 = vpop.f32.mrf.mxu0
  %v263 = vpop.f32.mrf.mxu0
  %v264 = vpop.f32.mrf.mxu0
  %265 = vdwg.mxu0
  %v266 = vadd.f32 %v23, %v237
  %v267 = vadd.f32 %v24, %v240
  %v268 = vadd.f32 %v25, %v245
  %v269 = vadd.f32 %v26, %v248
  %v270 = vadd.f32 %v27, %v253
  %v271 = vadd.f32 %v28, %v256
  %v272 = vadd.f32 %v29, %v261
  %273 = vst [vmem:[#allocation2] sm:$0xff] %v266
  %274 = vst [vmem:[#allocation2 + $0x8] sm:$0xff] %v267
  %275 = vst [vmem:[#allocation2 + $0x10] sm:$0xff] %v268
  %276 = vst [vmem:[#allocation2 + $0x18] sm:$0xff] %v269
  %277 = vst [vmem:[#allocation2 + $0x20] sm:$0xff] %v270
  %278 = vst [vmem:[#allocation2 + $0x28] sm:$0xff] %v271
  %279 = vst [vmem:[#allocation2 + $0x30] sm:$0xff] %v272
  // Predicated region
  $region14: #{_lambda_.29} parent=0 // pred_check
    %p280 = pneg %p12
  $region15: #{_lambda_.29} parent=0 // pred_check_branch
    %282 = sbr.rel (%p280) target = $region17
  $region16: #{_lambda_.29} parent=0 // pred_region
    %v283 = vld [vmem:[#allocation2] sm:$0xff]
    %v284 = vld [vmem:[#allocation2 + $0x8] sm:$0xff]
    %v285 = vld [vmem:[#allocation2 + $0x10] sm:$0xff]
    %v286 = vld [vmem:[#allocation2 + $0x18] sm:$0xff]
    %v287 = vld [vmem:[#allocation2 + $0x20] sm:$0xff]
    %v288 = vld [vmem:[#allocation2 + $0x28] sm:$0xff]
    %v289 = vld [vmem:[#allocation2 + $0x30] sm:$0xff]
    %v290 = vpack.c.bf16 %v284, %v283
    %v291 = vpack.c.bf16 %v286, %v285
    %v292 = vpack.c.bf16 %v288, %v287
    %v293 = vpack.c.bf16 %v289, %v289
    %v298 = vunpack.c.l.b16 %v290
    %v299 = vunpack.c.h.b16 %v290
    %v300 = vunpack.c.l.b16 %v291
    %v301 = vunpack.c.h.b16 %v291
    %v302 = vunpack.c.l.b16 %v292
    %v303 = vunpack.c.h.b16 %v292
    %v304 = vunpack.c.l.b16 %v293
    %v305 = vpack.c.b16 %v298, %v298
    %v306 = vpack.c.b16 %v299, %v299
    %v307 = vpack.c.b16 %v300, %v300
    %v308 = vpack.c.b16 %v301, %v301
    %v309 = vpack.c.b16 %v302, %v302
    %v310 = vpack.c.b16 %v303, %v303
    %v311 = vpack.c.b16 %v304, %v304
    %319 = vst [vmem:[%s2] sm:$0xf] %v305
    %320 = vst [vmem:[%s2 + $0x4] sm:$0xf] %v306
    %321 = vst [vmem:[%s2 + $0x8] sm:$0xf] %v307
    %322 = vst [vmem:[%s2 + $0xc] sm:$0xf] %v308
    %323 = vst [vmem:[%s2 + $0x10] sm:$0xf] %v309
    %324 = vst [vmem:[%s2 + $0x14] sm:$0xf] %v310
    %325 = vst [vmem:[%s2 + $0x18] sm:$0xf] %v311
  $region17: #{_lambda_.29} parent=0 // pred_fallthru
    _
  // Predicated region
  $region18: #{_lambda_.29} parent=0 // pred_check
    _
  $region19: #{_lambda_.29} parent=0 // pred_check_branch
    %327 = sbr.rel (0) target = $region21
  $region20: #{_lambda_.29} parent=0 // pred_region
    _
  $region21: #{_lambda_.29} parent=0 // pred_fallthru
    _
  // Predicated region
  $region22: #{_lambda_.29} parent=0 // pred_check
    _
  $region23: #{_lambda_.29} parent=0 // pred_check_branch
    %329 = sbr.rel (0) target = $region25
  $region24: #{_lambda_.29} parent=0 // pred_region
    _
  $region25: #{_lambda_.29} parent=0 // pred_fallthru
    _

// kernel: _lambda_.30
$region0: #{_lambda_.30}
  #allocation0 [shape = 'u32[]', space=smem, size = 0x4, offset = 0x4, fixed_abs, tag = 'smem constant byte address 0x4 - core index']
  #allocation1 [shape = 'u32[144,128]{1,0:T(1,128)}', space=vmem, size = 0x12000, scoped, tag = 'internal scratch']
  %s0 = inlined_call_operand.vmem [shape: bf16[16,128], index: 0, kind: input, shape index: {}]
  %s1 = inlined_call_operand.vmem [shape: f32[1,128], index: 1, kind: input, shape index: {}]
  %s2 = inlined_call_operand.vmem [shape: f32[1,128], index: 2, kind: input, shape index: {}]
  %s3 = inlined_call_operand.vmem [shape: bf16[16,128], index: 3, kind: output, shape index: {}]
  %s4 = sld [smem:[#allocation0]]
  $region22: #{_lambda_.30} parent=0
    _
  %s6 = ssub.s32 1, %s4
  %s7 = scalar_select 0, %s6, %s4
  // Predicated region
  $region2: #{_lambda_.30} parent=0 // pred_check
    _
  $region3: #{_lambda_.30} parent=0 // pred_check_branch
    %9 = sbr.rel (0) target = $region5
  $region4: #{_lambda_.30} parent=0 // pred_region
    _
  $region5: #{_lambda_.30} parent=0 // pred_fallthru
    _
  // Predicated region
  $region6: #{_lambda_.30} parent=0 // pred_check
    _
  $region7: #{_lambda_.30} parent=0 // pred_check_branch
    %11 = sbr.rel (0) target = $region9
  $region8: #{_lambda_.30} parent=0 // pred_region
    _
  $region9: #{_lambda_.30} parent=0 // pred_fallthru
    _
  // Predicated region
  $region10: #{_lambda_.30} parent=0 // pred_check
    _
  $region11: #{_lambda_.30} parent=0 // pred_check_branch
    %13 = sbr.rel (0) target = $region13
  $region12: #{_lambda_.30} parent=0 // pred_region
    _
  $region13: #{_lambda_.30} parent=0 // pred_fallthru
    _
  %v14 = vld [vmem:[%s0] sm:$0xf]
  %v15 = vld [vmem:[%s0 + $0x4] sm:$0xf]
  %v16 = vunpack.c.l.bf16 %v14
  %v17 = vunpack.c.l.bf16 %v15
  %v18 = vld [vmem:[%s1] sm:$0x1]
  %v20 = vlaneseq
  %v21 = vshrl.u32 %v20, 7
  %v22 = vsub.s32 0, %v21
  %v23 = vrot.slane %v18, %v22
  %v25 = vmul.f32 %v16, %v23
  %v26 = vmul.f32 %v17, %v23
  %v27 = vld [vmem:[%s2] sm:$0x1]
  %v29 = vlaneseq
  %v30 = vshrl.u32 %v29, 7
  %v31 = vsub.s32 0, %v30
  %v32 = vrot.slane %v27, %v31
  %v34 = vadd.f32 %v25, %v32
  %v35 = vadd.f32 %v26, %v32
  %v36 = vmul.f32 %v34, 0.0
  %v37 = vmul.f32 %v35, 0.0
  %v38 = vmax.f32 %v34, %v36
  %v39 = vmax.f32 %v35, %v37
  %v40 = vpack.c.bf16 %v39, %v38
  %v42 = vunpack.c.l.b16 %v40
  %v43 = vunpack.c.h.b16 %v40
  %v44 = vpack.c.b16 %v42, %v42
  %v45 = vpack.c.b16 %v43, %v43
  %48 = vst [vmem:[%s3] sm:$0xf] %v44
  %49 = vst [vmem:[%s3 + $0x4] sm:$0xf] %v45
  // Predicated region
  $region14: #{_lambda_.30} parent=0 // pred_check
    _
  $region15: #{_lambda_.30} parent=0 // pred_check_branch
    %51 = sbr.rel (0) target = $region17
  $region16: #{_lambda_.30} parent=0 // pred_region
    _
  $region17: #{_lambda_.30} parent=0 // pred_fallthru
    _
  // Predicated region
  $region18: #{_lambda_.30} parent=0 // pred_check
    _
  $region19: #{_lambda_.30} parent=0 // pred_check_branch
    %53 = sbr.rel (0) target = $region21
  $region20: #{_lambda_.30} parent=0 // pred_region
    _
  $region21: #{_lambda_.30} parent=0 // pred_fallthru
    _

// kernel: tile.133
$region0: #{tile.133}
  #allocation0 [shape = 's32[1]{0}', space=sflag, size = 0x4, scoped, tag = 'scoped memory for tile.133']
  %s0 = inlined_call_operand.vmem [shape: f32[8], index: 0, kind: input, shape index: {}]
  %s1 = inlined_call_operand.vmem [shape: f32[16,8], index: 1, kind: output, shape index: {}]
  // Predicated region
  $region2: #{tile.133} parent=0 // pred_check
    _
  $region3: #{tile.133} parent=0 // pred_check_branch
    %3 = sbr.rel (0) target = $region5
  $region4: #{tile.133} parent=0 // pred_region
    _
  $region5: #{tile.133} parent=0 // pred_fallthru
    _
  %v4 = vld [vmem:[%s0] ss:$0 sm:$0xff]
  %5 = vst [vmem:[%s1] sm:$0xff] %v4
  %s6 = scalar_lea.vmem %s1, 8
  %7 = vst [vmem:[%s6] sm:$0xff] %v4

// kernel: tile.134
$region0: #{tile.134}
  %s0 = inlined_call_operand.vmem [shape: f32[16,8], index: 0, kind: input, shape index: {}]
  %s1 = inlined_call_operand.vmem [shape: f32[1,128], index: 1, kind: output, shape index: {}]
  $region1: #{tile.134} parent=0
    #allocation0 [shape = 'u8[4096]{0}', space=vmem, size = 0x1000, scoped, tag = 'scoped mem for output reshape']
    %v2 = vld [vmem:[%s0] sm:$0x1]
    %vm3 = vcmask 64512
    %4 = vst.msk [vmem:[#allocation0] sm:$0x1] %vm3, %v2
    %s5 = scalar_lea.vmem %s0, 15
    %v6 = vld [vmem:[%s5] sm:$0x1]
    %7 = vrot.lane.b32.xlu0 %v6, 120
    %v8 = vpop.permute.xlu0 %7
    %vm9 = vcmask 1048512
    %10 = vst.msk [vmem:[#allocation0] sm:$0x1] %vm9, %v8
    %s11 = scalar_lea.vmem %s0, 14
    %v12 = vld [vmem:[%s11] sm:$0x1]
    %13 = vrot.lane.b32.xlu0 %v12, 112
    %v14 = vpop.permute.xlu0 %13
    %vm15 = vcmask 982912
    %16 = vst.msk [vmem:[#allocation0] sm:$0x1] %vm15, %v14
    %s17 = scalar_lea.vmem %s0, 13
    %v18 = vld [vmem:[%s17] sm:$0x1]
    %19 = vrot.lane.b32.xlu0 %v18, 104
    %v20 = vpop.permute.xlu0 %19
    %vm21 = vcmask 917312
    %22 = vst.msk [vmem:[#allocation0] sm:$0x1] %vm21, %v20
    %s23 = scalar_lea.vmem %s0, 12
    %v24 = vld [vmem:[%s23] sm:$0x1]
    %25 = vrot.lane.b32.xlu0 %v24, 96
    %v26 = vpop.permute.xlu0 %25
    %vm27 = vcmask 851712
    %28 = vst.msk [vmem:[#allocation0] sm:$0x1] %vm27, %v26
    %s29 = scalar_lea.vmem %s0, 11
    %v30 = vld [vmem:[%s29] sm:$0x1]
    %31 = vrot.lane.b32.xlu0 %v30, 88
    %v32 = vpop.permute.xlu0 %31
    %vm33 = vcmask 786112
    %34 = vst.msk [vmem:[#allocation0] sm:$0x1] %vm33, %v32
    %s35 = scalar_lea.vmem %s0, 10
    %v36 = vld [vmem:[%s35] sm:$0x1]
    %37 = vrot.lane.b32.xlu0 %v36, 80
    %v38 = vpop.permute.xlu0 %37
    %vm39 = vcmask 720512
    %40 = vst.msk [vmem:[#allocation0] sm:$0x1] %vm39, %v38
    %s41 = scalar_lea.vmem %s0, 9
    %v42 = vld [vmem:[%s41] sm:$0x1]
    %43 = vrot.lane.b32.xlu0 %v42, 72
    %v44 = vpop.permute.xlu0 %43
    %vm45 = vcmask 654912
    %46 = vst.msk [vmem:[#allocation0] sm:$0x1] %vm45, %v44
    %s47 = scalar_lea.vmem %s0, 8
    %v48 = vld [vmem:[%s47] sm:$0x1]
    %49 = vrot.lane.b32.xlu0 %v48, 64
    %v50 = vpop.permute.xlu0 %49
    %vm51 = vcmask 589312
    %52 = vst.msk [vmem:[#allocation0] sm:$0x1] %vm51, %v50
    %s53 = scalar_lea.vmem %s0, 7
    %v54 = vld [vmem:[%s53] sm:$0x1]
    %55 = vrot.lane.b32.xlu0 %v54, 56
    %v56 = vpop.permute.xlu0 %55
    %vm57 = vcmask 523712
    %58 = vst.msk [vmem:[#allocation0] sm:$0x1] %vm57, %v56
    %s59 = scalar_lea.vmem %s0, 6
    %v60 = vld [vmem:[%s59] sm:$0x1]
    %61 = vrot.lane.b32.xlu0 %v60, 48
    %v62 = vpop.permute.xlu0 %61
    %vm63 = vcmask 458112
    %64 = vst.msk [vmem:[#allocation0] sm:$0x1] %vm63, %v62
    %s65 = scalar_lea.vmem %s0, 5
    %v66 = vld [vmem:[%s65] sm:$0x1]
    %67 = vrot.lane.b32.xlu0 %v66, 40
    %v68 = vpop.permute.xlu0 %67
    %vm69 = vcmask 392512
    %70 = vst.msk [vmem:[#allocation0] sm:$0x1] %vm69, %v68
    %s71 = scalar_lea.vmem %s0, 4
    %v72 = vld [vmem:[%s71] sm:$0x1]
    %73 = vrot.lane.b32.xlu0 %v72, 32
    %v74 = vpop.permute.xlu0 %73
    %vm75 = vcmask 326912
    %76 = vst.msk [vmem:[#allocation0] sm:$0x1] %vm75, %v74
    %s77 = scalar_lea.vmem %s0, 3
    %v78 = vld [vmem:[%s77] sm:$0x1]
    %79 = vrot.lane.b32.xlu0 %v78, 24
    %v80 = vpop.permute.xlu0 %79
    %vm81 = vcmask 261312
    %82 = vst.msk [vmem:[#allocation0] sm:$0x1] %vm81, %v80
    %s83 = scalar_lea.vmem %s0, 2
    %v84 = vld [vmem:[%s83] sm:$0x1]
    %85 = vrot.lane.b32.xlu0 %v84, 16
    %v86 = vpop.permute.xlu0 %85
    %vm87 = vcmask 195712
    %88 = vst.msk [vmem:[#allocation0] sm:$0x1] %vm87, %v86
    %s89 = scalar_lea.vmem %s0, 1
    %v90 = vld [vmem:[%s89] sm:$0x1]
    %91 = vrot.lane.b32.xlu0 %v90, 8
    %v92 = vpop.permute.xlu0 %91
    %vm93 = vcmask 130112
    %94 = vst.msk [vmem:[#allocation0] sm:$0x1] %vm93, %v92
    %s96 = sshll.u32 1, 1
    %s97 = ssub.s32 %s96, 1
    %v99 = vld [vmem:[#allocation0] sm:%s97]
    %s100 = sshll.u32 1, 1
    %s101 = ssub.s32 %s100, 1
    %102 = vst [vmem:[%s1] sm:%s101] %v99

// kernel: _lambda_.31
$region0: #{_lambda_.31}
  #allocation0 [shape = 'u32[]', space=smem, size = 0x4, offset = 0x4, fixed_abs, tag = 'smem constant byte address 0x4 - core index']
  #allocation1 [shape = 'u32[144,128]{1,0:T(1,128)}', space=vmem, size = 0x12000, scoped, tag = 'internal scratch']
  #allocation2 [shape = 'f32[168,128]{1,0:T(8,128)}', space=vmem, size = 0x15000, scoped, tag = 'scratch operand']
  %s0 = inlined_call_operand.vmem [shape: bf16[168,128], index: 0, kind: input, shape index: {}]
  %s1 = inlined_call_operand.vmem [shape: bf16[128,128], index: 1, kind: input, shape index: {}]
  %s2 = inlined_call_operand.vmem [shape: bf16[168,128], index: 2, kind: output, shape index: {}]
  %s3 = sld [smem:[#allocation0]]
  $region26: #{_lambda_.31} parent=0
    _
  %s5 = ssub.s32 1, %s3
  %s6 = scalar_select 0, %s5, %s3
  // Predicated region
  $region2: #{_lambda_.31} parent=0 // pred_check
    _
  $region3: #{_lambda_.31} parent=0 // pred_check_branch
    %8 = sbr.rel (0) target = $region5
  $region4: #{_lambda_.31} parent=0 // pred_region
    _
  $region5: #{_lambda_.31} parent=0 // pred_fallthru
    _
  // Predicated region
  $region6: #{_lambda_.31} parent=0 // pred_check
    _
  $region7: #{_lambda_.31} parent=0 // pred_check_branch
    %10 = sbr.rel (0) target = $region9
  $region8: #{_lambda_.31} parent=0 // pred_region
    _
  $region9: #{_lambda_.31} parent=0 // pred_fallthru
    _
  %p12 = scmp.eq.s32.totalorder 0, 0
  // Predicated region
  $region10: #{_lambda_.31} parent=0 // pred_check
    %p13 = pneg %p12
  $region11: #{_lambda_.31} parent=0 // pred_check_branch
    %15 = sbr.rel (%p13) target = $region13
  $region12: #{_lambda_.31} parent=0 // pred_region
    %16 = vst [vmem:[#allocation2] sm:$0xff] 0.0
    %17 = vst [vmem:[#allocation2 + $0x8] sm:$0xff] 0.0
    %18 = vst [vmem:[#allocation2 + $0x10] sm:$0xff] 0.0
    %19 = vst [vmem:[#allocation2 + $0x18] sm:$0xff] 0.0
    %20 = vst [vmem:[#allocation2 + $0x20] sm:$0xff] 0.0
    %21 = vst [vmem:[#allocation2 + $0x28] sm:$0xff] 0.0
    %22 = vst [vmem:[#allocation2 + $0x30] sm:$0xff] 0.0
    %23 = vst [vmem:[#allocation2 + $0x38] sm:$0xff] 0.0
    %24 = vst [vmem:[#allocation2 + $0x40] sm:$0xff] 0.0
    %25 = vst [vmem:[#allocation2 + $0x48] sm:$0xff] 0.0
    %26 = vst [vmem:[#allocation2 + $0x50] sm:$0xff] 0.0
    %27 = vst [vmem:[#allocation2 + $0x58] sm:$0xff] 0.0
    %28 = vst [vmem:[#allocation2 + $0x60] sm:$0xff] 0.0
    %29 = vst [vmem:[#allocation2 + $0x68] sm:$0xff] 0.0
    %30 = vst [vmem:[#allocation2 + $0x70] sm:$0xff] 0.0
    %31 = vst [vmem:[#allocation2 + $0x78] sm:$0xff] 0.0
    %32 = vst [vmem:[#allocation2 + $0x80] sm:$0xff] 0.0
    %33 = vst [vmem:[#allocation2 + $0x88] sm:$0xff] 0.0
    %34 = vst [vmem:[#allocation2 + $0x90] sm:$0xff] 0.0
    %35 = vst [vmem:[#allocation2 + $0x98] sm:$0xff] 0.0
    %36 = vst [vmem:[#allocation2 + $0xa0] sm:$0xff] 0.0
  $region13: #{_lambda_.31} parent=0 // pred_fallthru
    _
  %v37 = vld [vmem:[#allocation2] sm:$0xff]
  %v38 = vld [vmem:[#allocation2 + $0x8] sm:$0xff]
  %v39 = vld [vmem:[#allocation2 + $0x10] sm:$0xff]
  %v40 = vld [vmem:[#allocation2 + $0x18] sm:$0xff]
  %v41 = vld [vmem:[#allocation2 + $0x20] sm:$0xff]
  %v42 = vld [vmem:[#allocation2 + $0x28] sm:$0xff]
  %v43 = vld [vmem:[#allocation2 + $0x30] sm:$0xff]
  %v44 = vld [vmem:[#allocation2 + $0x38] sm:$0xff]
  %v45 = vld [vmem:[#allocation2 + $0x40] sm:$0xff]
  %v46 = vld [vmem:[#allocation2 + $0x48] sm:$0xff]
  %v47 = vld [vmem:[#allocation2 + $0x50] sm:$0xff]
  %v48 = vld [vmem:[#allocation2 + $0x58] sm:$0xff]
  %v49 = vld [vmem:[#allocation2 + $0x60] sm:$0xff]
  %v50 = vld [vmem:[#allocation2 + $0x68] sm:$0xff]
  %v51 = vld [vmem:[#allocation2 + $0x70] sm:$0xff]
  %v52 = vld [vmem:[#allocation2 + $0x78] sm:$0xff]
  %v53 = vld [vmem:[#allocation2 + $0x80] sm:$0xff]
  %v54 = vld [vmem:[#allocation2 + $0x88] sm:$0xff]
  %v55 = vld [vmem:[#allocation2 + $0x90] sm:$0xff]
  %v56 = vld [vmem:[#allocation2 + $0x98] sm:$0xff]
  %v57 = vld [vmem:[#allocation2 + $0xa0] sm:$0xff]
  %v58 = vld [vmem:[%s0] sm:$0xf]
  %v59 = vld [vmem:[%s0 + $0x4] sm:$0xf]
  %v60 = vld [vmem:[%s0 + $0x8] sm:$0xf]
  %v61 = vld [vmem:[%s0 + $0xc] sm:$0xf]
  %v62 = vld [vmem:[%s0 + $0x10] sm:$0xf]
  %v63 = vld [vmem:[%s0 + $0x14] sm:$0xf]
  %v64 = vld [vmem:[%s0 + $0x18] sm:$0xf]
  %v65 = vld [vmem:[%s0 + $0x1c] sm:$0xf]
  %v66 = vld [vmem:[%s0 + $0x20] sm:$0xf]
  %v67 = vld [vmem:[%s0 + $0x24] sm:$0xf]
  %v68 = vld [vmem:[%s0 + $0x28] sm:$0xf]
  %v69 = vld [vmem:[%s0 + $0x2c] sm:$0xf]
  %v70 = vld [vmem:[%s0 + $0x30] sm:$0xf]
  %v71 = vld [vmem:[%s0 + $0x34] sm:$0xf]
  %v72 = vld [vmem:[%s0 + $0x38] sm:$0xf]
  %v73 = vld [vmem:[%s0 + $0x3c] sm:$0xf]
  %v74 = vld [vmem:[%s0 + $0x40] sm:$0xf]
  %v75 = vld [vmem:[%s0 + $0x44] sm:$0xf]
  %v76 = vld [vmem:[%s0 + $0x48] sm:$0xf]
  %v77 = vld [vmem:[%s0 + $0x4c] sm:$0xf]
  %v78 = vld [vmem:[%s0 + $0x50] sm:$0xf]
  %v79 = vld [vmem:[%s1] sm:$0xf]
  %v80 = vld [vmem:[%s1 + $0x4] sm:$0xf]
  %v81 = vld [vmem:[%s1 + $0x8] sm:$0xf]
  %v82 = vld [vmem:[%s1 + $0xc] sm:$0xf]
  %v83 = vld [vmem:[%s1 + $0x10] sm:$0xf]
  %v84 = vld [vmem:[%s1 + $0x14] sm:$0xf]
  %v85 = vld [vmem:[%s1 + $0x18] sm:$0xf]
  %v86 = vld [vmem:[%s1 + $0x1c] sm:$0xf]
  %v87 = vld [vmem:[%s1 + $0x20] sm:$0xf]
  %v88 = vld [vmem:[%s1 + $0x24] sm:$0xf]
  %v89 = vld [vmem:[%s1 + $0x28] sm:$0xf]
  %v90 = vld [vmem:[%s1 + $0x2c] sm:$0xf]
  %v91 = vld [vmem:[%s1 + $0x30] sm:$0xf]
  %v92 = vld [vmem:[%s1 + $0x34] sm:$0xf]
  %v93 = vld [vmem:[%s1 + $0x38] sm:$0xf]
  %v94 = vld [vmem:[%s1 + $0x3c] sm:$0xf]
  %v116 = vunpack.c.l.b16 %v58
  %v117 = vunpack.c.l.b16 %v59
  %v118 = vunpack.c.l.b16 %v60
  %v119 = vunpack.c.l.b16 %v61
  %v120 = vunpack.c.l.b16 %v62
  %v121 = vunpack.c.l.b16 %v63
  %v122 = vunpack.c.l.b16 %v64
  %v123 = vunpack.c.l.b16 %v65
  %v124 = vunpack.c.l.b16 %v66
  %v125 = vunpack.c.l.b16 %v67
  %v126 = vunpack.c.l.b16 %v68
  %v127 = vunpack.c.l.b16 %v69
  %v128 = vunpack.c.l.b16 %v70
  %v129 = vunpack.c.l.b16 %v71
  %v130 = vunpack.c.l.b16 %v72
  %v131 = vunpack.c.l.b16 %v73
  %v132 = vunpack.c.l.b16 %v74
  %v133 = vunpack.c.l.b16 %v75
  %v134 = vunpack.c.l.b16 %v76
  %v135 = vunpack.c.l.b16 %v77
  %v136 = vunpack.c.l.b16 %v78
  %v137 = vpack.c.b16 %v117, %v116
  %v138 = vpack.c.b16 %v119, %v118
  %v139 = vpack.c.b16 %v121, %v120
  %v140 = vpack.c.b16 %v123, %v122
  %v141 = vpack.c.b16 %v125, %v124
  %v142 = vpack.c.b16 %v127, %v126
  %v143 = vpack.c.b16 %v129, %v128
  %v144 = vpack.c.b16 %v131, %v130
  %v145 = vpack.c.b16 %v133, %v132
  %v146 = vpack.c.b16 %v135, %v134
  %v147 = vpack.c.b16 %v136, %v136
  %v175 = vunpack.c.l.b16 %v79
  %v176 = vunpack.c.l.b16 %v80
  %v177 = vunpack.c.l.b16 %v81
  %v178 = vunpack.c.l.b16 %v82
  %v179 = vunpack.c.l.b16 %v83
  %v180 = vunpack.c.l.b16 %v84
  %v181 = vunpack.c.l.b16 %v85
  %v182 = vunpack.c.l.b16 %v86
  %v183 = vunpack.c.l.b16 %v87
  %v184 = vunpack.c.l.b16 %v88
  %v185 = vunpack.c.l.b16 %v89
  %v186 = vunpack.c.l.b16 %v90
  %v187 = vunpack.c.l.b16 %v91
  %v188 = vunpack.c.l.b16 %v92
  %v189 = vunpack.c.l.b16 %v93
  %v190 = vunpack.c.l.b16 %v94
  %v191 = vpack.c.b16 %v176, %v175
  %v192 = vpack.c.b16 %v178, %v177
  %v193 = vpack.c.b16 %v180, %v179
  %v194 = vpack.c.b16 %v182, %v181
  %v195 = vpack.c.b16 %v184, %v183
  %v196 = vpack.c.b16 %v186, %v185
  %v197 = vpack.c.b16 %v188, %v187
  %v198 = vpack.c.b16 %v190, %v189
  %207 = vmatprep.subr.bf16.mxu0 0
  %208 = vmatpush1.bf16.msra.mxu0 %v198
  %209 = vmatprep.subr.bf16.mxu0 0
  %210 = vmatpush1.bf16.msra.mxu0 %v197
  %211 = vmatprep.subr.bf16.mxu0 0
  %212 = vmatpush1.bf16.msra.mxu0 %v196
  %213 = vmatprep.subr.bf16.mxu0 0
  %214 = vmatpush1.bf16.msra.mxu0 %v195
  %215 = vmatprep.subr.bf16.mxu0 0
  %216 = vmatpush1.bf16.msra.mxu0 %v194
  %217 = vmatprep.subr.bf16.mxu0 0
  %218 = vmatpush1.bf16.msra.mxu0 %v193
  %219 = vmatprep.subr.bf16.mxu0 0
  %220 = vmatpush1.bf16.msra.mxu0 %v192
  %221 = vmatprep.subr.bf16.mxu0 0
  %222 = vmatpush1.bf16.msra.mxu0 %v191
  %223 = vmatprep.subr.bf16.mxu0 0
  %224 = vmatpush2.bf16.msra.mxu0 0
  %225 = vmatprep.subr.bf16.mxu0 0
  %226 = vmatpush2.bf16.msra.mxu0 0
  %227 = vmatprep.subr.bf16.mxu0 0
  %228 = vmatpush2.bf16.msra.mxu0 0
  %229 = vmatprep.subr.bf16.mxu0 0
  %230 = vmatpush2.bf16.msra.mxu0 0
  %231 = vmatprep.subr.bf16.mxu0 0
  %232 = vmatpush2.bf16.msra.mxu0 0
  %233 = vmatprep.subr.bf16.mxu0 0
  %234 = vmatpush2.bf16.msra.mxu0 0
  %235 = vmatprep.subr.bf16.mxu0 0
  %236 = vmatpush2.bf16.msra.mxu0 0
  %237 = vmatprep.subr.bf16.mxu0 0
  %238 = vmatpush2.bf16.msra.mxu0 0
  %239 = vmatprep.mubr.bf16.mxu0 0
  %240 = vmatmul.mubr.bf16.gmra.mxu0 %v137
  %v241 = vpop.f32.mrf.mxu0
  %v242 = vadd.f32 0.0, %v241
  %v243 = vpop.f32.mrf.mxu0
  %v244 = vpop.f32.mrf.mxu0
  %v245 = vadd.f32 0.0, %v244
  %v246 = vpop.f32.mrf.mxu0
  %247 = vmatprep.mubr.bf16.mxu0 0
  %248 = vmatmul.mubr.bf16.gmra.mxu0 %v138
  %v249 = vpop.f32.mrf.mxu0
  %v250 = vadd.f32 0.0, %v249
  %v251 = vpop.f32.mrf.mxu0
  %v252 = vpop.f32.mrf.mxu0
  %v253 = vadd.f32 0.0, %v252
  %v254 = vpop.f32.mrf.mxu0
  %255 = vmatprep.mubr.bf16.mxu0 0
  %256 = vmatmul.mubr.bf16.gmra.mxu0 %v139
  %v257 = vpop.f32.mrf.mxu0
  %v258 = vadd.f32 0.0, %v257
  %v259 = vpop.f32.mrf.mxu0
  %v260 = vpop.f32.mrf.mxu0
  %v261 = vadd.f32 0.0, %v260
  %v262 = vpop.f32.mrf.mxu0
  %263 = vmatprep.mubr.bf16.mxu0 0
  %264 = vmatmul.mubr.bf16.gmra.mxu0 %v140
  %v265 = vpop.f32.mrf.mxu0
  %v266 = vadd.f32 0.0, %v265
  %v267 = vpop.f32.mrf.mxu0
  %v268 = vpop.f32.mrf.mxu0
  %v269 = vadd.f32 0.0, %v268
  %v270 = vpop.f32.mrf.mxu0
  %271 = vmatprep.mubr.bf16.mxu0 0
  %272 = vmatmul.mubr.bf16.gmra.mxu0 %v141
  %v273 = vpop.f32.mrf.mxu0
  %v274 = vadd.f32 0.0, %v273
  %v275 = vpop.f32.mrf.mxu0
  %v276 = vpop.f32.mrf.mxu0
  %v277 = vadd.f32 0.0, %v276
  %v278 = vpop.f32.mrf.mxu0
  %279 = vmatprep.mubr.bf16.mxu0 0
  %280 = vmatmul.mubr.bf16.gmra.mxu0 %v142
  %v281 = vpop.f32.mrf.mxu0
  %v282 = vadd.f32 0.0, %v281
  %v283 = vpop.f32.mrf.mxu0
  %v284 = vpop.f32.mrf.mxu0
  %v285 = vadd.f32 0.0, %v284
  %v286 = vpop.f32.mrf.mxu0
  %287 = vmatprep.mubr.bf16.mxu0 0
  %288 = vmatmul.mubr.bf16.gmra.mxu0 %v143
  %v289 = vpop.f32.mrf.mxu0
  %v290 = vadd.f32 0.0, %v289
  %v291 = vpop.f32.mrf.mxu0
  %v292 = vpop.f32.mrf.mxu0
  %v293 = vadd.f32 0.0, %v292
  %v294 = vpop.f32.mrf.mxu0
  %295 = vmatprep.mubr.bf16.mxu0 0
  %296 = vmatmul.mubr.bf16.gmra.mxu0 %v144
  %v297 = vpop.f32.mrf.mxu0
  %v298 = vadd.f32 0.0, %v297
  %v299 = vpop.f32.mrf.mxu0
  %v300 = vpop.f32.mrf.mxu0
  %v301 = vadd.f32 0.0, %v300
  %v302 = vpop.f32.mrf.mxu0
  %303 = vmatprep.mubr.bf16.mxu0 0
  %304 = vmatmul.mubr.bf16.gmra.mxu0 %v145
  %v305 = vpop.f32.mrf.mxu0
  %v306 = vadd.f32 0.0, %v305
  %v307 = vpop.f32.mrf.mxu0
  %v308 = vpop.f32.mrf.mxu0
  %v309 = vadd.f32 0.0, %v308
  %v310 = vpop.f32.mrf.mxu0
  %311 = vmatprep.mubr.bf16.mxu0 0
  %312 = vmatmul.mubr.bf16.gmra.mxu0 %v146
  %v313 = vpop.f32.mrf.mxu0
  %v314 = vadd.f32 0.0, %v313
  %v315 = vpop.f32.mrf.mxu0
  %v316 = vpop.f32.mrf.mxu0
  %v317 = vadd.f32 0.0, %v316
  %v318 = vpop.f32.mrf.mxu0
  %319 = vmatprep.mubr.bf16.mxu0 0
  %320 = vmatmul.mubr.bf16.gmra.mxu0 %v147
  %v321 = vpop.f32.mrf.mxu0
  %v322 = vadd.f32 0.0, %v321
  %v323 = vpop.f32.mrf.mxu0
  %v324 = vpop.f32.mrf.mxu0
  %v325 = vpop.f32.mrf.mxu0
  %326 = vdwg.mxu0
  %v327 = vadd.f32 %v37, %v242
  %v328 = vadd.f32 %v38, %v245
  %v329 = vadd.f32 %v39, %v250
  %v330 = vadd.f32 %v40, %v253
  %v331 = vadd.f32 %v41, %v258
  %v332 = vadd.f32 %v42, %v261
  %v333 = vadd.f32 %v43, %v266
  %v334 = vadd.f32 %v44, %v269
  %v335 = vadd.f32 %v45, %v274
  %v336 = vadd.f32 %v46, %v277
  %v337 = vadd.f32 %v47, %v282
  %v338 = vadd.f32 %v48, %v285
  %v339 = vadd.f32 %v49, %v290
  %v340 = vadd.f32 %v50, %v293
  %v341 = vadd.f32 %v51, %v298
  %v342 = vadd.f32 %v52, %v301
  %v343 = vadd.f32 %v53, %v306
  %v344 = vadd.f32 %v54, %v309
  %v345 = vadd.f32 %v55, %v314
  %v346 = vadd.f32 %v56, %v317
  %v347 = vadd.f32 %v57, %v322
  %348 = vst [vmem:[#allocation2] sm:$0xff] %v327
  %349 = vst [vmem:[#allocation2 + $0x8] sm:$0xff] %v328
  %350 = vst [vmem:[#allocation2 + $0x10] sm:$0xff] %v329
  %351 = vst [vmem:[#allocation2 + $0x18] sm:$0xff] %v330
  %352 = vst [vmem:[#allocation2 + $0x20] sm:$0xff] %v331
  %353 = vst [vmem:[#allocation2 + $0x28] sm:$0xff] %v332
  %354 = vst [vmem:[#allocation2 + $0x30] sm:$0xff] %v333
  %355 = vst [vmem:[#allocation2 + $0x38] sm:$0xff] %v334
  %356 = vst [vmem:[#allocation2 + $0x40] sm:$0xff] %v335
  %357 = vst [vmem:[#allocation2 + $0x48] sm:$0xff] %v336
  %358 = vst [vmem:[#allocation2 + $0x50] sm:$0xff] %v337
  %359 = vst [vmem:[#allocation2 + $0x58] sm:$0xff] %v338
  %360 = vst [vmem:[#allocation2 + $0x60] sm:$0xff] %v339
  %361 = vst [vmem:[#allocation2 + $0x68] sm:$0xff] %v340
  %362 = vst [vmem:[#allocation2 + $0x70] sm:$0xff] %v341
  %363 = vst [vmem:[#allocation2 + $0x78] sm:$0xff] %v342
  %364 = vst [vmem:[#allocation2 + $0x80] sm:$0xff] %v343
  %365 = vst [vmem:[#allocation2 + $0x88] sm:$0xff] %v344
  %366 = vst [vmem:[#allocation2 + $0x90] sm:$0xff] %v345
  %367 = vst [vmem:[#allocation2 + $0x98] sm:$0xff] %v346
  %368 = vst [vmem:[#allocation2 + $0xa0] sm:$0xff] %v347
  // Predicated region
  $region14: #{_lambda_.31} parent=0 // pred_check
    %p369 = pneg %p12
  $region15: #{_lambda_.31} parent=0 // pred_check_branch
    %371 = sbr.rel (%p369) target = $region17
  $region16: #{_lambda_.31} parent=0 // pred_region
    %v372 = vld [vmem:[#allocation2] sm:$0xff]
    %v373 = vld [vmem:[#allocation2 + $0x8] sm:$0xff]
    %v374 = vld [vmem:[#allocation2 + $0x10] sm:$0xff]
    %v375 = vld [vmem:[#allocation2 + $0x18] sm:$0xff]
    %v376 = vld [vmem:[#allocation2 + $0x20] sm:$0xff]
    %v377 = vld [vmem:[#allocation2 + $0x28] sm:$0xff]
    %v378 = vld [vmem:[#allocation2 + $0x30] sm:$0xff]
    %v379 = vld [vmem:[#allocation2 + $0x38] sm:$0xff]
    %v380 = vld [vmem:[#allocation2 + $0x40] sm:$0xff]
    %v381 = vld [vmem:[#allocation2 + $0x48] sm:$0xff]
    %v382 = vld [vmem:[#allocation2 + $0x50] sm:$0xff]
    %v383 = vld [vmem:[#allocation2 + $0x58] sm:$0xff]
    %v384 = vld [vmem:[#allocation2 + $0x60] sm:$0xff]
    %v385 = vld [vmem:[#allocation2 + $0x68] sm:$0xff]
    %v386 = vld [vmem:[#allocation2 + $0x70] sm:$0xff]
    %v387 = vld [vmem:[#allocation2 + $0x78] sm:$0xff]
    %v388 = vld [vmem:[#allocation2 + $0x80] sm:$0xff]
    %v389 = vld [vmem:[#allocation2 + $0x88] sm:$0xff]
    %v390 = vld [vmem:[#allocation2 + $0x90] sm:$0xff]
    %v391 = vld [vmem:[#allocation2 + $0x98] sm:$0xff]
    %v392 = vld [vmem:[#allocation2 + $0xa0] sm:$0xff]
    %v393 = vpack.c.bf16 %v373, %v372
    %v394 = vpack.c.bf16 %v375, %v374
    %v395 = vpack.c.bf16 %v377, %v376
    %v396 = vpack.c.bf16 %v379, %v378
    %v397 = vpack.c.bf16 %v381, %v380
    %v398 = vpack.c.bf16 %v383, %v382
    %v399 = vpack.c.bf16 %v385, %v384
    %v400 = vpack.c.bf16 %v387, %v386
    %v401 = vpack.c.bf16 %v389, %v388
    %v402 = vpack.c.bf16 %v391, %v390
    %v403 = vpack.c.bf16 %v392, %v392
    %v415 = vunpack.c.l.b16 %v393
    %v416 = vunpack.c.h.b16 %v393
    %v417 = vunpack.c.l.b16 %v394
    %v418 = vunpack.c.h.b16 %v394
    %v419 = vunpack.c.l.b16 %v395
    %v420 = vunpack.c.h.b16 %v395
    %v421 = vunpack.c.l.b16 %v396
    %v422 = vunpack.c.h.b16 %v396
    %v423 = vunpack.c.l.b16 %v397
    %v424 = vunpack.c.h.b16 %v397
    %v425 = vunpack.c.l.b16 %v398
    %v426 = vunpack.c.h.b16 %v398
    %v427 = vunpack.c.l.b16 %v399
    %v428 = vunpack.c.h.b16 %v399
    %v429 = vunpack.c.l.b16 %v400
    %v430 = vunpack.c.h.b16 %v400
    %v431 = vunpack.c.l.b16 %v401
    %v432 = vunpack.c.h.b16 %v401
    %v433 = vunpack.c.l.b16 %v402
    %v434 = vunpack.c.h.b16 %v402
    %v435 = vunpack.c.l.b16 %v403
    %v436 = vpack.c.b16 %v415, %v415
    %v437 = vpack.c.b16 %v416, %v416
    %v438 = vpack.c.b16 %v417, %v417
    %v439 = vpack.c.b16 %v418, %v418
    %v440 = vpack.c.b16 %v419, %v419
    %v441 = vpack.c.b16 %v420, %v420
    %v442 = vpack.c.b16 %v421, %v421
    %v443 = vpack.c.b16 %v422, %v422
    %v444 = vpack.c.b16 %v423, %v423
    %v445 = vpack.c.b16 %v424, %v424
    %v446 = vpack.c.b16 %v425, %v425
    %v447 = vpack.c.b16 %v426, %v426
    %v448 = vpack.c.b16 %v427, %v427
    %v449 = vpack.c.b16 %v428, %v428
    %v450 = vpack.c.b16 %v429, %v429
    %v451 = vpack.c.b16 %v430, %v430
    %v452 = vpack.c.b16 %v431, %v431
    %v453 = vpack.c.b16 %v432, %v432
    %v454 = vpack.c.b16 %v433, %v433
    %v455 = vpack.c.b16 %v434, %v434
    %v456 = vpack.c.b16 %v435, %v435
    %478 = vst [vmem:[%s2] sm:$0xf] %v436
    %479 = vst [vmem:[%s2 + $0x4] sm:$0xf] %v437
    %480 = vst [vmem:[%s2 + $0x8] sm:$0xf] %v438
    %481 = vst [vmem:[%s2 + $0xc] sm:$0xf] %v439
    %482 = vst [vmem:[%s2 + $0x10] sm:$0xf] %v440
    %483 = vst [vmem:[%s2 + $0x14] sm:$0xf] %v441
    %484 = vst [vmem:[%s2 + $0x18] sm:$0xf] %v442
    %485 = vst [vmem:[%s2 + $0x1c] sm:$0xf] %v443
    %486 = vst [vmem:[%s2 + $0x20] sm:$0xf] %v444
    %487 = vst [vmem:[%s2 + $0x24] sm:$0xf] %v445
    %488 = vst [vmem:[%s2 + $0x28] sm:$0xf] %v446
    %489 = vst [vmem:[%s2 + $0x2c] sm:$0xf] %v447
    %490 = vst [vmem:[%s2 + $0x30] sm:$0xf] %v448
    %491 = vst [vmem:[%s2 + $0x34] sm:$0xf] %v449
    %492 = vst [vmem:[%s2 + $0x38] sm:$0xf] %v450
    %493 = vst [vmem:[%s2 + $0x3c] sm:$0xf] %v451
    %494 = vst [vmem:[%s2 + $0x40] sm:$0xf] %v452
    %495 = vst [vmem:[%s2 + $0x44] sm:$0xf] %v453
    %496 = vst [vmem:[%s2 + $0x48] sm:$0xf] %v454
    %497 = vst [vmem:[%s2 + $0x4c] sm:$0xf] %v455
    %498 = vst [vmem:[%s2 + $0x50] sm:$0xf] %v456
  $region17: #{_lambda_.31} parent=0 // pred_fallthru
    _
  // Predicated region
  $region18: #{_lambda_.31} parent=0 // pred_check
    _
  $region19: #{_lambda_.31} parent=0 // pred_check_branch
    %500 = sbr.rel (0) target = $region21
  $region20: #{_lambda_.31} parent=0 // pred_region
    _
  $region21: #{_lambda_.31} parent=0 // pred_fallthru
    _
  // Predicated region
  $region22: #{_lambda_.31} parent=0 // pred_check
    _
  $region23: #{_lambda_.31} parent=0 // pred_check_branch
    %502 = sbr.rel (0) target = $region25
  $region24: #{_lambda_.31} parent=0 // pred_region
    _
  $region25: #{_lambda_.31} parent=0 // pred_fallthru
    _

// kernel: _lambda_.32
$region0: #{_lambda_.32}
  #allocation0 [shape = 'u32[]', space=smem, size = 0x4, offset = 0x4, fixed_abs, tag = 'smem constant byte address 0x4 - core index']
  #allocation1 [shape = 'u32[144,128]{1,0:T(1,128)}', space=vmem, size = 0x12000, scoped, tag = 'internal scratch']
  %s0 = inlined_call_operand.vmem [shape: bf16[32,128], index: 0, kind: input, shape index: {}]
  %s1 = inlined_call_operand.vmem [shape: f32[1,128], index: 1, kind: input, shape index: {}]
  %s2 = inlined_call_operand.vmem [shape: f32[1,128], index: 2, kind: input, shape index: {}]
  %s3 = inlined_call_operand.vmem [shape: bf16[32,128], index: 3, kind: output, shape index: {}]
  %s4 = sld [smem:[#allocation0]]
  $region22: #{_lambda_.32} parent=0
    _
  %s6 = ssub.s32 1, %s4
  %s7 = scalar_select 0, %s6, %s4
  // Predicated region
  $region2: #{_lambda_.32} parent=0 // pred_check
    _
  $region3: #{_lambda_.32} parent=0 // pred_check_branch
    %9 = sbr.rel (0) target = $region5
  $region4: #{_lambda_.32} parent=0 // pred_region
    _
  $region5: #{_lambda_.32} parent=0 // pred_fallthru
    _
  // Predicated region
  $region6: #{_lambda_.32} parent=0 // pred_check
    _
  $region7: #{_lambda_.32} parent=0 // pred_check_branch
    %11 = sbr.rel (0) target = $region9
  $region8: #{_lambda_.32} parent=0 // pred_region
    _
  $region9: #{_lambda_.32} parent=0 // pred_fallthru
    _
  // Predicated region
  $region10: #{_lambda_.32} parent=0 // pred_check
    _
  $region11: #{_lambda_.32} parent=0 // pred_check_branch
    %13 = sbr.rel (0) target = $region13
  $region12: #{_lambda_.32} parent=0 // pred_region
    _
  $region13: #{_lambda_.32} parent=0 // pred_fallthru
    _
  %v14 = vld [vmem:[%s0] sm:$0xf]
  %v15 = vld [vmem:[%s0 + $0x4] sm:$0xf]
  %v16 = vld [vmem:[%s0 + $0x8] sm:$0xf]
  %v17 = vld [vmem:[%s0 + $0xc] sm:$0xf]
  %v18 = vunpack.c.l.bf16 %v14
  %v19 = vunpack.c.l.bf16 %v15
  %v20 = vunpack.c.l.bf16 %v16
  %v21 = vunpack.c.l.bf16 %v17
  %v22 = vld [vmem:[%s1] sm:$0x1]
  %v24 = vlaneseq
  %v25 = vshrl.u32 %v24, 7
  %v26 = vsub.s32 0, %v25
  %v27 = vrot.slane %v22, %v26
  %v29 = vmul.f32 %v18, %v27
  %v30 = vmul.f32 %v19, %v27
  %v31 = vmul.f32 %v20, %v27
  %v32 = vmul.f32 %v21, %v27
  %v33 = vld [vmem:[%s2] sm:$0x1]
  %v35 = vlaneseq
  %v36 = vshrl.u32 %v35, 7
  %v37 = vsub.s32 0, %v36
  %v38 = vrot.slane %v33, %v37
  %v40 = vadd.f32 %v29, %v38
  %v41 = vadd.f32 %v30, %v38
  %v42 = vadd.f32 %v31, %v38
  %v43 = vadd.f32 %v32, %v38
  %v44 = vmul.f32 %v40, 0.0
  %v45 = vmul.f32 %v41, 0.0
  %v46 = vmul.f32 %v42, 0.0
  %v47 = vmul.f32 %v43, 0.0
  %v48 = vmax.f32 %v40, %v44
  %v49 = vmax.f32 %v41, %v45
  %v50 = vmax.f32 %v42, %v46
  %v51 = vmax.f32 %v43, %v47
  %v52 = vpack.c.bf16 %v49, %v48
  %v53 = vpack.c.bf16 %v51, %v50
  %v56 = vunpack.c.l.b16 %v52
  %v57 = vunpack.c.h.b16 %v52
  %v58 = vunpack.c.l.b16 %v53
  %v59 = vunpack.c.h.b16 %v53
  %v60 = vpack.c.b16 %v56, %v56
  %v61 = vpack.c.b16 %v57, %v57
  %v62 = vpack.c.b16 %v58, %v58
  %v63 = vpack.c.b16 %v59, %v59
  %68 = vst [vmem:[%s3] sm:$0xf] %v60
  %69 = vst [vmem:[%s3 + $0x4] sm:$0xf] %v61
  %70 = vst [vmem:[%s3 + $0x8] sm:$0xf] %v62
  %71 = vst [vmem:[%s3 + $0xc] sm:$0xf] %v63
  // Predicated region
  $region14: #{_lambda_.32} parent=0 // pred_check
    _
  $region15: #{_lambda_.32} parent=0 // pred_check_branch
    %73 = sbr.rel (0) target = $region17
  $region16: #{_lambda_.32} parent=0 // pred_region
    _
  $region17: #{_lambda_.32} parent=0 // pred_fallthru
    _
  // Predicated region
  $region18: #{_lambda_.32} parent=0 // pred_check
    _
  $region19: #{_lambda_.32} parent=0 // pred_check_branch
    %75 = sbr.rel (0) target = $region21
  $region20: #{_lambda_.32} parent=0 // pred_region
    _
  $region21: #{_lambda_.32} parent=0 // pred_fallthru
    _

// kernel: _lambda_.33
$region0: #{_lambda_.33}
  #allocation0 [shape = 'u32[]', space=smem, size = 0x4, offset = 0x4, fixed_abs, tag = 'smem constant byte address 0x4 - core index']
  #allocation1 [shape = 'u32[144,128]{1,0:T(1,128)}', space=vmem, size = 0x12000, scoped, tag = 'internal scratch']
  #allocation2 [shape = 'f32[584,128]{1,0:T(8,128)}', space=vmem, size = 0x49000, scoped, tag = 'scratch operand']
  %s0 = inlined_call_operand.vmem [shape: bf16[584,64], index: 0, kind: input, shape index: {}]
  %s1 = inlined_call_operand.vmem [shape: bf16[64,128], index: 1, kind: input, shape index: {}]
  %s2 = inlined_call_operand.vmem [shape: f32[1,128], index: 2, kind: input, shape index: {}]
  %s3 = inlined_call_operand.vmem [shape: f32[584,128], index: 3, kind: output, shape index: {}]
  %s4 = sld [smem:[#allocation0]]
  $region30: #{_lambda_.33} parent=0
    _
  %s6 = ssub.s32 1, %s4
  %s7 = scalar_select 0, %s6, %s4
  // Predicated region
  $region2: #{_lambda_.33} parent=0 // pred_check
    _
  $region3: #{_lambda_.33} parent=0 // pred_check_branch
    %9 = sbr.rel (0) target = $region5
  $region4: #{_lambda_.33} parent=0 // pred_region
    _
  $region5: #{_lambda_.33} parent=0 // pred_fallthru
    _
  // Predicated region
  $region6: #{_lambda_.33} parent=0 // pred_check
    _
  $region7: #{_lambda_.33} parent=0 // pred_check_branch
    %11 = sbr.rel (0) target = $region9
  $region8: #{_lambda_.33} parent=0 // pred_region
    _
  $region9: #{_lambda_.33} parent=0 // pred_fallthru
    _
  // Predicated region
  $region10: #{_lambda_.33} parent=0 // pred_check
    _
  $region11: #{_lambda_.33} parent=0 // pred_check_branch
    %13 = sbr.rel (0) target = $region13
  $region12: #{_lambda_.33} parent=0 // pred_region
    _
  $region13: #{_lambda_.33} parent=0 // pred_fallthru
    _
  %p15 = scmp.eq.s32.totalorder 0, 0
  // Predicated region
  $region14: #{_lambda_.33} parent=0 // pred_check
    %p16 = pneg %p15
  $region15: #{_lambda_.33} parent=0 // pred_check_branch
    %18 = sbr.rel (%p16) target = $region17
  $region16: #{_lambda_.33} parent=0 // pred_region
    %19 = vst [vmem:[#allocation2] sm:$0xff] 0.0
    %20 = vst [vmem:[#allocation2 + $0x8] sm:$0xff] 0.0
    %21 = vst [vmem:[#allocation2 + $0x10] sm:$0xff] 0.0
    %22 = vst [vmem:[#allocation2 + $0x18] sm:$0xff] 0.0
    %23 = vst [vmem:[#allocation2 + $0x20] sm:$0xff] 0.0
    %24 = vst [vmem:[#allocation2 + $0x28] sm:$0xff] 0.0
    %25 = vst [vmem:[#allocation2 + $0x30] sm:$0xff] 0.0
    %26 = vst [vmem:[#allocation2 + $0x38] sm:$0xff] 0.0
    %27 = vst [vmem:[#allocation2 + $0x40] sm:$0xff] 0.0
    %28 = vst [vmem:[#allocation2 + $0x48] sm:$0xff] 0.0
    %29 = vst [vmem:[#allocation2 + $0x50] sm:$0xff] 0.0
    %30 = vst [vmem:[#allocation2 + $0x58] sm:$0xff] 0.0
    %31 = vst [vmem:[#allocation2 + $0x60] sm:$0xff] 0.0
    %32 = vst [vmem:[#allocation2 + $0x68] sm:$0xff] 0.0
    %33 = vst [vmem:[#allocation2 + $0x70] sm:$0xff] 0.0
    %34 = vst [vmem:[#allocation2 + $0x78] sm:$0xff] 0.0
    %35 = vst [vmem:[#allocation2 + $0x80] sm:$0xff] 0.0
    %36 = vst [vmem:[#allocation2 + $0x88] sm:$0xff] 0.0
    %37 = vst [vmem:[#allocation2 + $0x90] sm:$0xff] 0.0
    %38 = vst [vmem:[#allocation2 + $0x98] sm:$0xff] 0.0
    %39 = vst [vmem:[#allocation2 + $0xa0] sm:$0xff] 0.0
    %40 = vst [vmem:[#allocation2 + $0xa8] sm:$0xff] 0.0
    %41 = vst [vmem:[#allocation2 + $0xb0] sm:$0xff] 0.0
    %42 = vst [vmem:[#allocation2 + $0xb8] sm:$0xff] 0.0
    %43 = vst [vmem:[#allocation2 + $0xc0] sm:$0xff] 0.0
    %44 = vst [vmem:[#allocation2 + $0xc8] sm:$0xff] 0.0
    %45 = vst [vmem:[#allocation2 + $0xd0] sm:$0xff] 0.0
    %46 = vst [vmem:[#allocation2 + $0xd8] sm:$0xff] 0.0
    %47 = vst [vmem:[#allocation2 + $0xe0] sm:$0xff] 0.0
    %48 = vst [vmem:[#allocation2 + $0xe8] sm:$0xff] 0.0
    %49 = vst [vmem:[#allocation2 + $0xf0] sm:$0xff] 0.0
    %50 = vst [vmem:[#allocation2 + $0xf8] sm:$0xff] 0.0
    %51 = vst [vmem:[#allocation2 + $0x100] sm:$0xff] 0.0
    %52 = vst [vmem:[#allocation2 + $0x108] sm:$0xff] 0.0
    %53 = vst [vmem:[#allocation2 + $0x110] sm:$0xff] 0.0
    %54 = vst [vmem:[#allocation2 + $0x118] sm:$0xff] 0.0
    %55 = vst [vmem:[#allocation2 + $0x120] sm:$0xff] 0.0
    %56 = vst [vmem:[#allocation2 + $0x128] sm:$0xff] 0.0
    %57 = vst [vmem:[#allocation2 + $0x130] sm:$0xff] 0.0
    %58 = vst [vmem:[#allocation2 + $0x138] sm:$0xff] 0.0
    %59 = vst [vmem:[#allocation2 + $0x140] sm:$0xff] 0.0
    %60 = vst [vmem:[#allocation2 + $0x148] sm:$0xff] 0.0
    %61 = vst [vmem:[#allocation2 + $0x150] sm:$0xff] 0.0
    %62 = vst [vmem:[#allocation2 + $0x158] sm:$0xff] 0.0
    %63 = vst [vmem:[#allocation2 + $0x160] sm:$0xff] 0.0
    %64 = vst [vmem:[#allocation2 + $0x168] sm:$0xff] 0.0
    %65 = vst [vmem:[#allocation2 + $0x170] sm:$0xff] 0.0
    %66 = vst [vmem:[#allocation2 + $0x178] sm:$0xff] 0.0
    %67 = vst [vmem:[#allocation2 + $0x180] sm:$0xff] 0.0
    %68 = vst [vmem:[#allocation2 + $0x188] sm:$0xff] 0.0
    %69 = vst [vmem:[#allocation2 + $0x190] sm:$0xff] 0.0
    %70 = vst [vmem:[#allocation2 + $0x198] sm:$0xff] 0.0
    %71 = vst [vmem:[#allocation2 + $0x1a0] sm:$0xff] 0.0
    %72 = vst [vmem:[#allocation2 + $0x1a8] sm:$0xff] 0.0
    %73 = vst [vmem:[#allocation2 + $0x1b0] sm:$0xff] 0.0
    %74 = vst [vmem:[#allocation2 + $0x1b8] sm:$0xff] 0.0
    %75 = vst [vmem:[#allocation2 + $0x1c0] sm:$0xff] 0.0
    %76 = vst [vmem:[#allocation2 + $0x1c8] sm:$0xff] 0.0
    %77 = vst [vmem:[#allocation2 + $0x1d0] sm:$0xff] 0.0
    %78 = vst [vmem:[#allocation2 + $0x1d8] sm:$0xff] 0.0
    %79 = vst [vmem:[#allocation2 + $0x1e0] sm:$0xff] 0.0
    %80 = vst [vmem:[#allocation2 + $0x1e8] sm:$0xff] 0.0
    %81 = vst [vmem:[#allocation2 + $0x1f0] sm:$0xff] 0.0
    %82 = vst [vmem:[#allocation2 + $0x1f8] sm:$0xff] 0.0
    %83 = vst [vmem:[#allocation2 + $0x200] sm:$0xff] 0.0
    %84 = vst [vmem:[#allocation2 + $0x208] sm:$0xff] 0.0
    %85 = vst [vmem:[#allocation2 + $0x210] sm:$0xff] 0.0
    %86 = vst [vmem:[#allocation2 + $0x218] sm:$0xff] 0.0
    %87 = vst [vmem:[#allocation2 + $0x220] sm:$0xff] 0.0
    %88 = vst [vmem:[#allocation2 + $0x228] sm:$0xff] 0.0
    %89 = vst [vmem:[#allocation2 + $0x230] sm:$0xff] 0.0
    %90 = vst [vmem:[#allocation2 + $0x238] sm:$0xff] 0.0
    %91 = vst [vmem:[#allocation2 + $0x240] sm:$0xff] 0.0
  $region17: #{_lambda_.33} parent=0 // pred_fallthru
    _
  %v92 = vld [vmem:[#allocation2] sm:$0xff]
  %v93 = vld [vmem:[#allocation2 + $0x8] sm:$0xff]
  %v94 = vld [vmem:[#allocation2 + $0x10] sm:$0xff]
  %v95 = vld [vmem:[#allocation2 + $0x18] sm:$0xff]
  %v96 = vld [vmem:[#allocation2 + $0x20] sm:$0xff]
  %v97 = vld [vmem:[#allocation2 + $0x28] sm:$0xff]
  %v98 = vld [vmem:[#allocation2 + $0x30] sm:$0xff]
  %v99 = vld [vmem:[#allocation2 + $0x38] sm:$0xff]
  %v100 = vld [vmem:[#allocation2 + $0x40] sm:$0xff]
  %v101 = vld [vmem:[#allocation2 + $0x48] sm:$0xff]
  %v102 = vld [vmem:[#allocation2 + $0x50] sm:$0xff]
  %v103 = vld [vmem:[#allocation2 + $0x58] sm:$0xff]
  %v104 = vld [vmem:[#allocation2 + $0x60] sm:$0xff]
  %v105 = vld [vmem:[#allocation2 + $0x68] sm:$0xff]
  %v106 = vld [vmem:[#allocation2 + $0x70] sm:$0xff]
  %v107 = vld [vmem:[#allocation2 + $0x78] sm:$0xff]
  %v108 = vld [vmem:[#allocation2 + $0x80] sm:$0xff]
  %v109 = vld [vmem:[#allocation2 + $0x88] sm:$0xff]
  %v110 = vld [vmem:[#allocation2 + $0x90] sm:$0xff]
  %v111 = vld [vmem:[#allocation2 + $0x98] sm:$0xff]
  %v112 = vld [vmem:[#allocation2 + $0xa0] sm:$0xff]
  %v113 = vld [vmem:[#allocation2 + $0xa8] sm:$0xff]
  %v114 = vld [vmem:[#allocation2 + $0xb0] sm:$0xff]
  %v115 = vld [vmem:[#allocation2 + $0xb8] sm:$0xff]
  %v116 = vld [vmem:[#allocation2 + $0xc0] sm:$0xff]
  %v117 = vld [vmem:[#allocation2 + $0xc8] sm:$0xff]
  %v118 = vld [vmem:[#allocation2 + $0xd0] sm:$0xff]
  %v119 = vld [vmem:[#allocation2 + $0xd8] sm:$0xff]
  %v120 = vld [vmem:[#allocation2 + $0xe0] sm:$0xff]
  %v121 = vld [vmem:[#allocation2 + $0xe8] sm:$0xff]
  %v122 = vld [vmem:[#allocation2 + $0xf0] sm:$0xff]
  %v123 = vld [vmem:[#allocation2 + $0xf8] sm:$0xff]
  %v124 = vld [vmem:[#allocation2 + $0x100] sm:$0xff]
  %v125 = vld [vmem:[#allocation2 + $0x108] sm:$0xff]
  %v126 = vld [vmem:[#allocation2 + $0x110] sm:$0xff]
  %v127 = vld [vmem:[#allocation2 + $0x118] sm:$0xff]
  %v128 = vld [vmem:[#allocation2 + $0x120] sm:$0xff]
  %v129 = vld [vmem:[#allocation2 + $0x128] sm:$0xff]
  %v130 = vld [vmem:[#allocation2 + $0x130] sm:$0xff]
  %v131 = vld [vmem:[#allocation2 + $0x138] sm:$0xff]
  %v132 = vld [vmem:[#allocation2 + $0x140] sm:$0xff]
  %v133 = vld [vmem:[#allocation2 + $0x148] sm:$0xff]
  %v134 = vld [vmem:[#allocation2 + $0x150] sm:$0xff]
  %v135 = vld [vmem:[#allocation2 + $0x158] sm:$0xff]
  %v136 = vld [vmem:[#allocation2 + $0x160] sm:$0xff]
  %v137 = vld [vmem:[#allocation2 + $0x168] sm:$0xff]
  %v138 = vld [vmem:[#allocation2 + $0x170] sm:$0xff]
  %v139 = vld [vmem:[#allocation2 + $0x178] sm:$0xff]
  %v140 = vld [vmem:[#allocation2 + $0x180] sm:$0xff]
  %v141 = vld [vmem:[#allocation2 + $0x188] sm:$0xff]
  %v142 = vld [vmem:[#allocation2 + $0x190] sm:$0xff]
  %v143 = vld [vmem:[#allocation2 + $0x198] sm:$0xff]
  %v144 = vld [vmem:[#allocation2 + $0x1a0] sm:$0xff]
  %v145 = vld [vmem:[#allocation2 + $0x1a8] sm:$0xff]
  %v146 = vld [vmem:[#allocation2 + $0x1b0] sm:$0xff]
  %v147 = vld [vmem:[#allocation2 + $0x1b8] sm:$0xff]
  %v148 = vld [vmem:[#allocation2 + $0x1c0] sm:$0xff]
  %v149 = vld [vmem:[#allocation2 + $0x1c8] sm:$0xff]
  %v150 = vld [vmem:[#allocation2 + $0x1d0] sm:$0xff]
  %v151 = vld [vmem:[#allocation2 + $0x1d8] sm:$0xff]
  %v152 = vld [vmem:[#allocation2 + $0x1e0] sm:$0xff]
  %v153 = vld [vmem:[#allocation2 + $0x1e8] sm:$0xff]
  %v154 = vld [vmem:[#allocation2 + $0x1f0] sm:$0xff]
  %v155 = vld [vmem:[#allocation2 + $0x1f8] sm:$0xff]
  %v156 = vld [vmem:[#allocation2 + $0x200] sm:$0xff]
  %v157 = vld [vmem:[#allocation2 + $0x208] sm:$0xff]
  %v158 = vld [vmem:[#allocation2 + $0x210] sm:$0xff]
  %v159 = vld [vmem:[#allocation2 + $0x218] sm:$0xff]
  %v160 = vld [vmem:[#allocation2 + $0x220] sm:$0xff]
  %v161 = vld [vmem:[#allocation2 + $0x228] sm:$0xff]
  %v162 = vld [vmem:[#allocation2 + $0x230] sm:$0xff]
  %v163 = vld [vmem:[#allocation2 + $0x238] sm:$0xff]
  %v164 = vld [vmem:[#allocation2 + $0x240] sm:$0xff]
  %v165 = vld [vmem:[%s0] sm:$0xf]
  %v166 = vld [vmem:[%s0 + $0x4] sm:$0xf]
  %v167 = vld [vmem:[%s0 + $0x8] sm:$0xf]
  %v168 = vld [vmem:[%s0 + $0xc] sm:$0xf]
  %v169 = vld [vmem:[%s0 + $0x10] sm:$0xf]
  %v170 = vld [vmem:[%s0 + $0x14] sm:$0xf]
  %v171 = vld [vmem:[%s0 + $0x18] sm:$0xf]
  %v172 = vld [vmem:[%s0 + $0x1c] sm:$0xf]
  %v173 = vld [vmem:[%s0 + $0x20] sm:$0xf]
  %v174 = vld [vmem:[%s0 + $0x24] sm:$0xf]
  %v175 = vld [vmem:[%s0 + $0x28] sm:$0xf]
  %v176 = vld [vmem:[%s0 + $0x2c] sm:$0xf]
  %v177 = vld [vmem:[%s0 + $0x30] sm:$0xf]
  %v178 = vld [vmem:[%s0 + $0x34] sm:$0xf]
  %v179 = vld [vmem:[%s0 + $0x38] sm:$0xf]
  %v180 = vld [vmem:[%s0 + $0x3c] sm:$0xf]
  %v181 = vld [vmem:[%s0 + $0x40] sm:$0xf]
  %v182 = vld [vmem:[%s0 + $0x44] sm:$0xf]
  %v183 = vld [vmem:[%s0 + $0x48] sm:$0xf]
  %v184 = vld [vmem:[%s0 + $0x4c] sm:$0xf]
  %v185 = vld [vmem:[%s0 + $0x50] sm:$0xf]
  %v186 = vld [vmem:[%s0 + $0x54] sm:$0xf]
  %v187 = vld [vmem:[%s0 + $0x58] sm:$0xf]
  %v188 = vld [vmem:[%s0 + $0x5c] sm:$0xf]
  %v189 = vld [vmem:[%s0 + $0x60] sm:$0xf]
  %v190 = vld [vmem:[%s0 + $0x64] sm:$0xf]
  %v191 = vld [vmem:[%s0 + $0x68] sm:$0xf]
  %v192 = vld [vmem:[%s0 + $0x6c] sm:$0xf]
  %v193 = vld [vmem:[%s0 + $0x70] sm:$0xf]
  %v194 = vld [vmem:[%s0 + $0x74] sm:$0xf]
  %v195 = vld [vmem:[%s0 + $0x78] sm:$0xf]
  %v196 = vld [vmem:[%s0 + $0x7c] sm:$0xf]
  %v197 = vld [vmem:[%s0 + $0x80] sm:$0xf]
  %v198 = vld [vmem:[%s0 + $0x84] sm:$0xf]
  %v199 = vld [vmem:[%s0 + $0x88] sm:$0xf]
  %v200 = vld [vmem:[%s0 + $0x8c] sm:$0xf]
  %v201 = vld [vmem:[%s0 + $0x90] sm:$0xf]
  %v202 = vld [vmem:[%s0 + $0x94] sm:$0xf]
  %v203 = vld [vmem:[%s0 + $0x98] sm:$0xf]
  %v204 = vld [vmem:[%s0 + $0x9c] sm:$0xf]
  %v205 = vld [vmem:[%s0 + $0xa0] sm:$0xf]
  %v206 = vld [vmem:[%s0 + $0xa4] sm:$0xf]
  %v207 = vld [vmem:[%s0 + $0xa8] sm:$0xf]
  %v208 = vld [vmem:[%s0 + $0xac] sm:$0xf]
  %v209 = vld [vmem:[%s0 + $0xb0] sm:$0xf]
  %v210 = vld [vmem:[%s0 + $0xb4] sm:$0xf]
  %v211 = vld [vmem:[%s0 + $0xb8] sm:$0xf]
  %v212 = vld [vmem:[%s0 + $0xbc] sm:$0xf]
  %v213 = vld [vmem:[%s0 + $0xc0] sm:$0xf]
  %v214 = vld [vmem:[%s0 + $0xc4] sm:$0xf]
  %v215 = vld [vmem:[%s0 + $0xc8] sm:$0xf]
  %v216 = vld [vmem:[%s0 + $0xcc] sm:$0xf]
  %v217 = vld [vmem:[%s0 + $0xd0] sm:$0xf]
  %v218 = vld [vmem:[%s0 + $0xd4] sm:$0xf]
  %v219 = vld [vmem:[%s0 + $0xd8] sm:$0xf]
  %v220 = vld [vmem:[%s0 + $0xdc] sm:$0xf]
  %v221 = vld [vmem:[%s0 + $0xe0] sm:$0xf]
  %v222 = vld [vmem:[%s0 + $0xe4] sm:$0xf]
  %v223 = vld [vmem:[%s0 + $0xe8] sm:$0xf]
  %v224 = vld [vmem:[%s0 + $0xec] sm:$0xf]
  %v225 = vld [vmem:[%s0 + $0xf0] sm:$0xf]
  %v226 = vld [vmem:[%s0 + $0xf4] sm:$0xf]
  %v227 = vld [vmem:[%s0 + $0xf8] sm:$0xf]
  %v228 = vld [vmem:[%s0 + $0xfc] sm:$0xf]
  %v229 = vld [vmem:[%s0 + $0x100] sm:$0xf]
  %v230 = vld [vmem:[%s0 + $0x104] sm:$0xf]
  %v231 = vld [vmem:[%s0 + $0x108] sm:$0xf]
  %v232 = vld [vmem:[%s0 + $0x10c] sm:$0xf]
  %v233 = vld [vmem:[%s0 + $0x110] sm:$0xf]
  %v234 = vld [vmem:[%s0 + $0x114] sm:$0xf]
  %v235 = vld [vmem:[%s0 + $0x118] sm:$0xf]
  %v236 = vld [vmem:[%s0 + $0x11c] sm:$0xf]
  %v237 = vld [vmem:[%s0 + $0x120] sm:$0xf]
  %v238 = vld [vmem:[%s1] sm:$0xf]
  %v239 = vld [vmem:[%s1 + $0x4] sm:$0xf]
  %v240 = vld [vmem:[%s1 + $0x8] sm:$0xf]
  %v241 = vld [vmem:[%s1 + $0xc] sm:$0xf]
  %v242 = vld [vmem:[%s1 + $0x10] sm:$0xf]
  %v243 = vld [vmem:[%s1 + $0x14] sm:$0xf]
  %v244 = vld [vmem:[%s1 + $0x18] sm:$0xf]
  %v245 = vld [vmem:[%s1 + $0x1c] sm:$0xf]
  %v319 = vunpack.c.l.b16 %v165
  %v320 = vunpack.c.l.b16 %v166
  %v321 = vunpack.c.l.b16 %v167
  %v322 = vunpack.c.l.b16 %v168
  %v323 = vunpack.c.l.b16 %v169
  %v324 = vunpack.c.l.b16 %v170
  %v325 = vunpack.c.l.b16 %v171
  %v326 = vunpack.c.l.b16 %v172
  %v327 = vunpack.c.l.b16 %v173
  %v328 = vunpack.c.l.b16 %v174
  %v329 = vunpack.c.l.b16 %v175
  %v330 = vunpack.c.l.b16 %v176
  %v331 = vunpack.c.l.b16 %v177
  %v332 = vunpack.c.l.b16 %v178
  %v333 = vunpack.c.l.b16 %v179
  %v334 = vunpack.c.l.b16 %v180
  %v335 = vunpack.c.l.b16 %v181
  %v336 = vunpack.c.l.b16 %v182
  %v337 = vunpack.c.l.b16 %v183
  %v338 = vunpack.c.l.b16 %v184
  %v339 = vunpack.c.l.b16 %v185
  %v340 = vunpack.c.l.b16 %v186
  %v341 = vunpack.c.l.b16 %v187
  %v342 = vunpack.c.l.b16 %v188
  %v343 = vunpack.c.l.b16 %v189
  %v344 = vunpack.c.l.b16 %v190
  %v345 = vunpack.c.l.b16 %v191
  %v346 = vunpack.c.l.b16 %v192
  %v347 = vunpack.c.l.b16 %v193
  %v348 = vunpack.c.l.b16 %v194
  %v349 = vunpack.c.l.b16 %v195
  %v350 = vunpack.c.l.b16 %v196
  %v351 = vunpack.c.l.b16 %v197
  %v352 = vunpack.c.l.b16 %v198
  %v353 = vunpack.c.l.b16 %v199
  %v354 = vunpack.c.l.b16 %v200
  %v355 = vunpack.c.l.b16 %v201
  %v356 = vunpack.c.l.b16 %v202
  %v357 = vunpack.c.l.b16 %v203
  %v358 = vunpack.c.l.b16 %v204
  %v359 = vunpack.c.l.b16 %v205
  %v360 = vunpack.c.l.b16 %v206
  %v361 = vunpack.c.l.b16 %v207
  %v362 = vunpack.c.l.b16 %v208
  %v363 = vunpack.c.l.b16 %v209
  %v364 = vunpack.c.l.b16 %v210
  %v365 = vunpack.c.l.b16 %v211
  %v366 = vunpack.c.l.b16 %v212
  %v367 = vunpack.c.l.b16 %v213
  %v368 = vunpack.c.l.b16 %v214
  %v369 = vunpack.c.l.b16 %v215
  %v370 = vunpack.c.l.b16 %v216
  %v371 = vunpack.c.l.b16 %v217
  %v372 = vunpack.c.l.b16 %v218
  %v373 = vunpack.c.l.b16 %v219
  %v374 = vunpack.c.l.b16 %v220
  %v375 = vunpack.c.l.b16 %v221
  %v376 = vunpack.c.l.b16 %v222
  %v377 = vunpack.c.l.b16 %v223
  %v378 = vunpack.c.l.b16 %v224
  %v379 = vunpack.c.l.b16 %v225
  %v380 = vunpack.c.l.b16 %v226
  %v381 = vunpack.c.l.b16 %v227
  %v382 = vunpack.c.l.b16 %v228
  %v383 = vunpack.c.l.b16 %v229
  %v384 = vunpack.c.l.b16 %v230
  %v385 = vunpack.c.l.b16 %v231
  %v386 = vunpack.c.l.b16 %v232
  %v387 = vunpack.c.l.b16 %v233
  %v388 = vunpack.c.l.b16 %v234
  %v389 = vunpack.c.l.b16 %v235
  %v390 = vunpack.c.l.b16 %v236
  %v391 = vunpack.c.l.b16 %v237
  %v392 = vpack.c.b16 %v320, %v319
  %v393 = vpack.c.b16 %v322, %v321
  %v394 = vpack.c.b16 %v324, %v323
  %v395 = vpack.c.b16 %v326, %v325
  %v396 = vpack.c.b16 %v328, %v327
  %v397 = vpack.c.b16 %v330, %v329
  %v398 = vpack.c.b16 %v332, %v331
  %v399 = vpack.c.b16 %v334, %v333
  %v400 = vpack.c.b16 %v336, %v335
  %v401 = vpack.c.b16 %v338, %v337
  %v402 = vpack.c.b16 %v340, %v339
  %v403 = vpack.c.b16 %v342, %v341
  %v404 = vpack.c.b16 %v344, %v343
  %v405 = vpack.c.b16 %v346, %v345
  %v406 = vpack.c.b16 %v348, %v347
  %v407 = vpack.c.b16 %v350, %v349
  %v408 = vpack.c.b16 %v352, %v351
  %v409 = vpack.c.b16 %v354, %v353
  %v410 = vpack.c.b16 %v356, %v355
  %v411 = vpack.c.b16 %v358, %v357
  %v412 = vpack.c.b16 %v360, %v359
  %v413 = vpack.c.b16 %v362, %v361
  %v414 = vpack.c.b16 %v364, %v363
  %v415 = vpack.c.b16 %v366, %v365
  %v416 = vpack.c.b16 %v368, %v367
  %v417 = vpack.c.b16 %v370, %v369
  %v418 = vpack.c.b16 %v372, %v371
  %v419 = vpack.c.b16 %v374, %v373
  %v420 = vpack.c.b16 %v376, %v375
  %v421 = vpack.c.b16 %v378, %v377
  %v422 = vpack.c.b16 %v380, %v379
  %v423 = vpack.c.b16 %v382, %v381
  %v424 = vpack.c.b16 %v384, %v383
  %v425 = vpack.c.b16 %v386, %v385
  %v426 = vpack.c.b16 %v388, %v387
  %v427 = vpack.c.b16 %v390, %v389
  %v428 = vpack.c.b16 %v391, %v391
  %v437 = vunpack.c.l.b16 %v238
  %v438 = vunpack.c.l.b16 %v239
  %v439 = vunpack.c.l.b16 %v240
  %v440 = vunpack.c.l.b16 %v241
  %v441 = vunpack.c.l.b16 %v242
  %v442 = vunpack.c.l.b16 %v243
  %v443 = vunpack.c.l.b16 %v244
  %v444 = vunpack.c.l.b16 %v245
  %v445 = vpack.c.b16 %v438, %v437
  %v446 = vpack.c.b16 %v440, %v439
  %v447 = vpack.c.b16 %v442, %v441
  %v448 = vpack.c.b16 %v444, %v443
  %vm453 = vcmask 523264
  %v455 = vsel %vm453, %v392, 0
  %v458 = vsel %vm453, %v393, 0
  %v461 = vsel %vm453, %v394, 0
  %v464 = vsel %vm453, %v395, 0
  %v467 = vsel %vm453, %v396, 0
  %v470 = vsel %vm453, %v397, 0
  %v473 = vsel %vm453, %v398, 0
  %v476 = vsel %vm453, %v399, 0
  %v479 = vsel %vm453, %v400, 0
  %v482 = vsel %vm453, %v401, 0
  %v485 = vsel %vm453, %v402, 0
  %v488 = vsel %vm453, %v403, 0
  %v491 = vsel %vm453, %v404, 0
  %v494 = vsel %vm453, %v405, 0
  %v497 = vsel %vm453, %v406, 0
  %v500 = vsel %vm453, %v407, 0
  %v503 = vsel %vm453, %v408, 0
  %v506 = vsel %vm453, %v409, 0
  %v509 = vsel %vm453, %v410, 0
  %v512 = vsel %vm453, %v411, 0
  %v515 = vsel %vm453, %v412, 0
  %v518 = vsel %vm453, %v413, 0
  %v521 = vsel %vm453, %v414, 0
  %v524 = vsel %vm453, %v415, 0
  %v527 = vsel %vm453, %v416, 0
  %v530 = vsel %vm453, %v417, 0
  %v533 = vsel %vm453, %v418, 0
  %v536 = vsel %vm453, %v419, 0
  %v539 = vsel %vm453, %v420, 0
  %v542 = vsel %vm453, %v421, 0
  %v545 = vsel %vm453, %v422, 0
  %v548 = vsel %vm453, %v423, 0
  %v551 = vsel %vm453, %v424, 0
  %v554 = vsel %vm453, %v425, 0
  %v557 = vsel %vm453, %v426, 0
  %v560 = vsel %vm453, %v427, 0
  %v563 = vsel %vm453, %v428, 0
  %565 = vmatprep.subr.bf16.mxu0 0
  %566 = vmatpush1.bf16.msra.mxu0 0
  %567 = vmatprep.subr.bf16.mxu0 0
  %568 = vmatpush1.bf16.msra.mxu0 0
  %569 = vmatprep.subr.bf16.mxu0 0
  %570 = vmatpush1.bf16.msra.mxu0 0
  %571 = vmatprep.subr.bf16.mxu0 0
  %572 = vmatpush1.bf16.msra.mxu0 0
  %573 = vmatprep.subr.bf16.mxu0 0
  %574 = vmatpush1.bf16.msra.mxu0 %v448
  %575 = vmatprep.subr.bf16.mxu0 0
  %576 = vmatpush1.bf16.msra.mxu0 %v447
  %577 = vmatprep.subr.bf16.mxu0 0
  %578 = vmatpush1.bf16.msra.mxu0 %v446
  %579 = vmatprep.subr.bf16.mxu0 0
  %580 = vmatpush1.bf16.msra.mxu0 %v445
  %581 = vmatprep.subr.bf16.mxu0 0
  %582 = vmatpush2.bf16.msra.mxu0 0
  %583 = vmatprep.subr.bf16.mxu0 0
  %584 = vmatpush2.bf16.msra.mxu0 0
  %585 = vmatprep.subr.bf16.mxu0 0
  %586 = vmatpush2.bf16.msra.mxu0 0
  %587 = vmatprep.subr.bf16.mxu0 0
  %588 = vmatpush2.bf16.msra.mxu0 0
  %589 = vmatprep.subr.bf16.mxu0 0
  %590 = vmatpush2.bf16.msra.mxu0 0
  %591 = vmatprep.subr.bf16.mxu0 0
  %592 = vmatpush2.bf16.msra.mxu0 0
  %593 = vmatprep.subr.bf16.mxu0 0
  %594 = vmatpush2.bf16.msra.mxu0 0
  %595 = vmatprep.subr.bf16.mxu0 0
  %596 = vmatpush2.bf16.msra.mxu0 0
  %597 = vmatprep.mubr.bf16.mxu0 0
  %598 = vmatmul.mubr.bf16.gmra.mxu0 %v455
  %v599 = vpop.f32.mrf.mxu0
  %v600 = vadd.f32 0.0, %v599
  %v601 = vpop.f32.mrf.mxu0
  %v602 = vpop.f32.mrf.mxu0
  %v603 = vadd.f32 0.0, %v602
  %v604 = vpop.f32.mrf.mxu0
  %605 = vmatprep.mubr.bf16.mxu0 0
  %606 = vmatmul.mubr.bf16.gmra.mxu0 %v458
  %v607 = vpop.f32.mrf.mxu0
  %v608 = vadd.f32 0.0, %v607
  %v609 = vpop.f32.mrf.mxu0
  %v610 = vpop.f32.mrf.mxu0
  %v611 = vadd.f32 0.0, %v610
  %v612 = vpop.f32.mrf.mxu0
  %613 = vmatprep.mubr.bf16.mxu0 0
  %614 = vmatmul.mubr.bf16.gmra.mxu0 %v461
  %v615 = vpop.f32.mrf.mxu0
  %v616 = vadd.f32 0.0, %v615
  %v617 = vpop.f32.mrf.mxu0
  %v618 = vpop.f32.mrf.mxu0
  %v619 = vadd.f32 0.0, %v618
  %v620 = vpop.f32.mrf.mxu0
  %621 = vmatprep.mubr.bf16.mxu0 0
  %622 = vmatmul.mubr.bf16.gmra.mxu0 %v464
  %v623 = vpop.f32.mrf.mxu0
  %v624 = vadd.f32 0.0, %v623
  %v625 = vpop.f32.mrf.mxu0
  %v626 = vpop.f32.mrf.mxu0
  %v627 = vadd.f32 0.0, %v626
  %v628 = vpop.f32.mrf.mxu0
  %629 = vmatprep.mubr.bf16.mxu0 0
  %630 = vmatmul.mubr.bf16.gmra.mxu0 %v467
  %v631 = vpop.f32.mrf.mxu0
  %v632 = vadd.f32 0.0, %v631
  %v633 = vpop.f32.mrf.mxu0
  %v634 = vpop.f32.mrf.mxu0
  %v635 = vadd.f32 0.0, %v634
  %v636 = vpop.f32.mrf.mxu0
  %637 = vmatprep.mubr.bf16.mxu0 0
  %638 = vmatmul.mubr.bf16.gmra.mxu0 %v470
  %v639 = vpop.f32.mrf.mxu0
  %v640 = vadd.f32 0.0, %v639
  %v641 = vpop.f32.mrf.mxu0
  %v642 = vpop.f32.mrf.mxu0
  %v643 = vadd.f32 0.0, %v642
  %v644 = vpop.f32.mrf.mxu0
  %645 = vmatprep.mubr.bf16.mxu0 0
  %646 = vmatmul.mubr.bf16.gmra.mxu0 %v473
  %v647 = vpop.f32.mrf.mxu0
  %v648 = vadd.f32 0.0, %v647
  %v649 = vpop.f32.mrf.mxu0
  %v650 = vpop.f32.mrf.mxu0
  %v651 = vadd.f32 0.0, %v650
  %v652 = vpop.f32.mrf.mxu0
  %653 = vmatprep.mubr.bf16.mxu0 0
  %654 = vmatmul.mubr.bf16.gmra.mxu0 %v476
  %v655 = vpop.f32.mrf.mxu0
  %v656 = vadd.f32 0.0, %v655
  %v657 = vpop.f32.mrf.mxu0
  %v658 = vpop.f32.mrf.mxu0
  %v659 = vadd.f32 0.0, %v658
  %v660 = vpop.f32.mrf.mxu0
  %661 = vmatprep.mubr.bf16.mxu0 0
  %662 = vmatmul.mubr.bf16.gmra.mxu0 %v479
  %v663 = vpop.f32.mrf.mxu0
  %v664 = vadd.f32 0.0, %v663
  %v665 = vpop.f32.mrf.mxu0
  %v666 = vpop.f32.mrf.mxu0
  %v667 = vadd.f32 0.0, %v666
  %v668 = vpop.f32.mrf.mxu0
  %669 = vmatprep.mubr.bf16.mxu0 0
  %670 = vmatmul.mubr.bf16.gmra.mxu0 %v482
  %v671 = vpop.f32.mrf.mxu0
  %v672 = vadd.f32 0.0, %v671
  %v673 = vpop.f32.mrf.mxu0
  %v674 = vpop.f32.mrf.mxu0
  %v675 = vadd.f32 0.0, %v674
  %v676 = vpop.f32.mrf.mxu0
  %677 = vmatprep.mubr.bf16.mxu0 0
  %678 = vmatmul.mubr.bf16.gmra.mxu0 %v485
  %v679 = vpop.f32.mrf.mxu0
  %v680 = vadd.f32 0.0, %v679
  %v681 = vpop.f32.mrf.mxu0
  %v682 = vpop.f32.mrf.mxu0
  %v683 = vadd.f32 0.0, %v682
  %v684 = vpop.f32.mrf.mxu0
  %685 = vmatprep.mubr.bf16.mxu0 0
  %686 = vmatmul.mubr.bf16.gmra.mxu0 %v488
  %v687 = vpop.f32.mrf.mxu0
  %v688 = vadd.f32 0.0, %v687
  %v689 = vpop.f32.mrf.mxu0
  %v690 = vpop.f32.mrf.mxu0
  %v691 = vadd.f32 0.0, %v690
  %v692 = vpop.f32.mrf.mxu0
  %693 = vmatprep.mubr.bf16.mxu0 0
  %694 = vmatmul.mubr.bf16.gmra.mxu0 %v491
  %v695 = vpop.f32.mrf.mxu0
  %v696 = vadd.f32 0.0, %v695
  %v697 = vpop.f32.mrf.mxu0
  %v698 = vpop.f32.mrf.mxu0
  %v699 = vadd.f32 0.0, %v698
  %v700 = vpop.f32.mrf.mxu0
  %701 = vmatprep.mubr.bf16.mxu0 0
  %702 = vmatmul.mubr.bf16.gmra.mxu0 %v494
  %v703 = vpop.f32.mrf.mxu0
  %v704 = vadd.f32 0.0, %v703
  %v705 = vpop.f32.mrf.mxu0
  %v706 = vpop.f32.mrf.mxu0
  %v707 = vadd.f32 0.0, %v706
  %v708 = vpop.f32.mrf.mxu0
  %709 = vmatprep.mubr.bf16.mxu0 0
  %710 = vmatmul.mubr.bf16.gmra.mxu0 %v497
  %v711 = vpop.f32.mrf.mxu0
  %v712 = vadd.f32 0.0, %v711
  %v713 = vpop.f32.mrf.mxu0
  %v714 = vpop.f32.mrf.mxu0
  %v715 = vadd.f32 0.0, %v714
  %v716 = vpop.f32.mrf.mxu0
  %717 = vmatprep.mubr.bf16.mxu0 0
  %718 = vmatmul.mubr.bf16.gmra.mxu0 %v500
  %v719 = vpop.f32.mrf.mxu0
  %v720 = vadd.f32 0.0, %v719
  %v721 = vpop.f32.mrf.mxu0
  %v722 = vpop.f32.mrf.mxu0
  %v723 = vadd.f32 0.0, %v722
  %v724 = vpop.f32.mrf.mxu0
  %725 = vmatprep.mubr.bf16.mxu0 0
  %726 = vmatmul.mubr.bf16.gmra.mxu0 %v503
  %v727 = vpop.f32.mrf.mxu0
  %v728 = vadd.f32 0.0, %v727
  %v729 = vpop.f32.mrf.mxu0
  %v730 = vpop.f32.mrf.mxu0
  %v731 = vadd.f32 0.0, %v730
  %v732 = vpop.f32.mrf.mxu0
  %733 = vmatprep.mubr.bf16.mxu0 0
  %734 = vmatmul.mubr.bf16.gmra.mxu0 %v506
  %v735 = vpop.f32.mrf.mxu0
  %v736 = vadd.f32 0.0, %v735
  %v737 = vpop.f32.mrf.mxu0
  %v738 = vpop.f32.mrf.mxu0
  %v739 = vadd.f32 0.0, %v738
  %v740 = vpop.f32.mrf.mxu0
  %741 = vmatprep.mubr.bf16.mxu0 0
  %742 = vmatmul.mubr.bf16.gmra.mxu0 %v509
  %v743 = vpop.f32.mrf.mxu0
  %v744 = vadd.f32 0.0, %v743
  %v745 = vpop.f32.mrf.mxu0
  %v746 = vpop.f32.mrf.mxu0
  %v747 = vadd.f32 0.0, %v746
  %v748 = vpop.f32.mrf.mxu0
  %749 = vmatprep.mubr.bf16.mxu0 0
  %750 = vmatmul.mubr.bf16.gmra.mxu0 %v512
  %v751 = vpop.f32.mrf.mxu0
  %v752 = vadd.f32 0.0, %v751
  %v753 = vpop.f32.mrf.mxu0
  %v754 = vpop.f32.mrf.mxu0
  %v755 = vadd.f32 0.0, %v754
  %v756 = vpop.f32.mrf.mxu0
  %757 = vmatprep.mubr.bf16.mxu0 0
  %758 = vmatmul.mubr.bf16.gmra.mxu0 %v515
  %v759 = vpop.f32.mrf.mxu0
  %v760 = vadd.f32 0.0, %v759
  %v761 = vpop.f32.mrf.mxu0
  %v762 = vpop.f32.mrf.mxu0
  %v763 = vadd.f32 0.0, %v762
  %v764 = vpop.f32.mrf.mxu0
  %765 = vmatprep.mubr.bf16.mxu0 0
  %766 = vmatmul.mubr.bf16.gmra.mxu0 %v518
  %v767 = vpop.f32.mrf.mxu0
  %v768 = vadd.f32 0.0, %v767
  %v769 = vpop.f32.mrf.mxu0
  %v770 = vpop.f32.mrf.mxu0
  %v771 = vadd.f32 0.0, %v770
  %v772 = vpop.f32.mrf.mxu0
  %773 = vmatprep.mubr.bf16.mxu0 0
  %774 = vmatmul.mubr.bf16.gmra.mxu0 %v521
  %v775 = vpop.f32.mrf.mxu0
  %v776 = vadd.f32 0.0, %v775
  %v777 = vpop.f32.mrf.mxu0
  %v778 = vpop.f32.mrf.mxu0
  %v779 = vadd.f32 0.0, %v778
  %v780 = vpop.f32.mrf.mxu0
  %781 = vmatprep.mubr.bf16.mxu0 0
  %782 = vmatmul.mubr.bf16.gmra.mxu0 %v524
  %v783 = vpop.f32.mrf.mxu0
  %v784 = vadd.f32 0.0, %v783
  %v785 = vpop.f32.mrf.mxu0
  %v786 = vpop.f32.mrf.mxu0
  %v787 = vadd.f32 0.0, %v786
  %v788 = vpop.f32.mrf.mxu0
  %789 = vmatprep.mubr.bf16.mxu0 0
  %790 = vmatmul.mubr.bf16.gmra.mxu0 %v527
  %v791 = vpop.f32.mrf.mxu0
  %v792 = vadd.f32 0.0, %v791
  %v793 = vpop.f32.mrf.mxu0
  %v794 = vpop.f32.mrf.mxu0
  %v795 = vadd.f32 0.0, %v794
  %v796 = vpop.f32.mrf.mxu0
  %797 = vmatprep.mubr.bf16.mxu0 0
  %798 = vmatmul.mubr.bf16.gmra.mxu0 %v530
  %v799 = vpop.f32.mrf.mxu0
  %v800 = vadd.f32 0.0, %v799
  %v801 = vpop.f32.mrf.mxu0
  %v802 = vpop.f32.mrf.mxu0
  %v803 = vadd.f32 0.0, %v802
  %v804 = vpop.f32.mrf.mxu0
  %805 = vmatprep.mubr.bf16.mxu0 0
  %806 = vmatmul.mubr.bf16.gmra.mxu0 %v533
  %v807 = vpop.f32.mrf.mxu0
  %v808 = vadd.f32 0.0, %v807
  %v809 = vpop.f32.mrf.mxu0
  %v810 = vpop.f32.mrf.mxu0
  %v811 = vadd.f32 0.0, %v810
  %v812 = vpop.f32.mrf.mxu0
  %813 = vmatprep.mubr.bf16.mxu0 0
  %814 = vmatmul.mubr.bf16.gmra.mxu0 %v536
  %v815 = vpop.f32.mrf.mxu0
  %v816 = vadd.f32 0.0, %v815
  %v817 = vpop.f32.mrf.mxu0
  %v818 = vpop.f32.mrf.mxu0
  %v819 = vadd.f32 0.0, %v818
  %v820 = vpop.f32.mrf.mxu0
  %821 = vmatprep.mubr.bf16.mxu0 0
  %822 = vmatmul.mubr.bf16.gmra.mxu0 %v539
  %v823 = vpop.f32.mrf.mxu0
  %v824 = vadd.f32 0.0, %v823
  %v825 = vpop.f32.mrf.mxu0
  %v826 = vpop.f32.mrf.mxu0
  %v827 = vadd.f32 0.0, %v826
  %v828 = vpop.f32.mrf.mxu0
  %829 = vmatprep.mubr.bf16.mxu0 0
  %830 = vmatmul.mubr.bf16.gmra.mxu0 %v542
  %v831 = vpop.f32.mrf.mxu0
  %v832 = vadd.f32 0.0, %v831
  %v833 = vpop.f32.mrf.mxu0
  %v834 = vpop.f32.mrf.mxu0
  %v835 = vadd.f32 0.0, %v834
  %v836 = vpop.f32.mrf.mxu0
  %837 = vmatprep.mubr.bf16.mxu0 0
  %838 = vmatmul.mubr.bf16.gmra.mxu0 %v545
  %v839 = vpop.f32.mrf.mxu0
  %v840 = vadd.f32 0.0, %v839
  %v841 = vpop.f32.mrf.mxu0
  %v842 = vpop.f32.mrf.mxu0
  %v843 = vadd.f32 0.0, %v842
  %v844 = vpop.f32.mrf.mxu0
  %845 = vmatprep.mubr.bf16.mxu0 0
  %846 = vmatmul.mubr.bf16.gmra.mxu0 %v548
  %v847 = vpop.f32.mrf.mxu0
  %v848 = vadd.f32 0.0, %v847
  %v849 = vpop.f32.mrf.mxu0
  %v850 = vpop.f32.mrf.mxu0
  %v851 = vadd.f32 0.0, %v850
  %v852 = vpop.f32.mrf.mxu0
  %853 = vmatprep.mubr.bf16.mxu0 0
  %854 = vmatmul.mubr.bf16.gmra.mxu0 %v551
  %v855 = vpop.f32.mrf.mxu0
  %v856 = vadd.f32 0.0, %v855
  %v857 = vpop.f32.mrf.mxu0
  %v858 = vpop.f32.mrf.mxu0
  %v859 = vadd.f32 0.0, %v858
  %v860 = vpop.f32.mrf.mxu0
  %861 = vmatprep.mubr.bf16.mxu0 0
  %862 = vmatmul.mubr.bf16.gmra.mxu0 %v554
  %v863 = vpop.f32.mrf.mxu0
  %v864 = vadd.f32 0.0, %v863
  %v865 = vpop.f32.mrf.mxu0
  %v866 = vpop.f32.mrf.mxu0
  %v867 = vadd.f32 0.0, %v866
  %v868 = vpop.f32.mrf.mxu0
  %869 = vmatprep.mubr.bf16.mxu0 0
  %870 = vmatmul.mubr.bf16.gmra.mxu0 %v557
  %v871 = vpop.f32.mrf.mxu0
  %v872 = vadd.f32 0.0, %v871
  %v873 = vpop.f32.mrf.mxu0
  %v874 = vpop.f32.mrf.mxu0
  %v875 = vadd.f32 0.0, %v874
  %v876 = vpop.f32.mrf.mxu0
  %877 = vmatprep.mubr.bf16.mxu0 0
  %878 = vmatmul.mubr.bf16.gmra.mxu0 %v560
  %v879 = vpop.f32.mrf.mxu0
  %v880 = vadd.f32 0.0, %v879
  %v881 = vpop.f32.mrf.mxu0
  %v882 = vpop.f32.mrf.mxu0
  %v883 = vadd.f32 0.0, %v882
  %v884 = vpop.f32.mrf.mxu0
  %885 = vmatprep.mubr.bf16.mxu0 0
  %886 = vmatmul.mubr.bf16.gmra.mxu0 %v563
  %v887 = vpop.f32.mrf.mxu0
  %v888 = vadd.f32 0.0, %v887
  %v889 = vpop.f32.mrf.mxu0
  %v890 = vpop.f32.mrf.mxu0
  %v891 = vpop.f32.mrf.mxu0
  %892 = vdwg.mxu0
  %v893 = vadd.f32 %v92, %v600
  %v894 = vadd.f32 %v93, %v603
  %v895 = vadd.f32 %v94, %v608
  %v896 = vadd.f32 %v95, %v611
  %v897 = vadd.f32 %v96, %v616
  %v898 = vadd.f32 %v97, %v619
  %v899 = vadd.f32 %v98, %v624
  %v900 = vadd.f32 %v99, %v627
  %v901 = vadd.f32 %v100, %v632
  %v902 = vadd.f32 %v101, %v635
  %v903 = vadd.f32 %v102, %v640
  %v904 = vadd.f32 %v103, %v643
  %v905 = vadd.f32 %v104, %v648
  %v906 = vadd.f32 %v105, %v651
  %v907 = vadd.f32 %v106, %v656
  %v908 = vadd.f32 %v107, %v659
  %v909 = vadd.f32 %v108, %v664
  %v910 = vadd.f32 %v109, %v667
  %v911 = vadd.f32 %v110, %v672
  %v912 = vadd.f32 %v111, %v675
  %v913 = vadd.f32 %v112, %v680
  %v914 = vadd.f32 %v113, %v683
  %v915 = vadd.f32 %v114, %v688
  %v916 = vadd.f32 %v115, %v691
  %v917 = vadd.f32 %v116, %v696
  %v918 = vadd.f32 %v117, %v699
  %v919 = vadd.f32 %v118, %v704
  %v920 = vadd.f32 %v119, %v707
  %v921 = vadd.f32 %v120, %v712
  %v922 = vadd.f32 %v121, %v715
  %v923 = vadd.f32 %v122, %v720
  %v924 = vadd.f32 %v123, %v723
  %v925 = vadd.f32 %v124, %v728
  %v926 = vadd.f32 %v125, %v731
  %v927 = vadd.f32 %v126, %v736
  %v928 = vadd.f32 %v127, %v739
  %v929 = vadd.f32 %v128, %v744
  %v930 = vadd.f32 %v129, %v747
  %v931 = vadd.f32 %v130, %v752
  %v932 = vadd.f32 %v131, %v755
  %v933 = vadd.f32 %v132, %v760
  %v934 = vadd.f32 %v133, %v763
  %v935 = vadd.f32 %v134, %v768
  %v936 = vadd.f32 %v135, %v771
  %v937 = vadd.f32 %v136, %v776
  %v938 = vadd.f32 %v137, %v779
  %v939 = vadd.f32 %v138, %v784
  %v940 = vadd.f32 %v139, %v787
  %v941 = vadd.f32 %v140, %v792
  %v942 = vadd.f32 %v141, %v795
  %v943 = vadd.f32 %v142, %v800
  %v944 = vadd.f32 %v143, %v803
  %v945 = vadd.f32 %v144, %v808
  %v946 = vadd.f32 %v145, %v811
  %v947 = vadd.f32 %v146, %v816
  %v948 = vadd.f32 %v147, %v819
  %v949 = vadd.f32 %v148, %v824
  %v950 = vadd.f32 %v149, %v827
  %v951 = vadd.f32 %v150, %v832
  %v952 = vadd.f32 %v151, %v835
  %v953 = vadd.f32 %v152, %v840
  %v954 = vadd.f32 %v153, %v843
  %v955 = vadd.f32 %v154, %v848
  %v956 = vadd.f32 %v155, %v851
  %v957 = vadd.f32 %v156, %v856
  %v958 = vadd.f32 %v157, %v859
  %v959 = vadd.f32 %v158, %v864
  %v960 = vadd.f32 %v159, %v867
  %v961 = vadd.f32 %v160, %v872
  %v962 = vadd.f32 %v161, %v875
  %v963 = vadd.f32 %v162, %v880
  %v964 = vadd.f32 %v163, %v883
  %v965 = vadd.f32 %v164, %v888
  %966 = vst [vmem:[#allocation2] sm:$0xff] %v893
  %967 = vst [vmem:[#allocation2 + $0x8] sm:$0xff] %v894
  %968 = vst [vmem:[#allocation2 + $0x10] sm:$0xff] %v895
  %969 = vst [vmem:[#allocation2 + $0x18] sm:$0xff] %v896
  %970 = vst [vmem:[#allocation2 + $0x20] sm:$0xff] %v897
  %971 = vst [vmem:[#allocation2 + $0x28] sm:$0xff] %v898
  %972 = vst [vmem:[#allocation2 + $0x30] sm:$0xff] %v899
  %973 = vst [vmem:[#allocation2 + $0x38] sm:$0xff] %v900
  %974 = vst [vmem:[#allocation2 + $0x40] sm:$0xff] %v901
  %975 = vst [vmem:[#allocation2 + $0x48] sm:$0xff] %v902
  %976 = vst [vmem:[#allocation2 + $0x50] sm:$0xff] %v903
  %977 = vst [vmem:[#allocation2 + $0x58] sm:$0xff] %v904
  %978 = vst [vmem:[#allocation2 + $0x60] sm:$0xff] %v905
  %979 = vst [vmem:[#allocation2 + $0x68] sm:$0xff] %v906
  %980 = vst [vmem:[#allocation2 + $0x70] sm:$0xff] %v907
  %981 = vst [vmem:[#allocation2 + $0x78] sm:$0xff] %v908
  %982 = vst [vmem:[#allocation2 + $0x80] sm:$0xff] %v909
  %983 = vst [vmem:[#allocation2 + $0x88] sm:$0xff] %v910
  %984 = vst [vmem:[#allocation2 + $0x90] sm:$0xff] %v911
  %985 = vst [vmem:[#allocation2 + $0x98] sm:$0xff] %v912
  %986 = vst [vmem:[#allocation2 + $0xa0] sm:$0xff] %v913
  %987 = vst [vmem:[#allocation2 + $0xa8] sm:$0xff] %v914
  %988 = vst [vmem:[#allocation2 + $0xb0] sm:$0xff] %v915
  %989 = vst [vmem:[#allocation2 + $0xb8] sm:$0xff] %v916
  %990 = vst [vmem:[#allocation2 + $0xc0] sm:$0xff] %v917
  %991 = vst [vmem:[#allocation2 + $0xc8] sm:$0xff] %v918
  %992 = vst [vmem:[#allocation2 + $0xd0] sm:$0xff] %v919
  %993 = vst [vmem:[#allocation2 + $0xd8] sm:$0xff] %v920
  %994 = vst [vmem:[#allocation2 + $0xe0] sm:$0xff] %v921
  %995 = vst [vmem:[#allocation2 + $0xe8] sm:$0xff] %v922
  %996 = vst [vmem:[#allocation2 + $0xf0] sm:$0xff] %v923
  %997 = vst [vmem:[#allocation2 + $0xf8] sm:$0xff] %v924
  %998 = vst [vmem:[#allocation2 + $0x100] sm:$0xff] %v925
  %999 = vst [vmem:[#allocation2 + $0x108] sm:$0xff] %v926
  %1000 = vst [vmem:[#allocation2 + $0x110] sm:$0xff] %v927
  %1001 = vst [vmem:[#allocation2 + $0x118] sm:$0xff] %v928
  %1002 = vst [vmem:[#allocation2 + $0x120] sm:$0xff] %v929
  %1003 = vst [vmem:[#allocation2 + $0x128] sm:$0xff] %v930
  %1004 = vst [vmem:[#allocation2 + $0x130] sm:$0xff] %v931
  %1005 = vst [vmem:[#allocation2 + $0x138] sm:$0xff] %v932
  %1006 = vst [vmem:[#allocation2 + $0x140] sm:$0xff] %v933
  %1007 = vst [vmem:[#allocation2 + $0x148] sm:$0xff] %v934
  %1008 = vst [vmem:[#allocation2 + $0x150] sm:$0xff] %v935
  %1009 = vst [vmem:[#allocation2 + $0x158] sm:$0xff] %v936
  %1010 = vst [vmem:[#allocation2 + $0x160] sm:$0xff] %v937
  %1011 = vst [vmem:[#allocation2 + $0x168] sm:$0xff] %v938
  %1012 = vst [vmem:[#allocation2 + $0x170] sm:$0xff] %v939
  %1013 = vst [vmem:[#allocation2 + $0x178] sm:$0xff] %v940
  %1014 = vst [vmem:[#allocation2 + $0x180] sm:$0xff] %v941
  %1015 = vst [vmem:[#allocation2 + $0x188] sm:$0xff] %v942
  %1016 = vst [vmem:[#allocation2 + $0x190] sm:$0xff] %v943
  %1017 = vst [vmem:[#allocation2 + $0x198] sm:$0xff] %v944
  %1018 = vst [vmem:[#allocation2 + $0x1a0] sm:$0xff] %v945
  %1019 = vst [vmem:[#allocation2 + $0x1a8] sm:$0xff] %v946
  %1020 = vst [vmem:[#allocation2 + $0x1b0] sm:$0xff] %v947
  %1021 = vst [vmem:[#allocation2 + $0x1b8] sm:$0xff] %v948
  %1022 = vst [vmem:[#allocation2 + $0x1c0] sm:$0xff] %v949
  %1023 = vst [vmem:[#allocation2 + $0x1c8] sm:$0xff] %v950
  %1024 = vst [vmem:[#allocation2 + $0x1d0] sm:$0xff] %v951
  %1025 = vst [vmem:[#allocation2 + $0x1d8] sm:$0xff] %v952
  %1026 = vst [vmem:[#allocation2 + $0x1e0] sm:$0xff] %v953
  %1027 = vst [vmem:[#allocation2 + $0x1e8] sm:$0xff] %v954
  %1028 = vst [vmem:[#allocation2 + $0x1f0] sm:$0xff] %v955
  %1029 = vst [vmem:[#allocation2 + $0x1f8] sm:$0xff] %v956
  %1030 = vst [vmem:[#allocation2 + $0x200] sm:$0xff] %v957
  %1031 = vst [vmem:[#allocation2 + $0x208] sm:$0xff] %v958
  %1032 = vst [vmem:[#allocation2 + $0x210] sm:$0xff] %v959
  %1033 = vst [vmem:[#allocation2 + $0x218] sm:$0xff] %v960
  %1034 = vst [vmem:[#allocation2 + $0x220] sm:$0xff] %v961
  %1035 = vst [vmem:[#allocation2 + $0x228] sm:$0xff] %v962
  %1036 = vst [vmem:[#allocation2 + $0x230] sm:$0xff] %v963
  %1037 = vst [vmem:[#allocation2 + $0x238] sm:$0xff] %v964
  %1038 = vst [vmem:[#allocation2 + $0x240] sm:$0xff] %v965
  // Predicated region
  $region18: #{_lambda_.33} parent=0 // pred_check
    %p1039 = pneg %p15
  $region19: #{_lambda_.33} parent=0 // pred_check_branch
    %1041 = sbr.rel (%p1039) target = $region21
  $region20: #{_lambda_.33} parent=0 // pred_region
    %v1042 = vld [vmem:[#allocation2] sm:$0xff]
    %v1043 = vld [vmem:[#allocation2 + $0x8] sm:$0xff]
    %v1044 = vld [vmem:[#allocation2 + $0x10] sm:$0xff]
    %v1045 = vld [vmem:[#allocation2 + $0x18] sm:$0xff]
    %v1046 = vld [vmem:[#allocation2 + $0x20] sm:$0xff]
    %v1047 = vld [vmem:[#allocation2 + $0x28] sm:$0xff]
    %v1048 = vld [vmem:[#allocation2 + $0x30] sm:$0xff]
    %v1049 = vld [vmem:[#allocation2 + $0x38] sm:$0xff]
    %v1050 = vld [vmem:[#allocation2 + $0x40] sm:$0xff]
    %v1051 = vld [vmem:[#allocation2 + $0x48] sm:$0xff]
    %v1052 = vld [vmem:[#allocation2 + $0x50] sm:$0xff]
    %v1053 = vld [vmem:[#allocation2 + $0x58] sm:$0xff]
    %v1054 = vld [vmem:[#allocation2 + $0x60] sm:$0xff]
    %v1055 = vld [vmem:[#allocation2 + $0x68] sm:$0xff]
    %v1056 = vld [vmem:[#allocation2 + $0x70] sm:$0xff]
    %v1057 = vld [vmem:[#allocation2 + $0x78] sm:$0xff]
    %v1058 = vld [vmem:[#allocation2 + $0x80] sm:$0xff]
    %v1059 = vld [vmem:[#allocation2 + $0x88] sm:$0xff]
    %v1060 = vld [vmem:[#allocation2 + $0x90] sm:$0xff]
    %v1061 = vld [vmem:[#allocation2 + $0x98] sm:$0xff]
    %v1062 = vld [vmem:[#allocation2 + $0xa0] sm:$0xff]
    %v1063 = vld [vmem:[#allocation2 + $0xa8] sm:$0xff]
    %v1064 = vld [vmem:[#allocation2 + $0xb0] sm:$0xff]
    %v1065 = vld [vmem:[#allocation2 + $0xb8] sm:$0xff]
    %v1066 = vld [vmem:[#allocation2 + $0xc0] sm:$0xff]
    %v1067 = vld [vmem:[#allocation2 + $0xc8] sm:$0xff]
    %v1068 = vld [vmem:[#allocation2 + $0xd0] sm:$0xff]
    %v1069 = vld [vmem:[#allocation2 + $0xd8] sm:$0xff]
    %v1070 = vld [vmem:[#allocation2 + $0xe0] sm:$0xff]
    %v1071 = vld [vmem:[#allocation2 + $0xe8] sm:$0xff]
    %v1072 = vld [vmem:[#allocation2 + $0xf0] sm:$0xff]
    %v1073 = vld [vmem:[#allocation2 + $0xf8] sm:$0xff]
    %v1074 = vld [vmem:[#allocation2 + $0x100] sm:$0xff]
    %v1075 = vld [vmem:[#allocation2 + $0x108] sm:$0xff]
    %v1076 = vld [vmem:[#allocation2 + $0x110] sm:$0xff]
    %v1077 = vld [vmem:[#allocation2 + $0x118] sm:$0xff]
    %v1078 = vld [vmem:[#allocation2 + $0x120] sm:$0xff]
    %v1079 = vld [vmem:[#allocation2 + $0x128] sm:$0xff]
    %v1080 = vld [vmem:[#allocation2 + $0x130] sm:$0xff]
    %v1081 = vld [vmem:[#allocation2 + $0x138] sm:$0xff]
    %v1082 = vld [vmem:[#allocation2 + $0x140] sm:$0xff]
    %v1083 = vld [vmem:[#allocation2 + $0x148] sm:$0xff]
    %v1084 = vld [vmem:[#allocation2 + $0x150] sm:$0xff]
    %v1085 = vld [vmem:[#allocation2 + $0x158] sm:$0xff]
    %v1086 = vld [vmem:[#allocation2 + $0x160] sm:$0xff]
    %v1087 = vld [vmem:[#allocation2 + $0x168] sm:$0xff]
    %v1088 = vld [vmem:[#allocation2 + $0x170] sm:$0xff]
    %v1089 = vld [vmem:[#allocation2 + $0x178] sm:$0xff]
    %v1090 = vld [vmem:[#allocation2 + $0x180] sm:$0xff]
    %v1091 = vld [vmem:[#allocation2 + $0x188] sm:$0xff]
    %v1092 = vld [vmem:[#allocation2 + $0x190] sm:$0xff]
    %v1093 = vld [vmem:[#allocation2 + $0x198] sm:$0xff]
    %v1094 = vld [vmem:[#allocation2 + $0x1a0] sm:$0xff]
    %v1095 = vld [vmem:[#allocation2 + $0x1a8] sm:$0xff]
    %v1096 = vld [vmem:[#allocation2 + $0x1b0] sm:$0xff]
    %v1097 = vld [vmem:[#allocation2 + $0x1b8] sm:$0xff]
    %v1098 = vld [vmem:[#allocation2 + $0x1c0] sm:$0xff]
    %v1099 = vld [vmem:[#allocation2 + $0x1c8] sm:$0xff]
    %v1100 = vld [vmem:[#allocation2 + $0x1d0] sm:$0xff]
    %v1101 = vld [vmem:[#allocation2 + $0x1d8] sm:$0xff]
    %v1102 = vld [vmem:[#allocation2 + $0x1e0] sm:$0xff]
    %v1103 = vld [vmem:[#allocation2 + $0x1e8] sm:$0xff]
    %v1104 = vld [vmem:[#allocation2 + $0x1f0] sm:$0xff]
    %v1105 = vld [vmem:[#allocation2 + $0x1f8] sm:$0xff]
    %v1106 = vld [vmem:[#allocation2 + $0x200] sm:$0xff]
    %v1107 = vld [vmem:[#allocation2 + $0x208] sm:$0xff]
    %v1108 = vld [vmem:[#allocation2 + $0x210] sm:$0xff]
    %v1109 = vld [vmem:[#allocation2 + $0x218] sm:$0xff]
    %v1110 = vld [vmem:[#allocation2 + $0x220] sm:$0xff]
    %v1111 = vld [vmem:[#allocation2 + $0x228] sm:$0xff]
    %v1112 = vld [vmem:[#allocation2 + $0x230] sm:$0xff]
    %v1113 = vld [vmem:[#allocation2 + $0x238] sm:$0xff]
    %v1114 = vld [vmem:[#allocation2 + $0x240] sm:$0xff]
    %v1115 = vld [vmem:[%s2] sm:$0x1]
    %v1117 = vlaneseq
    %v1118 = vshrl.u32 %v1117, 7
    %v1119 = vsub.s32 0, %v1118
    %v1120 = vrot.slane %v1115, %v1119
    %v1122 = vadd.f32 %v1042, %v1120
    %v1123 = vadd.f32 %v1043, %v1120
    %v1124 = vadd.f32 %v1044, %v1120
    %v1125 = vadd.f32 %v1045, %v1120
    %v1126 = vadd.f32 %v1046, %v1120
    %v1127 = vadd.f32 %v1047, %v1120
    %v1128 = vadd.f32 %v1048, %v1120
    %v1129 = vadd.f32 %v1049, %v1120
    %v1130 = vadd.f32 %v1050, %v1120
    %v1131 = vadd.f32 %v1051, %v1120
    %v1132 = vadd.f32 %v1052, %v1120
    %v1133 = vadd.f32 %v1053, %v1120
    %v1134 = vadd.f32 %v1054, %v1120
    %v1135 = vadd.f32 %v1055, %v1120
    %v1136 = vadd.f32 %v1056, %v1120
    %v1137 = vadd.f32 %v1057, %v1120
    %v1138 = vadd.f32 %v1058, %v1120
    %v1139 = vadd.f32 %v1059, %v1120
    %v1140 = vadd.f32 %v1060, %v1120
    %v1141 = vadd.f32 %v1061, %v1120
    %v1142 = vadd.f32 %v1062, %v1120
    %v1143 = vadd.f32 %v1063, %v1120
    %v1144 = vadd.f32 %v1064, %v1120
    %v1145 = vadd.f32 %v1065, %v1120
    %v1146 = vadd.f32 %v1066, %v1120
    %v1147 = vadd.f32 %v1067, %v1120
    %v1148 = vadd.f32 %v1068, %v1120
    %v1149 = vadd.f32 %v1069, %v1120
    %v1150 = vadd.f32 %v1070, %v1120
    %v1151 = vadd.f32 %v1071, %v1120
    %v1152 = vadd.f32 %v1072, %v1120
    %v1153 = vadd.f32 %v1073, %v1120
    %v1154 = vadd.f32 %v1074, %v1120
    %v1155 = vadd.f32 %v1075, %v1120
    %v1156 = vadd.f32 %v1076, %v1120
    %v1157 = vadd.f32 %v1077, %v1120
    %v1158 = vadd.f32 %v1078, %v1120
    %v1159 = vadd.f32 %v1079, %v1120
    %v1160 = vadd.f32 %v1080, %v1120
    %v1161 = vadd.f32 %v1081, %v1120
    %v1162 = vadd.f32 %v1082, %v1120
    %v1163 = vadd.f32 %v1083, %v1120
    %v1164 = vadd.f32 %v1084, %v1120
    %v1165 = vadd.f32 %v1085, %v1120
    %v1166 = vadd.f32 %v1086, %v1120
    %v1167 = vadd.f32 %v1087, %v1120
    %v1168 = vadd.f32 %v1088, %v1120
    %v1169 = vadd.f32 %v1089, %v1120
    %v1170 = vadd.f32 %v1090, %v1120
    %v1171 = vadd.f32 %v1091, %v1120
    %v1172 = vadd.f32 %v1092, %v1120
    %v1173 = vadd.f32 %v1093, %v1120
    %v1174 = vadd.f32 %v1094, %v1120
    %v1175 = vadd.f32 %v1095, %v1120
    %v1176 = vadd.f32 %v1096, %v1120
    %v1177 = vadd.f32 %v1097, %v1120
    %v1178 = vadd.f32 %v1098, %v1120
    %v1179 = vadd.f32 %v1099, %v1120
    %v1180 = vadd.f32 %v1100, %v1120
    %v1181 = vadd.f32 %v1101, %v1120
    %v1182 = vadd.f32 %v1102, %v1120
    %v1183 = vadd.f32 %v1103, %v1120
    %v1184 = vadd.f32 %v1104, %v1120
    %v1185 = vadd.f32 %v1105, %v1120
    %v1186 = vadd.f32 %v1106, %v1120
    %v1187 = vadd.f32 %v1107, %v1120
    %v1188 = vadd.f32 %v1108, %v1120
    %v1189 = vadd.f32 %v1109, %v1120
    %v1190 = vadd.f32 %v1110, %v1120
    %v1191 = vadd.f32 %v1111, %v1120
    %v1192 = vadd.f32 %v1112, %v1120
    %v1193 = vadd.f32 %v1113, %v1120
    %v1194 = vadd.f32 %v1114, %v1120
    %v1195 = vtanh.pop %v1122
    %v1196 = vtanh.pop %v1123
    %v1197 = vtanh.pop %v1124
    %v1198 = vtanh.pop %v1125
    %v1199 = vtanh.pop %v1126
    %v1200 = vtanh.pop %v1127
    %v1201 = vtanh.pop %v1128
    %v1202 = vtanh.pop %v1129
    %v1203 = vtanh.pop %v1130
    %v1204 = vtanh.pop %v1131
    %v1205 = vtanh.pop %v1132
    %v1206 = vtanh.pop %v1133
    %v1207 = vtanh.pop %v1134
    %v1208 = vtanh.pop %v1135
    %v1209 = vtanh.pop %v1136
    %v1210 = vtanh.pop %v1137
    %v1211 = vtanh.pop %v1138
    %v1212 = vtanh.pop %v1139
    %v1213 = vtanh.pop %v1140
    %v1214 = vtanh.pop %v1141
    %v1215 = vtanh.pop %v1142
    %v1216 = vtanh.pop %v1143
    %v1217 = vtanh.pop %v1144
    %v1218 = vtanh.pop %v1145
    %v1219 = vtanh.pop %v1146
    %v1220 = vtanh.pop %v1147
    %v1221 = vtanh.pop %v1148
    %v1222 = vtanh.pop %v1149
    %v1223 = vtanh.pop %v1150
    %v1224 = vtanh.pop %v1151
    %v1225 = vtanh.pop %v1152
    %v1226 = vtanh.pop %v1153
    %v1227 = vtanh.pop %v1154
    %v1228 = vtanh.pop %v1155
    %v1229 = vtanh.pop %v1156
    %v1230 = vtanh.pop %v1157
    %v1231 = vtanh.pop %v1158
    %v1232 = vtanh.pop %v1159
    %v1233 = vtanh.pop %v1160
    %v1234 = vtanh.pop %v1161
    %v1235 = vtanh.pop %v1162
    %v1236 = vtanh.pop %v1163
    %v1237 = vtanh.pop %v1164
    %v1238 = vtanh.pop %v1165
    %v1239 = vtanh.pop %v1166
    %v1240 = vtanh.pop %v1167
    %v1241 = vtanh.pop %v1168
    %v1242 = vtanh.pop %v1169
    %v1243 = vtanh.pop %v1170
    %v1244 = vtanh.pop %v1171
    %v1245 = vtanh.pop %v1172
    %v1246 = vtanh.pop %v1173
    %v1247 = vtanh.pop %v1174
    %v1248 = vtanh.pop %v1175
    %v1249 = vtanh.pop %v1176
    %v1250 = vtanh.pop %v1177
    %v1251 = vtanh.pop %v1178
    %v1252 = vtanh.pop %v1179
    %v1253 = vtanh.pop %v1180
    %v1254 = vtanh.pop %v1181
    %v1255 = vtanh.pop %v1182
    %v1256 = vtanh.pop %v1183
    %v1257 = vtanh.pop %v1184
    %v1258 = vtanh.pop %v1185
    %v1259 = vtanh.pop %v1186
    %v1260 = vtanh.pop %v1187
    %v1261 = vtanh.pop %v1188
    %v1262 = vtanh.pop %v1189
    %v1263 = vtanh.pop %v1190
    %v1264 = vtanh.pop %v1191
    %v1265 = vtanh.pop %v1192
    %v1266 = vtanh.pop %v1193
    %v1267 = vtanh.pop %v1194
    %1268 = vst [vmem:[%s3] sm:$0xff] %v1195
    %1269 = vst [vmem:[%s3 + $0x8] sm:$0xff] %v1196
    %1270 = vst [vmem:[%s3 + $0x10] sm:$0xff] %v1197
    %1271 = vst [vmem:[%s3 + $0x18] sm:$0xff] %v1198
    %1272 = vst [vmem:[%s3 + $0x20] sm:$0xff] %v1199
    %1273 = vst [vmem:[%s3 + $0x28] sm:$0xff] %v1200
    %1274 = vst [vmem:[%s3 + $0x30] sm:$0xff] %v1201
    %1275 = vst [vmem:[%s3 + $0x38] sm:$0xff] %v1202
    %1276 = vst [vmem:[%s3 + $0x40] sm:$0xff] %v1203
    %1277 = vst [vmem:[%s3 + $0x48] sm:$0xff] %v1204
    %1278 = vst [vmem:[%s3 + $0x50] sm:$0xff] %v1205
    %1279 = vst [vmem:[%s3 + $0x58] sm:$0xff] %v1206
    %1280 = vst [vmem:[%s3 + $0x60] sm:$0xff] %v1207
    %1281 = vst [vmem:[%s3 + $0x68] sm:$0xff] %v1208
    %1282 = vst [vmem:[%s3 + $0x70] sm:$0xff] %v1209
    %1283 = vst [vmem:[%s3 + $0x78] sm:$0xff] %v1210
    %1284 = vst [vmem:[%s3 + $0x80] sm:$0xff] %v1211
    %1285 = vst [vmem:[%s3 + $0x88] sm:$0xff] %v1212
    %1286 = vst [vmem:[%s3 + $0x90] sm:$0xff] %v1213
    %1287 = vst [vmem:[%s3 + $0x98] sm:$0xff] %v1214
    %1288 = vst [vmem:[%s3 + $0xa0] sm:$0xff] %v1215
    %1289 = vst [vmem:[%s3 + $0xa8] sm:$0xff] %v1216
    %1290 = vst [vmem:[%s3 + $0xb0] sm:$0xff] %v1217
    %1291 = vst [vmem:[%s3 + $0xb8] sm:$0xff] %v1218
    %1292 = vst [vmem:[%s3 + $0xc0] sm:$0xff] %v1219
    %1293 = vst [vmem:[%s3 + $0xc8] sm:$0xff] %v1220
    %1294 = vst [vmem:[%s3 + $0xd0] sm:$0xff] %v1221
    %1295 = vst [vmem:[%s3 + $0xd8] sm:$0xff] %v1222
    %1296 = vst [vmem:[%s3 + $0xe0] sm:$0xff] %v1223
    %1297 = vst [vmem:[%s3 + $0xe8] sm:$0xff] %v1224
    %1298 = vst [vmem:[%s3 + $0xf0] sm:$0xff] %v1225
    %1299 = vst [vmem:[%s3 + $0xf8] sm:$0xff] %v1226
    %1300 = vst [vmem:[%s3 + $0x100] sm:$0xff] %v1227
    %1301 = vst [vmem:[%s3 + $0x108] sm:$0xff] %v1228
    %1302 = vst [vmem:[%s3 + $0x110] sm:$0xff] %v1229
    %1303 = vst [vmem:[%s3 + $0x118] sm:$0xff] %v1230
    %1304 = vst [vmem:[%s3 + $0x120] sm:$0xff] %v1231
    %1305 = vst [vmem:[%s3 + $0x128] sm:$0xff] %v1232
    %1306 = vst [vmem:[%s3 + $0x130] sm:$0xff] %v1233
    %1307 = vst [vmem:[%s3 + $0x138] sm:$0xff] %v1234
    %1308 = vst [vmem:[%s3 + $0x140] sm:$0xff] %v1235
    %1309 = vst [vmem:[%s3 + $0x148] sm:$0xff] %v1236
    %1310 = vst [vmem:[%s3 + $0x150] sm:$0xff] %v1237
    %1311 = vst [vmem:[%s3 + $0x158] sm:$0xff] %v1238
    %1312 = vst [vmem:[%s3 + $0x160] sm:$0xff] %v1239
    %1313 = vst [vmem:[%s3 + $0x168] sm:$0xff] %v1240
    %1314 = vst [vmem:[%s3 + $0x170] sm:$0xff] %v1241
    %1315 = vst [vmem:[%s3 + $0x178] sm:$0xff] %v1242
    %1316 = vst [vmem:[%s3 + $0x180] sm:$0xff] %v1243
    %1317 = vst [vmem:[%s3 + $0x188] sm:$0xff] %v1244
    %1318 = vst [vmem:[%s3 + $0x190] sm:$0xff] %v1245
    %1319 = vst [vmem:[%s3 + $0x198] sm:$0xff] %v1246
    %1320 = vst [vmem:[%s3 + $0x1a0] sm:$0xff] %v1247
    %1321 = vst [vmem:[%s3 + $0x1a8] sm:$0xff] %v1248
    %1322 = vst [vmem:[%s3 + $0x1b0] sm:$0xff] %v1249
    %1323 = vst [vmem:[%s3 + $0x1b8] sm:$0xff] %v1250
    %1324 = vst [vmem:[%s3 + $0x1c0] sm:$0xff] %v1251
    %1325 = vst [vmem:[%s3 + $0x1c8] sm:$0xff] %v1252
    %1326 = vst [vmem:[%s3 + $0x1d0] sm:$0xff] %v1253
    %1327 = vst [vmem:[%s3 + $0x1d8] sm:$0xff] %v1254
    %1328 = vst [vmem:[%s3 + $0x1e0] sm:$0xff] %v1255
    %1329 = vst [vmem:[%s3 + $0x1e8] sm:$0xff] %v1256
    %1330 = vst [vmem:[%s3 + $0x1f0] sm:$0xff] %v1257
    %1331 = vst [vmem:[%s3 + $0x1f8] sm:$0xff] %v1258
    %1332 = vst [vmem:[%s3 + $0x200] sm:$0xff] %v1259
    %1333 = vst [vmem:[%s3 + $0x208] sm:$0xff] %v1260
    %1334 = vst [vmem:[%s3 + $0x210] sm:$0xff] %v1261
    %1335 = vst [vmem:[%s3 + $0x218] sm:$0xff] %v1262
    %1336 = vst [vmem:[%s3 + $0x220] sm:$0xff] %v1263
    %1337 = vst [vmem:[%s3 + $0x228] sm:$0xff] %v1264
    %1338 = vst [vmem:[%s3 + $0x230] sm:$0xff] %v1265
    %1339 = vst [vmem:[%s3 + $0x238] sm:$0xff] %v1266
    %1340 = vst [vmem:[%s3 + $0x240] sm:$0xff] %v1267
  $region21: #{_lambda_.33} parent=0 // pred_fallthru
    _
  // Predicated region
  $region22: #{_lambda_.33} parent=0 // pred_check
    _
  $region23: #{_lambda_.33} parent=0 // pred_check_branch
    %1342 = sbr.rel (0) target = $region25
  $region24: #{_lambda_.33} parent=0 // pred_region
    _
  $region25: #{_lambda_.33} parent=0 // pred_fallthru
    _
  // Predicated region
  $region26: #{_lambda_.33} parent=0 // pred_check
    _
  $region27: #{_lambda_.33} parent=0 // pred_check_branch
    %1344 = sbr.rel (0) target = $region29
  $region28: #{_lambda_.33} parent=0 // pred_region
    _
  $region29: #{_lambda_.33} parent=0 // pred_fallthru
    _

</llo_original>
